<compile_context>
chip_gen: v7x
topology: tpu7x:2x2x1
jax: 0.10.0
libtpu: 0.0.40
codegen_flags: <defaults>
</compile_context>

<pallas_src>
import math

import jax
import jax.numpy as jnp
from jax.experimental import pallas as pl
from jax.experimental.pallas import tpu as pltpu


def _mlp_decoder_kernel(x_ref,
                        w0_ref, b0_ref,
                        w1_ref, b1_ref,
                        w2_ref, b2_ref,
                        w3_ref, b3_ref,
                        w4_ref, b4_ref,
                        out_ref):
    """Fused fc0..fc4 forward pass: 4x (Linear + ReLU) then Linear + tanh.

    Weights are bf16; activations / bias adds / ReLU / tanh are f32; matmuls
    accumulate in f32 on the MXU (operands cast to bf16 only at the MXU boundary).
    """
    h = x_ref[...]  # f32 (tm, latent)

    def _linear(h_f32, w_ref, b_ref):
        return jnp.dot(h_f32.astype(jnp.bfloat16), w_ref[...],
                       preferred_element_type=jnp.float32) + b_ref[...]

    h = jnp.maximum(_linear(h, w0_ref, b0_ref), 0.0)
    h = jnp.maximum(_linear(h, w1_ref, b1_ref), 0.0)
    h = jnp.maximum(_linear(h, w2_ref, b2_ref), 0.0)
    h = jnp.maximum(_linear(h, w3_ref, b3_ref), 0.0)
    out_ref[...] = jnp.tanh(_linear(h, w4_ref, b4_ref))


def mesh_verts_decoder_forward(x, params, num_verts):
    """x: (B, latent_size) f32 -> (B, num_verts, 3) f32."""
    B, latent = x.shape
    out_dim = num_verts * 3

    # Row-tile choice: big M tiles amortize the weight DMA / fill the MXU; for tiny
    # batches just round up to the 8-row sublane granule.
    if B >= 256:
        tm = 256
    elif B >= 128:
        tm = 128
    else:
        tm = max(8, ((B + 7) // 8) * 8)
    padded_B = ((B + tm - 1) // tm) * tm
    if padded_B != B:
        x_p = jnp.zeros((padded_B, latent), x.dtype).at[:B].set(x)
    else:
        x_p = x
    grid = (padded_B // tm,)

    # Flatten args: x tile + (w, b) per layer. Weights/biases use a constant (0, 0)
    # index_map so they stay resident in VMEM across all row-tiles of the grid.
    flat_args = [x_p]
    in_specs = [pl.BlockSpec((tm, latent), lambda i: (i, 0))]
    weight_bytes = 0
    bias_bytes = 0
    for (w, b) in params:
        flat_args.append(w)
        flat_args.append(b)
        in_specs.append(pl.BlockSpec(w.shape, lambda i: (0, 0)))
        in_specs.append(pl.BlockSpec(b.shape, lambda i: (0, 0)))
        weight_bytes += w.size * w.dtype.itemsize
        bias_bytes += b.size * b.dtype.itemsize

    out_specs = pl.BlockSpec((tm, out_dim), lambda i: (i, 0))

    # VMEM budget from actual footprint (inputs are double-buffered by the pipeline)
    # + activation working set + headroom; capped below v7x's 64 MiB physical VMEM.
    x_block_bytes = tm * latent * 4
    out_block_bytes = tm * out_dim * 4
    vmem_limit = 2 * (weight_bytes + bias_bytes + x_block_bytes + out_block_bytes)
    vmem_limit += 6 * tm * 1024 * 4          # f32/bf16 activation temporaries
    vmem_limit += 8 * 1024 * 1024            # compiler scratch / headroom
    vmem_limit = min(vmem_limit, 60 * 1024 * 1024)

    flops = 2 * padded_B * (latent * 1024 + 3 * 1024 * 1024 + 1024 * out_dim)
    bytes_accessed = (weight_bytes + bias_bytes
                      + padded_B * latent * 4 + padded_B * out_dim * 4)
    cost = pl.CostEstimate(flops=flops,
                           transcendentals=padded_B * out_dim,
                           bytes_accessed=bytes_accessed)

    out = pl.pallas_call(
        _mlp_decoder_kernel,
        out_shape=jax.ShapeDtypeStruct((padded_B, out_dim), jnp.float32),
        grid_spec=pltpu.PrefetchScalarGridSpec(
            num_scalar_prefetch=0,
            grid=grid,
            in_specs=in_specs,
            out_specs=out_specs,
        ),
        compiler_params=pltpu.CompilerParams(
            dimension_semantics=("parallel",),
            vmem_limit_bytes=vmem_limit,
        ),
        cost_estimate=cost,
    )(*flat_args)

    if padded_B != B:
        out = out[:B]

    # Glue: final view(batchsize, num_verts, 3)
    return out.reshape(B, num_verts, 3)


def init_params(key, latent_size, num_verts):
    """Deterministic init mimicking nn.Linear default (U[-1/sqrt(fan_in), ...]).

    Weights are stored bf16 (HBM-bandwidth win); biases stay f32.
    """
    dims = [(latent_size, 1024), (1024, 1024), (1024, 1024), (1024, 1024),
            (1024, num_verts * 3)]
    params = []
    for (fan_in, fan_out) in dims:
        key, kw, kb = jax.random.split(key, 3)
        bound = 1.0 / math.sqrt(fan_in)
        w = jax.random.uniform(kw, (fan_in, fan_out), jnp.float32, -bound, bound)
        b = jax.random.uniform(kb, (1, fan_out), jnp.float32, -bound, bound)
        params.append((w.astype(jnp.bfloat16), b))
    return params


def reference_forward(x, params, num_verts):
    """Pure-JAX f32 reference of the PyTorch forward (using the bf16-stored weights)."""
    h = x
    for i, (w, b) in enumerate(params):
        h = h @ w.astype(jnp.float32) + b
        if i < 4:
            h = jnp.maximum(h, 0.0)
        else:
            h = jnp.tanh(h)
    return h.reshape(x.shape[0], num_verts, 3)


if __name__ == "__main__":
    # Small shapes consistent with the module: batch=8, latent=32, num_verts=128.
    B = 8
    LATENT = 32
    NUM_VERTS = 128  # -> final feature dim 384 (lane-aligned, multiple of 128)

    key = jax.random.PRNGKey(0)
    key, kx = jax.random.split(key)
    x = jax.random.normal(kx, (B, LATENT), jnp.float32)

    params = init_params(key, LATENT, NUM_VERTS)

    out = mesh_verts_decoder_forward(x, params, NUM_VERTS)
    out = jax.block_until_ready(out)

    ref = reference_forward(x, params, NUM_VERTS)
    assert out.shape == (B, NUM_VERTS, 3)
    # Tolerance relaxed vs pure-f32: activations are rounded to bf16 at the MXU
    # boundary inside the kernel (tanh output is bounded in [-1, 1]).
    assert jnp.allclose(out, ref, atol=2e-2, rtol=2e-2), \
        "Pallas kernel mismatch vs reference"

    print("KERNEL_OK")
</pallas_src>

<mosaic_0001>
module attributes {stable_mosaic.version = 11 : i64} {
  func.func @_mlp_decoder_kernel(%arg0: i32, %arg1: memref<8x32xf32, #tpu.memory_space<vmem>>, %arg2: memref<32x1024xbf16, #tpu.memory_space<vmem>>, %arg3: memref<1x1024xf32, #tpu.memory_space<vmem>>, %arg4: memref<1024x1024xbf16, #tpu.memory_space<vmem>>, %arg5: memref<1x1024xf32, #tpu.memory_space<vmem>>, %arg6: memref<1024x1024xbf16, #tpu.memory_space<vmem>>, %arg7: memref<1x1024xf32, #tpu.memory_space<vmem>>, %arg8: memref<1024x1024xbf16, #tpu.memory_space<vmem>>, %arg9: memref<1x1024xf32, #tpu.memory_space<vmem>>, %arg10: memref<1024x384xbf16, #tpu.memory_space<vmem>>, %arg11: memref<1x384xf32, #tpu.memory_space<vmem>>, %arg12: memref<8x384xf32, #tpu.memory_space<vmem>>) attributes {dimension_semantics = [#tpu.dimension_semantics<parallel>], iteration_bounds = array<i64: 1>, scalar_prefetch = 0 : i64, scratch_operands = 0 : i64, tpu.core_type = #tpu.core_type<tc>, window_params = [{transform_indices = @transform_0, window_bounds = array<i64: 8, 32>}, {pipeline_mode = #tpu.pipeline_mode<synchronous>, transform_indices = @transform_1, window_bounds = array<i64: 32, 1024>}, {pipeline_mode = #tpu.pipeline_mode<synchronous>, transform_indices = @transform_2, window_bounds = array<i64: 1, 1024>}, {pipeline_mode = #tpu.pipeline_mode<synchronous>, transform_indices = @transform_3, window_bounds = array<i64: 1024, 1024>}, {pipeline_mode = #tpu.pipeline_mode<synchronous>, transform_indices = @transform_4, window_bounds = array<i64: 1, 1024>}, {pipeline_mode = #tpu.pipeline_mode<synchronous>, transform_indices = @transform_5, window_bounds = array<i64: 1024, 1024>}, {pipeline_mode = #tpu.pipeline_mode<synchronous>, transform_indices = @transform_6, window_bounds = array<i64: 1, 1024>}, {pipeline_mode = #tpu.pipeline_mode<synchronous>, transform_indices = @transform_7, window_bounds = array<i64: 1024, 1024>}, {pipeline_mode = #tpu.pipeline_mode<synchronous>, transform_indices = @transform_8, window_bounds = array<i64: 1, 1024>}, {pipeline_mode = #tpu.pipeline_mode<synchronous>, transform_indices = @transform_9, window_bounds = array<i64: 1024, 384>}, {pipeline_mode = #tpu.pipeline_mode<synchronous>, transform_indices = @transform_10, window_bounds = array<i64: 1, 384>}, {transform_indices = @transform_11, window_bounds = array<i64: 8, 384>}]} {
    %c0 = arith.constant 0 : index
    %c0_0 = arith.constant 0 : index
    %0 = vector.load %arg1[%c0, %c0_0] : memref<8x32xf32, #tpu.memory_space<vmem>>, vector<8x32xf32>
    %1 = arith.truncf %0 : vector<8x32xf32> to vector<8x32xbf16>
    %c0_1 = arith.constant 0 : index
    %c0_2 = arith.constant 0 : index
    %2 = vector.load %arg2[%c0_1, %c0_2] : memref<32x1024xbf16, #tpu.memory_space<vmem>>, vector<32x1024xbf16>
    %cst = arith.constant dense<0.000000e+00> : vector<8x1024xf32>
    %3 = tpu.matmul %1, %2, %cst {dimension_numbers = #tpu.dot_dimension_numbers<[1], [0], [0], [1], [0, 0, 1, 1], [], []>} : vector<8x32xbf16>, vector<32x1024xbf16>, vector<8x1024xf32> -> vector<8x1024xf32>
    %c0_3 = arith.constant 0 : index
    %c0_4 = arith.constant 0 : index
    %4 = vector.load %arg3[%c0_3, %c0_4] : memref<1x1024xf32, #tpu.memory_space<vmem>>, vector<1x1024xf32>
    %5 = vector.broadcast %4 : vector<1x1024xf32> to vector<8x1024xf32>
    %6 = arith.addf %3, %5 : vector<8x1024xf32>
    %cst_5 = arith.constant 0.000000e+00 : f32
    %7 = vector.broadcast %cst_5 : f32 to vector<8x1024xf32>
    %8 = arith.maximumf %6, %7 : vector<8x1024xf32>
    %9 = arith.truncf %8 : vector<8x1024xf32> to vector<8x1024xbf16>
    %c0_6 = arith.constant 0 : index
    %c0_7 = arith.constant 0 : index
    %10 = vector.load %arg4[%c0_6, %c0_7] : memref<1024x1024xbf16, #tpu.memory_space<vmem>>, vector<1024x1024xbf16>
    %cst_8 = arith.constant dense<0.000000e+00> : vector<8x1024xf32>
    %11 = tpu.matmul %9, %10, %cst_8 {dimension_numbers = #tpu.dot_dimension_numbers<[1], [0], [0], [1], [0, 0, 1, 1], [], []>} : vector<8x1024xbf16>, vector<1024x1024xbf16>, vector<8x1024xf32> -> vector<8x1024xf32>
    %c0_9 = arith.constant 0 : index
    %c0_10 = arith.constant 0 : index
    %12 = vector.load %arg5[%c0_9, %c0_10] : memref<1x1024xf32, #tpu.memory_space<vmem>>, vector<1x1024xf32>
    %13 = vector.broadcast %12 : vector<1x1024xf32> to vector<8x1024xf32>
    %14 = arith.addf %11, %13 : vector<8x1024xf32>
    %cst_11 = arith.constant 0.000000e+00 : f32
    %15 = vector.broadcast %cst_11 : f32 to vector<8x1024xf32>
    %16 = arith.maximumf %14, %15 : vector<8x1024xf32>
    %17 = arith.truncf %16 : vector<8x1024xf32> to vector<8x1024xbf16>
    %c0_12 = arith.constant 0 : index
    %c0_13 = arith.constant 0 : index
    %18 = vector.load %arg6[%c0_12, %c0_13] : memref<1024x1024xbf16, #tpu.memory_space<vmem>>, vector<1024x1024xbf16>
    %cst_14 = arith.constant dense<0.000000e+00> : vector<8x1024xf32>
    %19 = tpu.matmul %17, %18, %cst_14 {dimension_numbers = #tpu.dot_dimension_numbers<[1], [0], [0], [1], [0, 0, 1, 1], [], []>} : vector<8x1024xbf16>, vector<1024x1024xbf16>, vector<8x1024xf32> -> vector<8x1024xf32>
    %c0_15 = arith.constant 0 : index
    %c0_16 = arith.constant 0 : index
    %20 = vector.load %arg7[%c0_15, %c0_16] : memref<1x1024xf32, #tpu.memory_space<vmem>>, vector<1x1024xf32>
    %21 = vector.broadcast %20 : vector<1x1024xf32> to vector<8x1024xf32>
    %22 = arith.addf %19, %21 : vector<8x1024xf32>
    %cst_17 = arith.constant 0.000000e+00 : f32
    %23 = vector.broadcast %cst_17 : f32 to vector<8x1024xf32>
    %24 = arith.maximumf %22, %23 : vector<8x1024xf32>
    %25 = arith.truncf %24 : vector<8x1024xf32> to vector<8x1024xbf16>
    %c0_18 = arith.constant 0 : index
    %c0_19 = arith.constant 0 : index
    %26 = vector.load %arg8[%c0_18, %c0_19] : memref<1024x1024xbf16, #tpu.memory_space<vmem>>, vector<1024x1024xbf16>
    %cst_20 = arith.constant dense<0.000000e+00> : vector<8x1024xf32>
    %27 = tpu.matmul %25, %26, %cst_20 {dimension_numbers = #tpu.dot_dimension_numbers<[1], [0], [0], [1], [0, 0, 1, 1], [], []>} : vector<8x1024xbf16>, vector<1024x1024xbf16>, vector<8x1024xf32> -> vector<8x1024xf32>
    %c0_21 = arith.constant 0 : index
    %c0_22 = arith.constant 0 : index
    %28 = vector.load %arg9[%c0_21, %c0_22] : memref<1x1024xf32, #tpu.memory_space<vmem>>, vector<1x1024xf32>
    %29 = vector.broadcast %28 : vector<1x1024xf32> to vector<8x1024xf32>
    %30 = arith.addf %27, %29 : vector<8x1024xf32>
    %cst_23 = arith.constant 0.000000e+00 : f32
    %31 = vector.broadcast %cst_23 : f32 to vector<8x1024xf32>
    %32 = arith.maximumf %30, %31 : vector<8x1024xf32>
    %33 = arith.truncf %32 : vector<8x1024xf32> to vector<8x1024xbf16>
    %c0_24 = arith.constant 0 : index
    %c0_25 = arith.constant 0 : index
    %34 = vector.load %arg10[%c0_24, %c0_25] : memref<1024x384xbf16, #tpu.memory_space<vmem>>, vector<1024x384xbf16>
    %cst_26 = arith.constant dense<0.000000e+00> : vector<8x384xf32>
    %35 = tpu.matmul %33, %34, %cst_26 {dimension_numbers = #tpu.dot_dimension_numbers<[1], [0], [0], [1], [0, 0, 1, 1], [], []>} : vector<8x1024xbf16>, vector<1024x384xbf16>, vector<8x384xf32> -> vector<8x384xf32>
    %c0_27 = arith.constant 0 : index
    %c0_28 = arith.constant 0 : index
    %36 = vector.load %arg11[%c0_27, %c0_28] : memref<1x384xf32, #tpu.memory_space<vmem>>, vector<1x384xf32>
    %37 = vector.broadcast %36 : vector<1x384xf32> to vector<8x384xf32>
    %38 = arith.addf %35, %37 : vector<8x384xf32>
    %39 = math.tanh %38 : vector<8x384xf32>
    %c0_29 = arith.constant 0 : index
    %c0_30 = arith.constant 0 : index
    %40 = vector.load %arg12[%c0_29, %c0_30] : memref<8x384xf32, #tpu.memory_space<vmem>>, vector<8x384xf32>
    tpu.vector_store %arg12[%c0_29, %c0_30], %39 {strides = array<i32>} : memref<8x384xf32, #tpu.memory_space<vmem>>, vector<8x384xf32>,
    return
  }
  func.func @transform_0(%arg0: i32) -> (i32, i32) {
    %c0_i32 = arith.constant 0 : i32
    %c0_i32_0 = arith.constant 0 : i32
    return %arg0, %c0_i32 : i32, i32
  }
  func.func @transform_1(%arg0: i32) -> (i32, i32) {
    %c0_i32 = arith.constant 0 : i32
    %c0_i32_0 = arith.constant 0 : i32
    %c0_i32_1 = arith.constant 0 : i32
    return %c0_i32, %c0_i32_0 : i32, i32
  }
  func.func @transform_2(%arg0: i32) -> (i32, i32) {
    %c0_i32 = arith.constant 0 : i32
    %c0_i32_0 = arith.constant 0 : i32
    %c0_i32_1 = arith.constant 0 : i32
    return %c0_i32, %c0_i32_0 : i32, i32
  }
  func.func @transform_3(%arg0: i32) -> (i32, i32) {
    %c0_i32 = arith.constant 0 : i32
    %c0_i32_0 = arith.constant 0 : i32
    %c0_i32_1 = arith.constant 0 : i32
    return %c0_i32, %c0_i32_0 : i32, i32
  }
  func.func @transform_4(%arg0: i32) -> (i32, i32) {
    %c0_i32 = arith.constant 0 : i32
    %c0_i32_0 = arith.constant 0 : i32
    %c0_i32_1 = arith.constant 0 : i32
    return %c0_i32, %c0_i32_0 : i32, i32
  }
  func.func @transform_5(%arg0: i32) -> (i32, i32) {
    %c0_i32 = arith.constant 0 : i32
    %c0_i32_0 = arith.constant 0 : i32
    %c0_i32_1 = arith.constant 0 : i32
    return %c0_i32, %c0_i32_0 : i32, i32
  }
  func.func @transform_6(%arg0: i32) -> (i32, i32) {
    %c0_i32 = arith.constant 0 : i32
    %c0_i32_0 = arith.constant 0 : i32
    %c0_i32_1 = arith.constant 0 : i32
    return %c0_i32, %c0_i32_0 : i32, i32
  }
  func.func @transform_7(%arg0: i32) -> (i32, i32) {
    %c0_i32 = arith.constant 0 : i32
    %c0_i32_0 = arith.constant 0 : i32
    %c0_i32_1 = arith.constant 0 : i32
    return %c0_i32, %c0_i32_0 : i32, i32
  }
  func.func @transform_8(%arg0: i32) -> (i32, i32) {
    %c0_i32 = arith.constant 0 : i32
    %c0_i32_0 = arith.constant 0 : i32
    %c0_i32_1 = arith.constant 0 : i32
    return %c0_i32, %c0_i32_0 : i32, i32
  }
  func.func @transform_9(%arg0: i32) -> (i32, i32) {
    %c0_i32 = arith.constant 0 : i32
    %c0_i32_0 = arith.constant 0 : i32
    %c0_i32_1 = arith.constant 0 : i32
    return %c0_i32, %c0_i32_0 : i32, i32
  }
  func.func @transform_10(%arg0: i32) -> (i32, i32) {
    %c0_i32 = arith.constant 0 : i32
    %c0_i32_0 = arith.constant 0 : i32
    %c0_i32_1 = arith.constant 0 : i32
    return %c0_i32, %c0_i32_0 : i32, i32
  }
  func.func @transform_11(%arg0: i32) -> (i32, i32) {
    %c0_i32 = arith.constant 0 : i32
    %c0_i32_0 = arith.constant 0 : i32
    return %arg0, %c0_i32 : i32, i32
  }
}

</mosaic_0001>

<llo_original>
// kernel: tpu_custom_call.1
$region0: #{tpu_custom_call.1}
  #allocation0 [shape = 'u32[]', space=smem, size = 0x4, offset = 0x4, fixed_abs, tag = 'smem constant byte address 0x4 - core index']
  #allocation1 [shape = 'u32[144,128]{1,0:T(1,128)}', space=vmem, size = 0x12000, scoped, tag = 'internal scratch']
  %s0 = inlined_call_operand.hbm [shape: f32[8,32], index: 0, kind: input, shape index: {}]
  %s1 = inlined_call_operand.hbm [shape: bf16[32,1024], index: 1, kind: input, shape index: {}]
  %s2 = inlined_call_operand.hbm [shape: f32[1,1024], index: 2, kind: input, shape index: {}]
  %s3 = inlined_call_operand.hbm [shape: bf16[1024,1024], index: 3, kind: input, shape index: {}]
  %s4 = inlined_call_operand.hbm [shape: f32[1,1024], index: 4, kind: input, shape index: {}]
  %s5 = inlined_call_operand.hbm [shape: bf16[1024,1024], index: 5, kind: input, shape index: {}]
  %s6 = inlined_call_operand.hbm [shape: f32[1,1024], index: 6, kind: input, shape index: {}]
  %s7 = inlined_call_operand.hbm [shape: bf16[1024,1024], index: 7, kind: input, shape index: {}]
  %s8 = inlined_call_operand.hbm [shape: f32[1,1024], index: 8, kind: input, shape index: {}]
  %s9 = inlined_call_operand.hbm [shape: bf16[1024,384], index: 9, kind: input, shape index: {}]
  %s10 = inlined_call_operand.hbm [shape: f32[1,384], index: 10, kind: input, shape index: {}]
  %s11 = inlined_call_operand.hbm [shape: f32[8,384], index: 11, kind: output, shape index: {}]
  %s12 = sld [smem:[#allocation0]]
  $region98: #{tpu_custom_call.1} parent=0
    _
  %s14 = ssub.s32 1, %s12
  %s15 = scalar_select 0, %s14, %s12
  $region1: #{tpu_custom_call.1} parent=0
    #allocation2 [shape = 'u8[4096]{0}', space=vmem, size = 0x1000, scoped, tag = 'input window, operand 0, single buffered']
    #allocation3 [shape = 's32[1]{0}', space=sflag, size = 0x4, scoped, tag = 'scoped memory for tpu_custom_call.1']
    #allocation4 [shape = 's32[1]{0}', space=sflag, size = 0x4, scoped, tag = 'scoped memory for tpu_custom_call.1']
    #allocation5 [shape = 'u8[65536]{0}', space=vmem, size = 0x10000, scoped, tag = 'input window, operand 1, single buffered']
    #allocation6 [shape = 's32[1]{0}', space=sflag, size = 0x4, scoped, tag = 'scoped memory for tpu_custom_call.1']
    #allocation7 [shape = 'u8[4096]{0}', space=vmem, size = 0x1000, scoped, tag = 'input window, operand 2, single buffered']
    #allocation8 [shape = 'u8[2097152]{0}', space=vmem, size = 0x200000, scoped, tag = 'input window, operand 3, single buffered']
    #allocation9 [shape = 's32[1]{0}', space=sflag, size = 0x4, scoped, tag = 'scoped memory for tpu_custom_call.1']
    #allocation10 [shape = 'u8[4096]{0}', space=vmem, size = 0x1000, scoped, tag = 'input window, operand 4, single buffered']
    #allocation11 [shape = 'u8[2097152]{0}', space=vmem, size = 0x200000, scoped, tag = 'input window, operand 5, single buffered']
    #allocation12 [shape = 's32[1]{0}', space=sflag, size = 0x4, scoped, tag = 'scoped memory for tpu_custom_call.1']
    #allocation13 [shape = 'u8[4096]{0}', space=vmem, size = 0x1000, scoped, tag = 'input window, operand 6, single buffered']
    #allocation14 [shape = 'u8[2097152]{0}', space=vmem, size = 0x200000, scoped, tag = 'input window, operand 7, single buffered']
    #allocation15 [shape = 's32[1]{0}', space=sflag, size = 0x4, scoped, tag = 'scoped memory for tpu_custom_call.1']
    #allocation16 [shape = 'u8[4096]{0}', space=vmem, size = 0x1000, scoped, tag = 'input window, operand 8, single buffered']
    #allocation17 [shape = 'u8[786432]{0}', space=vmem, size = 0xc0000, scoped, tag = 'input window, operand 9, single buffered']
    #allocation18 [shape = 's32[1]{0}', space=sflag, size = 0x4, scoped, tag = 'scoped memory for tpu_custom_call.1']
    #allocation19 [shape = 'u8[1536]{0}', space=vmem, size = 0x800, scoped, tag = 'input window, operand 10, single buffered']
    #allocation20 [shape = 'u8[12288]{0}', space=vmem, size = 0x3000, scoped, tag = 'output window, operand 0, single buffered']
    %16 = vsyncpa [#allocation3], 0
    %17 = vsyncpa [#allocation6], 0
    %18 = vsyncpa [#allocation9], 0
    %19 = vsyncpa [#allocation12], 0
    %20 = vsyncpa [#allocation15], 0
    %21 = vsyncpa [#allocation18], 0
    %22 = vsyncpa [#allocation4], 0
    // Predicated region
    $region2: #{tpu_custom_call.1} parent=1 // pred_check
      _
    $region3: #{tpu_custom_call.1} parent=1 // pred_check_branch
      %24 = sbr.rel (0) target = $region5
    $region4: #{tpu_custom_call.1} parent=1 // pred_region
      %s26 = ssub.s32 128, 128
      %27 = vsyncadd [#allocation3], %s26
      %s29 = sshll.u32 [#allocation2], 4
      %s30 = int_to_ptr.vmem [resolvable:$true] %s29
      %32 = dma.hbm_to_vmem [thread:$0]  %s0, 128, %s30, [#allocation3]
    $region5: #{tpu_custom_call.1} parent=1 // pred_fallthru
      _
    // Predicated region
    $region6: #{tpu_custom_call.1} parent=1 // pred_check
      _
    $region7: #{tpu_custom_call.1} parent=1 // pred_check_branch
      %34 = sbr.rel (0) target = $region9
    $region8: #{tpu_custom_call.1} parent=1 // pred_region
      %s36 = ssub.s32 2048, 2048
      %37 = vsyncadd [#allocation6], %s36
      %s38 = sshll.u32 [#allocation5], 4
      %s39 = int_to_ptr.vmem [resolvable:$true] %s38
      %44 = dma.hbm_to_vmem [thread:$0]  %s1, 2048, %s39, [#allocation6], 512, 512, 32
    $region9: #{tpu_custom_call.1} parent=1 // pred_fallthru
      _
    // Predicated region
    $region10: #{tpu_custom_call.1} parent=1 // pred_check
      _
    $region11: #{tpu_custom_call.1} parent=1 // pred_check_branch
      %46 = sbr.rel (0) target = $region13
    $region12: #{tpu_custom_call.1} parent=1 // pred_region
      %s48 = ssub.s32 128, 128
      %49 = vsyncadd [#allocation6], %s48
      %s51 = sshll.u32 [#allocation7], 4
      %s52 = int_to_ptr.vmem [resolvable:$true] %s51
      %54 = dma.hbm_to_vmem [thread:$0]  %s2, 128, %s52, [#allocation6]
    $region13: #{tpu_custom_call.1} parent=1 // pred_fallthru
      _
    // Predicated region
    $region14: #{tpu_custom_call.1} parent=1 // pred_check
      _
    $region15: #{tpu_custom_call.1} parent=1 // pred_check_branch
      %56 = sbr.rel (0) target = $region17
    $region16: #{tpu_custom_call.1} parent=1 // pred_region
      %s58 = ssub.s32 65536, 65536
      %59 = vsyncadd [#allocation9], %s58
      %s60 = sshll.u32 [#allocation8], 4
      %s61 = int_to_ptr.vmem [resolvable:$true] %s60
      %66 = dma.hbm_to_vmem [thread:$0]  %s3, 65536, %s61, [#allocation9], 512, 512, 32
    $region17: #{tpu_custom_call.1} parent=1 // pred_fallthru
      _
    // Predicated region
    $region18: #{tpu_custom_call.1} parent=1 // pred_check
      _
    $region19: #{tpu_custom_call.1} parent=1 // pred_check_branch
      %68 = sbr.rel (0) target = $region21
    $region20: #{tpu_custom_call.1} parent=1 // pred_region
      %s70 = ssub.s32 128, 128
      %71 = vsyncadd [#allocation9], %s70
      %s73 = sshll.u32 [#allocation10], 4
      %s74 = int_to_ptr.vmem [resolvable:$true] %s73
      %76 = dma.hbm_to_vmem [thread:$0]  %s4, 128, %s74, [#allocation9]
    $region21: #{tpu_custom_call.1} parent=1 // pred_fallthru
      _
    // Predicated region
    $region22: #{tpu_custom_call.1} parent=1 // pred_check
      _
    $region23: #{tpu_custom_call.1} parent=1 // pred_check_branch
      %78 = sbr.rel (0) target = $region25
    $region24: #{tpu_custom_call.1} parent=1 // pred_region
      %s80 = ssub.s32 65536, 65536
      %81 = vsyncadd [#allocation12], %s80
      %s82 = sshll.u32 [#allocation11], 4
      %s83 = int_to_ptr.vmem [resolvable:$true] %s82
      %88 = dma.hbm_to_vmem [thread:$0]  %s5, 65536, %s83, [#allocation12], 512, 512, 32
    $region25: #{tpu_custom_call.1} parent=1 // pred_fallthru
      _
    // Predicated region
    $region26: #{tpu_custom_call.1} parent=1 // pred_check
      _
    $region27: #{tpu_custom_call.1} parent=1 // pred_check_branch
      %90 = sbr.rel (0) target = $region29
    $region28: #{tpu_custom_call.1} parent=1 // pred_region
      %s92 = ssub.s32 128, 128
      %93 = vsyncadd [#allocation12], %s92
      %s95 = sshll.u32 [#allocation13], 4
      %s96 = int_to_ptr.vmem [resolvable:$true] %s95
      %98 = dma.hbm_to_vmem [thread:$0]  %s6, 128, %s96, [#allocation12]
    $region29: #{tpu_custom_call.1} parent=1 // pred_fallthru
      _
    // Predicated region
    $region30: #{tpu_custom_call.1} parent=1 // pred_check
      _
    $region31: #{tpu_custom_call.1} parent=1 // pred_check_branch
      %100 = sbr.rel (0) target = $region33
    $region32: #{tpu_custom_call.1} parent=1 // pred_region
      %s102 = ssub.s32 65536, 65536
      %103 = vsyncadd [#allocation15], %s102
      %s104 = sshll.u32 [#allocation14], 4
      %s105 = int_to_ptr.vmem [resolvable:$true] %s104
      %110 = dma.hbm_to_vmem [thread:$0]  %s7, 65536, %s105, [#allocation15], 512, 512, 32
    $region33: #{tpu_custom_call.1} parent=1 // pred_fallthru
      _
    // Predicated region
    $region34: #{tpu_custom_call.1} parent=1 // pred_check
      _
    $region35: #{tpu_custom_call.1} parent=1 // pred_check_branch
      %112 = sbr.rel (0) target = $region37
    $region36: #{tpu_custom_call.1} parent=1 // pred_region
      %s114 = ssub.s32 128, 128
      %115 = vsyncadd [#allocation15], %s114
      %s117 = sshll.u32 [#allocation16], 4
      %s118 = int_to_ptr.vmem [resolvable:$true] %s117
      %120 = dma.hbm_to_vmem [thread:$0]  %s8, 128, %s118, [#allocation15]
    $region37: #{tpu_custom_call.1} parent=1 // pred_fallthru
      _
    // Predicated region
    $region38: #{tpu_custom_call.1} parent=1 // pred_check
      _
    $region39: #{tpu_custom_call.1} parent=1 // pred_check_branch
      %122 = sbr.rel (0) target = $region41
    $region40: #{tpu_custom_call.1} parent=1 // pred_region
      %s124 = ssub.s32 24576, 24576
      %125 = vsyncadd [#allocation18], %s124
      %s126 = sshll.u32 [#allocation17], 4
      %s127 = int_to_ptr.vmem [resolvable:$true] %s126
      %132 = dma.hbm_to_vmem [thread:$0]  %s9, 24576, %s127, [#allocation18], 192, 192, 12
    $region41: #{tpu_custom_call.1} parent=1 // pred_fallthru
      _
    // Predicated region
    $region42: #{tpu_custom_call.1} parent=1 // pred_check
      _
    $region43: #{tpu_custom_call.1} parent=1 // pred_check_branch
      %134 = sbr.rel (0) target = $region45
    $region44: #{tpu_custom_call.1} parent=1 // pred_region
      %s136 = ssub.s32 48, 48
      %137 = vsyncadd [#allocation18], %s136
      %s139 = sshll.u32 [#allocation19], 4
      %s140 = int_to_ptr.vmem [resolvable:$true] %s139
      %142 = dma.hbm_to_vmem [thread:$0]  %s10, 48, %s140, [#allocation18]
    $region45: #{tpu_custom_call.1} parent=1 // pred_fallthru
      _
    // Predicated region
    $region46: #{tpu_custom_call.1} parent=1 // pred_check
      _
    $region47: #{tpu_custom_call.1} parent=1 // pred_check_branch
      %144 = sbr.rel (0) target = $region49
    $region48: #{tpu_custom_call.1} parent=1 // pred_region
      %145 = dma.done [#allocation3], 128
    $region49: #{tpu_custom_call.1} parent=1 // pred_fallthru
      _
    // Predicated region
    $region50: #{tpu_custom_call.1} parent=1 // pred_check
      _
    $region51: #{tpu_custom_call.1} parent=1 // pred_check_branch
      %147 = sbr.rel (0) target = $region53
    $region52: #{tpu_custom_call.1} parent=1 // pred_region
      %148 = dma.done [#allocation6], 2048
    $region53: #{tpu_custom_call.1} parent=1 // pred_fallthru
      _
    // Predicated region
    $region54: #{tpu_custom_call.1} parent=1 // pred_check
      _
    $region55: #{tpu_custom_call.1} parent=1 // pred_check_branch
      %150 = sbr.rel (0) target = $region57
    $region56: #{tpu_custom_call.1} parent=1 // pred_region
      %151 = dma.done [#allocation6], 128
    $region57: #{tpu_custom_call.1} parent=1 // pred_fallthru
      _
    // Predicated region
    $region58: #{tpu_custom_call.1} parent=1 // pred_check
      _
    $region59: #{tpu_custom_call.1} parent=1 // pred_check_branch
      %153 = sbr.rel (0) target = $region61
    $region60: #{tpu_custom_call.1} parent=1 // pred_region
      %154 = dma.done [#allocation9], 65536
    $region61: #{tpu_custom_call.1} parent=1 // pred_fallthru
      _
    // Predicated region
    $region62: #{tpu_custom_call.1} parent=1 // pred_check
      _
    $region63: #{tpu_custom_call.1} parent=1 // pred_check_branch
      %156 = sbr.rel (0) target = $region65
    $region64: #{tpu_custom_call.1} parent=1 // pred_region
      %157 = dma.done [#allocation9], 128
    $region65: #{tpu_custom_call.1} parent=1 // pred_fallthru
      _
    // Predicated region
    $region66: #{tpu_custom_call.1} parent=1 // pred_check
      _
    $region67: #{tpu_custom_call.1} parent=1 // pred_check_branch
      %159 = sbr.rel (0) target = $region69
    $region68: #{tpu_custom_call.1} parent=1 // pred_region
      %160 = dma.done [#allocation12], 65536
    $region69: #{tpu_custom_call.1} parent=1 // pred_fallthru
      _
    // Predicated region
    $region70: #{tpu_custom_call.1} parent=1 // pred_check
      _
    $region71: #{tpu_custom_call.1} parent=1 // pred_check_branch
      %162 = sbr.rel (0) target = $region73
    $region72: #{tpu_custom_call.1} parent=1 // pred_region
      %163 = dma.done [#allocation12], 128
    $region73: #{tpu_custom_call.1} parent=1 // pred_fallthru
      _
    // Predicated region
    $region74: #{tpu_custom_call.1} parent=1 // pred_check
      _
    $region75: #{tpu_custom_call.1} parent=1 // pred_check_branch
      %165 = sbr.rel (0) target = $region77
    $region76: #{tpu_custom_call.1} parent=1 // pred_region
      %166 = dma.done [#allocation15], 65536
    $region77: #{tpu_custom_call.1} parent=1 // pred_fallthru
      _
    // Predicated region
    $region78: #{tpu_custom_call.1} parent=1 // pred_check
      _
    $region79: #{tpu_custom_call.1} parent=1 // pred_check_branch
      %168 = sbr.rel (0) target = $region81
    $region80: #{tpu_custom_call.1} parent=1 // pred_region
      %169 = dma.done [#allocation15], 128
    $region81: #{tpu_custom_call.1} parent=1 // pred_fallthru
      _
    // Predicated region
    $region82: #{tpu_custom_call.1} parent=1 // pred_check
      _
    $region83: #{tpu_custom_call.1} parent=1 // pred_check_branch
      %171 = sbr.rel (0) target = $region85
    $region84: #{tpu_custom_call.1} parent=1 // pred_region
      %172 = dma.done [#allocation18], 24576
    $region85: #{tpu_custom_call.1} parent=1 // pred_fallthru
      _
    // Predicated region
    $region86: #{tpu_custom_call.1} parent=1 // pred_check
      _
    $region87: #{tpu_custom_call.1} parent=1 // pred_check_branch
      %174 = sbr.rel (0) target = $region89
    $region88: #{tpu_custom_call.1} parent=1 // pred_region
      %175 = dma.done [#allocation18], 48
    $region89: #{tpu_custom_call.1} parent=1 // pred_fallthru
      _
    %v177 = vld [vmem:[#allocation2] sm:$0xff]
    %v178 = vpack.c.bf16 %v177, %v177
    %v179 = vld [vmem:[#allocation5] sm:$0xff]
    %v180 = vld [vmem:[#allocation5 + $0x8] sm:$0xff]
    %v181 = vld [vmem:[#allocation5 + $0x10] sm:$0xff]
    %v182 = vld [vmem:[#allocation5 + $0x18] sm:$0xff]
    %v183 = vld [vmem:[#allocation5 + $0x20] sm:$0xff]
    %v184 = vld [vmem:[#allocation5 + $0x28] sm:$0xff]
    %v185 = vld [vmem:[#allocation5 + $0x30] sm:$0xff]
    %v186 = vld [vmem:[#allocation5 + $0x38] sm:$0xff]
    %v187 = vld [vmem:[#allocation5 + $0x40] sm:$0xff]
    %v188 = vld [vmem:[#allocation5 + $0x48] sm:$0xff]
    %v189 = vld [vmem:[#allocation5 + $0x50] sm:$0xff]
    %v190 = vld [vmem:[#allocation5 + $0x58] sm:$0xff]
    %v191 = vld [vmem:[#allocation5 + $0x60] sm:$0xff]
    %v192 = vld [vmem:[#allocation5 + $0x68] sm:$0xff]
    %v193 = vld [vmem:[#allocation5 + $0x70] sm:$0xff]
    %v194 = vld [vmem:[#allocation5 + $0x78] sm:$0xff]
    %v195 = vld [vmem:[#allocation7] sm:$0xff]
    %v197 = vlaneseq
    %v198 = vshrl.u32 %v197, 7
    %v199 = vsub.s32 0, %v198
    %v200 = vrot.slane %v195, %v199
    %v201 = vlaneseq
    %v202 = vshrl.u32 %v201, 7
    %v203 = vsub.s32 1, %v202
    %v204 = vrot.slane %v195, %v203
    %v205 = vlaneseq
    %v206 = vshrl.u32 %v205, 7
    %v207 = vsub.s32 2, %v206
    %v208 = vrot.slane %v195, %v207
    %v209 = vlaneseq
    %v210 = vshrl.u32 %v209, 7
    %v211 = vsub.s32 3, %v210
    %v212 = vrot.slane %v195, %v211
    %v213 = vlaneseq
    %v214 = vshrl.u32 %v213, 7
    %v215 = vsub.s32 4, %v214
    %v216 = vrot.slane %v195, %v215
    %v217 = vlaneseq
    %v218 = vshrl.u32 %v217, 7
    %v219 = vsub.s32 5, %v218
    %v220 = vrot.slane %v195, %v219
    %v221 = vlaneseq
    %v222 = vshrl.u32 %v221, 7
    %v223 = vsub.s32 6, %v222
    %v224 = vrot.slane %v195, %v223
    %v225 = vlaneseq
    %v226 = vshrl.u32 %v225, 7
    %v227 = vsub.s32 7, %v226
    %v228 = vrot.slane %v195, %v227
    %v253 = vunpack.c.l.b16 %v179
    %v254 = vunpack.c.h.b16 %v179
    %v255 = vunpack.c.l.b16 %v180
    %v256 = vunpack.c.h.b16 %v180
    %v257 = vunpack.c.l.b16 %v181
    %v258 = vunpack.c.h.b16 %v181
    %v259 = vunpack.c.l.b16 %v182
    %v260 = vunpack.c.h.b16 %v182
    %v261 = vunpack.c.l.b16 %v183
    %v262 = vunpack.c.h.b16 %v183
    %v263 = vunpack.c.l.b16 %v184
    %v264 = vunpack.c.h.b16 %v184
    %v265 = vunpack.c.l.b16 %v185
    %v266 = vunpack.c.h.b16 %v185
    %v267 = vunpack.c.l.b16 %v186
    %v268 = vunpack.c.h.b16 %v186
    %v269 = vunpack.c.l.b16 %v187
    %v270 = vunpack.c.h.b16 %v187
    %v271 = vunpack.c.l.b16 %v188
    %v272 = vunpack.c.h.b16 %v188
    %v273 = vunpack.c.l.b16 %v189
    %v274 = vunpack.c.h.b16 %v189
    %v275 = vunpack.c.l.b16 %v190
    %v276 = vunpack.c.h.b16 %v190
    %v277 = vunpack.c.l.b16 %v191
    %v278 = vunpack.c.h.b16 %v191
    %v279 = vunpack.c.l.b16 %v192
    %v280 = vunpack.c.h.b16 %v192
    %v281 = vunpack.c.l.b16 %v193
    %v282 = vunpack.c.h.b16 %v193
    %v283 = vunpack.c.l.b16 %v194
    %v284 = vunpack.c.h.b16 %v194
    %v285 = vpack.c.b16 %v261, %v253
    %v286 = vpack.c.b16 %v262, %v254
    %v287 = vpack.c.b16 %v263, %v255
    %v288 = vpack.c.b16 %v264, %v256
    %v289 = vpack.c.b16 %v265, %v257
    %v290 = vpack.c.b16 %v266, %v258
    %v291 = vpack.c.b16 %v267, %v259
    %v292 = vpack.c.b16 %v268, %v260
    %v293 = vpack.c.b16 %v277, %v269
    %v294 = vpack.c.b16 %v278, %v270
    %v295 = vpack.c.b16 %v279, %v271
    %v296 = vpack.c.b16 %v280, %v272
    %v297 = vpack.c.b16 %v281, %v273
    %v298 = vpack.c.b16 %v282, %v274
    %v299 = vpack.c.b16 %v283, %v275
    %v300 = vpack.c.b16 %v284, %v276
    %vm317 = vcmask 261120
    %v319 = vsel %vm317, %v178, 0
    %321 = vmatprep.subr.bf16.mxu0 %v286
    %322 = vmatpush1.bf16.msra.mxu0 %v285
    %323 = vmatprep.subr.bf16.mxu0 %v294
    %324 = vmatpush1.bf16.msra.mxu0 %v293
    %325 = vmatprep.subr.bf16.mxu0 0
    %326 = vmatpush1.bf16.msra.mxu0 0
    %327 = vmatprep.subr.bf16.mxu0 0
    %328 = vmatpush1.bf16.msra.mxu0 0
    %329 = vmatprep.subr.bf16.mxu0 0
    %330 = vmatpush1.bf16.msra.mxu0 0
    %331 = vmatprep.subr.bf16.mxu0 0
    %332 = vmatpush1.bf16.msra.mxu0 0
    %333 = vmatprep.subr.bf16.mxu0 0
    %334 = vmatpush1.bf16.msra.mxu0 0
    %335 = vmatprep.subr.bf16.mxu0 0
    %336 = vmatpush1.bf16.msra.mxu0 0
    %337 = vmatprep.subr.bf16.mxu0 0
    %338 = vmatpush1.bf16.msra.mxu0 0
    %339 = vmatprep.subr.bf16.mxu0 0
    %340 = vmatpush1.bf16.msra.mxu0 0
    %341 = vmatprep.subr.bf16.mxu0 0
    %342 = vmatpush1.bf16.msra.mxu0 0
    %343 = vmatprep.subr.bf16.mxu0 0
    %344 = vmatpush1.bf16.msra.mxu0 0
    %345 = vmatprep.subr.bf16.mxu0 0
    %346 = vmatpush1.bf16.msra.mxu0 0
    %347 = vmatprep.subr.bf16.mxu0 0
    %348 = vmatpush1.bf16.msra.mxu0 0
    %349 = vmatprep.subr.bf16.mxu0 0
    %350 = vmatpush1.bf16.msra.mxu0 0
    %351 = vmatprep.subr.bf16.mxu0 0
    %352 = vmatpush1.bf16.msra.mxu0 0
    %353 = vmatprep.mubr.bf16.mxu0 0
    %354 = vmatmul.mubr.bf16.gmra.mrb[0].mxu0 %v319
    %v355 = vpop.f32.mrb[0].mxu0
    %v356 = vadd.f32 %v200, %v355
    %v357 = vpop.f32.mrb[0].mxu0
    %v358 = vadd.f32 %v204, %v357
    %v359 = vpop.f32.mrb[0].mxu0
    %v360 = vpop.f32.mrb[0].mxu0
    %361 = vdwg.mxu0
    %362 = vmatprep.subr.bf16.mxu0 %v288
    %363 = vmatpush1.bf16.msra.mxu0 %v287
    %364 = vmatprep.subr.bf16.mxu0 %v296
    %365 = vmatpush1.bf16.msra.mxu0 %v295
    %366 = vmatprep.subr.bf16.mxu0 0
    %367 = vmatpush1.bf16.msra.mxu0 0
    %368 = vmatprep.subr.bf16.mxu0 0
    %369 = vmatpush1.bf16.msra.mxu0 0
    %370 = vmatprep.subr.bf16.mxu0 0
    %371 = vmatpush1.bf16.msra.mxu0 0
    %372 = vmatprep.subr.bf16.mxu0 0
    %373 = vmatpush1.bf16.msra.mxu0 0
    %374 = vmatprep.subr.bf16.mxu0 0
    %375 = vmatpush1.bf16.msra.mxu0 0
    %376 = vmatprep.subr.bf16.mxu0 0
    %377 = vmatpush1.bf16.msra.mxu0 0
    %378 = vmatprep.subr.bf16.mxu0 0
    %379 = vmatpush1.bf16.msra.mxu0 0
    %380 = vmatprep.subr.bf16.mxu0 0
    %381 = vmatpush1.bf16.msra.mxu0 0
    %382 = vmatprep.subr.bf16.mxu0 0
    %383 = vmatpush1.bf16.msra.mxu0 0
    %384 = vmatprep.subr.bf16.mxu0 0
    %385 = vmatpush1.bf16.msra.mxu0 0
    %386 = vmatprep.subr.bf16.mxu0 0
    %387 = vmatpush1.bf16.msra.mxu0 0
    %388 = vmatprep.subr.bf16.mxu0 0
    %389 = vmatpush1.bf16.msra.mxu0 0
    %390 = vmatprep.subr.bf16.mxu0 0
    %391 = vmatpush1.bf16.msra.mxu0 0
    %392 = vmatprep.subr.bf16.mxu0 0
    %393 = vmatpush1.bf16.msra.mxu0 0
    %394 = vmatprep.mubr.bf16.mxu0 0
    %395 = vmatmul.mubr.bf16.gmra.mrb[0].mxu0 %v319
    %v396 = vpop.f32.mrb[0].mxu0
    %v397 = vadd.f32 %v208, %v396
    %v398 = vpop.f32.mrb[0].mxu0
    %v399 = vadd.f32 %v212, %v398
    %v400 = vpop.f32.mrb[0].mxu0
    %v401 = vpop.f32.mrb[0].mxu0
    %402 = vdwg.mxu0
    %403 = vmatprep.subr.bf16.mxu0 %v290
    %404 = vmatpush1.bf16.msra.mxu0 %v289
    %405 = vmatprep.subr.bf16.mxu0 %v298
    %406 = vmatpush1.bf16.msra.mxu0 %v297
    %407 = vmatprep.subr.bf16.mxu0 0
    %408 = vmatpush1.bf16.msra.mxu0 0
    %409 = vmatprep.subr.bf16.mxu0 0
    %410 = vmatpush1.bf16.msra.mxu0 0
    %411 = vmatprep.subr.bf16.mxu0 0
    %412 = vmatpush1.bf16.msra.mxu0 0
    %413 = vmatprep.subr.bf16.mxu0 0
    %414 = vmatpush1.bf16.msra.mxu0 0
    %415 = vmatprep.subr.bf16.mxu0 0
    %416 = vmatpush1.bf16.msra.mxu0 0
    %417 = vmatprep.subr.bf16.mxu0 0
    %418 = vmatpush1.bf16.msra.mxu0 0
    %419 = vmatprep.subr.bf16.mxu0 0
    %420 = vmatpush1.bf16.msra.mxu0 0
    %421 = vmatprep.subr.bf16.mxu0 0
    %422 = vmatpush1.bf16.msra.mxu0 0
    %423 = vmatprep.subr.bf16.mxu0 0
    %424 = vmatpush1.bf16.msra.mxu0 0
    %425 = vmatprep.subr.bf16.mxu0 0
    %426 = vmatpush1.bf16.msra.mxu0 0
    %427 = vmatprep.subr.bf16.mxu0 0
    %428 = vmatpush1.bf16.msra.mxu0 0
    %429 = vmatprep.subr.bf16.mxu0 0
    %430 = vmatpush1.bf16.msra.mxu0 0
    %431 = vmatprep.subr.bf16.mxu0 0
    %432 = vmatpush1.bf16.msra.mxu0 0
    %433 = vmatprep.subr.bf16.mxu0 0
    %434 = vmatpush1.bf16.msra.mxu0 0
    %435 = vmatprep.mubr.bf16.mxu0 0
    %436 = vmatmul.mubr.bf16.gmra.mrb[0].mxu0 %v319
    %v437 = vpop.f32.mrb[0].mxu0
    %v438 = vadd.f32 %v216, %v437
    %v439 = vpop.f32.mrb[0].mxu0
    %v440 = vadd.f32 %v220, %v439
    %v441 = vpop.f32.mrb[0].mxu0
    %v442 = vpop.f32.mrb[0].mxu0
    %443 = vdwg.mxu0
    %444 = vmatprep.subr.bf16.mxu0 %v292
    %445 = vmatpush1.bf16.msra.mxu0 %v291
    %446 = vmatprep.subr.bf16.mxu0 %v300
    %447 = vmatpush1.bf16.msra.mxu0 %v299
    %448 = vmatprep.subr.bf16.mxu0 0
    %449 = vmatpush1.bf16.msra.mxu0 0
    %450 = vmatprep.subr.bf16.mxu0 0
    %451 = vmatpush1.bf16.msra.mxu0 0
    %452 = vmatprep.subr.bf16.mxu0 0
    %453 = vmatpush1.bf16.msra.mxu0 0
    %454 = vmatprep.subr.bf16.mxu0 0
    %455 = vmatpush1.bf16.msra.mxu0 0
    %456 = vmatprep.subr.bf16.mxu0 0
    %457 = vmatpush1.bf16.msra.mxu0 0
    %458 = vmatprep.subr.bf16.mxu0 0
    %459 = vmatpush1.bf16.msra.mxu0 0
    %460 = vmatprep.subr.bf16.mxu0 0
    %461 = vmatpush1.bf16.msra.mxu0 0
    %462 = vmatprep.subr.bf16.mxu0 0
    %463 = vmatpush1.bf16.msra.mxu0 0
    %464 = vmatprep.subr.bf16.mxu0 0
    %465 = vmatpush1.bf16.msra.mxu0 0
    %466 = vmatprep.subr.bf16.mxu0 0
    %467 = vmatpush1.bf16.msra.mxu0 0
    %468 = vmatprep.subr.bf16.mxu0 0
    %469 = vmatpush1.bf16.msra.mxu0 0
    %470 = vmatprep.subr.bf16.mxu0 0
    %471 = vmatpush1.bf16.msra.mxu0 0
    %472 = vmatprep.subr.bf16.mxu0 0
    %473 = vmatpush1.bf16.msra.mxu0 0
    %474 = vmatprep.subr.bf16.mxu0 0
    %475 = vmatpush1.bf16.msra.mxu0 0
    %476 = vmatprep.mubr.bf16.mxu0 0
    %477 = vmatmul.mubr.bf16.gmra.mrb[0].mxu0 %v319
    %v478 = vpop.f32.mrb[0].mxu0
    %v479 = vadd.f32 %v224, %v478
    %v480 = vpop.f32.mrb[0].mxu0
    %v481 = vadd.f32 %v228, %v480
    %v482 = vpop.f32.mrb[0].mxu0
    %v483 = vpop.f32.mrb[0].mxu0
    %484 = vdwg.mxu0
    %v485 = vmax.f32 %v356, 0.0
    %v486 = vmax.f32 %v358, 0.0
    %v487 = vmax.f32 %v397, 0.0
    %v488 = vmax.f32 %v399, 0.0
    %v489 = vmax.f32 %v438, 0.0
    %v490 = vmax.f32 %v440, 0.0
    %v491 = vmax.f32 %v479, 0.0
    %v492 = vmax.f32 %v481, 0.0
    %v493 = vpack.c.bf16 %v485, %v485
    %v494 = vpack.c.bf16 %v486, %v486
    %v495 = vpack.c.bf16 %v487, %v487
    %v496 = vpack.c.bf16 %v488, %v488
    %v497 = vpack.c.bf16 %v489, %v489
    %v498 = vpack.c.bf16 %v490, %v490
    %v499 = vpack.c.bf16 %v491, %v491
    %v500 = vpack.c.bf16 %v492, %v492
    %v501 = vld [vmem:[#allocation8] sm:$0xff]
    %v502 = vld [vmem:[#allocation8 + $0x8] sm:$0xff]
    %v503 = vld [vmem:[#allocation8 + $0x10] sm:$0xff]
    %v504 = vld [vmem:[#allocation8 + $0x18] sm:$0xff]
    %v505 = vld [vmem:[#allocation8 + $0x20] sm:$0xff]
    %v506 = vld [vmem:[#allocation8 + $0x28] sm:$0xff]
    %v507 = vld [vmem:[#allocation8 + $0x30] sm:$0xff]
    %v508 = vld [vmem:[#allocation8 + $0x38] sm:$0xff]
    %v509 = vld [vmem:[#allocation8 + $0x40] sm:$0xff]
    %v510 = vld [vmem:[#allocation8 + $0x48] sm:$0xff]
    %v511 = vld [vmem:[#allocation8 + $0x50] sm:$0xff]
    %v512 = vld [vmem:[#allocation8 + $0x58] sm:$0xff]
    %v513 = vld [vmem:[#allocation8 + $0x60] sm:$0xff]
    %v514 = vld [vmem:[#allocation8 + $0x68] sm:$0xff]
    %v515 = vld [vmem:[#allocation8 + $0x70] sm:$0xff]
    %v516 = vld [vmem:[#allocation8 + $0x78] sm:$0xff]
    %v517 = vld [vmem:[#allocation8 + $0x80] sm:$0xff]
    %v518 = vld [vmem:[#allocation8 + $0x88] sm:$0xff]
    %v519 = vld [vmem:[#allocation8 + $0x90] sm:$0xff]
    %v520 = vld [vmem:[#allocation8 + $0x98] sm:$0xff]
    %v521 = vld [vmem:[#allocation8 + $0xa0] sm:$0xff]
    %v522 = vld [vmem:[#allocation8 + $0xa8] sm:$0xff]
    %v523 = vld [vmem:[#allocation8 + $0xb0] sm:$0xff]
    %v524 = vld [vmem:[#allocation8 + $0xb8] sm:$0xff]
    %v525 = vld [vmem:[#allocation8 + $0xc0] sm:$0xff]
    %v526 = vld [vmem:[#allocation8 + $0xc8] sm:$0xff]
    %v527 = vld [vmem:[#allocation8 + $0xd0] sm:$0xff]
    %v528 = vld [vmem:[#allocation8 + $0xd8] sm:$0xff]
    %v529 = vld [vmem:[#allocation8 + $0xe0] sm:$0xff]
    %v530 = vld [vmem:[#allocation8 + $0xe8] sm:$0xff]
    %v531 = vld [vmem:[#allocation8 + $0xf0] sm:$0xff]
    %v532 = vld [vmem:[#allocation8 + $0xf8] sm:$0xff]
    %v533 = vld [vmem:[#allocation8 + $0x100] sm:$0xff]
    %v534 = vld [vmem:[#allocation8 + $0x108] sm:$0xff]
    %v535 = vld [vmem:[#allocation8 + $0x110] sm:$0xff]
    %v536 = vld [vmem:[#allocation8 + $0x118] sm:$0xff]
    %v537 = vld [vmem:[#allocation8 + $0x120] sm:$0xff]
    %v538 = vld [vmem:[#allocation8 + $0x128] sm:$0xff]
    %v539 = vld [vmem:[#allocation8 + $0x130] sm:$0xff]
    %v540 = vld [vmem:[#allocation8 + $0x138] sm:$0xff]
    %v541 = vld [vmem:[#allocation8 + $0x140] sm:$0xff]
    %v542 = vld [vmem:[#allocation8 + $0x148] sm:$0xff]
    %v543 = vld [vmem:[#allocation8 + $0x150] sm:$0xff]
    %v544 = vld [vmem:[#allocation8 + $0x158] sm:$0xff]
    %v545 = vld [vmem:[#allocation8 + $0x160] sm:$0xff]
    %v546 = vld [vmem:[#allocation8 + $0x168] sm:$0xff]
    %v547 = vld [vmem:[#allocation8 + $0x170] sm:$0xff]
    %v548 = vld [vmem:[#allocation8 + $0x178] sm:$0xff]
    %v549 = vld [vmem:[#allocation8 + $0x180] sm:$0xff]
    %v550 = vld [vmem:[#allocation8 + $0x188] sm:$0xff]
    %v551 = vld [vmem:[#allocation8 + $0x190] sm:$0xff]
    %v552 = vld [vmem:[#allocation8 + $0x198] sm:$0xff]
    %v553 = vld [vmem:[#allocation8 + $0x1a0] sm:$0xff]
    %v554 = vld [vmem:[#allocation8 + $0x1a8] sm:$0xff]
    %v555 = vld [vmem:[#allocation8 + $0x1b0] sm:$0xff]
    %v556 = vld [vmem:[#allocation8 + $0x1b8] sm:$0xff]
    %v557 = vld [vmem:[#allocation8 + $0x1c0] sm:$0xff]
    %v558 = vld [vmem:[#allocation8 + $0x1c8] sm:$0xff]
    %v559 = vld [vmem:[#allocation8 + $0x1d0] sm:$0xff]
    %v560 = vld [vmem:[#allocation8 + $0x1d8] sm:$0xff]
    %v561 = vld [vmem:[#allocation8 + $0x1e0] sm:$0xff]
    %v562 = vld [vmem:[#allocation8 + $0x1e8] sm:$0xff]
    %v563 = vld [vmem:[#allocation8 + $0x1f0] sm:$0xff]
    %v564 = vld [vmem:[#allocation8 + $0x1f8] sm:$0xff]
    %v565 = vld [vmem:[#allocation8 + $0x200] sm:$0xff]
    %v566 = vld [vmem:[#allocation8 + $0x208] sm:$0xff]
    %v567 = vld [vmem:[#allocation8 + $0x210] sm:$0xff]
    %v568 = vld [vmem:[#allocation8 + $0x218] sm:$0xff]
    %v569 = vld [vmem:[#allocation8 + $0x220] sm:$0xff]
    %v570 = vld [vmem:[#allocation8 + $0x228] sm:$0xff]
    %v571 = vld [vmem:[#allocation8 + $0x230] sm:$0xff]
    %v572 = vld [vmem:[#allocation8 + $0x238] sm:$0xff]
    %v573 = vld [vmem:[#allocation8 + $0x240] sm:$0xff]
    %v574 = vld [vmem:[#allocation8 + $0x248] sm:$0xff]
    %v575 = vld [vmem:[#allocation8 + $0x250] sm:$0xff]
    %v576 = vld [vmem:[#allocation8 + $0x258] sm:$0xff]
    %v577 = vld [vmem:[#allocation8 + $0x260] sm:$0xff]
    %v578 = vld [vmem:[#allocation8 + $0x268] sm:$0xff]
    %v579 = vld [vmem:[#allocation8 + $0x270] sm:$0xff]
    %v580 = vld [vmem:[#allocation8 + $0x278] sm:$0xff]
    %v581 = vld [vmem:[#allocation8 + $0x280] sm:$0xff]
    %v582 = vld [vmem:[#allocation8 + $0x288] sm:$0xff]
    %v583 = vld [vmem:[#allocation8 + $0x290] sm:$0xff]
    %v584 = vld [vmem:[#allocation8 + $0x298] sm:$0xff]
    %v585 = vld [vmem:[#allocation8 + $0x2a0] sm:$0xff]
    %v586 = vld [vmem:[#allocation8 + $0x2a8] sm:$0xff]
    %v587 = vld [vmem:[#allocation8 + $0x2b0] sm:$0xff]
    %v588 = vld [vmem:[#allocation8 + $0x2b8] sm:$0xff]
    %v589 = vld [vmem:[#allocation8 + $0x2c0] sm:$0xff]
    %v590 = vld [vmem:[#allocation8 + $0x2c8] sm:$0xff]
    %v591 = vld [vmem:[#allocation8 + $0x2d0] sm:$0xff]
    %v592 = vld [vmem:[#allocation8 + $0x2d8] sm:$0xff]
    %v593 = vld [vmem:[#allocation8 + $0x2e0] sm:$0xff]
    %v594 = vld [vmem:[#allocation8 + $0x2e8] sm:$0xff]
    %v595 = vld [vmem:[#allocation8 + $0x2f0] sm:$0xff]
    %v596 = vld [vmem:[#allocation8 + $0x2f8] sm:$0xff]
    %v597 = vld [vmem:[#allocation8 + $0x300] sm:$0xff]
    %v598 = vld [vmem:[#allocation8 + $0x308] sm:$0xff]
    %v599 = vld [vmem:[#allocation8 + $0x310] sm:$0xff]
    %v600 = vld [vmem:[#allocation8 + $0x318] sm:$0xff]
    %v601 = vld [vmem:[#allocation8 + $0x320] sm:$0xff]
    %v602 = vld [vmem:[#allocation8 + $0x328] sm:$0xff]
    %v603 = vld [vmem:[#allocation8 + $0x330] sm:$0xff]
    %v604 = vld [vmem:[#allocation8 + $0x338] sm:$0xff]
    %v605 = vld [vmem:[#allocation8 + $0x340] sm:$0xff]
    %v606 = vld [vmem:[#allocation8 + $0x348] sm:$0xff]
    %v607 = vld [vmem:[#allocation8 + $0x350] sm:$0xff]
    %v608 = vld [vmem:[#allocation8 + $0x358] sm:$0xff]
    %v609 = vld [vmem:[#allocation8 + $0x360] sm:$0xff]
    %v610 = vld [vmem:[#allocation8 + $0x368] sm:$0xff]
    %v611 = vld [vmem:[#allocation8 + $0x370] sm:$0xff]
    %v612 = vld [vmem:[#allocation8 + $0x378] sm:$0xff]
    %v613 = vld [vmem:[#allocation8 + $0x380] sm:$0xff]
    %v614 = vld [vmem:[#allocation8 + $0x388] sm:$0xff]
    %v615 = vld [vmem:[#allocation8 + $0x390] sm:$0xff]
    %v616 = vld [vmem:[#allocation8 + $0x398] sm:$0xff]
    %v617 = vld [vmem:[#allocation8 + $0x3a0] sm:$0xff]
    %v618 = vld [vmem:[#allocation8 + $0x3a8] sm:$0xff]
    %v619 = vld [vmem:[#allocation8 + $0x3b0] sm:$0xff]
    %v620 = vld [vmem:[#allocation8 + $0x3b8] sm:$0xff]
    %v621 = vld [vmem:[#allocation8 + $0x3c0] sm:$0xff]
    %v622 = vld [vmem:[#allocation8 + $0x3c8] sm:$0xff]
    %v623 = vld [vmem:[#allocation8 + $0x3d0] sm:$0xff]
    %v624 = vld [vmem:[#allocation8 + $0x3d8] sm:$0xff]
    %v625 = vld [vmem:[#allocation8 + $0x3e0] sm:$0xff]
    %v626 = vld [vmem:[#allocation8 + $0x3e8] sm:$0xff]
    %v627 = vld [vmem:[#allocation8 + $0x3f0] sm:$0xff]
    %v628 = vld [vmem:[#allocation8 + $0x3f8] sm:$0xff]
    %v629 = vld [vmem:[#allocation8 + $0x400] sm:$0xff]
    %v630 = vld [vmem:[#allocation8 + $0x408] sm:$0xff]
    %v631 = vld [vmem:[#allocation8 + $0x410] sm:$0xff]
    %v632 = vld [vmem:[#allocation8 + $0x418] sm:$0xff]
    %v633 = vld [vmem:[#allocation8 + $0x420] sm:$0xff]
    %v634 = vld [vmem:[#allocation8 + $0x428] sm:$0xff]
    %v635 = vld [vmem:[#allocation8 + $0x430] sm:$0xff]
    %v636 = vld [vmem:[#allocation8 + $0x438] sm:$0xff]
    %v637 = vld [vmem:[#allocation8 + $0x440] sm:$0xff]
    %v638 = vld [vmem:[#allocation8 + $0x448] sm:$0xff]
    %v639 = vld [vmem:[#allocation8 + $0x450] sm:$0xff]
    %v640 = vld [vmem:[#allocation8 + $0x458] sm:$0xff]
    %v641 = vld [vmem:[#allocation8 + $0x460] sm:$0xff]
    %v642 = vld [vmem:[#allocation8 + $0x468] sm:$0xff]
    %v643 = vld [vmem:[#allocation8 + $0x470] sm:$0xff]
    %v644 = vld [vmem:[#allocation8 + $0x478] sm:$0xff]
    %v645 = vld [vmem:[#allocation8 + $0x480] sm:$0xff]
    %v646 = vld [vmem:[#allocation8 + $0x488] sm:$0xff]
    %v647 = vld [vmem:[#allocation8 + $0x490] sm:$0xff]
    %v648 = vld [vmem:[#allocation8 + $0x498] sm:$0xff]
    %v649 = vld [vmem:[#allocation8 + $0x4a0] sm:$0xff]
    %v650 = vld [vmem:[#allocation8 + $0x4a8] sm:$0xff]
    %v651 = vld [vmem:[#allocation8 + $0x4b0] sm:$0xff]
    %v652 = vld [vmem:[#allocation8 + $0x4b8] sm:$0xff]
    %v653 = vld [vmem:[#allocation8 + $0x4c0] sm:$0xff]
    %v654 = vld [vmem:[#allocation8 + $0x4c8] sm:$0xff]
    %v655 = vld [vmem:[#allocation8 + $0x4d0] sm:$0xff]
    %v656 = vld [vmem:[#allocation8 + $0x4d8] sm:$0xff]
    %v657 = vld [vmem:[#allocation8 + $0x4e0] sm:$0xff]
    %v658 = vld [vmem:[#allocation8 + $0x4e8] sm:$0xff]
    %v659 = vld [vmem:[#allocation8 + $0x4f0] sm:$0xff]
    %v660 = vld [vmem:[#allocation8 + $0x4f8] sm:$0xff]
    %v661 = vld [vmem:[#allocation8 + $0x500] sm:$0xff]
    %v662 = vld [vmem:[#allocation8 + $0x508] sm:$0xff]
    %v663 = vld [vmem:[#allocation8 + $0x510] sm:$0xff]
    %v664 = vld [vmem:[#allocation8 + $0x518] sm:$0xff]
    %v665 = vld [vmem:[#allocation8 + $0x520] sm:$0xff]
    %v666 = vld [vmem:[#allocation8 + $0x528] sm:$0xff]
    %v667 = vld [vmem:[#allocation8 + $0x530] sm:$0xff]
    %v668 = vld [vmem:[#allocation8 + $0x538] sm:$0xff]
    %v669 = vld [vmem:[#allocation8 + $0x540] sm:$0xff]
    %v670 = vld [vmem:[#allocation8 + $0x548] sm:$0xff]
    %v671 = vld [vmem:[#allocation8 + $0x550] sm:$0xff]
    %v672 = vld [vmem:[#allocation8 + $0x558] sm:$0xff]
    %v673 = vld [vmem:[#allocation8 + $0x560] sm:$0xff]
    %v674 = vld [vmem:[#allocation8 + $0x568] sm:$0xff]
    %v675 = vld [vmem:[#allocation8 + $0x570] sm:$0xff]
    %v676 = vld [vmem:[#allocation8 + $0x578] sm:$0xff]
    %v677 = vld [vmem:[#allocation8 + $0x580] sm:$0xff]
    %v678 = vld [vmem:[#allocation8 + $0x588] sm:$0xff]
    %v679 = vld [vmem:[#allocation8 + $0x590] sm:$0xff]
    %v680 = vld [vmem:[#allocation8 + $0x598] sm:$0xff]
    %v681 = vld [vmem:[#allocation8 + $0x5a0] sm:$0xff]
    %v682 = vld [vmem:[#allocation8 + $0x5a8] sm:$0xff]
    %v683 = vld [vmem:[#allocation8 + $0x5b0] sm:$0xff]
    %v684 = vld [vmem:[#allocation8 + $0x5b8] sm:$0xff]
    %v685 = vld [vmem:[#allocation8 + $0x5c0] sm:$0xff]
    %v686 = vld [vmem:[#allocation8 + $0x5c8] sm:$0xff]
    %v687 = vld [vmem:[#allocation8 + $0x5d0] sm:$0xff]
    %v688 = vld [vmem:[#allocation8 + $0x5d8] sm:$0xff]
    %v689 = vld [vmem:[#allocation8 + $0x5e0] sm:$0xff]
    %v690 = vld [vmem:[#allocation8 + $0x5e8] sm:$0xff]
    %v691 = vld [vmem:[#allocation8 + $0x5f0] sm:$0xff]
    %v692 = vld [vmem:[#allocation8 + $0x5f8] sm:$0xff]
    %v693 = vld [vmem:[#allocation8 + $0x600] sm:$0xff]
    %v694 = vld [vmem:[#allocation8 + $0x608] sm:$0xff]
    %v695 = vld [vmem:[#allocation8 + $0x610] sm:$0xff]
    %v696 = vld [vmem:[#allocation8 + $0x618] sm:$0xff]
    %v697 = vld [vmem:[#allocation8 + $0x620] sm:$0xff]
    %v698 = vld [vmem:[#allocation8 + $0x628] sm:$0xff]
    %v699 = vld [vmem:[#allocation8 + $0x630] sm:$0xff]
    %v700 = vld [vmem:[#allocation8 + $0x638] sm:$0xff]
    %v701 = vld [vmem:[#allocation8 + $0x640] sm:$0xff]
    %v702 = vld [vmem:[#allocation8 + $0x648] sm:$0xff]
    %v703 = vld [vmem:[#allocation8 + $0x650] sm:$0xff]
    %v704 = vld [vmem:[#allocation8 + $0x658] sm:$0xff]
    %v705 = vld [vmem:[#allocation8 + $0x660] sm:$0xff]
    %v706 = vld [vmem:[#allocation8 + $0x668] sm:$0xff]
    %v707 = vld [vmem:[#allocation8 + $0x670] sm:$0xff]
    %v708 = vld [vmem:[#allocation8 + $0x678] sm:$0xff]
    %v709 = vld [vmem:[#allocation8 + $0x680] sm:$0xff]
    %v710 = vld [vmem:[#allocation8 + $0x688] sm:$0xff]
    %v711 = vld [vmem:[#allocation8 + $0x690] sm:$0xff]
    %v712 = vld [vmem:[#allocation8 + $0x698] sm:$0xff]
    %v713 = vld [vmem:[#allocation8 + $0x6a0] sm:$0xff]
    %v714 = vld [vmem:[#allocation8 + $0x6a8] sm:$0xff]
    %v715 = vld [vmem:[#allocation8 + $0x6b0] sm:$0xff]
    %v716 = vld [vmem:[#allocation8 + $0x6b8] sm:$0xff]
    %v717 = vld [vmem:[#allocation8 + $0x6c0] sm:$0xff]
    %v718 = vld [vmem:[#allocation8 + $0x6c8] sm:$0xff]
    %v719 = vld [vmem:[#allocation8 + $0x6d0] sm:$0xff]
    %v720 = vld [vmem:[#allocation8 + $0x6d8] sm:$0xff]
    %v721 = vld [vmem:[#allocation8 + $0x6e0] sm:$0xff]
    %v722 = vld [vmem:[#allocation8 + $0x6e8] sm:$0xff]
    %v723 = vld [vmem:[#allocation8 + $0x6f0] sm:$0xff]
    %v724 = vld [vmem:[#allocation8 + $0x6f8] sm:$0xff]
    %v725 = vld [vmem:[#allocation8 + $0x700] sm:$0xff]
    %v726 = vld [vmem:[#allocation8 + $0x708] sm:$0xff]
    %v727 = vld [vmem:[#allocation8 + $0x710] sm:$0xff]
    %v728 = vld [vmem:[#allocation8 + $0x718] sm:$0xff]
    %v729 = vld [vmem:[#allocation8 + $0x720] sm:$0xff]
    %v730 = vld [vmem:[#allocation8 + $0x728] sm:$0xff]
    %v731 = vld [vmem:[#allocation8 + $0x730] sm:$0xff]
    %v732 = vld [vmem:[#allocation8 + $0x738] sm:$0xff]
    %v733 = vld [vmem:[#allocation8 + $0x740] sm:$0xff]
    %v734 = vld [vmem:[#allocation8 + $0x748] sm:$0xff]
    %v735 = vld [vmem:[#allocation8 + $0x750] sm:$0xff]
    %v736 = vld [vmem:[#allocation8 + $0x758] sm:$0xff]
    %v737 = vld [vmem:[#allocation8 + $0x760] sm:$0xff]
    %v738 = vld [vmem:[#allocation8 + $0x768] sm:$0xff]
    %v739 = vld [vmem:[#allocation8 + $0x770] sm:$0xff]
    %v740 = vld [vmem:[#allocation8 + $0x778] sm:$0xff]
    %v741 = vld [vmem:[#allocation8 + $0x780] sm:$0xff]
    %v742 = vld [vmem:[#allocation8 + $0x788] sm:$0xff]
    %v743 = vld [vmem:[#allocation8 + $0x790] sm:$0xff]
    %v744 = vld [vmem:[#allocation8 + $0x798] sm:$0xff]
    %v745 = vld [vmem:[#allocation8 + $0x7a0] sm:$0xff]
    %v746 = vld [vmem:[#allocation8 + $0x7a8] sm:$0xff]
    %v747 = vld [vmem:[#allocation8 + $0x7b0] sm:$0xff]
    %v748 = vld [vmem:[#allocation8 + $0x7b8] sm:$0xff]
    %v749 = vld [vmem:[#allocation8 + $0x7c0] sm:$0xff]
    %v750 = vld [vmem:[#allocation8 + $0x7c8] sm:$0xff]
    %v751 = vld [vmem:[#allocation8 + $0x7d0] sm:$0xff]
    %v752 = vld [vmem:[#allocation8 + $0x7d8] sm:$0xff]
    %v753 = vld [vmem:[#allocation8 + $0x7e0] sm:$0xff]
    %v754 = vld [vmem:[#allocation8 + $0x7e8] sm:$0xff]
    %v755 = vld [vmem:[#allocation8 + $0x7f0] sm:$0xff]
    %v756 = vld [vmem:[#allocation8 + $0x7f8] sm:$0xff]
    %v757 = vld [vmem:[#allocation8 + $0x800] sm:$0xff]
    %v758 = vld [vmem:[#allocation8 + $0x808] sm:$0xff]
    %v759 = vld [vmem:[#allocation8 + $0x810] sm:$0xff]
    %v760 = vld [vmem:[#allocation8 + $0x818] sm:$0xff]
    %v761 = vld [vmem:[#allocation8 + $0x820] sm:$0xff]
    %v762 = vld [vmem:[#allocation8 + $0x828] sm:$0xff]
    %v763 = vld [vmem:[#allocation8 + $0x830] sm:$0xff]
    %v764 = vld [vmem:[#allocation8 + $0x838] sm:$0xff]
    %v765 = vld [vmem:[#allocation8 + $0x840] sm:$0xff]
    %v766 = vld [vmem:[#allocation8 + $0x848] sm:$0xff]
    %v767 = vld [vmem:[#allocation8 + $0x850] sm:$0xff]
    %v768 = vld [vmem:[#allocation8 + $0x858] sm:$0xff]
    %v769 = vld [vmem:[#allocation8 + $0x860] sm:$0xff]
    %v770 = vld [vmem:[#allocation8 + $0x868] sm:$0xff]
    %v771 = vld [vmem:[#allocation8 + $0x870] sm:$0xff]
    %v772 = vld [vmem:[#allocation8 + $0x878] sm:$0xff]
    %v773 = vld [vmem:[#allocation8 + $0x880] sm:$0xff]
    %v774 = vld [vmem:[#allocation8 + $0x888] sm:$0xff]
    %v775 = vld [vmem:[#allocation8 + $0x890] sm:$0xff]
    %v776 = vld [vmem:[#allocation8 + $0x898] sm:$0xff]
    %v777 = vld [vmem:[#allocation8 + $0x8a0] sm:$0xff]
    %v778 = vld [vmem:[#allocation8 + $0x8a8] sm:$0xff]
    %v779 = vld [vmem:[#allocation8 + $0x8b0] sm:$0xff]
    %v780 = vld [vmem:[#allocation8 + $0x8b8] sm:$0xff]
    %v781 = vld [vmem:[#allocation8 + $0x8c0] sm:$0xff]
    %v782 = vld [vmem:[#allocation8 + $0x8c8] sm:$0xff]
    %v783 = vld [vmem:[#allocation8 + $0x8d0] sm:$0xff]
    %v784 = vld [vmem:[#allocation8 + $0x8d8] sm:$0xff]
    %v785 = vld [vmem:[#allocation8 + $0x8e0] sm:$0xff]
    %v786 = vld [vmem:[#allocation8 + $0x8e8] sm:$0xff]
    %v787 = vld [vmem:[#allocation8 + $0x8f0] sm:$0xff]
    %v788 = vld [vmem:[#allocation8 + $0x8f8] sm:$0xff]
    %v789 = vld [vmem:[#allocation8 + $0x900] sm:$0xff]
    %v790 = vld [vmem:[#allocation8 + $0x908] sm:$0xff]
    %v791 = vld [vmem:[#allocation8 + $0x910] sm:$0xff]
    %v792 = vld [vmem:[#allocation8 + $0x918] sm:$0xff]
    %v793 = vld [vmem:[#allocation8 + $0x920] sm:$0xff]
    %v794 = vld [vmem:[#allocation8 + $0x928] sm:$0xff]
    %v795 = vld [vmem:[#allocation8 + $0x930] sm:$0xff]
    %v796 = vld [vmem:[#allocation8 + $0x938] sm:$0xff]
    %v797 = vld [vmem:[#allocation8 + $0x940] sm:$0xff]
    %v798 = vld [vmem:[#allocation8 + $0x948] sm:$0xff]
    %v799 = vld [vmem:[#allocation8 + $0x950] sm:$0xff]
    %v800 = vld [vmem:[#allocation8 + $0x958] sm:$0xff]
    %v801 = vld [vmem:[#allocation8 + $0x960] sm:$0xff]
    %v802 = vld [vmem:[#allocation8 + $0x968] sm:$0xff]
    %v803 = vld [vmem:[#allocation8 + $0x970] sm:$0xff]
    %v804 = vld [vmem:[#allocation8 + $0x978] sm:$0xff]
    %v805 = vld [vmem:[#allocation8 + $0x980] sm:$0xff]
    %v806 = vld [vmem:[#allocation8 + $0x988] sm:$0xff]
    %v807 = vld [vmem:[#allocation8 + $0x990] sm:$0xff]
    %v808 = vld [vmem:[#allocation8 + $0x998] sm:$0xff]
    %v809 = vld [vmem:[#allocation8 + $0x9a0] sm:$0xff]
    %v810 = vld [vmem:[#allocation8 + $0x9a8] sm:$0xff]
    %v811 = vld [vmem:[#allocation8 + $0x9b0] sm:$0xff]
    %v812 = vld [vmem:[#allocation8 + $0x9b8] sm:$0xff]
    %v813 = vld [vmem:[#allocation8 + $0x9c0] sm:$0xff]
    %v814 = vld [vmem:[#allocation8 + $0x9c8] sm:$0xff]
    %v815 = vld [vmem:[#allocation8 + $0x9d0] sm:$0xff]
    %v816 = vld [vmem:[#allocation8 + $0x9d8] sm:$0xff]
    %v817 = vld [vmem:[#allocation8 + $0x9e0] sm:$0xff]
    %v818 = vld [vmem:[#allocation8 + $0x9e8] sm:$0xff]
    %v819 = vld [vmem:[#allocation8 + $0x9f0] sm:$0xff]
    %v820 = vld [vmem:[#allocation8 + $0x9f8] sm:$0xff]
    %v821 = vld [vmem:[#allocation8 + $0xa00] sm:$0xff]
    %v822 = vld [vmem:[#allocation8 + $0xa08] sm:$0xff]
    %v823 = vld [vmem:[#allocation8 + $0xa10] sm:$0xff]
    %v824 = vld [vmem:[#allocation8 + $0xa18] sm:$0xff]
    %v825 = vld [vmem:[#allocation8 + $0xa20] sm:$0xff]
    %v826 = vld [vmem:[#allocation8 + $0xa28] sm:$0xff]
    %v827 = vld [vmem:[#allocation8 + $0xa30] sm:$0xff]
    %v828 = vld [vmem:[#allocation8 + $0xa38] sm:$0xff]
    %v829 = vld [vmem:[#allocation8 + $0xa40] sm:$0xff]
    %v830 = vld [vmem:[#allocation8 + $0xa48] sm:$0xff]
    %v831 = vld [vmem:[#allocation8 + $0xa50] sm:$0xff]
    %v832 = vld [vmem:[#allocation8 + $0xa58] sm:$0xff]
    %v833 = vld [vmem:[#allocation8 + $0xa60] sm:$0xff]
    %v834 = vld [vmem:[#allocation8 + $0xa68] sm:$0xff]
    %v835 = vld [vmem:[#allocation8 + $0xa70] sm:$0xff]
    %v836 = vld [vmem:[#allocation8 + $0xa78] sm:$0xff]
    %v837 = vld [vmem:[#allocation8 + $0xa80] sm:$0xff]
    %v838 = vld [vmem:[#allocation8 + $0xa88] sm:$0xff]
    %v839 = vld [vmem:[#allocation8 + $0xa90] sm:$0xff]
    %v840 = vld [vmem:[#allocation8 + $0xa98] sm:$0xff]
    %v841 = vld [vmem:[#allocation8 + $0xaa0] sm:$0xff]
    %v842 = vld [vmem:[#allocation8 + $0xaa8] sm:$0xff]
    %v843 = vld [vmem:[#allocation8 + $0xab0] sm:$0xff]
    %v844 = vld [vmem:[#allocation8 + $0xab8] sm:$0xff]
    %v845 = vld [vmem:[#allocation8 + $0xac0] sm:$0xff]
    %v846 = vld [vmem:[#allocation8 + $0xac8] sm:$0xff]
    %v847 = vld [vmem:[#allocation8 + $0xad0] sm:$0xff]
    %v848 = vld [vmem:[#allocation8 + $0xad8] sm:$0xff]
    %v849 = vld [vmem:[#allocation8 + $0xae0] sm:$0xff]
    %v850 = vld [vmem:[#allocation8 + $0xae8] sm:$0xff]
    %v851 = vld [vmem:[#allocation8 + $0xaf0] sm:$0xff]
    %v852 = vld [vmem:[#allocation8 + $0xaf8] sm:$0xff]
    %v853 = vld [vmem:[#allocation8 + $0xb00] sm:$0xff]
    %v854 = vld [vmem:[#allocation8 + $0xb08] sm:$0xff]
    %v855 = vld [vmem:[#allocation8 + $0xb10] sm:$0xff]
    %v856 = vld [vmem:[#allocation8 + $0xb18] sm:$0xff]
    %v857 = vld [vmem:[#allocation8 + $0xb20] sm:$0xff]
    %v858 = vld [vmem:[#allocation8 + $0xb28] sm:$0xff]
    %v859 = vld [vmem:[#allocation8 + $0xb30] sm:$0xff]
    %v860 = vld [vmem:[#allocation8 + $0xb38] sm:$0xff]
    %v861 = vld [vmem:[#allocation8 + $0xb40] sm:$0xff]
    %v862 = vld [vmem:[#allocation8 + $0xb48] sm:$0xff]
    %v863 = vld [vmem:[#allocation8 + $0xb50] sm:$0xff]
    %v864 = vld [vmem:[#allocation8 + $0xb58] sm:$0xff]
    %v865 = vld [vmem:[#allocation8 + $0xb60] sm:$0xff]
    %v866 = vld [vmem:[#allocation8 + $0xb68] sm:$0xff]
    %v867 = vld [vmem:[#allocation8 + $0xb70] sm:$0xff]
    %v868 = vld [vmem:[#allocation8 + $0xb78] sm:$0xff]
    %v869 = vld [vmem:[#allocation8 + $0xb80] sm:$0xff]
    %v870 = vld [vmem:[#allocation8 + $0xb88] sm:$0xff]
    %v871 = vld [vmem:[#allocation8 + $0xb90] sm:$0xff]
    %v872 = vld [vmem:[#allocation8 + $0xb98] sm:$0xff]
    %v873 = vld [vmem:[#allocation8 + $0xba0] sm:$0xff]
    %v874 = vld [vmem:[#allocation8 + $0xba8] sm:$0xff]
    %v875 = vld [vmem:[#allocation8 + $0xbb0] sm:$0xff]
    %v876 = vld [vmem:[#allocation8 + $0xbb8] sm:$0xff]
    %v877 = vld [vmem:[#allocation8 + $0xbc0] sm:$0xff]
    %v878 = vld [vmem:[#allocation8 + $0xbc8] sm:$0xff]
    %v879 = vld [vmem:[#allocation8 + $0xbd0] sm:$0xff]
    %v880 = vld [vmem:[#allocation8 + $0xbd8] sm:$0xff]
    %v881 = vld [vmem:[#allocation8 + $0xbe0] sm:$0xff]
    %v882 = vld [vmem:[#allocation8 + $0xbe8] sm:$0xff]
    %v883 = vld [vmem:[#allocation8 + $0xbf0] sm:$0xff]
    %v884 = vld [vmem:[#allocation8 + $0xbf8] sm:$0xff]
    %v885 = vld [vmem:[#allocation8 + $0xc00] sm:$0xff]
    %v886 = vld [vmem:[#allocation8 + $0xc08] sm:$0xff]
    %v887 = vld [vmem:[#allocation8 + $0xc10] sm:$0xff]
    %v888 = vld [vmem:[#allocation8 + $0xc18] sm:$0xff]
    %v889 = vld [vmem:[#allocation8 + $0xc20] sm:$0xff]
    %v890 = vld [vmem:[#allocation8 + $0xc28] sm:$0xff]
    %v891 = vld [vmem:[#allocation8 + $0xc30] sm:$0xff]
    %v892 = vld [vmem:[#allocation8 + $0xc38] sm:$0xff]
    %v893 = vld [vmem:[#allocation8 + $0xc40] sm:$0xff]
    %v894 = vld [vmem:[#allocation8 + $0xc48] sm:$0xff]
    %v895 = vld [vmem:[#allocation8 + $0xc50] sm:$0xff]
    %v896 = vld [vmem:[#allocation8 + $0xc58] sm:$0xff]
    %v897 = vld [vmem:[#allocation8 + $0xc60] sm:$0xff]
    %v898 = vld [vmem:[#allocation8 + $0xc68] sm:$0xff]
    %v899 = vld [vmem:[#allocation8 + $0xc70] sm:$0xff]
    %v900 = vld [vmem:[#allocation8 + $0xc78] sm:$0xff]
    %v901 = vld [vmem:[#allocation8 + $0xc80] sm:$0xff]
    %v902 = vld [vmem:[#allocation8 + $0xc88] sm:$0xff]
    %v903 = vld [vmem:[#allocation8 + $0xc90] sm:$0xff]
    %v904 = vld [vmem:[#allocation8 + $0xc98] sm:$0xff]
    %v905 = vld [vmem:[#allocation8 + $0xca0] sm:$0xff]
    %v906 = vld [vmem:[#allocation8 + $0xca8] sm:$0xff]
    %v907 = vld [vmem:[#allocation8 + $0xcb0] sm:$0xff]
    %v908 = vld [vmem:[#allocation8 + $0xcb8] sm:$0xff]
    %v909 = vld [vmem:[#allocation8 + $0xcc0] sm:$0xff]
    %v910 = vld [vmem:[#allocation8 + $0xcc8] sm:$0xff]
    %v911 = vld [vmem:[#allocation8 + $0xcd0] sm:$0xff]
    %v912 = vld [vmem:[#allocation8 + $0xcd8] sm:$0xff]
    %v913 = vld [vmem:[#allocation8 + $0xce0] sm:$0xff]
    %v914 = vld [vmem:[#allocation8 + $0xce8] sm:$0xff]
    %v915 = vld [vmem:[#allocation8 + $0xcf0] sm:$0xff]
    %v916 = vld [vmem:[#allocation8 + $0xcf8] sm:$0xff]
    %v917 = vld [vmem:[#allocation8 + $0xd00] sm:$0xff]
    %v918 = vld [vmem:[#allocation8 + $0xd08] sm:$0xff]
    %v919 = vld [vmem:[#allocation8 + $0xd10] sm:$0xff]
    %v920 = vld [vmem:[#allocation8 + $0xd18] sm:$0xff]
    %v921 = vld [vmem:[#allocation8 + $0xd20] sm:$0xff]
    %v922 = vld [vmem:[#allocation8 + $0xd28] sm:$0xff]
    %v923 = vld [vmem:[#allocation8 + $0xd30] sm:$0xff]
    %v924 = vld [vmem:[#allocation8 + $0xd38] sm:$0xff]
    %v925 = vld [vmem:[#allocation8 + $0xd40] sm:$0xff]
    %v926 = vld [vmem:[#allocation8 + $0xd48] sm:$0xff]
    %v927 = vld [vmem:[#allocation8 + $0xd50] sm:$0xff]
    %v928 = vld [vmem:[#allocation8 + $0xd58] sm:$0xff]
    %v929 = vld [vmem:[#allocation8 + $0xd60] sm:$0xff]
    %v930 = vld [vmem:[#allocation8 + $0xd68] sm:$0xff]
    %v931 = vld [vmem:[#allocation8 + $0xd70] sm:$0xff]
    %v932 = vld [vmem:[#allocation8 + $0xd78] sm:$0xff]
    %v933 = vld [vmem:[#allocation8 + $0xd80] sm:$0xff]
    %v934 = vld [vmem:[#allocation8 + $0xd88] sm:$0xff]
    %v935 = vld [vmem:[#allocation8 + $0xd90] sm:$0xff]
    %v936 = vld [vmem:[#allocation8 + $0xd98] sm:$0xff]
    %v937 = vld [vmem:[#allocation8 + $0xda0] sm:$0xff]
    %v938 = vld [vmem:[#allocation8 + $0xda8] sm:$0xff]
    %v939 = vld [vmem:[#allocation8 + $0xdb0] sm:$0xff]
    %v940 = vld [vmem:[#allocation8 + $0xdb8] sm:$0xff]
    %v941 = vld [vmem:[#allocation8 + $0xdc0] sm:$0xff]
    %v942 = vld [vmem:[#allocation8 + $0xdc8] sm:$0xff]
    %v943 = vld [vmem:[#allocation8 + $0xdd0] sm:$0xff]
    %v944 = vld [vmem:[#allocation8 + $0xdd8] sm:$0xff]
    %v945 = vld [vmem:[#allocation8 + $0xde0] sm:$0xff]
    %v946 = vld [vmem:[#allocation8 + $0xde8] sm:$0xff]
    %v947 = vld [vmem:[#allocation8 + $0xdf0] sm:$0xff]
    %v948 = vld [vmem:[#allocation8 + $0xdf8] sm:$0xff]
    %v949 = vld [vmem:[#allocation8 + $0xe00] sm:$0xff]
    %v950 = vld [vmem:[#allocation8 + $0xe08] sm:$0xff]
    %v951 = vld [vmem:[#allocation8 + $0xe10] sm:$0xff]
    %v952 = vld [vmem:[#allocation8 + $0xe18] sm:$0xff]
    %v953 = vld [vmem:[#allocation8 + $0xe20] sm:$0xff]
    %v954 = vld [vmem:[#allocation8 + $0xe28] sm:$0xff]
    %v955 = vld [vmem:[#allocation8 + $0xe30] sm:$0xff]
    %v956 = vld [vmem:[#allocation8 + $0xe38] sm:$0xff]
    %v957 = vld [vmem:[#allocation8 + $0xe40] sm:$0xff]
    %v958 = vld [vmem:[#allocation8 + $0xe48] sm:$0xff]
    %v959 = vld [vmem:[#allocation8 + $0xe50] sm:$0xff]
    %v960 = vld [vmem:[#allocation8 + $0xe58] sm:$0xff]
    %v961 = vld [vmem:[#allocation8 + $0xe60] sm:$0xff]
    %v962 = vld [vmem:[#allocation8 + $0xe68] sm:$0xff]
    %v963 = vld [vmem:[#allocation8 + $0xe70] sm:$0xff]
    %v964 = vld [vmem:[#allocation8 + $0xe78] sm:$0xff]
    %v965 = vld [vmem:[#allocation8 + $0xe80] sm:$0xff]
    %v966 = vld [vmem:[#allocation8 + $0xe88] sm:$0xff]
    %v967 = vld [vmem:[#allocation8 + $0xe90] sm:$0xff]
    %v968 = vld [vmem:[#allocation8 + $0xe98] sm:$0xff]
    %v969 = vld [vmem:[#allocation8 + $0xea0] sm:$0xff]
    %v970 = vld [vmem:[#allocation8 + $0xea8] sm:$0xff]
    %v971 = vld [vmem:[#allocation8 + $0xeb0] sm:$0xff]
    %v972 = vld [vmem:[#allocation8 + $0xeb8] sm:$0xff]
    %v973 = vld [vmem:[#allocation8 + $0xec0] sm:$0xff]
    %v974 = vld [vmem:[#allocation8 + $0xec8] sm:$0xff]
    %v975 = vld [vmem:[#allocation8 + $0xed0] sm:$0xff]
    %v976 = vld [vmem:[#allocation8 + $0xed8] sm:$0xff]
    %v977 = vld [vmem:[#allocation8 + $0xee0] sm:$0xff]
    %v978 = vld [vmem:[#allocation8 + $0xee8] sm:$0xff]
    %v979 = vld [vmem:[#allocation8 + $0xef0] sm:$0xff]
    %v980 = vld [vmem:[#allocation8 + $0xef8] sm:$0xff]
    %v981 = vld [vmem:[#allocation8 + $0xf00] sm:$0xff]
    %v982 = vld [vmem:[#allocation8 + $0xf08] sm:$0xff]
    %v983 = vld [vmem:[#allocation8 + $0xf10] sm:$0xff]
    %v984 = vld [vmem:[#allocation8 + $0xf18] sm:$0xff]
    %v985 = vld [vmem:[#allocation8 + $0xf20] sm:$0xff]
    %v986 = vld [vmem:[#allocation8 + $0xf28] sm:$0xff]
    %v987 = vld [vmem:[#allocation8 + $0xf30] sm:$0xff]
    %v988 = vld [vmem:[#allocation8 + $0xf38] sm:$0xff]
    %v989 = vld [vmem:[#allocation8 + $0xf40] sm:$0xff]
    %v990 = vld [vmem:[#allocation8 + $0xf48] sm:$0xff]
    %v991 = vld [vmem:[#allocation8 + $0xf50] sm:$0xff]
    %v992 = vld [vmem:[#allocation8 + $0xf58] sm:$0xff]
    %v993 = vld [vmem:[#allocation8 + $0xf60] sm:$0xff]
    %v994 = vld [vmem:[#allocation8 + $0xf68] sm:$0xff]
    %v995 = vld [vmem:[#allocation8 + $0xf70] sm:$0xff]
    %v996 = vld [vmem:[#allocation8 + $0xf78] sm:$0xff]
    %v997 = vld [vmem:[#allocation8 + $0xf80] sm:$0xff]
    %v998 = vld [vmem:[#allocation8 + $0xf88] sm:$0xff]
    %v999 = vld [vmem:[#allocation8 + $0xf90] sm:$0xff]
    %v1000 = vld [vmem:[#allocation8 + $0xf98] sm:$0xff]
    %v1001 = vld [vmem:[#allocation8 + $0xfa0] sm:$0xff]
    %v1002 = vld [vmem:[#allocation8 + $0xfa8] sm:$0xff]
    %v1003 = vld [vmem:[#allocation8 + $0xfb0] sm:$0xff]
    %v1004 = vld [vmem:[#allocation8 + $0xfb8] sm:$0xff]
    %v1005 = vld [vmem:[#allocation8 + $0xfc0] sm:$0xff]
    %v1006 = vld [vmem:[#allocation8 + $0xfc8] sm:$0xff]
    %v1007 = vld [vmem:[#allocation8 + $0xfd0] sm:$0xff]
    %v1008 = vld [vmem:[#allocation8 + $0xfd8] sm:$0xff]
    %v1009 = vld [vmem:[#allocation8 + $0xfe0] sm:$0xff]
    %v1010 = vld [vmem:[#allocation8 + $0xfe8] sm:$0xff]
    %v1011 = vld [vmem:[#allocation8 + $0xff0] sm:$0xff]
    %v1012 = vld [vmem:[#allocation8 + $0xff8] sm:$0xff]
    %v1013 = vld [vmem:[#allocation10] sm:$0xff]
    %v1015 = vlaneseq
    %v1016 = vshrl.u32 %v1015, 7
    %v1017 = vsub.s32 0, %v1016
    %v1018 = vrot.slane %v1013, %v1017
    %v1019 = vlaneseq
    %v1020 = vshrl.u32 %v1019, 7
    %v1021 = vsub.s32 1, %v1020
    %v1022 = vrot.slane %v1013, %v1021
    %v1023 = vlaneseq
    %v1024 = vshrl.u32 %v1023, 7
    %v1025 = vsub.s32 2, %v1024
    %v1026 = vrot.slane %v1013, %v1025
    %v1027 = vlaneseq
    %v1028 = vshrl.u32 %v1027, 7
    %v1029 = vsub.s32 3, %v1028
    %v1030 = vrot.slane %v1013, %v1029
    %v1031 = vlaneseq
    %v1032 = vshrl.u32 %v1031, 7
    %v1033 = vsub.s32 4, %v1032
    %v1034 = vrot.slane %v1013, %v1033
    %v1035 = vlaneseq
    %v1036 = vshrl.u32 %v1035, 7
    %v1037 = vsub.s32 5, %v1036
    %v1038 = vrot.slane %v1013, %v1037
    %v1039 = vlaneseq
    %v1040 = vshrl.u32 %v1039, 7
    %v1041 = vsub.s32 6, %v1040
    %v1042 = vrot.slane %v1013, %v1041
    %v1043 = vlaneseq
    %v1044 = vshrl.u32 %v1043, 7
    %v1045 = vsub.s32 7, %v1044
    %v1046 = vrot.slane %v1013, %v1045
    %v1567 = vunpack.c.l.b16 %v501
    %v1568 = vunpack.c.h.b16 %v501
    %v1569 = vunpack.c.l.b16 %v502
    %v1570 = vunpack.c.h.b16 %v502
    %v1571 = vunpack.c.l.b16 %v503
    %v1572 = vunpack.c.h.b16 %v503
    %v1573 = vunpack.c.l.b16 %v504
    %v1574 = vunpack.c.h.b16 %v504
    %v1575 = vunpack.c.l.b16 %v505
    %v1576 = vunpack.c.h.b16 %v505
    %v1577 = vunpack.c.l.b16 %v506
    %v1578 = vunpack.c.h.b16 %v506
    %v1579 = vunpack.c.l.b16 %v507
    %v1580 = vunpack.c.h.b16 %v507
    %v1581 = vunpack.c.l.b16 %v508
    %v1582 = vunpack.c.h.b16 %v508
    %v1583 = vunpack.c.l.b16 %v509
    %v1584 = vunpack.c.h.b16 %v509
    %v1585 = vunpack.c.l.b16 %v510
    %v1586 = vunpack.c.h.b16 %v510
    %v1587 = vunpack.c.l.b16 %v511
    %v1588 = vunpack.c.h.b16 %v511
    %v1589 = vunpack.c.l.b16 %v512
    %v1590 = vunpack.c.h.b16 %v512
    %v1591 = vunpack.c.l.b16 %v513
    %v1592 = vunpack.c.h.b16 %v513
    %v1593 = vunpack.c.l.b16 %v514
    %v1594 = vunpack.c.h.b16 %v514
    %v1595 = vunpack.c.l.b16 %v515
    %v1596 = vunpack.c.h.b16 %v515
    %v1597 = vunpack.c.l.b16 %v516
    %v1598 = vunpack.c.h.b16 %v516
    %v1599 = vunpack.c.l.b16 %v517
    %v1600 = vunpack.c.h.b16 %v517
    %v1601 = vunpack.c.l.b16 %v518
    %v1602 = vunpack.c.h.b16 %v518
    %v1603 = vunpack.c.l.b16 %v519
    %v1604 = vunpack.c.h.b16 %v519
    %v1605 = vunpack.c.l.b16 %v520
    %v1606 = vunpack.c.h.b16 %v520
    %v1607 = vunpack.c.l.b16 %v521
    %v1608 = vunpack.c.h.b16 %v521
    %v1609 = vunpack.c.l.b16 %v522
    %v1610 = vunpack.c.h.b16 %v522
    %v1611 = vunpack.c.l.b16 %v523
    %v1612 = vunpack.c.h.b16 %v523
    %v1613 = vunpack.c.l.b16 %v524
    %v1614 = vunpack.c.h.b16 %v524
    %v1615 = vunpack.c.l.b16 %v525
    %v1616 = vunpack.c.h.b16 %v525
    %v1617 = vunpack.c.l.b16 %v526
    %v1618 = vunpack.c.h.b16 %v526
    %v1619 = vunpack.c.l.b16 %v527
    %v1620 = vunpack.c.h.b16 %v527
    %v1621 = vunpack.c.l.b16 %v528
    %v1622 = vunpack.c.h.b16 %v528
    %v1623 = vunpack.c.l.b16 %v529
    %v1624 = vunpack.c.h.b16 %v529
    %v1625 = vunpack.c.l.b16 %v530
    %v1626 = vunpack.c.h.b16 %v530
    %v1627 = vunpack.c.l.b16 %v531
    %v1628 = vunpack.c.h.b16 %v531
    %v1629 = vunpack.c.l.b16 %v532
    %v1630 = vunpack.c.h.b16 %v532
    %v1631 = vunpack.c.l.b16 %v533
    %v1632 = vunpack.c.h.b16 %v533
    %v1633 = vunpack.c.l.b16 %v534
    %v1634 = vunpack.c.h.b16 %v534
    %v1635 = vunpack.c.l.b16 %v535
    %v1636 = vunpack.c.h.b16 %v535
    %v1637 = vunpack.c.l.b16 %v536
    %v1638 = vunpack.c.h.b16 %v536
    %v1639 = vunpack.c.l.b16 %v537
    %v1640 = vunpack.c.h.b16 %v537
    %v1641 = vunpack.c.l.b16 %v538
    %v1642 = vunpack.c.h.b16 %v538
    %v1643 = vunpack.c.l.b16 %v539
    %v1644 = vunpack.c.h.b16 %v539
    %v1645 = vunpack.c.l.b16 %v540
    %v1646 = vunpack.c.h.b16 %v540
    %v1647 = vunpack.c.l.b16 %v541
    %v1648 = vunpack.c.h.b16 %v541
    %v1649 = vunpack.c.l.b16 %v542
    %v1650 = vunpack.c.h.b16 %v542
    %v1651 = vunpack.c.l.b16 %v543
    %v1652 = vunpack.c.h.b16 %v543
    %v1653 = vunpack.c.l.b16 %v544
    %v1654 = vunpack.c.h.b16 %v544
    %v1655 = vunpack.c.l.b16 %v545
    %v1656 = vunpack.c.h.b16 %v545
    %v1657 = vunpack.c.l.b16 %v546
    %v1658 = vunpack.c.h.b16 %v546
    %v1659 = vunpack.c.l.b16 %v547
    %v1660 = vunpack.c.h.b16 %v547
    %v1661 = vunpack.c.l.b16 %v548
    %v1662 = vunpack.c.h.b16 %v548
    %v1663 = vunpack.c.l.b16 %v549
    %v1664 = vunpack.c.h.b16 %v549
    %v1665 = vunpack.c.l.b16 %v550
    %v1666 = vunpack.c.h.b16 %v550
    %v1667 = vunpack.c.l.b16 %v551
    %v1668 = vunpack.c.h.b16 %v551
    %v1669 = vunpack.c.l.b16 %v552
    %v1670 = vunpack.c.h.b16 %v552
    %v1671 = vunpack.c.l.b16 %v553
    %v1672 = vunpack.c.h.b16 %v553
    %v1673 = vunpack.c.l.b16 %v554
    %v1674 = vunpack.c.h.b16 %v554
    %v1675 = vunpack.c.l.b16 %v555
    %v1676 = vunpack.c.h.b16 %v555
    %v1677 = vunpack.c.l.b16 %v556
    %v1678 = vunpack.c.h.b16 %v556
    %v1679 = vunpack.c.l.b16 %v557
    %v1680 = vunpack.c.h.b16 %v557
    %v1681 = vunpack.c.l.b16 %v558
    %v1682 = vunpack.c.h.b16 %v558
    %v1683 = vunpack.c.l.b16 %v559
    %v1684 = vunpack.c.h.b16 %v559
    %v1685 = vunpack.c.l.b16 %v560
    %v1686 = vunpack.c.h.b16 %v560
    %v1687 = vunpack.c.l.b16 %v561
    %v1688 = vunpack.c.h.b16 %v561
    %v1689 = vunpack.c.l.b16 %v562
    %v1690 = vunpack.c.h.b16 %v562
    %v1691 = vunpack.c.l.b16 %v563
    %v1692 = vunpack.c.h.b16 %v563
    %v1693 = vunpack.c.l.b16 %v564
    %v1694 = vunpack.c.h.b16 %v564
    %v1695 = vunpack.c.l.b16 %v565
    %v1696 = vunpack.c.h.b16 %v565
    %v1697 = vunpack.c.l.b16 %v566
    %v1698 = vunpack.c.h.b16 %v566
    %v1699 = vunpack.c.l.b16 %v567
    %v1700 = vunpack.c.h.b16 %v567
    %v1701 = vunpack.c.l.b16 %v568
    %v1702 = vunpack.c.h.b16 %v568
    %v1703 = vunpack.c.l.b16 %v569
    %v1704 = vunpack.c.h.b16 %v569
    %v1705 = vunpack.c.l.b16 %v570
    %v1706 = vunpack.c.h.b16 %v570
    %v1707 = vunpack.c.l.b16 %v571
    %v1708 = vunpack.c.h.b16 %v571
    %v1709 = vunpack.c.l.b16 %v572
    %v1710 = vunpack.c.h.b16 %v572
    %v1711 = vunpack.c.l.b16 %v573
    %v1712 = vunpack.c.h.b16 %v573
    %v1713 = vunpack.c.l.b16 %v574
    %v1714 = vunpack.c.h.b16 %v574
    %v1715 = vunpack.c.l.b16 %v575
    %v1716 = vunpack.c.h.b16 %v575
    %v1717 = vunpack.c.l.b16 %v576
    %v1718 = vunpack.c.h.b16 %v576
    %v1719 = vunpack.c.l.b16 %v577
    %v1720 = vunpack.c.h.b16 %v577
    %v1721 = vunpack.c.l.b16 %v578
    %v1722 = vunpack.c.h.b16 %v578
    %v1723 = vunpack.c.l.b16 %v579
    %v1724 = vunpack.c.h.b16 %v579
    %v1725 = vunpack.c.l.b16 %v580
    %v1726 = vunpack.c.h.b16 %v580
    %v1727 = vunpack.c.l.b16 %v581
    %v1728 = vunpack.c.h.b16 %v581
    %v1729 = vunpack.c.l.b16 %v582
    %v1730 = vunpack.c.h.b16 %v582
    %v1731 = vunpack.c.l.b16 %v583
    %v1732 = vunpack.c.h.b16 %v583
    %v1733 = vunpack.c.l.b16 %v584
    %v1734 = vunpack.c.h.b16 %v584
    %v1735 = vunpack.c.l.b16 %v585
    %v1736 = vunpack.c.h.b16 %v585
    %v1737 = vunpack.c.l.b16 %v586
    %v1738 = vunpack.c.h.b16 %v586
    %v1739 = vunpack.c.l.b16 %v587
    %v1740 = vunpack.c.h.b16 %v587
    %v1741 = vunpack.c.l.b16 %v588
    %v1742 = vunpack.c.h.b16 %v588
    %v1743 = vunpack.c.l.b16 %v589
    %v1744 = vunpack.c.h.b16 %v589
    %v1745 = vunpack.c.l.b16 %v590
    %v1746 = vunpack.c.h.b16 %v590
    %v1747 = vunpack.c.l.b16 %v591
    %v1748 = vunpack.c.h.b16 %v591
    %v1749 = vunpack.c.l.b16 %v592
    %v1750 = vunpack.c.h.b16 %v592
    %v1751 = vunpack.c.l.b16 %v593
    %v1752 = vunpack.c.h.b16 %v593
    %v1753 = vunpack.c.l.b16 %v594
    %v1754 = vunpack.c.h.b16 %v594
    %v1755 = vunpack.c.l.b16 %v595
    %v1756 = vunpack.c.h.b16 %v595
    %v1757 = vunpack.c.l.b16 %v596
    %v1758 = vunpack.c.h.b16 %v596
    %v1759 = vunpack.c.l.b16 %v597
    %v1760 = vunpack.c.h.b16 %v597
    %v1761 = vunpack.c.l.b16 %v598
    %v1762 = vunpack.c.h.b16 %v598
    %v1763 = vunpack.c.l.b16 %v599
    %v1764 = vunpack.c.h.b16 %v599
    %v1765 = vunpack.c.l.b16 %v600
    %v1766 = vunpack.c.h.b16 %v600
    %v1767 = vunpack.c.l.b16 %v601
    %v1768 = vunpack.c.h.b16 %v601
    %v1769 = vunpack.c.l.b16 %v602
    %v1770 = vunpack.c.h.b16 %v602
    %v1771 = vunpack.c.l.b16 %v603
    %v1772 = vunpack.c.h.b16 %v603
    %v1773 = vunpack.c.l.b16 %v604
    %v1774 = vunpack.c.h.b16 %v604
    %v1775 = vunpack.c.l.b16 %v605
    %v1776 = vunpack.c.h.b16 %v605
    %v1777 = vunpack.c.l.b16 %v606
    %v1778 = vunpack.c.h.b16 %v606
    %v1779 = vunpack.c.l.b16 %v607
    %v1780 = vunpack.c.h.b16 %v607
    %v1781 = vunpack.c.l.b16 %v608
    %v1782 = vunpack.c.h.b16 %v608
    %v1783 = vunpack.c.l.b16 %v609
    %v1784 = vunpack.c.h.b16 %v609
    %v1785 = vunpack.c.l.b16 %v610
    %v1786 = vunpack.c.h.b16 %v610
    %v1787 = vunpack.c.l.b16 %v611
    %v1788 = vunpack.c.h.b16 %v611
    %v1789 = vunpack.c.l.b16 %v612
    %v1790 = vunpack.c.h.b16 %v612
    %v1791 = vunpack.c.l.b16 %v613
    %v1792 = vunpack.c.h.b16 %v613
    %v1793 = vunpack.c.l.b16 %v614
    %v1794 = vunpack.c.h.b16 %v614
    %v1795 = vunpack.c.l.b16 %v615
    %v1796 = vunpack.c.h.b16 %v615
    %v1797 = vunpack.c.l.b16 %v616
    %v1798 = vunpack.c.h.b16 %v616
    %v1799 = vunpack.c.l.b16 %v617
    %v1800 = vunpack.c.h.b16 %v617
    %v1801 = vunpack.c.l.b16 %v618
    %v1802 = vunpack.c.h.b16 %v618
    %v1803 = vunpack.c.l.b16 %v619
    %v1804 = vunpack.c.h.b16 %v619
    %v1805 = vunpack.c.l.b16 %v620
    %v1806 = vunpack.c.h.b16 %v620
    %v1807 = vunpack.c.l.b16 %v621
    %v1808 = vunpack.c.h.b16 %v621
    %v1809 = vunpack.c.l.b16 %v622
    %v1810 = vunpack.c.h.b16 %v622
    %v1811 = vunpack.c.l.b16 %v623
    %v1812 = vunpack.c.h.b16 %v623
    %v1813 = vunpack.c.l.b16 %v624
    %v1814 = vunpack.c.h.b16 %v624
    %v1815 = vunpack.c.l.b16 %v625
    %v1816 = vunpack.c.h.b16 %v625
    %v1817 = vunpack.c.l.b16 %v626
    %v1818 = vunpack.c.h.b16 %v626
    %v1819 = vunpack.c.l.b16 %v627
    %v1820 = vunpack.c.h.b16 %v627
    %v1821 = vunpack.c.l.b16 %v628
    %v1822 = vunpack.c.h.b16 %v628
    %v1823 = vunpack.c.l.b16 %v629
    %v1824 = vunpack.c.h.b16 %v629
    %v1825 = vunpack.c.l.b16 %v630
    %v1826 = vunpack.c.h.b16 %v630
    %v1827 = vunpack.c.l.b16 %v631
    %v1828 = vunpack.c.h.b16 %v631
    %v1829 = vunpack.c.l.b16 %v632
    %v1830 = vunpack.c.h.b16 %v632
    %v1831 = vunpack.c.l.b16 %v633
    %v1832 = vunpack.c.h.b16 %v633
    %v1833 = vunpack.c.l.b16 %v634
    %v1834 = vunpack.c.h.b16 %v634
    %v1835 = vunpack.c.l.b16 %v635
    %v1836 = vunpack.c.h.b16 %v635
    %v1837 = vunpack.c.l.b16 %v636
    %v1838 = vunpack.c.h.b16 %v636
    %v1839 = vunpack.c.l.b16 %v637
    %v1840 = vunpack.c.h.b16 %v637
    %v1841 = vunpack.c.l.b16 %v638
    %v1842 = vunpack.c.h.b16 %v638
    %v1843 = vunpack.c.l.b16 %v639
    %v1844 = vunpack.c.h.b16 %v639
    %v1845 = vunpack.c.l.b16 %v640
    %v1846 = vunpack.c.h.b16 %v640
    %v1847 = vunpack.c.l.b16 %v641
    %v1848 = vunpack.c.h.b16 %v641
    %v1849 = vunpack.c.l.b16 %v642
    %v1850 = vunpack.c.h.b16 %v642
    %v1851 = vunpack.c.l.b16 %v643
    %v1852 = vunpack.c.h.b16 %v643
    %v1853 = vunpack.c.l.b16 %v644
    %v1854 = vunpack.c.h.b16 %v644
    %v1855 = vunpack.c.l.b16 %v645
    %v1856 = vunpack.c.h.b16 %v645
    %v1857 = vunpack.c.l.b16 %v646
    %v1858 = vunpack.c.h.b16 %v646
    %v1859 = vunpack.c.l.b16 %v647
    %v1860 = vunpack.c.h.b16 %v647
    %v1861 = vunpack.c.l.b16 %v648
    %v1862 = vunpack.c.h.b16 %v648
    %v1863 = vunpack.c.l.b16 %v649
    %v1864 = vunpack.c.h.b16 %v649
    %v1865 = vunpack.c.l.b16 %v650
    %v1866 = vunpack.c.h.b16 %v650
    %v1867 = vunpack.c.l.b16 %v651
    %v1868 = vunpack.c.h.b16 %v651
    %v1869 = vunpack.c.l.b16 %v652
    %v1870 = vunpack.c.h.b16 %v652
    %v1871 = vunpack.c.l.b16 %v653
    %v1872 = vunpack.c.h.b16 %v653
    %v1873 = vunpack.c.l.b16 %v654
    %v1874 = vunpack.c.h.b16 %v654
    %v1875 = vunpack.c.l.b16 %v655
    %v1876 = vunpack.c.h.b16 %v655
    %v1877 = vunpack.c.l.b16 %v656
    %v1878 = vunpack.c.h.b16 %v656
    %v1879 = vunpack.c.l.b16 %v657
    %v1880 = vunpack.c.h.b16 %v657
    %v1881 = vunpack.c.l.b16 %v658
    %v1882 = vunpack.c.h.b16 %v658
    %v1883 = vunpack.c.l.b16 %v659
    %v1884 = vunpack.c.h.b16 %v659
    %v1885 = vunpack.c.l.b16 %v660
    %v1886 = vunpack.c.h.b16 %v660
    %v1887 = vunpack.c.l.b16 %v661
    %v1888 = vunpack.c.h.b16 %v661
    %v1889 = vunpack.c.l.b16 %v662
    %v1890 = vunpack.c.h.b16 %v662
    %v1891 = vunpack.c.l.b16 %v663
    %v1892 = vunpack.c.h.b16 %v663
    %v1893 = vunpack.c.l.b16 %v664
    %v1894 = vunpack.c.h.b16 %v664
    %v1895 = vunpack.c.l.b16 %v665
    %v1896 = vunpack.c.h.b16 %v665
    %v1897 = vunpack.c.l.b16 %v666
    %v1898 = vunpack.c.h.b16 %v666
    %v1899 = vunpack.c.l.b16 %v667
    %v1900 = vunpack.c.h.b16 %v667
    %v1901 = vunpack.c.l.b16 %v668
    %v1902 = vunpack.c.h.b16 %v668
    %v1903 = vunpack.c.l.b16 %v669
    %v1904 = vunpack.c.h.b16 %v669
    %v1905 = vunpack.c.l.b16 %v670
    %v1906 = vunpack.c.h.b16 %v670
    %v1907 = vunpack.c.l.b16 %v671
    %v1908 = vunpack.c.h.b16 %v671
    %v1909 = vunpack.c.l.b16 %v672
    %v1910 = vunpack.c.h.b16 %v672
    %v1911 = vunpack.c.l.b16 %v673
    %v1912 = vunpack.c.h.b16 %v673
    %v1913 = vunpack.c.l.b16 %v674
    %v1914 = vunpack.c.h.b16 %v674
    %v1915 = vunpack.c.l.b16 %v675
    %v1916 = vunpack.c.h.b16 %v675
    %v1917 = vunpack.c.l.b16 %v676
    %v1918 = vunpack.c.h.b16 %v676
    %v1919 = vunpack.c.l.b16 %v677
    %v1920 = vunpack.c.h.b16 %v677
    %v1921 = vunpack.c.l.b16 %v678
    %v1922 = vunpack.c.h.b16 %v678
    %v1923 = vunpack.c.l.b16 %v679
    %v1924 = vunpack.c.h.b16 %v679
    %v1925 = vunpack.c.l.b16 %v680
    %v1926 = vunpack.c.h.b16 %v680
    %v1927 = vunpack.c.l.b16 %v681
    %v1928 = vunpack.c.h.b16 %v681
    %v1929 = vunpack.c.l.b16 %v682
    %v1930 = vunpack.c.h.b16 %v682
    %v1931 = vunpack.c.l.b16 %v683
    %v1932 = vunpack.c.h.b16 %v683
    %v1933 = vunpack.c.l.b16 %v684
    %v1934 = vunpack.c.h.b16 %v684
    %v1935 = vunpack.c.l.b16 %v685
    %v1936 = vunpack.c.h.b16 %v685
    %v1937 = vunpack.c.l.b16 %v686
    %v1938 = vunpack.c.h.b16 %v686
    %v1939 = vunpack.c.l.b16 %v687
    %v1940 = vunpack.c.h.b16 %v687
    %v1941 = vunpack.c.l.b16 %v688
    %v1942 = vunpack.c.h.b16 %v688
    %v1943 = vunpack.c.l.b16 %v689
    %v1944 = vunpack.c.h.b16 %v689
    %v1945 = vunpack.c.l.b16 %v690
    %v1946 = vunpack.c.h.b16 %v690
    %v1947 = vunpack.c.l.b16 %v691
    %v1948 = vunpack.c.h.b16 %v691
    %v1949 = vunpack.c.l.b16 %v692
    %v1950 = vunpack.c.h.b16 %v692
    %v1951 = vunpack.c.l.b16 %v693
    %v1952 = vunpack.c.h.b16 %v693
    %v1953 = vunpack.c.l.b16 %v694
    %v1954 = vunpack.c.h.b16 %v694
    %v1955 = vunpack.c.l.b16 %v695
    %v1956 = vunpack.c.h.b16 %v695
    %v1957 = vunpack.c.l.b16 %v696
    %v1958 = vunpack.c.h.b16 %v696
    %v1959 = vunpack.c.l.b16 %v697
    %v1960 = vunpack.c.h.b16 %v697
    %v1961 = vunpack.c.l.b16 %v698
    %v1962 = vunpack.c.h.b16 %v698
    %v1963 = vunpack.c.l.b16 %v699
    %v1964 = vunpack.c.h.b16 %v699
    %v1965 = vunpack.c.l.b16 %v700
    %v1966 = vunpack.c.h.b16 %v700
    %v1967 = vunpack.c.l.b16 %v701
    %v1968 = vunpack.c.h.b16 %v701
    %v1969 = vunpack.c.l.b16 %v702
    %v1970 = vunpack.c.h.b16 %v702
    %v1971 = vunpack.c.l.b16 %v703
    %v1972 = vunpack.c.h.b16 %v703
    %v1973 = vunpack.c.l.b16 %v704
    %v1974 = vunpack.c.h.b16 %v704
    %v1975 = vunpack.c.l.b16 %v705
    %v1976 = vunpack.c.h.b16 %v705
    %v1977 = vunpack.c.l.b16 %v706
    %v1978 = vunpack.c.h.b16 %v706
    %v1979 = vunpack.c.l.b16 %v707
    %v1980 = vunpack.c.h.b16 %v707
    %v1981 = vunpack.c.l.b16 %v708
    %v1982 = vunpack.c.h.b16 %v708
    %v1983 = vunpack.c.l.b16 %v709
    %v1984 = vunpack.c.h.b16 %v709
    %v1985 = vunpack.c.l.b16 %v710
    %v1986 = vunpack.c.h.b16 %v710
    %v1987 = vunpack.c.l.b16 %v711
    %v1988 = vunpack.c.h.b16 %v711
    %v1989 = vunpack.c.l.b16 %v712
    %v1990 = vunpack.c.h.b16 %v712
    %v1991 = vunpack.c.l.b16 %v713
    %v1992 = vunpack.c.h.b16 %v713
    %v1993 = vunpack.c.l.b16 %v714
    %v1994 = vunpack.c.h.b16 %v714
    %v1995 = vunpack.c.l.b16 %v715
    %v1996 = vunpack.c.h.b16 %v715
    %v1997 = vunpack.c.l.b16 %v716
    %v1998 = vunpack.c.h.b16 %v716
    %v1999 = vunpack.c.l.b16 %v717
    %v2000 = vunpack.c.h.b16 %v717
    %v2001 = vunpack.c.l.b16 %v718
    %v2002 = vunpack.c.h.b16 %v718
    %v2003 = vunpack.c.l.b16 %v719
    %v2004 = vunpack.c.h.b16 %v719
    %v2005 = vunpack.c.l.b16 %v720
    %v2006 = vunpack.c.h.b16 %v720
    %v2007 = vunpack.c.l.b16 %v721
    %v2008 = vunpack.c.h.b16 %v721
    %v2009 = vunpack.c.l.b16 %v722
    %v2010 = vunpack.c.h.b16 %v722
    %v2011 = vunpack.c.l.b16 %v723
    %v2012 = vunpack.c.h.b16 %v723
    %v2013 = vunpack.c.l.b16 %v724
    %v2014 = vunpack.c.h.b16 %v724
    %v2015 = vunpack.c.l.b16 %v725
    %v2016 = vunpack.c.h.b16 %v725
    %v2017 = vunpack.c.l.b16 %v726
    %v2018 = vunpack.c.h.b16 %v726
    %v2019 = vunpack.c.l.b16 %v727
    %v2020 = vunpack.c.h.b16 %v727
    %v2021 = vunpack.c.l.b16 %v728
    %v2022 = vunpack.c.h.b16 %v728
    %v2023 = vunpack.c.l.b16 %v729
    %v2024 = vunpack.c.h.b16 %v729
    %v2025 = vunpack.c.l.b16 %v730
    %v2026 = vunpack.c.h.b16 %v730
    %v2027 = vunpack.c.l.b16 %v731
    %v2028 = vunpack.c.h.b16 %v731
    %v2029 = vunpack.c.l.b16 %v732
    %v2030 = vunpack.c.h.b16 %v732
    %v2031 = vunpack.c.l.b16 %v733
    %v2032 = vunpack.c.h.b16 %v733
    %v2033 = vunpack.c.l.b16 %v734
    %v2034 = vunpack.c.h.b16 %v734
    %v2035 = vunpack.c.l.b16 %v735
    %v2036 = vunpack.c.h.b16 %v735
    %v2037 = vunpack.c.l.b16 %v736
    %v2038 = vunpack.c.h.b16 %v736
    %v2039 = vunpack.c.l.b16 %v737
    %v2040 = vunpack.c.h.b16 %v737
    %v2041 = vunpack.c.l.b16 %v738
    %v2042 = vunpack.c.h.b16 %v738
    %v2043 = vunpack.c.l.b16 %v739
    %v2044 = vunpack.c.h.b16 %v739
    %v2045 = vunpack.c.l.b16 %v740
    %v2046 = vunpack.c.h.b16 %v740
    %v2047 = vunpack.c.l.b16 %v741
    %v2048 = vunpack.c.h.b16 %v741
    %v2049 = vunpack.c.l.b16 %v742
    %v2050 = vunpack.c.h.b16 %v742
    %v2051 = vunpack.c.l.b16 %v743
    %v2052 = vunpack.c.h.b16 %v743
    %v2053 = vunpack.c.l.b16 %v744
    %v2054 = vunpack.c.h.b16 %v744
    %v2055 = vunpack.c.l.b16 %v745
    %v2056 = vunpack.c.h.b16 %v745
    %v2057 = vunpack.c.l.b16 %v746
    %v2058 = vunpack.c.h.b16 %v746
    %v2059 = vunpack.c.l.b16 %v747
    %v2060 = vunpack.c.h.b16 %v747
    %v2061 = vunpack.c.l.b16 %v748
    %v2062 = vunpack.c.h.b16 %v748
    %v2063 = vunpack.c.l.b16 %v749
    %v2064 = vunpack.c.h.b16 %v749
    %v2065 = vunpack.c.l.b16 %v750
    %v2066 = vunpack.c.h.b16 %v750
    %v2067 = vunpack.c.l.b16 %v751
    %v2068 = vunpack.c.h.b16 %v751
    %v2069 = vunpack.c.l.b16 %v752
    %v2070 = vunpack.c.h.b16 %v752
    %v2071 = vunpack.c.l.b16 %v753
    %v2072 = vunpack.c.h.b16 %v753
    %v2073 = vunpack.c.l.b16 %v754
    %v2074 = vunpack.c.h.b16 %v754
    %v2075 = vunpack.c.l.b16 %v755
    %v2076 = vunpack.c.h.b16 %v755
    %v2077 = vunpack.c.l.b16 %v756
    %v2078 = vunpack.c.h.b16 %v756
    %v2079 = vunpack.c.l.b16 %v757
    %v2080 = vunpack.c.h.b16 %v757
    %v2081 = vunpack.c.l.b16 %v758
    %v2082 = vunpack.c.h.b16 %v758
    %v2083 = vunpack.c.l.b16 %v759
    %v2084 = vunpack.c.h.b16 %v759
    %v2085 = vunpack.c.l.b16 %v760
    %v2086 = vunpack.c.h.b16 %v760
    %v2087 = vunpack.c.l.b16 %v761
    %v2088 = vunpack.c.h.b16 %v761
    %v2089 = vunpack.c.l.b16 %v762
    %v2090 = vunpack.c.h.b16 %v762
    %v2091 = vunpack.c.l.b16 %v763
    %v2092 = vunpack.c.h.b16 %v763
    %v2093 = vunpack.c.l.b16 %v764
    %v2094 = vunpack.c.h.b16 %v764
    %v2095 = vunpack.c.l.b16 %v765
    %v2096 = vunpack.c.h.b16 %v765
    %v2097 = vunpack.c.l.b16 %v766
    %v2098 = vunpack.c.h.b16 %v766
    %v2099 = vunpack.c.l.b16 %v767
    %v2100 = vunpack.c.h.b16 %v767
    %v2101 = vunpack.c.l.b16 %v768
    %v2102 = vunpack.c.h.b16 %v768
    %v2103 = vunpack.c.l.b16 %v769
    %v2104 = vunpack.c.h.b16 %v769
    %v2105 = vunpack.c.l.b16 %v770
    %v2106 = vunpack.c.h.b16 %v770
    %v2107 = vunpack.c.l.b16 %v771
    %v2108 = vunpack.c.h.b16 %v771
    %v2109 = vunpack.c.l.b16 %v772
    %v2110 = vunpack.c.h.b16 %v772
    %v2111 = vunpack.c.l.b16 %v773
    %v2112 = vunpack.c.h.b16 %v773
    %v2113 = vunpack.c.l.b16 %v774
    %v2114 = vunpack.c.h.b16 %v774
    %v2115 = vunpack.c.l.b16 %v775
    %v2116 = vunpack.c.h.b16 %v775
    %v2117 = vunpack.c.l.b16 %v776
    %v2118 = vunpack.c.h.b16 %v776
    %v2119 = vunpack.c.l.b16 %v777
    %v2120 = vunpack.c.h.b16 %v777
    %v2121 = vunpack.c.l.b16 %v778
    %v2122 = vunpack.c.h.b16 %v778
    %v2123 = vunpack.c.l.b16 %v779
    %v2124 = vunpack.c.h.b16 %v779
    %v2125 = vunpack.c.l.b16 %v780
    %v2126 = vunpack.c.h.b16 %v780
    %v2127 = vunpack.c.l.b16 %v781
    %v2128 = vunpack.c.h.b16 %v781
    %v2129 = vunpack.c.l.b16 %v782
    %v2130 = vunpack.c.h.b16 %v782
    %v2131 = vunpack.c.l.b16 %v783
    %v2132 = vunpack.c.h.b16 %v783
    %v2133 = vunpack.c.l.b16 %v784
    %v2134 = vunpack.c.h.b16 %v784
    %v2135 = vunpack.c.l.b16 %v785
    %v2136 = vunpack.c.h.b16 %v785
    %v2137 = vunpack.c.l.b16 %v786
    %v2138 = vunpack.c.h.b16 %v786
    %v2139 = vunpack.c.l.b16 %v787
    %v2140 = vunpack.c.h.b16 %v787
    %v2141 = vunpack.c.l.b16 %v788
    %v2142 = vunpack.c.h.b16 %v788
    %v2143 = vunpack.c.l.b16 %v789
    %v2144 = vunpack.c.h.b16 %v789
    %v2145 = vunpack.c.l.b16 %v790
    %v2146 = vunpack.c.h.b16 %v790
    %v2147 = vunpack.c.l.b16 %v791
    %v2148 = vunpack.c.h.b16 %v791
    %v2149 = vunpack.c.l.b16 %v792
    %v2150 = vunpack.c.h.b16 %v792
    %v2151 = vunpack.c.l.b16 %v793
    %v2152 = vunpack.c.h.b16 %v793
    %v2153 = vunpack.c.l.b16 %v794
    %v2154 = vunpack.c.h.b16 %v794
    %v2155 = vunpack.c.l.b16 %v795
    %v2156 = vunpack.c.h.b16 %v795
    %v2157 = vunpack.c.l.b16 %v796
    %v2158 = vunpack.c.h.b16 %v796
    %v2159 = vunpack.c.l.b16 %v797
    %v2160 = vunpack.c.h.b16 %v797
    %v2161 = vunpack.c.l.b16 %v798
    %v2162 = vunpack.c.h.b16 %v798
    %v2163 = vunpack.c.l.b16 %v799
    %v2164 = vunpack.c.h.b16 %v799
    %v2165 = vunpack.c.l.b16 %v800
    %v2166 = vunpack.c.h.b16 %v800
    %v2167 = vunpack.c.l.b16 %v801
    %v2168 = vunpack.c.h.b16 %v801
    %v2169 = vunpack.c.l.b16 %v802
    %v2170 = vunpack.c.h.b16 %v802
    %v2171 = vunpack.c.l.b16 %v803
    %v2172 = vunpack.c.h.b16 %v803
    %v2173 = vunpack.c.l.b16 %v804
    %v2174 = vunpack.c.h.b16 %v804
    %v2175 = vunpack.c.l.b16 %v805
    %v2176 = vunpack.c.h.b16 %v805
    %v2177 = vunpack.c.l.b16 %v806
    %v2178 = vunpack.c.h.b16 %v806
    %v2179 = vunpack.c.l.b16 %v807
    %v2180 = vunpack.c.h.b16 %v807
    %v2181 = vunpack.c.l.b16 %v808
    %v2182 = vunpack.c.h.b16 %v808
    %v2183 = vunpack.c.l.b16 %v809
    %v2184 = vunpack.c.h.b16 %v809
    %v2185 = vunpack.c.l.b16 %v810
    %v2186 = vunpack.c.h.b16 %v810
    %v2187 = vunpack.c.l.b16 %v811
    %v2188 = vunpack.c.h.b16 %v811
    %v2189 = vunpack.c.l.b16 %v812
    %v2190 = vunpack.c.h.b16 %v812
    %v2191 = vunpack.c.l.b16 %v813
    %v2192 = vunpack.c.h.b16 %v813
    %v2193 = vunpack.c.l.b16 %v814
    %v2194 = vunpack.c.h.b16 %v814
    %v2195 = vunpack.c.l.b16 %v815
    %v2196 = vunpack.c.h.b16 %v815
    %v2197 = vunpack.c.l.b16 %v816
    %v2198 = vunpack.c.h.b16 %v816
    %v2199 = vunpack.c.l.b16 %v817
    %v2200 = vunpack.c.h.b16 %v817
    %v2201 = vunpack.c.l.b16 %v818
    %v2202 = vunpack.c.h.b16 %v818
    %v2203 = vunpack.c.l.b16 %v819
    %v2204 = vunpack.c.h.b16 %v819
    %v2205 = vunpack.c.l.b16 %v820
    %v2206 = vunpack.c.h.b16 %v820
    %v2207 = vunpack.c.l.b16 %v821
    %v2208 = vunpack.c.h.b16 %v821
    %v2209 = vunpack.c.l.b16 %v822
    %v2210 = vunpack.c.h.b16 %v822
    %v2211 = vunpack.c.l.b16 %v823
    %v2212 = vunpack.c.h.b16 %v823
    %v2213 = vunpack.c.l.b16 %v824
    %v2214 = vunpack.c.h.b16 %v824
    %v2215 = vunpack.c.l.b16 %v825
    %v2216 = vunpack.c.h.b16 %v825
    %v2217 = vunpack.c.l.b16 %v826
    %v2218 = vunpack.c.h.b16 %v826
    %v2219 = vunpack.c.l.b16 %v827
    %v2220 = vunpack.c.h.b16 %v827
    %v2221 = vunpack.c.l.b16 %v828
    %v2222 = vunpack.c.h.b16 %v828
    %v2223 = vunpack.c.l.b16 %v829
    %v2224 = vunpack.c.h.b16 %v829
    %v2225 = vunpack.c.l.b16 %v830
    %v2226 = vunpack.c.h.b16 %v830
    %v2227 = vunpack.c.l.b16 %v831
    %v2228 = vunpack.c.h.b16 %v831
    %v2229 = vunpack.c.l.b16 %v832
    %v2230 = vunpack.c.h.b16 %v832
    %v2231 = vunpack.c.l.b16 %v833
    %v2232 = vunpack.c.h.b16 %v833
    %v2233 = vunpack.c.l.b16 %v834
    %v2234 = vunpack.c.h.b16 %v834
    %v2235 = vunpack.c.l.b16 %v835
    %v2236 = vunpack.c.h.b16 %v835
    %v2237 = vunpack.c.l.b16 %v836
    %v2238 = vunpack.c.h.b16 %v836
    %v2239 = vunpack.c.l.b16 %v837
    %v2240 = vunpack.c.h.b16 %v837
    %v2241 = vunpack.c.l.b16 %v838
    %v2242 = vunpack.c.h.b16 %v838
    %v2243 = vunpack.c.l.b16 %v839
    %v2244 = vunpack.c.h.b16 %v839
    %v2245 = vunpack.c.l.b16 %v840
    %v2246 = vunpack.c.h.b16 %v840
    %v2247 = vunpack.c.l.b16 %v841
    %v2248 = vunpack.c.h.b16 %v841
    %v2249 = vunpack.c.l.b16 %v842
    %v2250 = vunpack.c.h.b16 %v842
    %v2251 = vunpack.c.l.b16 %v843
    %v2252 = vunpack.c.h.b16 %v843
    %v2253 = vunpack.c.l.b16 %v844
    %v2254 = vunpack.c.h.b16 %v844
    %v2255 = vunpack.c.l.b16 %v845
    %v2256 = vunpack.c.h.b16 %v845
    %v2257 = vunpack.c.l.b16 %v846
    %v2258 = vunpack.c.h.b16 %v846
    %v2259 = vunpack.c.l.b16 %v847
    %v2260 = vunpack.c.h.b16 %v847
    %v2261 = vunpack.c.l.b16 %v848
    %v2262 = vunpack.c.h.b16 %v848
    %v2263 = vunpack.c.l.b16 %v849
    %v2264 = vunpack.c.h.b16 %v849
    %v2265 = vunpack.c.l.b16 %v850
    %v2266 = vunpack.c.h.b16 %v850
    %v2267 = vunpack.c.l.b16 %v851
    %v2268 = vunpack.c.h.b16 %v851
    %v2269 = vunpack.c.l.b16 %v852
    %v2270 = vunpack.c.h.b16 %v852
    %v2271 = vunpack.c.l.b16 %v853
    %v2272 = vunpack.c.h.b16 %v853
    %v2273 = vunpack.c.l.b16 %v854
    %v2274 = vunpack.c.h.b16 %v854
    %v2275 = vunpack.c.l.b16 %v855
    %v2276 = vunpack.c.h.b16 %v855
    %v2277 = vunpack.c.l.b16 %v856
    %v2278 = vunpack.c.h.b16 %v856
    %v2279 = vunpack.c.l.b16 %v857
    %v2280 = vunpack.c.h.b16 %v857
    %v2281 = vunpack.c.l.b16 %v858
    %v2282 = vunpack.c.h.b16 %v858
    %v2283 = vunpack.c.l.b16 %v859
    %v2284 = vunpack.c.h.b16 %v859
    %v2285 = vunpack.c.l.b16 %v860
    %v2286 = vunpack.c.h.b16 %v860
    %v2287 = vunpack.c.l.b16 %v861
    %v2288 = vunpack.c.h.b16 %v861
    %v2289 = vunpack.c.l.b16 %v862
    %v2290 = vunpack.c.h.b16 %v862
    %v2291 = vunpack.c.l.b16 %v863
    %v2292 = vunpack.c.h.b16 %v863
    %v2293 = vunpack.c.l.b16 %v864
    %v2294 = vunpack.c.h.b16 %v864
    %v2295 = vunpack.c.l.b16 %v865
    %v2296 = vunpack.c.h.b16 %v865
    %v2297 = vunpack.c.l.b16 %v866
    %v2298 = vunpack.c.h.b16 %v866
    %v2299 = vunpack.c.l.b16 %v867
    %v2300 = vunpack.c.h.b16 %v867
    %v2301 = vunpack.c.l.b16 %v868
    %v2302 = vunpack.c.h.b16 %v868
    %v2303 = vunpack.c.l.b16 %v869
    %v2304 = vunpack.c.h.b16 %v869
    %v2305 = vunpack.c.l.b16 %v870
    %v2306 = vunpack.c.h.b16 %v870
    %v2307 = vunpack.c.l.b16 %v871
    %v2308 = vunpack.c.h.b16 %v871
    %v2309 = vunpack.c.l.b16 %v872
    %v2310 = vunpack.c.h.b16 %v872
    %v2311 = vunpack.c.l.b16 %v873
    %v2312 = vunpack.c.h.b16 %v873
    %v2313 = vunpack.c.l.b16 %v874
    %v2314 = vunpack.c.h.b16 %v874
    %v2315 = vunpack.c.l.b16 %v875
    %v2316 = vunpack.c.h.b16 %v875
    %v2317 = vunpack.c.l.b16 %v876
    %v2318 = vunpack.c.h.b16 %v876
    %v2319 = vunpack.c.l.b16 %v877
    %v2320 = vunpack.c.h.b16 %v877
    %v2321 = vunpack.c.l.b16 %v878
    %v2322 = vunpack.c.h.b16 %v878
    %v2323 = vunpack.c.l.b16 %v879
    %v2324 = vunpack.c.h.b16 %v879
    %v2325 = vunpack.c.l.b16 %v880
    %v2326 = vunpack.c.h.b16 %v880
    %v2327 = vunpack.c.l.b16 %v881
    %v2328 = vunpack.c.h.b16 %v881
    %v2329 = vunpack.c.l.b16 %v882
    %v2330 = vunpack.c.h.b16 %v882
    %v2331 = vunpack.c.l.b16 %v883
    %v2332 = vunpack.c.h.b16 %v883
    %v2333 = vunpack.c.l.b16 %v884
    %v2334 = vunpack.c.h.b16 %v884
    %v2335 = vunpack.c.l.b16 %v885
    %v2336 = vunpack.c.h.b16 %v885
    %v2337 = vunpack.c.l.b16 %v886
    %v2338 = vunpack.c.h.b16 %v886
    %v2339 = vunpack.c.l.b16 %v887
    %v2340 = vunpack.c.h.b16 %v887
    %v2341 = vunpack.c.l.b16 %v888
    %v2342 = vunpack.c.h.b16 %v888
    %v2343 = vunpack.c.l.b16 %v889
    %v2344 = vunpack.c.h.b16 %v889
    %v2345 = vunpack.c.l.b16 %v890
    %v2346 = vunpack.c.h.b16 %v890
    %v2347 = vunpack.c.l.b16 %v891
    %v2348 = vunpack.c.h.b16 %v891
    %v2349 = vunpack.c.l.b16 %v892
    %v2350 = vunpack.c.h.b16 %v892
    %v2351 = vunpack.c.l.b16 %v893
    %v2352 = vunpack.c.h.b16 %v893
    %v2353 = vunpack.c.l.b16 %v894
    %v2354 = vunpack.c.h.b16 %v894
    %v2355 = vunpack.c.l.b16 %v895
    %v2356 = vunpack.c.h.b16 %v895
    %v2357 = vunpack.c.l.b16 %v896
    %v2358 = vunpack.c.h.b16 %v896
    %v2359 = vunpack.c.l.b16 %v897
    %v2360 = vunpack.c.h.b16 %v897
    %v2361 = vunpack.c.l.b16 %v898
    %v2362 = vunpack.c.h.b16 %v898
    %v2363 = vunpack.c.l.b16 %v899
    %v2364 = vunpack.c.h.b16 %v899
    %v2365 = vunpack.c.l.b16 %v900
    %v2366 = vunpack.c.h.b16 %v900
    %v2367 = vunpack.c.l.b16 %v901
    %v2368 = vunpack.c.h.b16 %v901
    %v2369 = vunpack.c.l.b16 %v902
    %v2370 = vunpack.c.h.b16 %v902
    %v2371 = vunpack.c.l.b16 %v903
    %v2372 = vunpack.c.h.b16 %v903
    %v2373 = vunpack.c.l.b16 %v904
    %v2374 = vunpack.c.h.b16 %v904
    %v2375 = vunpack.c.l.b16 %v905
    %v2376 = vunpack.c.h.b16 %v905
    %v2377 = vunpack.c.l.b16 %v906
    %v2378 = vunpack.c.h.b16 %v906
    %v2379 = vunpack.c.l.b16 %v907
    %v2380 = vunpack.c.h.b16 %v907
    %v2381 = vunpack.c.l.b16 %v908
    %v2382 = vunpack.c.h.b16 %v908
    %v2383 = vunpack.c.l.b16 %v909
    %v2384 = vunpack.c.h.b16 %v909
    %v2385 = vunpack.c.l.b16 %v910
    %v2386 = vunpack.c.h.b16 %v910
    %v2387 = vunpack.c.l.b16 %v911
    %v2388 = vunpack.c.h.b16 %v911
    %v2389 = vunpack.c.l.b16 %v912
    %v2390 = vunpack.c.h.b16 %v912
    %v2391 = vunpack.c.l.b16 %v913
    %v2392 = vunpack.c.h.b16 %v913
    %v2393 = vunpack.c.l.b16 %v914
    %v2394 = vunpack.c.h.b16 %v914
    %v2395 = vunpack.c.l.b16 %v915
    %v2396 = vunpack.c.h.b16 %v915
    %v2397 = vunpack.c.l.b16 %v916
    %v2398 = vunpack.c.h.b16 %v916
    %v2399 = vunpack.c.l.b16 %v917
    %v2400 = vunpack.c.h.b16 %v917
    %v2401 = vunpack.c.l.b16 %v918
    %v2402 = vunpack.c.h.b16 %v918
    %v2403 = vunpack.c.l.b16 %v919
    %v2404 = vunpack.c.h.b16 %v919
    %v2405 = vunpack.c.l.b16 %v920
    %v2406 = vunpack.c.h.b16 %v920
    %v2407 = vunpack.c.l.b16 %v921
    %v2408 = vunpack.c.h.b16 %v921
    %v2409 = vunpack.c.l.b16 %v922
    %v2410 = vunpack.c.h.b16 %v922
    %v2411 = vunpack.c.l.b16 %v923
    %v2412 = vunpack.c.h.b16 %v923
    %v2413 = vunpack.c.l.b16 %v924
    %v2414 = vunpack.c.h.b16 %v924
    %v2415 = vunpack.c.l.b16 %v925
    %v2416 = vunpack.c.h.b16 %v925
    %v2417 = vunpack.c.l.b16 %v926
    %v2418 = vunpack.c.h.b16 %v926
    %v2419 = vunpack.c.l.b16 %v927
    %v2420 = vunpack.c.h.b16 %v927
    %v2421 = vunpack.c.l.b16 %v928
    %v2422 = vunpack.c.h.b16 %v928
    %v2423 = vunpack.c.l.b16 %v929
    %v2424 = vunpack.c.h.b16 %v929
    %v2425 = vunpack.c.l.b16 %v930
    %v2426 = vunpack.c.h.b16 %v930
    %v2427 = vunpack.c.l.b16 %v931
    %v2428 = vunpack.c.h.b16 %v931
    %v2429 = vunpack.c.l.b16 %v932
    %v2430 = vunpack.c.h.b16 %v932
    %v2431 = vunpack.c.l.b16 %v933
    %v2432 = vunpack.c.h.b16 %v933
    %v2433 = vunpack.c.l.b16 %v934
    %v2434 = vunpack.c.h.b16 %v934
    %v2435 = vunpack.c.l.b16 %v935
    %v2436 = vunpack.c.h.b16 %v935
    %v2437 = vunpack.c.l.b16 %v936
    %v2438 = vunpack.c.h.b16 %v936
    %v2439 = vunpack.c.l.b16 %v937
    %v2440 = vunpack.c.h.b16 %v937
    %v2441 = vunpack.c.l.b16 %v938
    %v2442 = vunpack.c.h.b16 %v938
    %v2443 = vunpack.c.l.b16 %v939
    %v2444 = vunpack.c.h.b16 %v939
    %v2445 = vunpack.c.l.b16 %v940
    %v2446 = vunpack.c.h.b16 %v940
    %v2447 = vunpack.c.l.b16 %v941
    %v2448 = vunpack.c.h.b16 %v941
    %v2449 = vunpack.c.l.b16 %v942
    %v2450 = vunpack.c.h.b16 %v942
    %v2451 = vunpack.c.l.b16 %v943
    %v2452 = vunpack.c.h.b16 %v943
    %v2453 = vunpack.c.l.b16 %v944
    %v2454 = vunpack.c.h.b16 %v944
    %v2455 = vunpack.c.l.b16 %v945
    %v2456 = vunpack.c.h.b16 %v945
    %v2457 = vunpack.c.l.b16 %v946
    %v2458 = vunpack.c.h.b16 %v946
    %v2459 = vunpack.c.l.b16 %v947
    %v2460 = vunpack.c.h.b16 %v947
    %v2461 = vunpack.c.l.b16 %v948
    %v2462 = vunpack.c.h.b16 %v948
    %v2463 = vunpack.c.l.b16 %v949
    %v2464 = vunpack.c.h.b16 %v949
    %v2465 = vunpack.c.l.b16 %v950
    %v2466 = vunpack.c.h.b16 %v950
    %v2467 = vunpack.c.l.b16 %v951
    %v2468 = vunpack.c.h.b16 %v951
    %v2469 = vunpack.c.l.b16 %v952
    %v2470 = vunpack.c.h.b16 %v952
    %v2471 = vunpack.c.l.b16 %v953
    %v2472 = vunpack.c.h.b16 %v953
    %v2473 = vunpack.c.l.b16 %v954
    %v2474 = vunpack.c.h.b16 %v954
    %v2475 = vunpack.c.l.b16 %v955
    %v2476 = vunpack.c.h.b16 %v955
    %v2477 = vunpack.c.l.b16 %v956
    %v2478 = vunpack.c.h.b16 %v956
    %v2479 = vunpack.c.l.b16 %v957
    %v2480 = vunpack.c.h.b16 %v957
    %v2481 = vunpack.c.l.b16 %v958
    %v2482 = vunpack.c.h.b16 %v958
    %v2483 = vunpack.c.l.b16 %v959
    %v2484 = vunpack.c.h.b16 %v959
    %v2485 = vunpack.c.l.b16 %v960
    %v2486 = vunpack.c.h.b16 %v960
    %v2487 = vunpack.c.l.b16 %v961
    %v2488 = vunpack.c.h.b16 %v961
    %v2489 = vunpack.c.l.b16 %v962
    %v2490 = vunpack.c.h.b16 %v962
    %v2491 = vunpack.c.l.b16 %v963
    %v2492 = vunpack.c.h.b16 %v963
    %v2493 = vunpack.c.l.b16 %v964
    %v2494 = vunpack.c.h.b16 %v964
    %v2495 = vunpack.c.l.b16 %v965
    %v2496 = vunpack.c.h.b16 %v965
    %v2497 = vunpack.c.l.b16 %v966
    %v2498 = vunpack.c.h.b16 %v966
    %v2499 = vunpack.c.l.b16 %v967
    %v2500 = vunpack.c.h.b16 %v967
    %v2501 = vunpack.c.l.b16 %v968
    %v2502 = vunpack.c.h.b16 %v968
    %v2503 = vunpack.c.l.b16 %v969
    %v2504 = vunpack.c.h.b16 %v969
    %v2505 = vunpack.c.l.b16 %v970
    %v2506 = vunpack.c.h.b16 %v970
    %v2507 = vunpack.c.l.b16 %v971
    %v2508 = vunpack.c.h.b16 %v971
    %v2509 = vunpack.c.l.b16 %v972
    %v2510 = vunpack.c.h.b16 %v972
    %v2511 = vunpack.c.l.b16 %v973
    %v2512 = vunpack.c.h.b16 %v973
    %v2513 = vunpack.c.l.b16 %v974
    %v2514 = vunpack.c.h.b16 %v974
    %v2515 = vunpack.c.l.b16 %v975
    %v2516 = vunpack.c.h.b16 %v975
    %v2517 = vunpack.c.l.b16 %v976
    %v2518 = vunpack.c.h.b16 %v976
    %v2519 = vunpack.c.l.b16 %v977
    %v2520 = vunpack.c.h.b16 %v977
    %v2521 = vunpack.c.l.b16 %v978
    %v2522 = vunpack.c.h.b16 %v978
    %v2523 = vunpack.c.l.b16 %v979
    %v2524 = vunpack.c.h.b16 %v979
    %v2525 = vunpack.c.l.b16 %v980
    %v2526 = vunpack.c.h.b16 %v980
    %v2527 = vunpack.c.l.b16 %v981
    %v2528 = vunpack.c.h.b16 %v981
    %v2529 = vunpack.c.l.b16 %v982
    %v2530 = vunpack.c.h.b16 %v982
    %v2531 = vunpack.c.l.b16 %v983
    %v2532 = vunpack.c.h.b16 %v983
    %v2533 = vunpack.c.l.b16 %v984
    %v2534 = vunpack.c.h.b16 %v984
    %v2535 = vunpack.c.l.b16 %v985
    %v2536 = vunpack.c.h.b16 %v985
    %v2537 = vunpack.c.l.b16 %v986
    %v2538 = vunpack.c.h.b16 %v986
    %v2539 = vunpack.c.l.b16 %v987
    %v2540 = vunpack.c.h.b16 %v987
    %v2541 = vunpack.c.l.b16 %v988
    %v2542 = vunpack.c.h.b16 %v988
    %v2543 = vunpack.c.l.b16 %v989
    %v2544 = vunpack.c.h.b16 %v989
    %v2545 = vunpack.c.l.b16 %v990
    %v2546 = vunpack.c.h.b16 %v990
    %v2547 = vunpack.c.l.b16 %v991
    %v2548 = vunpack.c.h.b16 %v991
    %v2549 = vunpack.c.l.b16 %v992
    %v2550 = vunpack.c.h.b16 %v992
    %v2551 = vunpack.c.l.b16 %v993
    %v2552 = vunpack.c.h.b16 %v993
    %v2553 = vunpack.c.l.b16 %v994
    %v2554 = vunpack.c.h.b16 %v994
    %v2555 = vunpack.c.l.b16 %v995
    %v2556 = vunpack.c.h.b16 %v995
    %v2557 = vunpack.c.l.b16 %v996
    %v2558 = vunpack.c.h.b16 %v996
    %v2559 = vunpack.c.l.b16 %v997
    %v2560 = vunpack.c.h.b16 %v997
    %v2561 = vunpack.c.l.b16 %v998
    %v2562 = vunpack.c.h.b16 %v998
    %v2563 = vunpack.c.l.b16 %v999
    %v2564 = vunpack.c.h.b16 %v999
    %v2565 = vunpack.c.l.b16 %v1000
    %v2566 = vunpack.c.h.b16 %v1000
    %v2567 = vunpack.c.l.b16 %v1001
    %v2568 = vunpack.c.h.b16 %v1001
    %v2569 = vunpack.c.l.b16 %v1002
    %v2570 = vunpack.c.h.b16 %v1002
    %v2571 = vunpack.c.l.b16 %v1003
    %v2572 = vunpack.c.h.b16 %v1003
    %v2573 = vunpack.c.l.b16 %v1004
    %v2574 = vunpack.c.h.b16 %v1004
    %v2575 = vunpack.c.l.b16 %v1005
    %v2576 = vunpack.c.h.b16 %v1005
    %v2577 = vunpack.c.l.b16 %v1006
    %v2578 = vunpack.c.h.b16 %v1006
    %v2579 = vunpack.c.l.b16 %v1007
    %v2580 = vunpack.c.h.b16 %v1007
    %v2581 = vunpack.c.l.b16 %v1008
    %v2582 = vunpack.c.h.b16 %v1008
    %v2583 = vunpack.c.l.b16 %v1009
    %v2584 = vunpack.c.h.b16 %v1009
    %v2585 = vunpack.c.l.b16 %v1010
    %v2586 = vunpack.c.h.b16 %v1010
    %v2587 = vunpack.c.l.b16 %v1011
    %v2588 = vunpack.c.h.b16 %v1011
    %v2589 = vunpack.c.l.b16 %v1012
    %v2590 = vunpack.c.h.b16 %v1012
    %v2591 = vpack.c.b16 %v1575, %v1567
    %v2592 = vpack.c.b16 %v1576, %v1568
    %v2593 = vpack.c.b16 %v1577, %v1569
    %v2594 = vpack.c.b16 %v1578, %v1570
    %v2595 = vpack.c.b16 %v1579, %v1571
    %v2596 = vpack.c.b16 %v1580, %v1572
    %v2597 = vpack.c.b16 %v1581, %v1573
    %v2598 = vpack.c.b16 %v1582, %v1574
    %v2599 = vpack.c.b16 %v1591, %v1583
    %v2600 = vpack.c.b16 %v1592, %v1584
    %v2601 = vpack.c.b16 %v1593, %v1585
    %v2602 = vpack.c.b16 %v1594, %v1586
    %v2603 = vpack.c.b16 %v1595, %v1587
    %v2604 = vpack.c.b16 %v1596, %v1588
    %v2605 = vpack.c.b16 %v1597, %v1589
    %v2606 = vpack.c.b16 %v1598, %v1590
    %v2607 = vpack.c.b16 %v1607, %v1599
    %v2608 = vpack.c.b16 %v1608, %v1600
    %v2609 = vpack.c.b16 %v1609, %v1601
    %v2610 = vpack.c.b16 %v1610, %v1602
    %v2611 = vpack.c.b16 %v1611, %v1603
    %v2612 = vpack.c.b16 %v1612, %v1604
    %v2613 = vpack.c.b16 %v1613, %v1605
    %v2614 = vpack.c.b16 %v1614, %v1606
    %v2615 = vpack.c.b16 %v1623, %v1615
    %v2616 = vpack.c.b16 %v1624, %v1616
    %v2617 = vpack.c.b16 %v1625, %v1617
    %v2618 = vpack.c.b16 %v1626, %v1618
    %v2619 = vpack.c.b16 %v1627, %v1619
    %v2620 = vpack.c.b16 %v1628, %v1620
    %v2621 = vpack.c.b16 %v1629, %v1621
    %v2622 = vpack.c.b16 %v1630, %v1622
    %v2623 = vpack.c.b16 %v1639, %v1631
    %v2624 = vpack.c.b16 %v1640, %v1632
    %v2625 = vpack.c.b16 %v1641, %v1633
    %v2626 = vpack.c.b16 %v1642, %v1634
    %v2627 = vpack.c.b16 %v1643, %v1635
    %v2628 = vpack.c.b16 %v1644, %v1636
    %v2629 = vpack.c.b16 %v1645, %v1637
    %v2630 = vpack.c.b16 %v1646, %v1638
    %v2631 = vpack.c.b16 %v1655, %v1647
    %v2632 = vpack.c.b16 %v1656, %v1648
    %v2633 = vpack.c.b16 %v1657, %v1649
    %v2634 = vpack.c.b16 %v1658, %v1650
    %v2635 = vpack.c.b16 %v1659, %v1651
    %v2636 = vpack.c.b16 %v1660, %v1652
    %v2637 = vpack.c.b16 %v1661, %v1653
    %v2638 = vpack.c.b16 %v1662, %v1654
    %v2639 = vpack.c.b16 %v1671, %v1663
    %v2640 = vpack.c.b16 %v1672, %v1664
    %v2641 = vpack.c.b16 %v1673, %v1665
    %v2642 = vpack.c.b16 %v1674, %v1666
    %v2643 = vpack.c.b16 %v1675, %v1667
    %v2644 = vpack.c.b16 %v1676, %v1668
    %v2645 = vpack.c.b16 %v1677, %v1669
    %v2646 = vpack.c.b16 %v1678, %v1670
    %v2647 = vpack.c.b16 %v1687, %v1679
    %v2648 = vpack.c.b16 %v1688, %v1680
    %v2649 = vpack.c.b16 %v1689, %v1681
    %v2650 = vpack.c.b16 %v1690, %v1682
    %v2651 = vpack.c.b16 %v1691, %v1683
    %v2652 = vpack.c.b16 %v1692, %v1684
    %v2653 = vpack.c.b16 %v1693, %v1685
    %v2654 = vpack.c.b16 %v1694, %v1686
    %v2655 = vpack.c.b16 %v1703, %v1695
    %v2656 = vpack.c.b16 %v1704, %v1696
    %v2657 = vpack.c.b16 %v1705, %v1697
    %v2658 = vpack.c.b16 %v1706, %v1698
    %v2659 = vpack.c.b16 %v1707, %v1699
    %v2660 = vpack.c.b16 %v1708, %v1700
    %v2661 = vpack.c.b16 %v1709, %v1701
    %v2662 = vpack.c.b16 %v1710, %v1702
    %v2663 = vpack.c.b16 %v1719, %v1711
    %v2664 = vpack.c.b16 %v1720, %v1712
    %v2665 = vpack.c.b16 %v1721, %v1713
    %v2666 = vpack.c.b16 %v1722, %v1714
    %v2667 = vpack.c.b16 %v1723, %v1715
    %v2668 = vpack.c.b16 %v1724, %v1716
    %v2669 = vpack.c.b16 %v1725, %v1717
    %v2670 = vpack.c.b16 %v1726, %v1718
    %v2671 = vpack.c.b16 %v1735, %v1727
    %v2672 = vpack.c.b16 %v1736, %v1728
    %v2673 = vpack.c.b16 %v1737, %v1729
    %v2674 = vpack.c.b16 %v1738, %v1730
    %v2675 = vpack.c.b16 %v1739, %v1731
    %v2676 = vpack.c.b16 %v1740, %v1732
    %v2677 = vpack.c.b16 %v1741, %v1733
    %v2678 = vpack.c.b16 %v1742, %v1734
    %v2679 = vpack.c.b16 %v1751, %v1743
    %v2680 = vpack.c.b16 %v1752, %v1744
    %v2681 = vpack.c.b16 %v1753, %v1745
    %v2682 = vpack.c.b16 %v1754, %v1746
    %v2683 = vpack.c.b16 %v1755, %v1747
    %v2684 = vpack.c.b16 %v1756, %v1748
    %v2685 = vpack.c.b16 %v1757, %v1749
    %v2686 = vpack.c.b16 %v1758, %v1750
    %v2687 = vpack.c.b16 %v1767, %v1759
    %v2688 = vpack.c.b16 %v1768, %v1760
    %v2689 = vpack.c.b16 %v1769, %v1761
    %v2690 = vpack.c.b16 %v1770, %v1762
    %v2691 = vpack.c.b16 %v1771, %v1763
    %v2692 = vpack.c.b16 %v1772, %v1764
    %v2693 = vpack.c.b16 %v1773, %v1765
    %v2694 = vpack.c.b16 %v1774, %v1766
    %v2695 = vpack.c.b16 %v1783, %v1775
    %v2696 = vpack.c.b16 %v1784, %v1776
    %v2697 = vpack.c.b16 %v1785, %v1777
    %v2698 = vpack.c.b16 %v1786, %v1778
    %v2699 = vpack.c.b16 %v1787, %v1779
    %v2700 = vpack.c.b16 %v1788, %v1780
    %v2701 = vpack.c.b16 %v1789, %v1781
    %v2702 = vpack.c.b16 %v1790, %v1782
    %v2703 = vpack.c.b16 %v1799, %v1791
    %v2704 = vpack.c.b16 %v1800, %v1792
    %v2705 = vpack.c.b16 %v1801, %v1793
    %v2706 = vpack.c.b16 %v1802, %v1794
    %v2707 = vpack.c.b16 %v1803, %v1795
    %v2708 = vpack.c.b16 %v1804, %v1796
    %v2709 = vpack.c.b16 %v1805, %v1797
    %v2710 = vpack.c.b16 %v1806, %v1798
    %v2711 = vpack.c.b16 %v1815, %v1807
    %v2712 = vpack.c.b16 %v1816, %v1808
    %v2713 = vpack.c.b16 %v1817, %v1809
    %v2714 = vpack.c.b16 %v1818, %v1810
    %v2715 = vpack.c.b16 %v1819, %v1811
    %v2716 = vpack.c.b16 %v1820, %v1812
    %v2717 = vpack.c.b16 %v1821, %v1813
    %v2718 = vpack.c.b16 %v1822, %v1814
    %v2719 = vpack.c.b16 %v1831, %v1823
    %v2720 = vpack.c.b16 %v1832, %v1824
    %v2721 = vpack.c.b16 %v1833, %v1825
    %v2722 = vpack.c.b16 %v1834, %v1826
    %v2723 = vpack.c.b16 %v1835, %v1827
    %v2724 = vpack.c.b16 %v1836, %v1828
    %v2725 = vpack.c.b16 %v1837, %v1829
    %v2726 = vpack.c.b16 %v1838, %v1830
    %v2727 = vpack.c.b16 %v1847, %v1839
    %v2728 = vpack.c.b16 %v1848, %v1840
    %v2729 = vpack.c.b16 %v1849, %v1841
    %v2730 = vpack.c.b16 %v1850, %v1842
    %v2731 = vpack.c.b16 %v1851, %v1843
    %v2732 = vpack.c.b16 %v1852, %v1844
    %v2733 = vpack.c.b16 %v1853, %v1845
    %v2734 = vpack.c.b16 %v1854, %v1846
    %v2735 = vpack.c.b16 %v1863, %v1855
    %v2736 = vpack.c.b16 %v1864, %v1856
    %v2737 = vpack.c.b16 %v1865, %v1857
    %v2738 = vpack.c.b16 %v1866, %v1858
    %v2739 = vpack.c.b16 %v1867, %v1859
    %v2740 = vpack.c.b16 %v1868, %v1860
    %v2741 = vpack.c.b16 %v1869, %v1861
    %v2742 = vpack.c.b16 %v1870, %v1862
    %v2743 = vpack.c.b16 %v1879, %v1871
    %v2744 = vpack.c.b16 %v1880, %v1872
    %v2745 = vpack.c.b16 %v1881, %v1873
    %v2746 = vpack.c.b16 %v1882, %v1874
    %v2747 = vpack.c.b16 %v1883, %v1875
    %v2748 = vpack.c.b16 %v1884, %v1876
    %v2749 = vpack.c.b16 %v1885, %v1877
    %v2750 = vpack.c.b16 %v1886, %v1878
    %v2751 = vpack.c.b16 %v1895, %v1887
    %v2752 = vpack.c.b16 %v1896, %v1888
    %v2753 = vpack.c.b16 %v1897, %v1889
    %v2754 = vpack.c.b16 %v1898, %v1890
    %v2755 = vpack.c.b16 %v1899, %v1891
    %v2756 = vpack.c.b16 %v1900, %v1892
    %v2757 = vpack.c.b16 %v1901, %v1893
    %v2758 = vpack.c.b16 %v1902, %v1894
    %v2759 = vpack.c.b16 %v1911, %v1903
    %v2760 = vpack.c.b16 %v1912, %v1904
    %v2761 = vpack.c.b16 %v1913, %v1905
    %v2762 = vpack.c.b16 %v1914, %v1906
    %v2763 = vpack.c.b16 %v1915, %v1907
    %v2764 = vpack.c.b16 %v1916, %v1908
    %v2765 = vpack.c.b16 %v1917, %v1909
    %v2766 = vpack.c.b16 %v1918, %v1910
    %v2767 = vpack.c.b16 %v1927, %v1919
    %v2768 = vpack.c.b16 %v1928, %v1920
    %v2769 = vpack.c.b16 %v1929, %v1921
    %v2770 = vpack.c.b16 %v1930, %v1922
    %v2771 = vpack.c.b16 %v1931, %v1923
    %v2772 = vpack.c.b16 %v1932, %v1924
    %v2773 = vpack.c.b16 %v1933, %v1925
    %v2774 = vpack.c.b16 %v1934, %v1926
    %v2775 = vpack.c.b16 %v1943, %v1935
    %v2776 = vpack.c.b16 %v1944, %v1936
    %v2777 = vpack.c.b16 %v1945, %v1937
    %v2778 = vpack.c.b16 %v1946, %v1938
    %v2779 = vpack.c.b16 %v1947, %v1939
    %v2780 = vpack.c.b16 %v1948, %v1940
    %v2781 = vpack.c.b16 %v1949, %v1941
    %v2782 = vpack.c.b16 %v1950, %v1942
    %v2783 = vpack.c.b16 %v1959, %v1951
    %v2784 = vpack.c.b16 %v1960, %v1952
    %v2785 = vpack.c.b16 %v1961, %v1953
    %v2786 = vpack.c.b16 %v1962, %v1954
    %v2787 = vpack.c.b16 %v1963, %v1955
    %v2788 = vpack.c.b16 %v1964, %v1956
    %v2789 = vpack.c.b16 %v1965, %v1957
    %v2790 = vpack.c.b16 %v1966, %v1958
    %v2791 = vpack.c.b16 %v1975, %v1967
    %v2792 = vpack.c.b16 %v1976, %v1968
    %v2793 = vpack.c.b16 %v1977, %v1969
    %v2794 = vpack.c.b16 %v1978, %v1970
    %v2795 = vpack.c.b16 %v1979, %v1971
    %v2796 = vpack.c.b16 %v1980, %v1972
    %v2797 = vpack.c.b16 %v1981, %v1973
    %v2798 = vpack.c.b16 %v1982, %v1974
    %v2799 = vpack.c.b16 %v1991, %v1983
    %v2800 = vpack.c.b16 %v1992, %v1984
    %v2801 = vpack.c.b16 %v1993, %v1985
    %v2802 = vpack.c.b16 %v1994, %v1986
    %v2803 = vpack.c.b16 %v1995, %v1987
    %v2804 = vpack.c.b16 %v1996, %v1988
    %v2805 = vpack.c.b16 %v1997, %v1989
    %v2806 = vpack.c.b16 %v1998, %v1990
    %v2807 = vpack.c.b16 %v2007, %v1999
    %v2808 = vpack.c.b16 %v2008, %v2000
    %v2809 = vpack.c.b16 %v2009, %v2001
    %v2810 = vpack.c.b16 %v2010, %v2002
    %v2811 = vpack.c.b16 %v2011, %v2003
    %v2812 = vpack.c.b16 %v2012, %v2004
    %v2813 = vpack.c.b16 %v2013, %v2005
    %v2814 = vpack.c.b16 %v2014, %v2006
    %v2815 = vpack.c.b16 %v2023, %v2015
    %v2816 = vpack.c.b16 %v2024, %v2016
    %v2817 = vpack.c.b16 %v2025, %v2017
    %v2818 = vpack.c.b16 %v2026, %v2018
    %v2819 = vpack.c.b16 %v2027, %v2019
    %v2820 = vpack.c.b16 %v2028, %v2020
    %v2821 = vpack.c.b16 %v2029, %v2021
    %v2822 = vpack.c.b16 %v2030, %v2022
    %v2823 = vpack.c.b16 %v2039, %v2031
    %v2824 = vpack.c.b16 %v2040, %v2032
    %v2825 = vpack.c.b16 %v2041, %v2033
    %v2826 = vpack.c.b16 %v2042, %v2034
    %v2827 = vpack.c.b16 %v2043, %v2035
    %v2828 = vpack.c.b16 %v2044, %v2036
    %v2829 = vpack.c.b16 %v2045, %v2037
    %v2830 = vpack.c.b16 %v2046, %v2038
    %v2831 = vpack.c.b16 %v2055, %v2047
    %v2832 = vpack.c.b16 %v2056, %v2048
    %v2833 = vpack.c.b16 %v2057, %v2049
    %v2834 = vpack.c.b16 %v2058, %v2050
    %v2835 = vpack.c.b16 %v2059, %v2051
    %v2836 = vpack.c.b16 %v2060, %v2052
    %v2837 = vpack.c.b16 %v2061, %v2053
    %v2838 = vpack.c.b16 %v2062, %v2054
    %v2839 = vpack.c.b16 %v2071, %v2063
    %v2840 = vpack.c.b16 %v2072, %v2064
    %v2841 = vpack.c.b16 %v2073, %v2065
    %v2842 = vpack.c.b16 %v2074, %v2066
    %v2843 = vpack.c.b16 %v2075, %v2067
    %v2844 = vpack.c.b16 %v2076, %v2068
    %v2845 = vpack.c.b16 %v2077, %v2069
    %v2846 = vpack.c.b16 %v2078, %v2070
    %v2847 = vpack.c.b16 %v2087, %v2079
    %v2848 = vpack.c.b16 %v2088, %v2080
    %v2849 = vpack.c.b16 %v2089, %v2081
    %v2850 = vpack.c.b16 %v2090, %v2082
    %v2851 = vpack.c.b16 %v2091, %v2083
    %v2852 = vpack.c.b16 %v2092, %v2084
    %v2853 = vpack.c.b16 %v2093, %v2085
    %v2854 = vpack.c.b16 %v2094, %v2086
    %v2855 = vpack.c.b16 %v2103, %v2095
    %v2856 = vpack.c.b16 %v2104, %v2096
    %v2857 = vpack.c.b16 %v2105, %v2097
    %v2858 = vpack.c.b16 %v2106, %v2098
    %v2859 = vpack.c.b16 %v2107, %v2099
    %v2860 = vpack.c.b16 %v2108, %v2100
    %v2861 = vpack.c.b16 %v2109, %v2101
    %v2862 = vpack.c.b16 %v2110, %v2102
    %v2863 = vpack.c.b16 %v2119, %v2111
    %v2864 = vpack.c.b16 %v2120, %v2112
    %v2865 = vpack.c.b16 %v2121, %v2113
    %v2866 = vpack.c.b16 %v2122, %v2114
    %v2867 = vpack.c.b16 %v2123, %v2115
    %v2868 = vpack.c.b16 %v2124, %v2116
    %v2869 = vpack.c.b16 %v2125, %v2117
    %v2870 = vpack.c.b16 %v2126, %v2118
    %v2871 = vpack.c.b16 %v2135, %v2127
    %v2872 = vpack.c.b16 %v2136, %v2128
    %v2873 = vpack.c.b16 %v2137, %v2129
    %v2874 = vpack.c.b16 %v2138, %v2130
    %v2875 = vpack.c.b16 %v2139, %v2131
    %v2876 = vpack.c.b16 %v2140, %v2132
    %v2877 = vpack.c.b16 %v2141, %v2133
    %v2878 = vpack.c.b16 %v2142, %v2134
    %v2879 = vpack.c.b16 %v2151, %v2143
    %v2880 = vpack.c.b16 %v2152, %v2144
    %v2881 = vpack.c.b16 %v2153, %v2145
    %v2882 = vpack.c.b16 %v2154, %v2146
    %v2883 = vpack.c.b16 %v2155, %v2147
    %v2884 = vpack.c.b16 %v2156, %v2148
    %v2885 = vpack.c.b16 %v2157, %v2149
    %v2886 = vpack.c.b16 %v2158, %v2150
    %v2887 = vpack.c.b16 %v2167, %v2159
    %v2888 = vpack.c.b16 %v2168, %v2160
    %v2889 = vpack.c.b16 %v2169, %v2161
    %v2890 = vpack.c.b16 %v2170, %v2162
    %v2891 = vpack.c.b16 %v2171, %v2163
    %v2892 = vpack.c.b16 %v2172, %v2164
    %v2893 = vpack.c.b16 %v2173, %v2165
    %v2894 = vpack.c.b16 %v2174, %v2166
    %v2895 = vpack.c.b16 %v2183, %v2175
    %v2896 = vpack.c.b16 %v2184, %v2176
    %v2897 = vpack.c.b16 %v2185, %v2177
    %v2898 = vpack.c.b16 %v2186, %v2178
    %v2899 = vpack.c.b16 %v2187, %v2179
    %v2900 = vpack.c.b16 %v2188, %v2180
    %v2901 = vpack.c.b16 %v2189, %v2181
    %v2902 = vpack.c.b16 %v2190, %v2182
    %v2903 = vpack.c.b16 %v2199, %v2191
    %v2904 = vpack.c.b16 %v2200, %v2192
    %v2905 = vpack.c.b16 %v2201, %v2193
    %v2906 = vpack.c.b16 %v2202, %v2194
    %v2907 = vpack.c.b16 %v2203, %v2195
    %v2908 = vpack.c.b16 %v2204, %v2196
    %v2909 = vpack.c.b16 %v2205, %v2197
    %v2910 = vpack.c.b16 %v2206, %v2198
    %v2911 = vpack.c.b16 %v2215, %v2207
    %v2912 = vpack.c.b16 %v2216, %v2208
    %v2913 = vpack.c.b16 %v2217, %v2209
    %v2914 = vpack.c.b16 %v2218, %v2210
    %v2915 = vpack.c.b16 %v2219, %v2211
    %v2916 = vpack.c.b16 %v2220, %v2212
    %v2917 = vpack.c.b16 %v2221, %v2213
    %v2918 = vpack.c.b16 %v2222, %v2214
    %v2919 = vpack.c.b16 %v2231, %v2223
    %v2920 = vpack.c.b16 %v2232, %v2224
    %v2921 = vpack.c.b16 %v2233, %v2225
    %v2922 = vpack.c.b16 %v2234, %v2226
    %v2923 = vpack.c.b16 %v2235, %v2227
    %v2924 = vpack.c.b16 %v2236, %v2228
    %v2925 = vpack.c.b16 %v2237, %v2229
    %v2926 = vpack.c.b16 %v2238, %v2230
    %v2927 = vpack.c.b16 %v2247, %v2239
    %v2928 = vpack.c.b16 %v2248, %v2240
    %v2929 = vpack.c.b16 %v2249, %v2241
    %v2930 = vpack.c.b16 %v2250, %v2242
    %v2931 = vpack.c.b16 %v2251, %v2243
    %v2932 = vpack.c.b16 %v2252, %v2244
    %v2933 = vpack.c.b16 %v2253, %v2245
    %v2934 = vpack.c.b16 %v2254, %v2246
    %v2935 = vpack.c.b16 %v2263, %v2255
    %v2936 = vpack.c.b16 %v2264, %v2256
    %v2937 = vpack.c.b16 %v2265, %v2257
    %v2938 = vpack.c.b16 %v2266, %v2258
    %v2939 = vpack.c.b16 %v2267, %v2259
    %v2940 = vpack.c.b16 %v2268, %v2260
    %v2941 = vpack.c.b16 %v2269, %v2261
    %v2942 = vpack.c.b16 %v2270, %v2262
    %v2943 = vpack.c.b16 %v2279, %v2271
    %v2944 = vpack.c.b16 %v2280, %v2272
    %v2945 = vpack.c.b16 %v2281, %v2273
    %v2946 = vpack.c.b16 %v2282, %v2274
    %v2947 = vpack.c.b16 %v2283, %v2275
    %v2948 = vpack.c.b16 %v2284, %v2276
    %v2949 = vpack.c.b16 %v2285, %v2277
    %v2950 = vpack.c.b16 %v2286, %v2278
    %v2951 = vpack.c.b16 %v2295, %v2287
    %v2952 = vpack.c.b16 %v2296, %v2288
    %v2953 = vpack.c.b16 %v2297, %v2289
    %v2954 = vpack.c.b16 %v2298, %v2290
    %v2955 = vpack.c.b16 %v2299, %v2291
    %v2956 = vpack.c.b16 %v2300, %v2292
    %v2957 = vpack.c.b16 %v2301, %v2293
    %v2958 = vpack.c.b16 %v2302, %v2294
    %v2959 = vpack.c.b16 %v2311, %v2303
    %v2960 = vpack.c.b16 %v2312, %v2304
    %v2961 = vpack.c.b16 %v2313, %v2305
    %v2962 = vpack.c.b16 %v2314, %v2306
    %v2963 = vpack.c.b16 %v2315, %v2307
    %v2964 = vpack.c.b16 %v2316, %v2308
    %v2965 = vpack.c.b16 %v2317, %v2309
    %v2966 = vpack.c.b16 %v2318, %v2310
    %v2967 = vpack.c.b16 %v2327, %v2319
    %v2968 = vpack.c.b16 %v2328, %v2320
    %v2969 = vpack.c.b16 %v2329, %v2321
    %v2970 = vpack.c.b16 %v2330, %v2322
    %v2971 = vpack.c.b16 %v2331, %v2323
    %v2972 = vpack.c.b16 %v2332, %v2324
    %v2973 = vpack.c.b16 %v2333, %v2325
    %v2974 = vpack.c.b16 %v2334, %v2326
    %v2975 = vpack.c.b16 %v2343, %v2335
    %v2976 = vpack.c.b16 %v2344, %v2336
    %v2977 = vpack.c.b16 %v2345, %v2337
    %v2978 = vpack.c.b16 %v2346, %v2338
    %v2979 = vpack.c.b16 %v2347, %v2339
    %v2980 = vpack.c.b16 %v2348, %v2340
    %v2981 = vpack.c.b16 %v2349, %v2341
    %v2982 = vpack.c.b16 %v2350, %v2342
    %v2983 = vpack.c.b16 %v2359, %v2351
    %v2984 = vpack.c.b16 %v2360, %v2352
    %v2985 = vpack.c.b16 %v2361, %v2353
    %v2986 = vpack.c.b16 %v2362, %v2354
    %v2987 = vpack.c.b16 %v2363, %v2355
    %v2988 = vpack.c.b16 %v2364, %v2356
    %v2989 = vpack.c.b16 %v2365, %v2357
    %v2990 = vpack.c.b16 %v2366, %v2358
    %v2991 = vpack.c.b16 %v2375, %v2367
    %v2992 = vpack.c.b16 %v2376, %v2368
    %v2993 = vpack.c.b16 %v2377, %v2369
    %v2994 = vpack.c.b16 %v2378, %v2370
    %v2995 = vpack.c.b16 %v2379, %v2371
    %v2996 = vpack.c.b16 %v2380, %v2372
    %v2997 = vpack.c.b16 %v2381, %v2373
    %v2998 = vpack.c.b16 %v2382, %v2374
    %v2999 = vpack.c.b16 %v2391, %v2383
    %v3000 = vpack.c.b16 %v2392, %v2384
    %v3001 = vpack.c.b16 %v2393, %v2385
    %v3002 = vpack.c.b16 %v2394, %v2386
    %v3003 = vpack.c.b16 %v2395, %v2387
    %v3004 = vpack.c.b16 %v2396, %v2388
    %v3005 = vpack.c.b16 %v2397, %v2389
    %v3006 = vpack.c.b16 %v2398, %v2390
    %v3007 = vpack.c.b16 %v2407, %v2399
    %v3008 = vpack.c.b16 %v2408, %v2400
    %v3009 = vpack.c.b16 %v2409, %v2401
    %v3010 = vpack.c.b16 %v2410, %v2402
    %v3011 = vpack.c.b16 %v2411, %v2403
    %v3012 = vpack.c.b16 %v2412, %v2404
    %v3013 = vpack.c.b16 %v2413, %v2405
    %v3014 = vpack.c.b16 %v2414, %v2406
    %v3015 = vpack.c.b16 %v2423, %v2415
    %v3016 = vpack.c.b16 %v2424, %v2416
    %v3017 = vpack.c.b16 %v2425, %v2417
    %v3018 = vpack.c.b16 %v2426, %v2418
    %v3019 = vpack.c.b16 %v2427, %v2419
    %v3020 = vpack.c.b16 %v2428, %v2420
    %v3021 = vpack.c.b16 %v2429, %v2421
    %v3022 = vpack.c.b16 %v2430, %v2422
    %v3023 = vpack.c.b16 %v2439, %v2431
    %v3024 = vpack.c.b16 %v2440, %v2432
    %v3025 = vpack.c.b16 %v2441, %v2433
    %v3026 = vpack.c.b16 %v2442, %v2434
    %v3027 = vpack.c.b16 %v2443, %v2435
    %v3028 = vpack.c.b16 %v2444, %v2436
    %v3029 = vpack.c.b16 %v2445, %v2437
    %v3030 = vpack.c.b16 %v2446, %v2438
    %v3031 = vpack.c.b16 %v2455, %v2447
    %v3032 = vpack.c.b16 %v2456, %v2448
    %v3033 = vpack.c.b16 %v2457, %v2449
    %v3034 = vpack.c.b16 %v2458, %v2450
    %v3035 = vpack.c.b16 %v2459, %v2451
    %v3036 = vpack.c.b16 %v2460, %v2452
    %v3037 = vpack.c.b16 %v2461, %v2453
    %v3038 = vpack.c.b16 %v2462, %v2454
    %v3039 = vpack.c.b16 %v2471, %v2463
    %v3040 = vpack.c.b16 %v2472, %v2464
    %v3041 = vpack.c.b16 %v2473, %v2465
    %v3042 = vpack.c.b16 %v2474, %v2466
    %v3043 = vpack.c.b16 %v2475, %v2467
    %v3044 = vpack.c.b16 %v2476, %v2468
    %v3045 = vpack.c.b16 %v2477, %v2469
    %v3046 = vpack.c.b16 %v2478, %v2470
    %v3047 = vpack.c.b16 %v2487, %v2479
    %v3048 = vpack.c.b16 %v2488, %v2480
    %v3049 = vpack.c.b16 %v2489, %v2481
    %v3050 = vpack.c.b16 %v2490, %v2482
    %v3051 = vpack.c.b16 %v2491, %v2483
    %v3052 = vpack.c.b16 %v2492, %v2484
    %v3053 = vpack.c.b16 %v2493, %v2485
    %v3054 = vpack.c.b16 %v2494, %v2486
    %v3055 = vpack.c.b16 %v2503, %v2495
    %v3056 = vpack.c.b16 %v2504, %v2496
    %v3057 = vpack.c.b16 %v2505, %v2497
    %v3058 = vpack.c.b16 %v2506, %v2498
    %v3059 = vpack.c.b16 %v2507, %v2499
    %v3060 = vpack.c.b16 %v2508, %v2500
    %v3061 = vpack.c.b16 %v2509, %v2501
    %v3062 = vpack.c.b16 %v2510, %v2502
    %v3063 = vpack.c.b16 %v2519, %v2511
    %v3064 = vpack.c.b16 %v2520, %v2512
    %v3065 = vpack.c.b16 %v2521, %v2513
    %v3066 = vpack.c.b16 %v2522, %v2514
    %v3067 = vpack.c.b16 %v2523, %v2515
    %v3068 = vpack.c.b16 %v2524, %v2516
    %v3069 = vpack.c.b16 %v2525, %v2517
    %v3070 = vpack.c.b16 %v2526, %v2518
    %v3071 = vpack.c.b16 %v2535, %v2527
    %v3072 = vpack.c.b16 %v2536, %v2528
    %v3073 = vpack.c.b16 %v2537, %v2529
    %v3074 = vpack.c.b16 %v2538, %v2530
    %v3075 = vpack.c.b16 %v2539, %v2531
    %v3076 = vpack.c.b16 %v2540, %v2532
    %v3077 = vpack.c.b16 %v2541, %v2533
    %v3078 = vpack.c.b16 %v2542, %v2534
    %v3079 = vpack.c.b16 %v2551, %v2543
    %v3080 = vpack.c.b16 %v2552, %v2544
    %v3081 = vpack.c.b16 %v2553, %v2545
    %v3082 = vpack.c.b16 %v2554, %v2546
    %v3083 = vpack.c.b16 %v2555, %v2547
    %v3084 = vpack.c.b16 %v2556, %v2548
    %v3085 = vpack.c.b16 %v2557, %v2549
    %v3086 = vpack.c.b16 %v2558, %v2550
    %v3087 = vpack.c.b16 %v2567, %v2559
    %v3088 = vpack.c.b16 %v2568, %v2560
    %v3089 = vpack.c.b16 %v2569, %v2561
    %v3090 = vpack.c.b16 %v2570, %v2562
    %v3091 = vpack.c.b16 %v2571, %v2563
    %v3092 = vpack.c.b16 %v2572, %v2564
    %v3093 = vpack.c.b16 %v2573, %v2565
    %v3094 = vpack.c.b16 %v2574, %v2566
    %v3095 = vpack.c.b16 %v2583, %v2575
    %v3096 = vpack.c.b16 %v2584, %v2576
    %v3097 = vpack.c.b16 %v2585, %v2577
    %v3098 = vpack.c.b16 %v2586, %v2578
    %v3099 = vpack.c.b16 %v2587, %v2579
    %v3100 = vpack.c.b16 %v2588, %v2580
    %v3101 = vpack.c.b16 %v2589, %v2581
    %v3102 = vpack.c.b16 %v2590, %v2582
    %3615 = vmatprep.subr.bf16.mxu0 %v2592
    %3616 = vmatpush1.bf16.msra.mxu0 %v2591
    %3617 = vmatprep.subr.bf16.mxu0 %v2600
    %3618 = vmatpush1.bf16.msra.mxu0 %v2599
    %3619 = vmatprep.subr.bf16.mxu0 %v2608
    %3620 = vmatpush1.bf16.msra.mxu0 %v2607
    %3621 = vmatprep.subr.bf16.mxu0 %v2616
    %3622 = vmatpush1.bf16.msra.mxu0 %v2615
    %3623 = vmatprep.subr.bf16.mxu0 %v2624
    %3624 = vmatpush1.bf16.msra.mxu0 %v2623
    %3625 = vmatprep.subr.bf16.mxu0 %v2632
    %3626 = vmatpush1.bf16.msra.mxu0 %v2631
    %3627 = vmatprep.subr.bf16.mxu0 %v2640
    %3628 = vmatpush1.bf16.msra.mxu0 %v2639
    %3629 = vmatprep.subr.bf16.mxu0 %v2648
    %3630 = vmatpush1.bf16.msra.mxu0 %v2647
    %3631 = vmatprep.subr.bf16.mxu0 %v2656
    %3632 = vmatpush1.bf16.msra.mxu0 %v2655
    %3633 = vmatprep.subr.bf16.mxu0 %v2664
    %3634 = vmatpush1.bf16.msra.mxu0 %v2663
    %3635 = vmatprep.subr.bf16.mxu0 %v2672
    %3636 = vmatpush1.bf16.msra.mxu0 %v2671
    %3637 = vmatprep.subr.bf16.mxu0 %v2680
    %3638 = vmatpush1.bf16.msra.mxu0 %v2679
    %3639 = vmatprep.subr.bf16.mxu0 %v2688
    %3640 = vmatpush1.bf16.msra.mxu0 %v2687
    %3641 = vmatprep.subr.bf16.mxu0 %v2696
    %3642 = vmatpush1.bf16.msra.mxu0 %v2695
    %3643 = vmatprep.subr.bf16.mxu0 %v2704
    %3644 = vmatpush1.bf16.msra.mxu0 %v2703
    %3645 = vmatprep.subr.bf16.mxu0 %v2712
    %3646 = vmatpush1.bf16.msra.mxu0 %v2711
    %3647 = vmatprep.mubr.bf16.mxu0 %v494
    %3648 = vmatmul.mubr.bf16.gmra.mrb[0].mxu0 %v493
    %v3649 = vpop.f32.mrb[0].mxu0
    %v3650 = vadd.f32 %v1018, %v3649
    %v3651 = vpop.f32.mrb[0].mxu0
    %v3652 = vadd.f32 %v1022, %v3651
    %v3653 = vpop.f32.mrb[0].mxu0
    %v3654 = vpop.f32.mrb[0].mxu0
    %3655 = vdwg.mxu0
    %3656 = vmatprep.subr.bf16.mxu0 %v2720
    %3657 = vmatpush1.bf16.msra.mxu0 %v2719
    %3658 = vmatprep.subr.bf16.mxu0 %v2728
    %3659 = vmatpush1.bf16.msra.mxu0 %v2727
    %3660 = vmatprep.subr.bf16.mxu0 %v2736
    %3661 = vmatpush1.bf16.msra.mxu0 %v2735
    %3662 = vmatprep.subr.bf16.mxu0 %v2744
    %3663 = vmatpush1.bf16.msra.mxu0 %v2743
    %3664 = vmatprep.subr.bf16.mxu0 %v2752
    %3665 = vmatpush1.bf16.msra.mxu0 %v2751
    %3666 = vmatprep.subr.bf16.mxu0 %v2760
    %3667 = vmatpush1.bf16.msra.mxu0 %v2759
    %3668 = vmatprep.subr.bf16.mxu0 %v2768
    %3669 = vmatpush1.bf16.msra.mxu0 %v2767
    %3670 = vmatprep.subr.bf16.mxu0 %v2776
    %3671 = vmatpush1.bf16.msra.mxu0 %v2775
    %3672 = vmatprep.subr.bf16.mxu0 %v2784
    %3673 = vmatpush1.bf16.msra.mxu0 %v2783
    %3674 = vmatprep.subr.bf16.mxu0 %v2792
    %3675 = vmatpush1.bf16.msra.mxu0 %v2791
    %3676 = vmatprep.subr.bf16.mxu0 %v2800
    %3677 = vmatpush1.bf16.msra.mxu0 %v2799
    %3678 = vmatprep.subr.bf16.mxu0 %v2808
    %3679 = vmatpush1.bf16.msra.mxu0 %v2807
    %3680 = vmatprep.subr.bf16.mxu0 %v2816
    %3681 = vmatpush1.bf16.msra.mxu0 %v2815
    %3682 = vmatprep.subr.bf16.mxu0 %v2824
    %3683 = vmatpush1.bf16.msra.mxu0 %v2823
    %3684 = vmatprep.subr.bf16.mxu0 %v2832
    %3685 = vmatpush1.bf16.msra.mxu0 %v2831
    %3686 = vmatprep.subr.bf16.mxu0 %v2840
    %3687 = vmatpush1.bf16.msra.mxu0 %v2839
    %3688 = vmatprep.mubr.bf16.mxu0 %v496
    %3689 = vmatmul.mubr.bf16.gmra.mrb[0].mxu0 %v495
    %v3690 = vpop.f32.mrb[0].mxu0
    %v3691 = vadd.f32 %v3650, %v3690
    %v3692 = vpop.f32.mrb[0].mxu0
    %v3693 = vadd.f32 %v3652, %v3692
    %v3694 = vpop.f32.mrb[0].mxu0
    %v3695 = vpop.f32.mrb[0].mxu0
    %3696 = vdwg.mxu0
    %3697 = vmatprep.subr.bf16.mxu0 %v2848
    %3698 = vmatpush1.bf16.msra.mxu0 %v2847
    %3699 = vmatprep.subr.bf16.mxu0 %v2856
    %3700 = vmatpush1.bf16.msra.mxu0 %v2855
    %3701 = vmatprep.subr.bf16.mxu0 %v2864
    %3702 = vmatpush1.bf16.msra.mxu0 %v2863
    %3703 = vmatprep.subr.bf16.mxu0 %v2872
    %3704 = vmatpush1.bf16.msra.mxu0 %v2871
    %3705 = vmatprep.subr.bf16.mxu0 %v2880
    %3706 = vmatpush1.bf16.msra.mxu0 %v2879
    %3707 = vmatprep.subr.bf16.mxu0 %v2888
    %3708 = vmatpush1.bf16.msra.mxu0 %v2887
    %3709 = vmatprep.subr.bf16.mxu0 %v2896
    %3710 = vmatpush1.bf16.msra.mxu0 %v2895
    %3711 = vmatprep.subr.bf16.mxu0 %v2904
    %3712 = vmatpush1.bf16.msra.mxu0 %v2903
    %3713 = vmatprep.subr.bf16.mxu0 %v2912
    %3714 = vmatpush1.bf16.msra.mxu0 %v2911
    %3715 = vmatprep.subr.bf16.mxu0 %v2920
    %3716 = vmatpush1.bf16.msra.mxu0 %v2919
    %3717 = vmatprep.subr.bf16.mxu0 %v2928
    %3718 = vmatpush1.bf16.msra.mxu0 %v2927
    %3719 = vmatprep.subr.bf16.mxu0 %v2936
    %3720 = vmatpush1.bf16.msra.mxu0 %v2935
    %3721 = vmatprep.subr.bf16.mxu0 %v2944
    %3722 = vmatpush1.bf16.msra.mxu0 %v2943
    %3723 = vmatprep.subr.bf16.mxu0 %v2952
    %3724 = vmatpush1.bf16.msra.mxu0 %v2951
    %3725 = vmatprep.subr.bf16.mxu0 %v2960
    %3726 = vmatpush1.bf16.msra.mxu0 %v2959
    %3727 = vmatprep.subr.bf16.mxu0 %v2968
    %3728 = vmatpush1.bf16.msra.mxu0 %v2967
    %3729 = vmatprep.mubr.bf16.mxu0 %v498
    %3730 = vmatmul.mubr.bf16.gmra.mrb[0].mxu0 %v497
    %v3731 = vpop.f32.mrb[0].mxu0
    %v3732 = vadd.f32 %v3691, %v3731
    %v3733 = vpop.f32.mrb[0].mxu0
    %v3734 = vadd.f32 %v3693, %v3733
    %v3735 = vpop.f32.mrb[0].mxu0
    %v3736 = vpop.f32.mrb[0].mxu0
    %3737 = vdwg.mxu0
    %3738 = vmatprep.subr.bf16.mxu0 %v2976
    %3739 = vmatpush1.bf16.msra.mxu0 %v2975
    %3740 = vmatprep.subr.bf16.mxu0 %v2984
    %3741 = vmatpush1.bf16.msra.mxu0 %v2983
    %3742 = vmatprep.subr.bf16.mxu0 %v2992
    %3743 = vmatpush1.bf16.msra.mxu0 %v2991
    %3744 = vmatprep.subr.bf16.mxu0 %v3000
    %3745 = vmatpush1.bf16.msra.mxu0 %v2999
    %3746 = vmatprep.subr.bf16.mxu0 %v3008
    %3747 = vmatpush1.bf16.msra.mxu0 %v3007
    %3748 = vmatprep.subr.bf16.mxu0 %v3016
    %3749 = vmatpush1.bf16.msra.mxu0 %v3015
    %3750 = vmatprep.subr.bf16.mxu0 %v3024
    %3751 = vmatpush1.bf16.msra.mxu0 %v3023
    %3752 = vmatprep.subr.bf16.mxu0 %v3032
    %3753 = vmatpush1.bf16.msra.mxu0 %v3031
    %3754 = vmatprep.subr.bf16.mxu0 %v3040
    %3755 = vmatpush1.bf16.msra.mxu0 %v3039
    %3756 = vmatprep.subr.bf16.mxu0 %v3048
    %3757 = vmatpush1.bf16.msra.mxu0 %v3047
    %3758 = vmatprep.subr.bf16.mxu0 %v3056
    %3759 = vmatpush1.bf16.msra.mxu0 %v3055
    %3760 = vmatprep.subr.bf16.mxu0 %v3064
    %3761 = vmatpush1.bf16.msra.mxu0 %v3063
    %3762 = vmatprep.subr.bf16.mxu0 %v3072
    %3763 = vmatpush1.bf16.msra.mxu0 %v3071
    %3764 = vmatprep.subr.bf16.mxu0 %v3080
    %3765 = vmatpush1.bf16.msra.mxu0 %v3079
    %3766 = vmatprep.subr.bf16.mxu0 %v3088
    %3767 = vmatpush1.bf16.msra.mxu0 %v3087
    %3768 = vmatprep.subr.bf16.mxu0 %v3096
    %3769 = vmatpush1.bf16.msra.mxu0 %v3095
    %3770 = vmatprep.mubr.bf16.mxu0 %v500
    %3771 = vmatmul.mubr.bf16.gmra.mrb[0].mxu0 %v499
    %v3772 = vpop.f32.mrb[0].mxu0
    %v3773 = vadd.f32 %v3732, %v3772
    %v3774 = vpop.f32.mrb[0].mxu0
    %v3775 = vadd.f32 %v3734, %v3774
    %v3776 = vpop.f32.mrb[0].mxu0
    %v3777 = vpop.f32.mrb[0].mxu0
    %3778 = vdwg.mxu0
    %3779 = vmatprep.subr.bf16.mxu0 %v2594
    %3780 = vmatpush1.bf16.msra.mxu0 %v2593
    %3781 = vmatprep.subr.bf16.mxu0 %v2602
    %3782 = vmatpush1.bf16.msra.mxu0 %v2601
    %3783 = vmatprep.subr.bf16.mxu0 %v2610
    %3784 = vmatpush1.bf16.msra.mxu0 %v2609
    %3785 = vmatprep.subr.bf16.mxu0 %v2618
    %3786 = vmatpush1.bf16.msra.mxu0 %v2617
    %3787 = vmatprep.subr.bf16.mxu0 %v2626
    %3788 = vmatpush1.bf16.msra.mxu0 %v2625
    %3789 = vmatprep.subr.bf16.mxu0 %v2634
    %3790 = vmatpush1.bf16.msra.mxu0 %v2633
    %3791 = vmatprep.subr.bf16.mxu0 %v2642
    %3792 = vmatpush1.bf16.msra.mxu0 %v2641
    %3793 = vmatprep.subr.bf16.mxu0 %v2650
    %3794 = vmatpush1.bf16.msra.mxu0 %v2649
    %3795 = vmatprep.subr.bf16.mxu0 %v2658
    %3796 = vmatpush1.bf16.msra.mxu0 %v2657
    %3797 = vmatprep.subr.bf16.mxu0 %v2666
    %3798 = vmatpush1.bf16.msra.mxu0 %v2665
    %3799 = vmatprep.subr.bf16.mxu0 %v2674
    %3800 = vmatpush1.bf16.msra.mxu0 %v2673
    %3801 = vmatprep.subr.bf16.mxu0 %v2682
    %3802 = vmatpush1.bf16.msra.mxu0 %v2681
    %3803 = vmatprep.subr.bf16.mxu0 %v2690
    %3804 = vmatpush1.bf16.msra.mxu0 %v2689
    %3805 = vmatprep.subr.bf16.mxu0 %v2698
    %3806 = vmatpush1.bf16.msra.mxu0 %v2697
    %3807 = vmatprep.subr.bf16.mxu0 %v2706
    %3808 = vmatpush1.bf16.msra.mxu0 %v2705
    %3809 = vmatprep.subr.bf16.mxu0 %v2714
    %3810 = vmatpush1.bf16.msra.mxu0 %v2713
    %3811 = vmatprep.mubr.bf16.mxu0 %v494
    %3812 = vmatmul.mubr.bf16.gmra.mrb[0].mxu0 %v493
    %v3813 = vpop.f32.mrb[0].mxu0
    %v3814 = vadd.f32 %v1026, %v3813
    %v3815 = vpop.f32.mrb[0].mxu0
    %v3816 = vadd.f32 %v1030, %v3815
    %v3817 = vpop.f32.mrb[0].mxu0
    %v3818 = vpop.f32.mrb[0].mxu0
    %3819 = vdwg.mxu0
    %3820 = vmatprep.subr.bf16.mxu0 %v2722
    %3821 = vmatpush1.bf16.msra.mxu0 %v2721
    %3822 = vmatprep.subr.bf16.mxu0 %v2730
    %3823 = vmatpush1.bf16.msra.mxu0 %v2729
    %3824 = vmatprep.subr.bf16.mxu0 %v2738
    %3825 = vmatpush1.bf16.msra.mxu0 %v2737
    %3826 = vmatprep.subr.bf16.mxu0 %v2746
    %3827 = vmatpush1.bf16.msra.mxu0 %v2745
    %3828 = vmatprep.subr.bf16.mxu0 %v2754
    %3829 = vmatpush1.bf16.msra.mxu0 %v2753
    %3830 = vmatprep.subr.bf16.mxu0 %v2762
    %3831 = vmatpush1.bf16.msra.mxu0 %v2761
    %3832 = vmatprep.subr.bf16.mxu0 %v2770
    %3833 = vmatpush1.bf16.msra.mxu0 %v2769
    %3834 = vmatprep.subr.bf16.mxu0 %v2778
    %3835 = vmatpush1.bf16.msra.mxu0 %v2777
    %3836 = vmatprep.subr.bf16.mxu0 %v2786
    %3837 = vmatpush1.bf16.msra.mxu0 %v2785
    %3838 = vmatprep.subr.bf16.mxu0 %v2794
    %3839 = vmatpush1.bf16.msra.mxu0 %v2793
    %3840 = vmatprep.subr.bf16.mxu0 %v2802
    %3841 = vmatpush1.bf16.msra.mxu0 %v2801
    %3842 = vmatprep.subr.bf16.mxu0 %v2810
    %3843 = vmatpush1.bf16.msra.mxu0 %v2809
    %3844 = vmatprep.subr.bf16.mxu0 %v2818
    %3845 = vmatpush1.bf16.msra.mxu0 %v2817
    %3846 = vmatprep.subr.bf16.mxu0 %v2826
    %3847 = vmatpush1.bf16.msra.mxu0 %v2825
    %3848 = vmatprep.subr.bf16.mxu0 %v2834
    %3849 = vmatpush1.bf16.msra.mxu0 %v2833
    %3850 = vmatprep.subr.bf16.mxu0 %v2842
    %3851 = vmatpush1.bf16.msra.mxu0 %v2841
    %3852 = vmatprep.mubr.bf16.mxu0 %v496
    %3853 = vmatmul.mubr.bf16.gmra.mrb[0].mxu0 %v495
    %v3854 = vpop.f32.mrb[0].mxu0
    %v3855 = vadd.f32 %v3814, %v3854
    %v3856 = vpop.f32.mrb[0].mxu0
    %v3857 = vadd.f32 %v3816, %v3856
    %v3858 = vpop.f32.mrb[0].mxu0
    %v3859 = vpop.f32.mrb[0].mxu0
    %3860 = vdwg.mxu0
    %3861 = vmatprep.subr.bf16.mxu0 %v2850
    %3862 = vmatpush1.bf16.msra.mxu0 %v2849
    %3863 = vmatprep.subr.bf16.mxu0 %v2858
    %3864 = vmatpush1.bf16.msra.mxu0 %v2857
    %3865 = vmatprep.subr.bf16.mxu0 %v2866
    %3866 = vmatpush1.bf16.msra.mxu0 %v2865
    %3867 = vmatprep.subr.bf16.mxu0 %v2874
    %3868 = vmatpush1.bf16.msra.mxu0 %v2873
    %3869 = vmatprep.subr.bf16.mxu0 %v2882
    %3870 = vmatpush1.bf16.msra.mxu0 %v2881
    %3871 = vmatprep.subr.bf16.mxu0 %v2890
    %3872 = vmatpush1.bf16.msra.mxu0 %v2889
    %3873 = vmatprep.subr.bf16.mxu0 %v2898
    %3874 = vmatpush1.bf16.msra.mxu0 %v2897
    %3875 = vmatprep.subr.bf16.mxu0 %v2906
    %3876 = vmatpush1.bf16.msra.mxu0 %v2905
    %3877 = vmatprep.subr.bf16.mxu0 %v2914
    %3878 = vmatpush1.bf16.msra.mxu0 %v2913
    %3879 = vmatprep.subr.bf16.mxu0 %v2922
    %3880 = vmatpush1.bf16.msra.mxu0 %v2921
    %3881 = vmatprep.subr.bf16.mxu0 %v2930
    %3882 = vmatpush1.bf16.msra.mxu0 %v2929
    %3883 = vmatprep.subr.bf16.mxu0 %v2938
    %3884 = vmatpush1.bf16.msra.mxu0 %v2937
    %3885 = vmatprep.subr.bf16.mxu0 %v2946
    %3886 = vmatpush1.bf16.msra.mxu0 %v2945
    %3887 = vmatprep.subr.bf16.mxu0 %v2954
    %3888 = vmatpush1.bf16.msra.mxu0 %v2953
    %3889 = vmatprep.subr.bf16.mxu0 %v2962
    %3890 = vmatpush1.bf16.msra.mxu0 %v2961
    %3891 = vmatprep.subr.bf16.mxu0 %v2970
    %3892 = vmatpush1.bf16.msra.mxu0 %v2969
    %3893 = vmatprep.mubr.bf16.mxu0 %v498
    %3894 = vmatmul.mubr.bf16.gmra.mrb[0].mxu0 %v497
    %v3895 = vpop.f32.mrb[0].mxu0
    %v3896 = vadd.f32 %v3855, %v3895
    %v3897 = vpop.f32.mrb[0].mxu0
    %v3898 = vadd.f32 %v3857, %v3897
    %v3899 = vpop.f32.mrb[0].mxu0
    %v3900 = vpop.f32.mrb[0].mxu0
    %3901 = vdwg.mxu0
    %3902 = vmatprep.subr.bf16.mxu0 %v2978
    %3903 = vmatpush1.bf16.msra.mxu0 %v2977
    %3904 = vmatprep.subr.bf16.mxu0 %v2986
    %3905 = vmatpush1.bf16.msra.mxu0 %v2985
    %3906 = vmatprep.subr.bf16.mxu0 %v2994
    %3907 = vmatpush1.bf16.msra.mxu0 %v2993
    %3908 = vmatprep.subr.bf16.mxu0 %v3002
    %3909 = vmatpush1.bf16.msra.mxu0 %v3001
    %3910 = vmatprep.subr.bf16.mxu0 %v3010
    %3911 = vmatpush1.bf16.msra.mxu0 %v3009
    %3912 = vmatprep.subr.bf16.mxu0 %v3018
    %3913 = vmatpush1.bf16.msra.mxu0 %v3017
    %3914 = vmatprep.subr.bf16.mxu0 %v3026
    %3915 = vmatpush1.bf16.msra.mxu0 %v3025
    %3916 = vmatprep.subr.bf16.mxu0 %v3034
    %3917 = vmatpush1.bf16.msra.mxu0 %v3033
    %3918 = vmatprep.subr.bf16.mxu0 %v3042
    %3919 = vmatpush1.bf16.msra.mxu0 %v3041
    %3920 = vmatprep.subr.bf16.mxu0 %v3050
    %3921 = vmatpush1.bf16.msra.mxu0 %v3049
    %3922 = vmatprep.subr.bf16.mxu0 %v3058
    %3923 = vmatpush1.bf16.msra.mxu0 %v3057
    %3924 = vmatprep.subr.bf16.mxu0 %v3066
    %3925 = vmatpush1.bf16.msra.mxu0 %v3065
    %3926 = vmatprep.subr.bf16.mxu0 %v3074
    %3927 = vmatpush1.bf16.msra.mxu0 %v3073
    %3928 = vmatprep.subr.bf16.mxu0 %v3082
    %3929 = vmatpush1.bf16.msra.mxu0 %v3081
    %3930 = vmatprep.subr.bf16.mxu0 %v3090
    %3931 = vmatpush1.bf16.msra.mxu0 %v3089
    %3932 = vmatprep.subr.bf16.mxu0 %v3098
    %3933 = vmatpush1.bf16.msra.mxu0 %v3097
    %3934 = vmatprep.mubr.bf16.mxu0 %v500
    %3935 = vmatmul.mubr.bf16.gmra.mrb[0].mxu0 %v499
    %v3936 = vpop.f32.mrb[0].mxu0
    %v3937 = vadd.f32 %v3896, %v3936
    %v3938 = vpop.f32.mrb[0].mxu0
    %v3939 = vadd.f32 %v3898, %v3938
    %v3940 = vpop.f32.mrb[0].mxu0
    %v3941 = vpop.f32.mrb[0].mxu0
    %3942 = vdwg.mxu0
    %3943 = vmatprep.subr.bf16.mxu0 %v2596
    %3944 = vmatpush1.bf16.msra.mxu0 %v2595
    %3945 = vmatprep.subr.bf16.mxu0 %v2604
    %3946 = vmatpush1.bf16.msra.mxu0 %v2603
    %3947 = vmatprep.subr.bf16.mxu0 %v2612
    %3948 = vmatpush1.bf16.msra.mxu0 %v2611
    %3949 = vmatprep.subr.bf16.mxu0 %v2620
    %3950 = vmatpush1.bf16.msra.mxu0 %v2619
    %3951 = vmatprep.subr.bf16.mxu0 %v2628
    %3952 = vmatpush1.bf16.msra.mxu0 %v2627
    %3953 = vmatprep.subr.bf16.mxu0 %v2636
    %3954 = vmatpush1.bf16.msra.mxu0 %v2635
    %3955 = vmatprep.subr.bf16.mxu0 %v2644
    %3956 = vmatpush1.bf16.msra.mxu0 %v2643
    %3957 = vmatprep.subr.bf16.mxu0 %v2652
    %3958 = vmatpush1.bf16.msra.mxu0 %v2651
    %3959 = vmatprep.subr.bf16.mxu0 %v2660
    %3960 = vmatpush1.bf16.msra.mxu0 %v2659
    %3961 = vmatprep.subr.bf16.mxu0 %v2668
    %3962 = vmatpush1.bf16.msra.mxu0 %v2667
    %3963 = vmatprep.subr.bf16.mxu0 %v2676
    %3964 = vmatpush1.bf16.msra.mxu0 %v2675
    %3965 = vmatprep.subr.bf16.mxu0 %v2684
    %3966 = vmatpush1.bf16.msra.mxu0 %v2683
    %3967 = vmatprep.subr.bf16.mxu0 %v2692
    %3968 = vmatpush1.bf16.msra.mxu0 %v2691
    %3969 = vmatprep.subr.bf16.mxu0 %v2700
    %3970 = vmatpush1.bf16.msra.mxu0 %v2699
    %3971 = vmatprep.subr.bf16.mxu0 %v2708
    %3972 = vmatpush1.bf16.msra.mxu0 %v2707
    %3973 = vmatprep.subr.bf16.mxu0 %v2716
    %3974 = vmatpush1.bf16.msra.mxu0 %v2715
    %3975 = vmatprep.mubr.bf16.mxu0 %v494
    %3976 = vmatmul.mubr.bf16.gmra.mrb[0].mxu0 %v493
    %v3977 = vpop.f32.mrb[0].mxu0
    %v3978 = vadd.f32 %v1034, %v3977
    %v3979 = vpop.f32.mrb[0].mxu0
    %v3980 = vadd.f32 %v1038, %v3979
    %v3981 = vpop.f32.mrb[0].mxu0
    %v3982 = vpop.f32.mrb[0].mxu0
    %3983 = vdwg.mxu0
    %3984 = vmatprep.subr.bf16.mxu0 %v2724
    %3985 = vmatpush1.bf16.msra.mxu0 %v2723
    %3986 = vmatprep.subr.bf16.mxu0 %v2732
    %3987 = vmatpush1.bf16.msra.mxu0 %v2731
    %3988 = vmatprep.subr.bf16.mxu0 %v2740
    %3989 = vmatpush1.bf16.msra.mxu0 %v2739
    %3990 = vmatprep.subr.bf16.mxu0 %v2748
    %3991 = vmatpush1.bf16.msra.mxu0 %v2747
    %3992 = vmatprep.subr.bf16.mxu0 %v2756
    %3993 = vmatpush1.bf16.msra.mxu0 %v2755
    %3994 = vmatprep.subr.bf16.mxu0 %v2764
    %3995 = vmatpush1.bf16.msra.mxu0 %v2763
    %3996 = vmatprep.subr.bf16.mxu0 %v2772
    %3997 = vmatpush1.bf16.msra.mxu0 %v2771
    %3998 = vmatprep.subr.bf16.mxu0 %v2780
    %3999 = vmatpush1.bf16.msra.mxu0 %v2779
    %4000 = vmatprep.subr.bf16.mxu0 %v2788
    %4001 = vmatpush1.bf16.msra.mxu0 %v2787
    %4002 = vmatprep.subr.bf16.mxu0 %v2796
    %4003 = vmatpush1.bf16.msra.mxu0 %v2795
    %4004 = vmatprep.subr.bf16.mxu0 %v2804
    %4005 = vmatpush1.bf16.msra.mxu0 %v2803
    %4006 = vmatprep.subr.bf16.mxu0 %v2812
    %4007 = vmatpush1.bf16.msra.mxu0 %v2811
    %4008 = vmatprep.subr.bf16.mxu0 %v2820
    %4009 = vmatpush1.bf16.msra.mxu0 %v2819
    %4010 = vmatprep.subr.bf16.mxu0 %v2828
    %4011 = vmatpush1.bf16.msra.mxu0 %v2827
    %4012 = vmatprep.subr.bf16.mxu0 %v2836
    %4013 = vmatpush1.bf16.msra.mxu0 %v2835
    %4014 = vmatprep.subr.bf16.mxu0 %v2844
    %4015 = vmatpush1.bf16.msra.mxu0 %v2843
    %4016 = vmatprep.mubr.bf16.mxu0 %v496
    %4017 = vmatmul.mubr.bf16.gmra.mrb[0].mxu0 %v495
    %v4018 = vpop.f32.mrb[0].mxu0
    %v4019 = vadd.f32 %v3978, %v4018
    %v4020 = vpop.f32.mrb[0].mxu0
    %v4021 = vadd.f32 %v3980, %v4020
    %v4022 = vpop.f32.mrb[0].mxu0
    %v4023 = vpop.f32.mrb[0].mxu0
    %4024 = vdwg.mxu0
    %4025 = vmatprep.subr.bf16.mxu0 %v2852
    %4026 = vmatpush1.bf16.msra.mxu0 %v2851
    %4027 = vmatprep.subr.bf16.mxu0 %v2860
    %4028 = vmatpush1.bf16.msra.mxu0 %v2859
    %4029 = vmatprep.subr.bf16.mxu0 %v2868
    %4030 = vmatpush1.bf16.msra.mxu0 %v2867
    %4031 = vmatprep.subr.bf16.mxu0 %v2876
    %4032 = vmatpush1.bf16.msra.mxu0 %v2875
    %4033 = vmatprep.subr.bf16.mxu0 %v2884
    %4034 = vmatpush1.bf16.msra.mxu0 %v2883
    %4035 = vmatprep.subr.bf16.mxu0 %v2892
    %4036 = vmatpush1.bf16.msra.mxu0 %v2891
    %4037 = vmatprep.subr.bf16.mxu0 %v2900
    %4038 = vmatpush1.bf16.msra.mxu0 %v2899
    %4039 = vmatprep.subr.bf16.mxu0 %v2908
    %4040 = vmatpush1.bf16.msra.mxu0 %v2907
    %4041 = vmatprep.subr.bf16.mxu0 %v2916
    %4042 = vmatpush1.bf16.msra.mxu0 %v2915
    %4043 = vmatprep.subr.bf16.mxu0 %v2924
    %4044 = vmatpush1.bf16.msra.mxu0 %v2923
    %4045 = vmatprep.subr.bf16.mxu0 %v2932
    %4046 = vmatpush1.bf16.msra.mxu0 %v2931
    %4047 = vmatprep.subr.bf16.mxu0 %v2940
    %4048 = vmatpush1.bf16.msra.mxu0 %v2939
    %4049 = vmatprep.subr.bf16.mxu0 %v2948
    %4050 = vmatpush1.bf16.msra.mxu0 %v2947
    %4051 = vmatprep.subr.bf16.mxu0 %v2956
    %4052 = vmatpush1.bf16.msra.mxu0 %v2955
    %4053 = vmatprep.subr.bf16.mxu0 %v2964
    %4054 = vmatpush1.bf16.msra.mxu0 %v2963
    %4055 = vmatprep.subr.bf16.mxu0 %v2972
    %4056 = vmatpush1.bf16.msra.mxu0 %v2971
    %4057 = vmatprep.mubr.bf16.mxu0 %v498
    %4058 = vmatmul.mubr.bf16.gmra.mrb[0].mxu0 %v497
    %v4059 = vpop.f32.mrb[0].mxu0
    %v4060 = vadd.f32 %v4019, %v4059
    %v4061 = vpop.f32.mrb[0].mxu0
    %v4062 = vadd.f32 %v4021, %v4061
    %v4063 = vpop.f32.mrb[0].mxu0
    %v4064 = vpop.f32.mrb[0].mxu0
    %4065 = vdwg.mxu0
    %4066 = vmatprep.subr.bf16.mxu0 %v2980
    %4067 = vmatpush1.bf16.msra.mxu0 %v2979
    %4068 = vmatprep.subr.bf16.mxu0 %v2988
    %4069 = vmatpush1.bf16.msra.mxu0 %v2987
    %4070 = vmatprep.subr.bf16.mxu0 %v2996
    %4071 = vmatpush1.bf16.msra.mxu0 %v2995
    %4072 = vmatprep.subr.bf16.mxu0 %v3004
    %4073 = vmatpush1.bf16.msra.mxu0 %v3003
    %4074 = vmatprep.subr.bf16.mxu0 %v3012
    %4075 = vmatpush1.bf16.msra.mxu0 %v3011
    %4076 = vmatprep.subr.bf16.mxu0 %v3020
    %4077 = vmatpush1.bf16.msra.mxu0 %v3019
    %4078 = vmatprep.subr.bf16.mxu0 %v3028
    %4079 = vmatpush1.bf16.msra.mxu0 %v3027
    %4080 = vmatprep.subr.bf16.mxu0 %v3036
    %4081 = vmatpush1.bf16.msra.mxu0 %v3035
    %4082 = vmatprep.subr.bf16.mxu0 %v3044
    %4083 = vmatpush1.bf16.msra.mxu0 %v3043
    %4084 = vmatprep.subr.bf16.mxu0 %v3052
    %4085 = vmatpush1.bf16.msra.mxu0 %v3051
    %4086 = vmatprep.subr.bf16.mxu0 %v3060
    %4087 = vmatpush1.bf16.msra.mxu0 %v3059
    %4088 = vmatprep.subr.bf16.mxu0 %v3068
    %4089 = vmatpush1.bf16.msra.mxu0 %v3067
    %4090 = vmatprep.subr.bf16.mxu0 %v3076
    %4091 = vmatpush1.bf16.msra.mxu0 %v3075
    %4092 = vmatprep.subr.bf16.mxu0 %v3084
    %4093 = vmatpush1.bf16.msra.mxu0 %v3083
    %4094 = vmatprep.subr.bf16.mxu0 %v3092
    %4095 = vmatpush1.bf16.msra.mxu0 %v3091
    %4096 = vmatprep.subr.bf16.mxu0 %v3100
    %4097 = vmatpush1.bf16.msra.mxu0 %v3099
    %4098 = vmatprep.mubr.bf16.mxu0 %v500
    %4099 = vmatmul.mubr.bf16.gmra.mrb[0].mxu0 %v499
    %v4100 = vpop.f32.mrb[0].mxu0
    %v4101 = vadd.f32 %v4060, %v4100
    %v4102 = vpop.f32.mrb[0].mxu0
    %v4103 = vadd.f32 %v4062, %v4102
    %v4104 = vpop.f32.mrb[0].mxu0
    %v4105 = vpop.f32.mrb[0].mxu0
    %4106 = vdwg.mxu0
    %4107 = vmatprep.subr.bf16.mxu0 %v2598
    %4108 = vmatpush1.bf16.msra.mxu0 %v2597
    %4109 = vmatprep.subr.bf16.mxu0 %v2606
    %4110 = vmatpush1.bf16.msra.mxu0 %v2605
    %4111 = vmatprep.subr.bf16.mxu0 %v2614
    %4112 = vmatpush1.bf16.msra.mxu0 %v2613
    %4113 = vmatprep.subr.bf16.mxu0 %v2622
    %4114 = vmatpush1.bf16.msra.mxu0 %v2621
    %4115 = vmatprep.subr.bf16.mxu0 %v2630
    %4116 = vmatpush1.bf16.msra.mxu0 %v2629
    %4117 = vmatprep.subr.bf16.mxu0 %v2638
    %4118 = vmatpush1.bf16.msra.mxu0 %v2637
    %4119 = vmatprep.subr.bf16.mxu0 %v2646
    %4120 = vmatpush1.bf16.msra.mxu0 %v2645
    %4121 = vmatprep.subr.bf16.mxu0 %v2654
    %4122 = vmatpush1.bf16.msra.mxu0 %v2653
    %4123 = vmatprep.subr.bf16.mxu0 %v2662
    %4124 = vmatpush1.bf16.msra.mxu0 %v2661
    %4125 = vmatprep.subr.bf16.mxu0 %v2670
    %4126 = vmatpush1.bf16.msra.mxu0 %v2669
    %4127 = vmatprep.subr.bf16.mxu0 %v2678
    %4128 = vmatpush1.bf16.msra.mxu0 %v2677
    %4129 = vmatprep.subr.bf16.mxu0 %v2686
    %4130 = vmatpush1.bf16.msra.mxu0 %v2685
    %4131 = vmatprep.subr.bf16.mxu0 %v2694
    %4132 = vmatpush1.bf16.msra.mxu0 %v2693
    %4133 = vmatprep.subr.bf16.mxu0 %v2702
    %4134 = vmatpush1.bf16.msra.mxu0 %v2701
    %4135 = vmatprep.subr.bf16.mxu0 %v2710
    %4136 = vmatpush1.bf16.msra.mxu0 %v2709
    %4137 = vmatprep.subr.bf16.mxu0 %v2718
    %4138 = vmatpush1.bf16.msra.mxu0 %v2717
    %4139 = vmatprep.mubr.bf16.mxu0 %v494
    %4140 = vmatmul.mubr.bf16.gmra.mrb[0].mxu0 %v493
    %v4141 = vpop.f32.mrb[0].mxu0
    %v4142 = vadd.f32 %v1042, %v4141
    %v4143 = vpop.f32.mrb[0].mxu0
    %v4144 = vadd.f32 %v1046, %v4143
    %v4145 = vpop.f32.mrb[0].mxu0
    %v4146 = vpop.f32.mrb[0].mxu0
    %4147 = vdwg.mxu0
    %4148 = vmatprep.subr.bf16.mxu0 %v2726
    %4149 = vmatpush1.bf16.msra.mxu0 %v2725
    %4150 = vmatprep.subr.bf16.mxu0 %v2734
    %4151 = vmatpush1.bf16.msra.mxu0 %v2733
    %4152 = vmatprep.subr.bf16.mxu0 %v2742
    %4153 = vmatpush1.bf16.msra.mxu0 %v2741
    %4154 = vmatprep.subr.bf16.mxu0 %v2750
    %4155 = vmatpush1.bf16.msra.mxu0 %v2749
    %4156 = vmatprep.subr.bf16.mxu0 %v2758
    %4157 = vmatpush1.bf16.msra.mxu0 %v2757
    %4158 = vmatprep.subr.bf16.mxu0 %v2766
    %4159 = vmatpush1.bf16.msra.mxu0 %v2765
    %4160 = vmatprep.subr.bf16.mxu0 %v2774
    %4161 = vmatpush1.bf16.msra.mxu0 %v2773
    %4162 = vmatprep.subr.bf16.mxu0 %v2782
    %4163 = vmatpush1.bf16.msra.mxu0 %v2781
    %4164 = vmatprep.subr.bf16.mxu0 %v2790
    %4165 = vmatpush1.bf16.msra.mxu0 %v2789
    %4166 = vmatprep.subr.bf16.mxu0 %v2798
    %4167 = vmatpush1.bf16.msra.mxu0 %v2797
    %4168 = vmatprep.subr.bf16.mxu0 %v2806
    %4169 = vmatpush1.bf16.msra.mxu0 %v2805
    %4170 = vmatprep.subr.bf16.mxu0 %v2814
    %4171 = vmatpush1.bf16.msra.mxu0 %v2813
    %4172 = vmatprep.subr.bf16.mxu0 %v2822
    %4173 = vmatpush1.bf16.msra.mxu0 %v2821
    %4174 = vmatprep.subr.bf16.mxu0 %v2830
    %4175 = vmatpush1.bf16.msra.mxu0 %v2829
    %4176 = vmatprep.subr.bf16.mxu0 %v2838
    %4177 = vmatpush1.bf16.msra.mxu0 %v2837
    %4178 = vmatprep.subr.bf16.mxu0 %v2846
    %4179 = vmatpush1.bf16.msra.mxu0 %v2845
    %4180 = vmatprep.mubr.bf16.mxu0 %v496
    %4181 = vmatmul.mubr.bf16.gmra.mrb[0].mxu0 %v495
    %v4182 = vpop.f32.mrb[0].mxu0
    %v4183 = vadd.f32 %v4142, %v4182
    %v4184 = vpop.f32.mrb[0].mxu0
    %v4185 = vadd.f32 %v4144, %v4184
    %v4186 = vpop.f32.mrb[0].mxu0
    %v4187 = vpop.f32.mrb[0].mxu0
    %4188 = vdwg.mxu0
    %4189 = vmatprep.subr.bf16.mxu0 %v2854
    %4190 = vmatpush1.bf16.msra.mxu0 %v2853
    %4191 = vmatprep.subr.bf16.mxu0 %v2862
    %4192 = vmatpush1.bf16.msra.mxu0 %v2861
    %4193 = vmatprep.subr.bf16.mxu0 %v2870
    %4194 = vmatpush1.bf16.msra.mxu0 %v2869
    %4195 = vmatprep.subr.bf16.mxu0 %v2878
    %4196 = vmatpush1.bf16.msra.mxu0 %v2877
    %4197 = vmatprep.subr.bf16.mxu0 %v2886
    %4198 = vmatpush1.bf16.msra.mxu0 %v2885
    %4199 = vmatprep.subr.bf16.mxu0 %v2894
    %4200 = vmatpush1.bf16.msra.mxu0 %v2893
    %4201 = vmatprep.subr.bf16.mxu0 %v2902
    %4202 = vmatpush1.bf16.msra.mxu0 %v2901
    %4203 = vmatprep.subr.bf16.mxu0 %v2910
    %4204 = vmatpush1.bf16.msra.mxu0 %v2909
    %4205 = vmatprep.subr.bf16.mxu0 %v2918
    %4206 = vmatpush1.bf16.msra.mxu0 %v2917
    %4207 = vmatprep.subr.bf16.mxu0 %v2926
    %4208 = vmatpush1.bf16.msra.mxu0 %v2925
    %4209 = vmatprep.subr.bf16.mxu0 %v2934
    %4210 = vmatpush1.bf16.msra.mxu0 %v2933
    %4211 = vmatprep.subr.bf16.mxu0 %v2942
    %4212 = vmatpush1.bf16.msra.mxu0 %v2941
    %4213 = vmatprep.subr.bf16.mxu0 %v2950
    %4214 = vmatpush1.bf16.msra.mxu0 %v2949
    %4215 = vmatprep.subr.bf16.mxu0 %v2958
    %4216 = vmatpush1.bf16.msra.mxu0 %v2957
    %4217 = vmatprep.subr.bf16.mxu0 %v2966
    %4218 = vmatpush1.bf16.msra.mxu0 %v2965
    %4219 = vmatprep.subr.bf16.mxu0 %v2974
    %4220 = vmatpush1.bf16.msra.mxu0 %v2973
    %4221 = vmatprep.mubr.bf16.mxu0 %v498
    %4222 = vmatmul.mubr.bf16.gmra.mrb[0].mxu0 %v497
    %v4223 = vpop.f32.mrb[0].mxu0
    %v4224 = vadd.f32 %v4183, %v4223
    %v4225 = vpop.f32.mrb[0].mxu0
    %v4226 = vadd.f32 %v4185, %v4225
    %v4227 = vpop.f32.mrb[0].mxu0
    %v4228 = vpop.f32.mrb[0].mxu0
    %4229 = vdwg.mxu0
    %4230 = vmatprep.subr.bf16.mxu0 %v2982
    %4231 = vmatpush1.bf16.msra.mxu0 %v2981
    %4232 = vmatprep.subr.bf16.mxu0 %v2990
    %4233 = vmatpush1.bf16.msra.mxu0 %v2989
    %4234 = vmatprep.subr.bf16.mxu0 %v2998
    %4235 = vmatpush1.bf16.msra.mxu0 %v2997
    %4236 = vmatprep.subr.bf16.mxu0 %v3006
    %4237 = vmatpush1.bf16.msra.mxu0 %v3005
    %4238 = vmatprep.subr.bf16.mxu0 %v3014
    %4239 = vmatpush1.bf16.msra.mxu0 %v3013
    %4240 = vmatprep.subr.bf16.mxu0 %v3022
    %4241 = vmatpush1.bf16.msra.mxu0 %v3021
    %4242 = vmatprep.subr.bf16.mxu0 %v3030
    %4243 = vmatpush1.bf16.msra.mxu0 %v3029
    %4244 = vmatprep.subr.bf16.mxu0 %v3038
    %4245 = vmatpush1.bf16.msra.mxu0 %v3037
    %4246 = vmatprep.subr.bf16.mxu0 %v3046
    %4247 = vmatpush1.bf16.msra.mxu0 %v3045
    %4248 = vmatprep.subr.bf16.mxu0 %v3054
    %4249 = vmatpush1.bf16.msra.mxu0 %v3053
    %4250 = vmatprep.subr.bf16.mxu0 %v3062
    %4251 = vmatpush1.bf16.msra.mxu0 %v3061
    %4252 = vmatprep.subr.bf16.mxu0 %v3070
    %4253 = vmatpush1.bf16.msra.mxu0 %v3069
    %4254 = vmatprep.subr.bf16.mxu0 %v3078
    %4255 = vmatpush1.bf16.msra.mxu0 %v3077
    %4256 = vmatprep.subr.bf16.mxu0 %v3086
    %4257 = vmatpush1.bf16.msra.mxu0 %v3085
    %4258 = vmatprep.subr.bf16.mxu0 %v3094
    %4259 = vmatpush1.bf16.msra.mxu0 %v3093
    %4260 = vmatprep.subr.bf16.mxu0 %v3102
    %4261 = vmatpush1.bf16.msra.mxu0 %v3101
    %4262 = vmatprep.mubr.bf16.mxu0 %v500
    %4263 = vmatmul.mubr.bf16.gmra.mrb[0].mxu0 %v499
    %v4264 = vpop.f32.mrb[0].mxu0
    %v4265 = vadd.f32 %v4224, %v4264
    %v4266 = vpop.f32.mrb[0].mxu0
    %v4267 = vadd.f32 %v4226, %v4266
    %v4268 = vpop.f32.mrb[0].mxu0
    %v4269 = vpop.f32.mrb[0].mxu0
    %4270 = vdwg.mxu0
    %v4271 = vmax.f32 %v3773, 0.0
    %v4272 = vmax.f32 %v3775, 0.0
    %v4273 = vmax.f32 %v3937, 0.0
    %v4274 = vmax.f32 %v3939, 0.0
    %v4275 = vmax.f32 %v4101, 0.0
    %v4276 = vmax.f32 %v4103, 0.0
    %v4277 = vmax.f32 %v4265, 0.0
    %v4278 = vmax.f32 %v4267, 0.0
    %v4279 = vpack.c.bf16 %v4271, %v4271
    %v4280 = vpack.c.bf16 %v4272, %v4272
    %v4281 = vpack.c.bf16 %v4273, %v4273
    %v4282 = vpack.c.bf16 %v4274, %v4274
    %v4283 = vpack.c.bf16 %v4275, %v4275
    %v4284 = vpack.c.bf16 %v4276, %v4276
    %v4285 = vpack.c.bf16 %v4277, %v4277
    %v4286 = vpack.c.bf16 %v4278, %v4278
    %v4287 = vld [vmem:[#allocation11] sm:$0xff]
    %v4288 = vld [vmem:[#allocation11 + $0x8] sm:$0xff]
    %v4289 = vld [vmem:[#allocation11 + $0x10] sm:$0xff]
    %v4290 = vld [vmem:[#allocation11 + $0x18] sm:$0xff]
    %v4291 = vld [vmem:[#allocation11 + $0x20] sm:$0xff]
    %v4292 = vld [vmem:[#allocation11 + $0x28] sm:$0xff]
    %v4293 = vld [vmem:[#allocation11 + $0x30] sm:$0xff]
    %v4294 = vld [vmem:[#allocation11 + $0x38] sm:$0xff]
    %v4295 = vld [vmem:[#allocation11 + $0x40] sm:$0xff]
    %v4296 = vld [vmem:[#allocation11 + $0x48] sm:$0xff]
    %v4297 = vld [vmem:[#allocation11 + $0x50] sm:$0xff]
    %v4298 = vld [vmem:[#allocation11 + $0x58] sm:$0xff]
    %v4299 = vld [vmem:[#allocation11 + $0x60] sm:$0xff]
    %v4300 = vld [vmem:[#allocation11 + $0x68] sm:$0xff]
    %v4301 = vld [vmem:[#allocation11 + $0x70] sm:$0xff]
    %v4302 = vld [vmem:[#allocation11 + $0x78] sm:$0xff]
    %v4303 = vld [vmem:[#allocation11 + $0x80] sm:$0xff]
    %v4304 = vld [vmem:[#allocation11 + $0x88] sm:$0xff]
    %v4305 = vld [vmem:[#allocation11 + $0x90] sm:$0xff]
    %v4306 = vld [vmem:[#allocation11 + $0x98] sm:$0xff]
    %v4307 = vld [vmem:[#allocation11 + $0xa0] sm:$0xff]
    %v4308 = vld [vmem:[#allocation11 + $0xa8] sm:$0xff]
    %v4309 = vld [vmem:[#allocation11 + $0xb0] sm:$0xff]
    %v4310 = vld [vmem:[#allocation11 + $0xb8] sm:$0xff]
    %v4311 = vld [vmem:[#allocation11 + $0xc0] sm:$0xff]
    %v4312 = vld [vmem:[#allocation11 + $0xc8] sm:$0xff]
    %v4313 = vld [vmem:[#allocation11 + $0xd0] sm:$0xff]
    %v4314 = vld [vmem:[#allocation11 + $0xd8] sm:$0xff]
    %v4315 = vld [vmem:[#allocation11 + $0xe0] sm:$0xff]
    %v4316 = vld [vmem:[#allocation11 + $0xe8] sm:$0xff]
    %v4317 = vld [vmem:[#allocation11 + $0xf0] sm:$0xff]
    %v4318 = vld [vmem:[#allocation11 + $0xf8] sm:$0xff]
    %v4319 = vld [vmem:[#allocation11 + $0x100] sm:$0xff]
    %v4320 = vld [vmem:[#allocation11 + $0x108] sm:$0xff]
    %v4321 = vld [vmem:[#allocation11 + $0x110] sm:$0xff]
    %v4322 = vld [vmem:[#allocation11 + $0x118] sm:$0xff]
    %v4323 = vld [vmem:[#allocation11 + $0x120] sm:$0xff]
    %v4324 = vld [vmem:[#allocation11 + $0x128] sm:$0xff]
    %v4325 = vld [vmem:[#allocation11 + $0x130] sm:$0xff]
    %v4326 = vld [vmem:[#allocation11 + $0x138] sm:$0xff]
    %v4327 = vld [vmem:[#allocation11 + $0x140] sm:$0xff]
    %v4328 = vld [vmem:[#allocation11 + $0x148] sm:$0xff]
    %v4329 = vld [vmem:[#allocation11 + $0x150] sm:$0xff]
    %v4330 = vld [vmem:[#allocation11 + $0x158] sm:$0xff]
    %v4331 = vld [vmem:[#allocation11 + $0x160] sm:$0xff]
    %v4332 = vld [vmem:[#allocation11 + $0x168] sm:$0xff]
    %v4333 = vld [vmem:[#allocation11 + $0x170] sm:$0xff]
    %v4334 = vld [vmem:[#allocation11 + $0x178] sm:$0xff]
    %v4335 = vld [vmem:[#allocation11 + $0x180] sm:$0xff]
    %v4336 = vld [vmem:[#allocation11 + $0x188] sm:$0xff]
    %v4337 = vld [vmem:[#allocation11 + $0x190] sm:$0xff]
    %v4338 = vld [vmem:[#allocation11 + $0x198] sm:$0xff]
    %v4339 = vld [vmem:[#allocation11 + $0x1a0] sm:$0xff]
    %v4340 = vld [vmem:[#allocation11 + $0x1a8] sm:$0xff]
    %v4341 = vld [vmem:[#allocation11 + $0x1b0] sm:$0xff]
    %v4342 = vld [vmem:[#allocation11 + $0x1b8] sm:$0xff]
    %v4343 = vld [vmem:[#allocation11 + $0x1c0] sm:$0xff]
    %v4344 = vld [vmem:[#allocation11 + $0x1c8] sm:$0xff]
    %v4345 = vld [vmem:[#allocation11 + $0x1d0] sm:$0xff]
    %v4346 = vld [vmem:[#allocation11 + $0x1d8] sm:$0xff]
    %v4347 = vld [vmem:[#allocation11 + $0x1e0] sm:$0xff]
    %v4348 = vld [vmem:[#allocation11 + $0x1e8] sm:$0xff]
    %v4349 = vld [vmem:[#allocation11 + $0x1f0] sm:$0xff]
    %v4350 = vld [vmem:[#allocation11 + $0x1f8] sm:$0xff]
    %v4351 = vld [vmem:[#allocation11 + $0x200] sm:$0xff]
    %v4352 = vld [vmem:[#allocation11 + $0x208] sm:$0xff]
    %v4353 = vld [vmem:[#allocation11 + $0x210] sm:$0xff]
    %v4354 = vld [vmem:[#allocation11 + $0x218] sm:$0xff]
    %v4355 = vld [vmem:[#allocation11 + $0x220] sm:$0xff]
    %v4356 = vld [vmem:[#allocation11 + $0x228] sm:$0xff]
    %v4357 = vld [vmem:[#allocation11 + $0x230] sm:$0xff]
    %v4358 = vld [vmem:[#allocation11 + $0x238] sm:$0xff]
    %v4359 = vld [vmem:[#allocation11 + $0x240] sm:$0xff]
    %v4360 = vld [vmem:[#allocation11 + $0x248] sm:$0xff]
    %v4361 = vld [vmem:[#allocation11 + $0x250] sm:$0xff]
    %v4362 = vld [vmem:[#allocation11 + $0x258] sm:$0xff]
    %v4363 = vld [vmem:[#allocation11 + $0x260] sm:$0xff]
    %v4364 = vld [vmem:[#allocation11 + $0x268] sm:$0xff]
    %v4365 = vld [vmem:[#allocation11 + $0x270] sm:$0xff]
    %v4366 = vld [vmem:[#allocation11 + $0x278] sm:$0xff]
    %v4367 = vld [vmem:[#allocation11 + $0x280] sm:$0xff]
    %v4368 = vld [vmem:[#allocation11 + $0x288] sm:$0xff]
    %v4369 = vld [vmem:[#allocation11 + $0x290] sm:$0xff]
    %v4370 = vld [vmem:[#allocation11 + $0x298] sm:$0xff]
    %v4371 = vld [vmem:[#allocation11 + $0x2a0] sm:$0xff]
    %v4372 = vld [vmem:[#allocation11 + $0x2a8] sm:$0xff]
    %v4373 = vld [vmem:[#allocation11 + $0x2b0] sm:$0xff]
    %v4374 = vld [vmem:[#allocation11 + $0x2b8] sm:$0xff]
    %v4375 = vld [vmem:[#allocation11 + $0x2c0] sm:$0xff]
    %v4376 = vld [vmem:[#allocation11 + $0x2c8] sm:$0xff]
    %v4377 = vld [vmem:[#allocation11 + $0x2d0] sm:$0xff]
    %v4378 = vld [vmem:[#allocation11 + $0x2d8] sm:$0xff]
    %v4379 = vld [vmem:[#allocation11 + $0x2e0] sm:$0xff]
    %v4380 = vld [vmem:[#allocation11 + $0x2e8] sm:$0xff]
    %v4381 = vld [vmem:[#allocation11 + $0x2f0] sm:$0xff]
    %v4382 = vld [vmem:[#allocation11 + $0x2f8] sm:$0xff]
    %v4383 = vld [vmem:[#allocation11 + $0x300] sm:$0xff]
    %v4384 = vld [vmem:[#allocation11 + $0x308] sm:$0xff]
    %v4385 = vld [vmem:[#allocation11 + $0x310] sm:$0xff]
    %v4386 = vld [vmem:[#allocation11 + $0x318] sm:$0xff]
    %v4387 = vld [vmem:[#allocation11 + $0x320] sm:$0xff]
    %v4388 = vld [vmem:[#allocation11 + $0x328] sm:$0xff]
    %v4389 = vld [vmem:[#allocation11 + $0x330] sm:$0xff]
    %v4390 = vld [vmem:[#allocation11 + $0x338] sm:$0xff]
    %v4391 = vld [vmem:[#allocation11 + $0x340] sm:$0xff]
    %v4392 = vld [vmem:[#allocation11 + $0x348] sm:$0xff]
    %v4393 = vld [vmem:[#allocation11 + $0x350] sm:$0xff]
    %v4394 = vld [vmem:[#allocation11 + $0x358] sm:$0xff]
    %v4395 = vld [vmem:[#allocation11 + $0x360] sm:$0xff]
    %v4396 = vld [vmem:[#allocation11 + $0x368] sm:$0xff]
    %v4397 = vld [vmem:[#allocation11 + $0x370] sm:$0xff]
    %v4398 = vld [vmem:[#allocation11 + $0x378] sm:$0xff]
    %v4399 = vld [vmem:[#allocation11 + $0x380] sm:$0xff]
    %v4400 = vld [vmem:[#allocation11 + $0x388] sm:$0xff]
    %v4401 = vld [vmem:[#allocation11 + $0x390] sm:$0xff]
    %v4402 = vld [vmem:[#allocation11 + $0x398] sm:$0xff]
    %v4403 = vld [vmem:[#allocation11 + $0x3a0] sm:$0xff]
    %v4404 = vld [vmem:[#allocation11 + $0x3a8] sm:$0xff]
    %v4405 = vld [vmem:[#allocation11 + $0x3b0] sm:$0xff]
    %v4406 = vld [vmem:[#allocation11 + $0x3b8] sm:$0xff]
    %v4407 = vld [vmem:[#allocation11 + $0x3c0] sm:$0xff]
    %v4408 = vld [vmem:[#allocation11 + $0x3c8] sm:$0xff]
    %v4409 = vld [vmem:[#allocation11 + $0x3d0] sm:$0xff]
    %v4410 = vld [vmem:[#allocation11 + $0x3d8] sm:$0xff]
    %v4411 = vld [vmem:[#allocation11 + $0x3e0] sm:$0xff]
    %v4412 = vld [vmem:[#allocation11 + $0x3e8] sm:$0xff]
    %v4413 = vld [vmem:[#allocation11 + $0x3f0] sm:$0xff]
    %v4414 = vld [vmem:[#allocation11 + $0x3f8] sm:$0xff]
    %v4415 = vld [vmem:[#allocation11 + $0x400] sm:$0xff]
    %v4416 = vld [vmem:[#allocation11 + $0x408] sm:$0xff]
    %v4417 = vld [vmem:[#allocation11 + $0x410] sm:$0xff]
    %v4418 = vld [vmem:[#allocation11 + $0x418] sm:$0xff]
    %v4419 = vld [vmem:[#allocation11 + $0x420] sm:$0xff]
    %v4420 = vld [vmem:[#allocation11 + $0x428] sm:$0xff]
    %v4421 = vld [vmem:[#allocation11 + $0x430] sm:$0xff]
    %v4422 = vld [vmem:[#allocation11 + $0x438] sm:$0xff]
    %v4423 = vld [vmem:[#allocation11 + $0x440] sm:$0xff]
    %v4424 = vld [vmem:[#allocation11 + $0x448] sm:$0xff]
    %v4425 = vld [vmem:[#allocation11 + $0x450] sm:$0xff]
    %v4426 = vld [vmem:[#allocation11 + $0x458] sm:$0xff]
    %v4427 = vld [vmem:[#allocation11 + $0x460] sm:$0xff]
    %v4428 = vld [vmem:[#allocation11 + $0x468] sm:$0xff]
    %v4429 = vld [vmem:[#allocation11 + $0x470] sm:$0xff]
    %v4430 = vld [vmem:[#allocation11 + $0x478] sm:$0xff]
    %v4431 = vld [vmem:[#allocation11 + $0x480] sm:$0xff]
    %v4432 = vld [vmem:[#allocation11 + $0x488] sm:$0xff]
    %v4433 = vld [vmem:[#allocation11 + $0x490] sm:$0xff]
    %v4434 = vld [vmem:[#allocation11 + $0x498] sm:$0xff]
    %v4435 = vld [vmem:[#allocation11 + $0x4a0] sm:$0xff]
    %v4436 = vld [vmem:[#allocation11 + $0x4a8] sm:$0xff]
    %v4437 = vld [vmem:[#allocation11 + $0x4b0] sm:$0xff]
    %v4438 = vld [vmem:[#allocation11 + $0x4b8] sm:$0xff]
    %v4439 = vld [vmem:[#allocation11 + $0x4c0] sm:$0xff]
    %v4440 = vld [vmem:[#allocation11 + $0x4c8] sm:$0xff]
    %v4441 = vld [vmem:[#allocation11 + $0x4d0] sm:$0xff]
    %v4442 = vld [vmem:[#allocation11 + $0x4d8] sm:$0xff]
    %v4443 = vld [vmem:[#allocation11 + $0x4e0] sm:$0xff]
    %v4444 = vld [vmem:[#allocation11 + $0x4e8] sm:$0xff]
    %v4445 = vld [vmem:[#allocation11 + $0x4f0] sm:$0xff]
    %v4446 = vld [vmem:[#allocation11 + $0x4f8] sm:$0xff]
    %v4447 = vld [vmem:[#allocation11 + $0x500] sm:$0xff]
    %v4448 = vld [vmem:[#allocation11 + $0x508] sm:$0xff]
    %v4449 = vld [vmem:[#allocation11 + $0x510] sm:$0xff]
    %v4450 = vld [vmem:[#allocation11 + $0x518] sm:$0xff]
    %v4451 = vld [vmem:[#allocation11 + $0x520] sm:$0xff]
    %v4452 = vld [vmem:[#allocation11 + $0x528] sm:$0xff]
    %v4453 = vld [vmem:[#allocation11 + $0x530] sm:$0xff]
    %v4454 = vld [vmem:[#allocation11 + $0x538] sm:$0xff]
    %v4455 = vld [vmem:[#allocation11 + $0x540] sm:$0xff]
    %v4456 = vld [vmem:[#allocation11 + $0x548] sm:$0xff]
    %v4457 = vld [vmem:[#allocation11 + $0x550] sm:$0xff]
    %v4458 = vld [vmem:[#allocation11 + $0x558] sm:$0xff]
    %v4459 = vld [vmem:[#allocation11 + $0x560] sm:$0xff]
    %v4460 = vld [vmem:[#allocation11 + $0x568] sm:$0xff]
    %v4461 = vld [vmem:[#allocation11 + $0x570] sm:$0xff]
    %v4462 = vld [vmem:[#allocation11 + $0x578] sm:$0xff]
    %v4463 = vld [vmem:[#allocation11 + $0x580] sm:$0xff]
    %v4464 = vld [vmem:[#allocation11 + $0x588] sm:$0xff]
    %v4465 = vld [vmem:[#allocation11 + $0x590] sm:$0xff]
    %v4466 = vld [vmem:[#allocation11 + $0x598] sm:$0xff]
    %v4467 = vld [vmem:[#allocation11 + $0x5a0] sm:$0xff]
    %v4468 = vld [vmem:[#allocation11 + $0x5a8] sm:$0xff]
    %v4469 = vld [vmem:[#allocation11 + $0x5b0] sm:$0xff]
    %v4470 = vld [vmem:[#allocation11 + $0x5b8] sm:$0xff]
    %v4471 = vld [vmem:[#allocation11 + $0x5c0] sm:$0xff]
    %v4472 = vld [vmem:[#allocation11 + $0x5c8] sm:$0xff]
    %v4473 = vld [vmem:[#allocation11 + $0x5d0] sm:$0xff]
    %v4474 = vld [vmem:[#allocation11 + $0x5d8] sm:$0xff]
    %v4475 = vld [vmem:[#allocation11 + $0x5e0] sm:$0xff]
    %v4476 = vld [vmem:[#allocation11 + $0x5e8] sm:$0xff]
    %v4477 = vld [vmem:[#allocation11 + $0x5f0] sm:$0xff]
    %v4478 = vld [vmem:[#allocation11 + $0x5f8] sm:$0xff]
    %v4479 = vld [vmem:[#allocation11 + $0x600] sm:$0xff]
    %v4480 = vld [vmem:[#allocation11 + $0x608] sm:$0xff]
    %v4481 = vld [vmem:[#allocation11 + $0x610] sm:$0xff]
    %v4482 = vld [vmem:[#allocation11 + $0x618] sm:$0xff]
    %v4483 = vld [vmem:[#allocation11 + $0x620] sm:$0xff]
    %v4484 = vld [vmem:[#allocation11 + $0x628] sm:$0xff]
    %v4485 = vld [vmem:[#allocation11 + $0x630] sm:$0xff]
    %v4486 = vld [vmem:[#allocation11 + $0x638] sm:$0xff]
    %v4487 = vld [vmem:[#allocation11 + $0x640] sm:$0xff]
    %v4488 = vld [vmem:[#allocation11 + $0x648] sm:$0xff]
    %v4489 = vld [vmem:[#allocation11 + $0x650] sm:$0xff]
    %v4490 = vld [vmem:[#allocation11 + $0x658] sm:$0xff]
    %v4491 = vld [vmem:[#allocation11 + $0x660] sm:$0xff]
    %v4492 = vld [vmem:[#allocation11 + $0x668] sm:$0xff]
    %v4493 = vld [vmem:[#allocation11 + $0x670] sm:$0xff]
    %v4494 = vld [vmem:[#allocation11 + $0x678] sm:$0xff]
    %v4495 = vld [vmem:[#allocation11 + $0x680] sm:$0xff]
    %v4496 = vld [vmem:[#allocation11 + $0x688] sm:$0xff]
    %v4497 = vld [vmem:[#allocation11 + $0x690] sm:$0xff]
    %v4498 = vld [vmem:[#allocation11 + $0x698] sm:$0xff]
    %v4499 = vld [vmem:[#allocation11 + $0x6a0] sm:$0xff]
    %v4500 = vld [vmem:[#allocation11 + $0x6a8] sm:$0xff]
    %v4501 = vld [vmem:[#allocation11 + $0x6b0] sm:$0xff]
    %v4502 = vld [vmem:[#allocation11 + $0x6b8] sm:$0xff]
    %v4503 = vld [vmem:[#allocation11 + $0x6c0] sm:$0xff]
    %v4504 = vld [vmem:[#allocation11 + $0x6c8] sm:$0xff]
    %v4505 = vld [vmem:[#allocation11 + $0x6d0] sm:$0xff]
    %v4506 = vld [vmem:[#allocation11 + $0x6d8] sm:$0xff]
    %v4507 = vld [vmem:[#allocation11 + $0x6e0] sm:$0xff]
    %v4508 = vld [vmem:[#allocation11 + $0x6e8] sm:$0xff]
    %v4509 = vld [vmem:[#allocation11 + $0x6f0] sm:$0xff]
    %v4510 = vld [vmem:[#allocation11 + $0x6f8] sm:$0xff]
    %v4511 = vld [vmem:[#allocation11 + $0x700] sm:$0xff]
    %v4512 = vld [vmem:[#allocation11 + $0x708] sm:$0xff]
    %v4513 = vld [vmem:[#allocation11 + $0x710] sm:$0xff]
    %v4514 = vld [vmem:[#allocation11 + $0x718] sm:$0xff]
    %v4515 = vld [vmem:[#allocation11 + $0x720] sm:$0xff]
    %v4516 = vld [vmem:[#allocation11 + $0x728] sm:$0xff]
    %v4517 = vld [vmem:[#allocation11 + $0x730] sm:$0xff]
    %v4518 = vld [vmem:[#allocation11 + $0x738] sm:$0xff]
    %v4519 = vld [vmem:[#allocation11 + $0x740] sm:$0xff]
    %v4520 = vld [vmem:[#allocation11 + $0x748] sm:$0xff]
    %v4521 = vld [vmem:[#allocation11 + $0x750] sm:$0xff]
    %v4522 = vld [vmem:[#allocation11 + $0x758] sm:$0xff]
    %v4523 = vld [vmem:[#allocation11 + $0x760] sm:$0xff]
    %v4524 = vld [vmem:[#allocation11 + $0x768] sm:$0xff]
    %v4525 = vld [vmem:[#allocation11 + $0x770] sm:$0xff]
    %v4526 = vld [vmem:[#allocation11 + $0x778] sm:$0xff]
    %v4527 = vld [vmem:[#allocation11 + $0x780] sm:$0xff]
    %v4528 = vld [vmem:[#allocation11 + $0x788] sm:$0xff]
    %v4529 = vld [vmem:[#allocation11 + $0x790] sm:$0xff]
    %v4530 = vld [vmem:[#allocation11 + $0x798] sm:$0xff]
    %v4531 = vld [vmem:[#allocation11 + $0x7a0] sm:$0xff]
    %v4532 = vld [vmem:[#allocation11 + $0x7a8] sm:$0xff]
    %v4533 = vld [vmem:[#allocation11 + $0x7b0] sm:$0xff]
    %v4534 = vld [vmem:[#allocation11 + $0x7b8] sm:$0xff]
    %v4535 = vld [vmem:[#allocation11 + $0x7c0] sm:$0xff]
    %v4536 = vld [vmem:[#allocation11 + $0x7c8] sm:$0xff]
    %v4537 = vld [vmem:[#allocation11 + $0x7d0] sm:$0xff]
    %v4538 = vld [vmem:[#allocation11 + $0x7d8] sm:$0xff]
    %v4539 = vld [vmem:[#allocation11 + $0x7e0] sm:$0xff]
    %v4540 = vld [vmem:[#allocation11 + $0x7e8] sm:$0xff]
    %v4541 = vld [vmem:[#allocation11 + $0x7f0] sm:$0xff]
    %v4542 = vld [vmem:[#allocation11 + $0x7f8] sm:$0xff]
    %v4543 = vld [vmem:[#allocation11 + $0x800] sm:$0xff]
    %v4544 = vld [vmem:[#allocation11 + $0x808] sm:$0xff]
    %v4545 = vld [vmem:[#allocation11 + $0x810] sm:$0xff]
    %v4546 = vld [vmem:[#allocation11 + $0x818] sm:$0xff]
    %v4547 = vld [vmem:[#allocation11 + $0x820] sm:$0xff]
    %v4548 = vld [vmem:[#allocation11 + $0x828] sm:$0xff]
    %v4549 = vld [vmem:[#allocation11 + $0x830] sm:$0xff]
    %v4550 = vld [vmem:[#allocation11 + $0x838] sm:$0xff]
    %v4551 = vld [vmem:[#allocation11 + $0x840] sm:$0xff]
    %v4552 = vld [vmem:[#allocation11 + $0x848] sm:$0xff]
    %v4553 = vld [vmem:[#allocation11 + $0x850] sm:$0xff]
    %v4554 = vld [vmem:[#allocation11 + $0x858] sm:$0xff]
    %v4555 = vld [vmem:[#allocation11 + $0x860] sm:$0xff]
    %v4556 = vld [vmem:[#allocation11 + $0x868] sm:$0xff]
    %v4557 = vld [vmem:[#allocation11 + $0x870] sm:$0xff]
    %v4558 = vld [vmem:[#allocation11 + $0x878] sm:$0xff]
    %v4559 = vld [vmem:[#allocation11 + $0x880] sm:$0xff]
    %v4560 = vld [vmem:[#allocation11 + $0x888] sm:$0xff]
    %v4561 = vld [vmem:[#allocation11 + $0x890] sm:$0xff]
    %v4562 = vld [vmem:[#allocation11 + $0x898] sm:$0xff]
    %v4563 = vld [vmem:[#allocation11 + $0x8a0] sm:$0xff]
    %v4564 = vld [vmem:[#allocation11 + $0x8a8] sm:$0xff]
    %v4565 = vld [vmem:[#allocation11 + $0x8b0] sm:$0xff]
    %v4566 = vld [vmem:[#allocation11 + $0x8b8] sm:$0xff]
    %v4567 = vld [vmem:[#allocation11 + $0x8c0] sm:$0xff]
    %v4568 = vld [vmem:[#allocation11 + $0x8c8] sm:$0xff]
    %v4569 = vld [vmem:[#allocation11 + $0x8d0] sm:$0xff]
    %v4570 = vld [vmem:[#allocation11 + $0x8d8] sm:$0xff]
    %v4571 = vld [vmem:[#allocation11 + $0x8e0] sm:$0xff]
    %v4572 = vld [vmem:[#allocation11 + $0x8e8] sm:$0xff]
    %v4573 = vld [vmem:[#allocation11 + $0x8f0] sm:$0xff]
    %v4574 = vld [vmem:[#allocation11 + $0x8f8] sm:$0xff]
    %v4575 = vld [vmem:[#allocation11 + $0x900] sm:$0xff]
    %v4576 = vld [vmem:[#allocation11 + $0x908] sm:$0xff]
    %v4577 = vld [vmem:[#allocation11 + $0x910] sm:$0xff]
    %v4578 = vld [vmem:[#allocation11 + $0x918] sm:$0xff]
    %v4579 = vld [vmem:[#allocation11 + $0x920] sm:$0xff]
    %v4580 = vld [vmem:[#allocation11 + $0x928] sm:$0xff]
    %v4581 = vld [vmem:[#allocation11 + $0x930] sm:$0xff]
    %v4582 = vld [vmem:[#allocation11 + $0x938] sm:$0xff]
    %v4583 = vld [vmem:[#allocation11 + $0x940] sm:$0xff]
    %v4584 = vld [vmem:[#allocation11 + $0x948] sm:$0xff]
    %v4585 = vld [vmem:[#allocation11 + $0x950] sm:$0xff]
    %v4586 = vld [vmem:[#allocation11 + $0x958] sm:$0xff]
    %v4587 = vld [vmem:[#allocation11 + $0x960] sm:$0xff]
    %v4588 = vld [vmem:[#allocation11 + $0x968] sm:$0xff]
    %v4589 = vld [vmem:[#allocation11 + $0x970] sm:$0xff]
    %v4590 = vld [vmem:[#allocation11 + $0x978] sm:$0xff]
    %v4591 = vld [vmem:[#allocation11 + $0x980] sm:$0xff]
    %v4592 = vld [vmem:[#allocation11 + $0x988] sm:$0xff]
    %v4593 = vld [vmem:[#allocation11 + $0x990] sm:$0xff]
    %v4594 = vld [vmem:[#allocation11 + $0x998] sm:$0xff]
    %v4595 = vld [vmem:[#allocation11 + $0x9a0] sm:$0xff]
    %v4596 = vld [vmem:[#allocation11 + $0x9a8] sm:$0xff]
    %v4597 = vld [vmem:[#allocation11 + $0x9b0] sm:$0xff]
    %v4598 = vld [vmem:[#allocation11 + $0x9b8] sm:$0xff]
    %v4599 = vld [vmem:[#allocation11 + $0x9c0] sm:$0xff]
    %v4600 = vld [vmem:[#allocation11 + $0x9c8] sm:$0xff]
    %v4601 = vld [vmem:[#allocation11 + $0x9d0] sm:$0xff]
    %v4602 = vld [vmem:[#allocation11 + $0x9d8] sm:$0xff]
    %v4603 = vld [vmem:[#allocation11 + $0x9e0] sm:$0xff]
    %v4604 = vld [vmem:[#allocation11 + $0x9e8] sm:$0xff]
    %v4605 = vld [vmem:[#allocation11 + $0x9f0] sm:$0xff]
    %v4606 = vld [vmem:[#allocation11 + $0x9f8] sm:$0xff]
    %v4607 = vld [vmem:[#allocation11 + $0xa00] sm:$0xff]
    %v4608 = vld [vmem:[#allocation11 + $0xa08] sm:$0xff]
    %v4609 = vld [vmem:[#allocation11 + $0xa10] sm:$0xff]
    %v4610 = vld [vmem:[#allocation11 + $0xa18] sm:$0xff]
    %v4611 = vld [vmem:[#allocation11 + $0xa20] sm:$0xff]
    %v4612 = vld [vmem:[#allocation11 + $0xa28] sm:$0xff]
    %v4613 = vld [vmem:[#allocation11 + $0xa30] sm:$0xff]
    %v4614 = vld [vmem:[#allocation11 + $0xa38] sm:$0xff]
    %v4615 = vld [vmem:[#allocation11 + $0xa40] sm:$0xff]
    %v4616 = vld [vmem:[#allocation11 + $0xa48] sm:$0xff]
    %v4617 = vld [vmem:[#allocation11 + $0xa50] sm:$0xff]
    %v4618 = vld [vmem:[#allocation11 + $0xa58] sm:$0xff]
    %v4619 = vld [vmem:[#allocation11 + $0xa60] sm:$0xff]
    %v4620 = vld [vmem:[#allocation11 + $0xa68] sm:$0xff]
    %v4621 = vld [vmem:[#allocation11 + $0xa70] sm:$0xff]
    %v4622 = vld [vmem:[#allocation11 + $0xa78] sm:$0xff]
    %v4623 = vld [vmem:[#allocation11 + $0xa80] sm:$0xff]
    %v4624 = vld [vmem:[#allocation11 + $0xa88] sm:$0xff]
    %v4625 = vld [vmem:[#allocation11 + $0xa90] sm:$0xff]
    %v4626 = vld [vmem:[#allocation11 + $0xa98] sm:$0xff]
    %v4627 = vld [vmem:[#allocation11 + $0xaa0] sm:$0xff]
    %v4628 = vld [vmem:[#allocation11 + $0xaa8] sm:$0xff]
    %v4629 = vld [vmem:[#allocation11 + $0xab0] sm:$0xff]
    %v4630 = vld [vmem:[#allocation11 + $0xab8] sm:$0xff]
    %v4631 = vld [vmem:[#allocation11 + $0xac0] sm:$0xff]
    %v4632 = vld [vmem:[#allocation11 + $0xac8] sm:$0xff]
    %v4633 = vld [vmem:[#allocation11 + $0xad0] sm:$0xff]
    %v4634 = vld [vmem:[#allocation11 + $0xad8] sm:$0xff]
    %v4635 = vld [vmem:[#allocation11 + $0xae0] sm:$0xff]
    %v4636 = vld [vmem:[#allocation11 + $0xae8] sm:$0xff]
    %v4637 = vld [vmem:[#allocation11 + $0xaf0] sm:$0xff]
    %v4638 = vld [vmem:[#allocation11 + $0xaf8] sm:$0xff]
    %v4639 = vld [vmem:[#allocation11 + $0xb00] sm:$0xff]
    %v4640 = vld [vmem:[#allocation11 + $0xb08] sm:$0xff]
    %v4641 = vld [vmem:[#allocation11 + $0xb10] sm:$0xff]
    %v4642 = vld [vmem:[#allocation11 + $0xb18] sm:$0xff]
    %v4643 = vld [vmem:[#allocation11 + $0xb20] sm:$0xff]
    %v4644 = vld [vmem:[#allocation11 + $0xb28] sm:$0xff]
    %v4645 = vld [vmem:[#allocation11 + $0xb30] sm:$0xff]
    %v4646 = vld [vmem:[#allocation11 + $0xb38] sm:$0xff]
    %v4647 = vld [vmem:[#allocation11 + $0xb40] sm:$0xff]
    %v4648 = vld [vmem:[#allocation11 + $0xb48] sm:$0xff]
    %v4649 = vld [vmem:[#allocation11 + $0xb50] sm:$0xff]
    %v4650 = vld [vmem:[#allocation11 + $0xb58] sm:$0xff]
    %v4651 = vld [vmem:[#allocation11 + $0xb60] sm:$0xff]
    %v4652 = vld [vmem:[#allocation11 + $0xb68] sm:$0xff]
    %v4653 = vld [vmem:[#allocation11 + $0xb70] sm:$0xff]
    %v4654 = vld [vmem:[#allocation11 + $0xb78] sm:$0xff]
    %v4655 = vld [vmem:[#allocation11 + $0xb80] sm:$0xff]
    %v4656 = vld [vmem:[#allocation11 + $0xb88] sm:$0xff]
    %v4657 = vld [vmem:[#allocation11 + $0xb90] sm:$0xff]
    %v4658 = vld [vmem:[#allocation11 + $0xb98] sm:$0xff]
    %v4659 = vld [vmem:[#allocation11 + $0xba0] sm:$0xff]
    %v4660 = vld [vmem:[#allocation11 + $0xba8] sm:$0xff]
    %v4661 = vld [vmem:[#allocation11 + $0xbb0] sm:$0xff]
    %v4662 = vld [vmem:[#allocation11 + $0xbb8] sm:$0xff]
    %v4663 = vld [vmem:[#allocation11 + $0xbc0] sm:$0xff]
    %v4664 = vld [vmem:[#allocation11 + $0xbc8] sm:$0xff]
    %v4665 = vld [vmem:[#allocation11 + $0xbd0] sm:$0xff]
    %v4666 = vld [vmem:[#allocation11 + $0xbd8] sm:$0xff]
    %v4667 = vld [vmem:[#allocation11 + $0xbe0] sm:$0xff]
    %v4668 = vld [vmem:[#allocation11 + $0xbe8] sm:$0xff]
    %v4669 = vld [vmem:[#allocation11 + $0xbf0] sm:$0xff]
    %v4670 = vld [vmem:[#allocation11 + $0xbf8] sm:$0xff]
    %v4671 = vld [vmem:[#allocation11 + $0xc00] sm:$0xff]
    %v4672 = vld [vmem:[#allocation11 + $0xc08] sm:$0xff]
    %v4673 = vld [vmem:[#allocation11 + $0xc10] sm:$0xff]
    %v4674 = vld [vmem:[#allocation11 + $0xc18] sm:$0xff]
    %v4675 = vld [vmem:[#allocation11 + $0xc20] sm:$0xff]
    %v4676 = vld [vmem:[#allocation11 + $0xc28] sm:$0xff]
    %v4677 = vld [vmem:[#allocation11 + $0xc30] sm:$0xff]
    %v4678 = vld [vmem:[#allocation11 + $0xc38] sm:$0xff]
    %v4679 = vld [vmem:[#allocation11 + $0xc40] sm:$0xff]
    %v4680 = vld [vmem:[#allocation11 + $0xc48] sm:$0xff]
    %v4681 = vld [vmem:[#allocation11 + $0xc50] sm:$0xff]
    %v4682 = vld [vmem:[#allocation11 + $0xc58] sm:$0xff]
    %v4683 = vld [vmem:[#allocation11 + $0xc60] sm:$0xff]
    %v4684 = vld [vmem:[#allocation11 + $0xc68] sm:$0xff]
    %v4685 = vld [vmem:[#allocation11 + $0xc70] sm:$0xff]
    %v4686 = vld [vmem:[#allocation11 + $0xc78] sm:$0xff]
    %v4687 = vld [vmem:[#allocation11 + $0xc80] sm:$0xff]
    %v4688 = vld [vmem:[#allocation11 + $0xc88] sm:$0xff]
    %v4689 = vld [vmem:[#allocation11 + $0xc90] sm:$0xff]
    %v4690 = vld [vmem:[#allocation11 + $0xc98] sm:$0xff]
    %v4691 = vld [vmem:[#allocation11 + $0xca0] sm:$0xff]
    %v4692 = vld [vmem:[#allocation11 + $0xca8] sm:$0xff]
    %v4693 = vld [vmem:[#allocation11 + $0xcb0] sm:$0xff]
    %v4694 = vld [vmem:[#allocation11 + $0xcb8] sm:$0xff]
    %v4695 = vld [vmem:[#allocation11 + $0xcc0] sm:$0xff]
    %v4696 = vld [vmem:[#allocation11 + $0xcc8] sm:$0xff]
    %v4697 = vld [vmem:[#allocation11 + $0xcd0] sm:$0xff]
    %v4698 = vld [vmem:[#allocation11 + $0xcd8] sm:$0xff]
    %v4699 = vld [vmem:[#allocation11 + $0xce0] sm:$0xff]
    %v4700 = vld [vmem:[#allocation11 + $0xce8] sm:$0xff]
    %v4701 = vld [vmem:[#allocation11 + $0xcf0] sm:$0xff]
    %v4702 = vld [vmem:[#allocation11 + $0xcf8] sm:$0xff]
    %v4703 = vld [vmem:[#allocation11 + $0xd00] sm:$0xff]
    %v4704 = vld [vmem:[#allocation11 + $0xd08] sm:$0xff]
    %v4705 = vld [vmem:[#allocation11 + $0xd10] sm:$0xff]
    %v4706 = vld [vmem:[#allocation11 + $0xd18] sm:$0xff]
    %v4707 = vld [vmem:[#allocation11 + $0xd20] sm:$0xff]
    %v4708 = vld [vmem:[#allocation11 + $0xd28] sm:$0xff]
    %v4709 = vld [vmem:[#allocation11 + $0xd30] sm:$0xff]
    %v4710 = vld [vmem:[#allocation11 + $0xd38] sm:$0xff]
    %v4711 = vld [vmem:[#allocation11 + $0xd40] sm:$0xff]
    %v4712 = vld [vmem:[#allocation11 + $0xd48] sm:$0xff]
    %v4713 = vld [vmem:[#allocation11 + $0xd50] sm:$0xff]
    %v4714 = vld [vmem:[#allocation11 + $0xd58] sm:$0xff]
    %v4715 = vld [vmem:[#allocation11 + $0xd60] sm:$0xff]
    %v4716 = vld [vmem:[#allocation11 + $0xd68] sm:$0xff]
    %v4717 = vld [vmem:[#allocation11 + $0xd70] sm:$0xff]
    %v4718 = vld [vmem:[#allocation11 + $0xd78] sm:$0xff]
    %v4719 = vld [vmem:[#allocation11 + $0xd80] sm:$0xff]
    %v4720 = vld [vmem:[#allocation11 + $0xd88] sm:$0xff]
    %v4721 = vld [vmem:[#allocation11 + $0xd90] sm:$0xff]
    %v4722 = vld [vmem:[#allocation11 + $0xd98] sm:$0xff]
    %v4723 = vld [vmem:[#allocation11 + $0xda0] sm:$0xff]
    %v4724 = vld [vmem:[#allocation11 + $0xda8] sm:$0xff]
    %v4725 = vld [vmem:[#allocation11 + $0xdb0] sm:$0xff]
    %v4726 = vld [vmem:[#allocation11 + $0xdb8] sm:$0xff]
    %v4727 = vld [vmem:[#allocation11 + $0xdc0] sm:$0xff]
    %v4728 = vld [vmem:[#allocation11 + $0xdc8] sm:$0xff]
    %v4729 = vld [vmem:[#allocation11 + $0xdd0] sm:$0xff]
    %v4730 = vld [vmem:[#allocation11 + $0xdd8] sm:$0xff]
    %v4731 = vld [vmem:[#allocation11 + $0xde0] sm:$0xff]
    %v4732 = vld [vmem:[#allocation11 + $0xde8] sm:$0xff]
    %v4733 = vld [vmem:[#allocation11 + $0xdf0] sm:$0xff]
    %v4734 = vld [vmem:[#allocation11 + $0xdf8] sm:$0xff]
    %v4735 = vld [vmem:[#allocation11 + $0xe00] sm:$0xff]
    %v4736 = vld [vmem:[#allocation11 + $0xe08] sm:$0xff]
    %v4737 = vld [vmem:[#allocation11 + $0xe10] sm:$0xff]
    %v4738 = vld [vmem:[#allocation11 + $0xe18] sm:$0xff]
    %v4739 = vld [vmem:[#allocation11 + $0xe20] sm:$0xff]
    %v4740 = vld [vmem:[#allocation11 + $0xe28] sm:$0xff]
    %v4741 = vld [vmem:[#allocation11 + $0xe30] sm:$0xff]
    %v4742 = vld [vmem:[#allocation11 + $0xe38] sm:$0xff]
    %v4743 = vld [vmem:[#allocation11 + $0xe40] sm:$0xff]
    %v4744 = vld [vmem:[#allocation11 + $0xe48] sm:$0xff]
    %v4745 = vld [vmem:[#allocation11 + $0xe50] sm:$0xff]
    %v4746 = vld [vmem:[#allocation11 + $0xe58] sm:$0xff]
    %v4747 = vld [vmem:[#allocation11 + $0xe60] sm:$0xff]
    %v4748 = vld [vmem:[#allocation11 + $0xe68] sm:$0xff]
    %v4749 = vld [vmem:[#allocation11 + $0xe70] sm:$0xff]
    %v4750 = vld [vmem:[#allocation11 + $0xe78] sm:$0xff]
    %v4751 = vld [vmem:[#allocation11 + $0xe80] sm:$0xff]
    %v4752 = vld [vmem:[#allocation11 + $0xe88] sm:$0xff]
    %v4753 = vld [vmem:[#allocation11 + $0xe90] sm:$0xff]
    %v4754 = vld [vmem:[#allocation11 + $0xe98] sm:$0xff]
    %v4755 = vld [vmem:[#allocation11 + $0xea0] sm:$0xff]
    %v4756 = vld [vmem:[#allocation11 + $0xea8] sm:$0xff]
    %v4757 = vld [vmem:[#allocation11 + $0xeb0] sm:$0xff]
    %v4758 = vld [vmem:[#allocation11 + $0xeb8] sm:$0xff]
    %v4759 = vld [vmem:[#allocation11 + $0xec0] sm:$0xff]
    %v4760 = vld [vmem:[#allocation11 + $0xec8] sm:$0xff]
    %v4761 = vld [vmem:[#allocation11 + $0xed0] sm:$0xff]
    %v4762 = vld [vmem:[#allocation11 + $0xed8] sm:$0xff]
    %v4763 = vld [vmem:[#allocation11 + $0xee0] sm:$0xff]
    %v4764 = vld [vmem:[#allocation11 + $0xee8] sm:$0xff]
    %v4765 = vld [vmem:[#allocation11 + $0xef0] sm:$0xff]
    %v4766 = vld [vmem:[#allocation11 + $0xef8] sm:$0xff]
    %v4767 = vld [vmem:[#allocation11 + $0xf00] sm:$0xff]
    %v4768 = vld [vmem:[#allocation11 + $0xf08] sm:$0xff]
    %v4769 = vld [vmem:[#allocation11 + $0xf10] sm:$0xff]
    %v4770 = vld [vmem:[#allocation11 + $0xf18] sm:$0xff]
    %v4771 = vld [vmem:[#allocation11 + $0xf20] sm:$0xff]
    %v4772 = vld [vmem:[#allocation11 + $0xf28] sm:$0xff]
    %v4773 = vld [vmem:[#allocation11 + $0xf30] sm:$0xff]
    %v4774 = vld [vmem:[#allocation11 + $0xf38] sm:$0xff]
    %v4775 = vld [vmem:[#allocation11 + $0xf40] sm:$0xff]
    %v4776 = vld [vmem:[#allocation11 + $0xf48] sm:$0xff]
    %v4777 = vld [vmem:[#allocation11 + $0xf50] sm:$0xff]
    %v4778 = vld [vmem:[#allocation11 + $0xf58] sm:$0xff]
    %v4779 = vld [vmem:[#allocation11 + $0xf60] sm:$0xff]
    %v4780 = vld [vmem:[#allocation11 + $0xf68] sm:$0xff]
    %v4781 = vld [vmem:[#allocation11 + $0xf70] sm:$0xff]
    %v4782 = vld [vmem:[#allocation11 + $0xf78] sm:$0xff]
    %v4783 = vld [vmem:[#allocation11 + $0xf80] sm:$0xff]
    %v4784 = vld [vmem:[#allocation11 + $0xf88] sm:$0xff]
    %v4785 = vld [vmem:[#allocation11 + $0xf90] sm:$0xff]
    %v4786 = vld [vmem:[#allocation11 + $0xf98] sm:$0xff]
    %v4787 = vld [vmem:[#allocation11 + $0xfa0] sm:$0xff]
    %v4788 = vld [vmem:[#allocation11 + $0xfa8] sm:$0xff]
    %v4789 = vld [vmem:[#allocation11 + $0xfb0] sm:$0xff]
    %v4790 = vld [vmem:[#allocation11 + $0xfb8] sm:$0xff]
    %v4791 = vld [vmem:[#allocation11 + $0xfc0] sm:$0xff]
    %v4792 = vld [vmem:[#allocation11 + $0xfc8] sm:$0xff]
    %v4793 = vld [vmem:[#allocation11 + $0xfd0] sm:$0xff]
    %v4794 = vld [vmem:[#allocation11 + $0xfd8] sm:$0xff]
    %v4795 = vld [vmem:[#allocation11 + $0xfe0] sm:$0xff]
    %v4796 = vld [vmem:[#allocation11 + $0xfe8] sm:$0xff]
    %v4797 = vld [vmem:[#allocation11 + $0xff0] sm:$0xff]
    %v4798 = vld [vmem:[#allocation11 + $0xff8] sm:$0xff]
    %v4799 = vld [vmem:[#allocation13] sm:$0xff]
    %v4801 = vlaneseq
    %v4802 = vshrl.u32 %v4801, 7
    %v4803 = vsub.s32 0, %v4802
    %v4804 = vrot.slane %v4799, %v4803
    %v4805 = vlaneseq
    %v4806 = vshrl.u32 %v4805, 7
    %v4807 = vsub.s32 1, %v4806
    %v4808 = vrot.slane %v4799, %v4807
    %v4809 = vlaneseq
    %v4810 = vshrl.u32 %v4809, 7
    %v4811 = vsub.s32 2, %v4810
    %v4812 = vrot.slane %v4799, %v4811
    %v4813 = vlaneseq
    %v4814 = vshrl.u32 %v4813, 7
    %v4815 = vsub.s32 3, %v4814
    %v4816 = vrot.slane %v4799, %v4815
    %v4817 = vlaneseq
    %v4818 = vshrl.u32 %v4817, 7
    %v4819 = vsub.s32 4, %v4818
    %v4820 = vrot.slane %v4799, %v4819
    %v4821 = vlaneseq
    %v4822 = vshrl.u32 %v4821, 7
    %v4823 = vsub.s32 5, %v4822
    %v4824 = vrot.slane %v4799, %v4823
    %v4825 = vlaneseq
    %v4826 = vshrl.u32 %v4825, 7
    %v4827 = vsub.s32 6, %v4826
    %v4828 = vrot.slane %v4799, %v4827
    %v4829 = vlaneseq
    %v4830 = vshrl.u32 %v4829, 7
    %v4831 = vsub.s32 7, %v4830
    %v4832 = vrot.slane %v4799, %v4831
    %v5353 = vunpack.c.l.b16 %v4287
    %v5354 = vunpack.c.h.b16 %v4287
    %v5355 = vunpack.c.l.b16 %v4288
    %v5356 = vunpack.c.h.b16 %v4288
    %v5357 = vunpack.c.l.b16 %v4289
    %v5358 = vunpack.c.h.b16 %v4289
    %v5359 = vunpack.c.l.b16 %v4290
    %v5360 = vunpack.c.h.b16 %v4290
    %v5361 = vunpack.c.l.b16 %v4291
    %v5362 = vunpack.c.h.b16 %v4291
    %v5363 = vunpack.c.l.b16 %v4292
    %v5364 = vunpack.c.h.b16 %v4292
    %v5365 = vunpack.c.l.b16 %v4293
    %v5366 = vunpack.c.h.b16 %v4293
    %v5367 = vunpack.c.l.b16 %v4294
    %v5368 = vunpack.c.h.b16 %v4294
    %v5369 = vunpack.c.l.b16 %v4295
    %v5370 = vunpack.c.h.b16 %v4295
    %v5371 = vunpack.c.l.b16 %v4296
    %v5372 = vunpack.c.h.b16 %v4296
    %v5373 = vunpack.c.l.b16 %v4297
    %v5374 = vunpack.c.h.b16 %v4297
    %v5375 = vunpack.c.l.b16 %v4298
    %v5376 = vunpack.c.h.b16 %v4298
    %v5377 = vunpack.c.l.b16 %v4299
    %v5378 = vunpack.c.h.b16 %v4299
    %v5379 = vunpack.c.l.b16 %v4300
    %v5380 = vunpack.c.h.b16 %v4300
    %v5381 = vunpack.c.l.b16 %v4301
    %v5382 = vunpack.c.h.b16 %v4301
    %v5383 = vunpack.c.l.b16 %v4302
    %v5384 = vunpack.c.h.b16 %v4302
    %v5385 = vunpack.c.l.b16 %v4303
    %v5386 = vunpack.c.h.b16 %v4303
    %v5387 = vunpack.c.l.b16 %v4304
    %v5388 = vunpack.c.h.b16 %v4304
    %v5389 = vunpack.c.l.b16 %v4305
    %v5390 = vunpack.c.h.b16 %v4305
    %v5391 = vunpack.c.l.b16 %v4306
    %v5392 = vunpack.c.h.b16 %v4306
    %v5393 = vunpack.c.l.b16 %v4307
    %v5394 = vunpack.c.h.b16 %v4307
    %v5395 = vunpack.c.l.b16 %v4308
    %v5396 = vunpack.c.h.b16 %v4308
    %v5397 = vunpack.c.l.b16 %v4309
    %v5398 = vunpack.c.h.b16 %v4309
    %v5399 = vunpack.c.l.b16 %v4310
    %v5400 = vunpack.c.h.b16 %v4310
    %v5401 = vunpack.c.l.b16 %v4311
    %v5402 = vunpack.c.h.b16 %v4311
    %v5403 = vunpack.c.l.b16 %v4312
    %v5404 = vunpack.c.h.b16 %v4312
    %v5405 = vunpack.c.l.b16 %v4313
    %v5406 = vunpack.c.h.b16 %v4313
    %v5407 = vunpack.c.l.b16 %v4314
    %v5408 = vunpack.c.h.b16 %v4314
    %v5409 = vunpack.c.l.b16 %v4315
    %v5410 = vunpack.c.h.b16 %v4315
    %v5411 = vunpack.c.l.b16 %v4316
    %v5412 = vunpack.c.h.b16 %v4316
    %v5413 = vunpack.c.l.b16 %v4317
    %v5414 = vunpack.c.h.b16 %v4317
    %v5415 = vunpack.c.l.b16 %v4318
    %v5416 = vunpack.c.h.b16 %v4318
    %v5417 = vunpack.c.l.b16 %v4319
    %v5418 = vunpack.c.h.b16 %v4319
    %v5419 = vunpack.c.l.b16 %v4320
    %v5420 = vunpack.c.h.b16 %v4320
    %v5421 = vunpack.c.l.b16 %v4321
    %v5422 = vunpack.c.h.b16 %v4321
    %v5423 = vunpack.c.l.b16 %v4322
    %v5424 = vunpack.c.h.b16 %v4322
    %v5425 = vunpack.c.l.b16 %v4323
    %v5426 = vunpack.c.h.b16 %v4323
    %v5427 = vunpack.c.l.b16 %v4324
    %v5428 = vunpack.c.h.b16 %v4324
    %v5429 = vunpack.c.l.b16 %v4325
    %v5430 = vunpack.c.h.b16 %v4325
    %v5431 = vunpack.c.l.b16 %v4326
    %v5432 = vunpack.c.h.b16 %v4326
    %v5433 = vunpack.c.l.b16 %v4327
    %v5434 = vunpack.c.h.b16 %v4327
    %v5435 = vunpack.c.l.b16 %v4328
    %v5436 = vunpack.c.h.b16 %v4328
    %v5437 = vunpack.c.l.b16 %v4329
    %v5438 = vunpack.c.h.b16 %v4329
    %v5439 = vunpack.c.l.b16 %v4330
    %v5440 = vunpack.c.h.b16 %v4330
    %v5441 = vunpack.c.l.b16 %v4331
    %v5442 = vunpack.c.h.b16 %v4331
    %v5443 = vunpack.c.l.b16 %v4332
    %v5444 = vunpack.c.h.b16 %v4332
    %v5445 = vunpack.c.l.b16 %v4333
    %v5446 = vunpack.c.h.b16 %v4333
    %v5447 = vunpack.c.l.b16 %v4334
    %v5448 = vunpack.c.h.b16 %v4334
    %v5449 = vunpack.c.l.b16 %v4335
    %v5450 = vunpack.c.h.b16 %v4335
    %v5451 = vunpack.c.l.b16 %v4336
    %v5452 = vunpack.c.h.b16 %v4336
    %v5453 = vunpack.c.l.b16 %v4337
    %v5454 = vunpack.c.h.b16 %v4337
    %v5455 = vunpack.c.l.b16 %v4338
    %v5456 = vunpack.c.h.b16 %v4338
    %v5457 = vunpack.c.l.b16 %v4339
    %v5458 = vunpack.c.h.b16 %v4339
    %v5459 = vunpack.c.l.b16 %v4340
    %v5460 = vunpack.c.h.b16 %v4340
    %v5461 = vunpack.c.l.b16 %v4341
    %v5462 = vunpack.c.h.b16 %v4341
    %v5463 = vunpack.c.l.b16 %v4342
    %v5464 = vunpack.c.h.b16 %v4342
    %v5465 = vunpack.c.l.b16 %v4343
    %v5466 = vunpack.c.h.b16 %v4343
    %v5467 = vunpack.c.l.b16 %v4344
    %v5468 = vunpack.c.h.b16 %v4344
    %v5469 = vunpack.c.l.b16 %v4345
    %v5470 = vunpack.c.h.b16 %v4345
    %v5471 = vunpack.c.l.b16 %v4346
    %v5472 = vunpack.c.h.b16 %v4346
    %v5473 = vunpack.c.l.b16 %v4347
    %v5474 = vunpack.c.h.b16 %v4347
    %v5475 = vunpack.c.l.b16 %v4348
    %v5476 = vunpack.c.h.b16 %v4348
    %v5477 = vunpack.c.l.b16 %v4349
    %v5478 = vunpack.c.h.b16 %v4349
    %v5479 = vunpack.c.l.b16 %v4350
    %v5480 = vunpack.c.h.b16 %v4350
    %v5481 = vunpack.c.l.b16 %v4351
    %v5482 = vunpack.c.h.b16 %v4351
    %v5483 = vunpack.c.l.b16 %v4352
    %v5484 = vunpack.c.h.b16 %v4352
    %v5485 = vunpack.c.l.b16 %v4353
    %v5486 = vunpack.c.h.b16 %v4353
    %v5487 = vunpack.c.l.b16 %v4354
    %v5488 = vunpack.c.h.b16 %v4354
    %v5489 = vunpack.c.l.b16 %v4355
    %v5490 = vunpack.c.h.b16 %v4355
    %v5491 = vunpack.c.l.b16 %v4356
    %v5492 = vunpack.c.h.b16 %v4356
    %v5493 = vunpack.c.l.b16 %v4357
    %v5494 = vunpack.c.h.b16 %v4357
    %v5495 = vunpack.c.l.b16 %v4358
    %v5496 = vunpack.c.h.b16 %v4358
    %v5497 = vunpack.c.l.b16 %v4359
    %v5498 = vunpack.c.h.b16 %v4359
    %v5499 = vunpack.c.l.b16 %v4360
    %v5500 = vunpack.c.h.b16 %v4360
    %v5501 = vunpack.c.l.b16 %v4361
    %v5502 = vunpack.c.h.b16 %v4361
    %v5503 = vunpack.c.l.b16 %v4362
    %v5504 = vunpack.c.h.b16 %v4362
    %v5505 = vunpack.c.l.b16 %v4363
    %v5506 = vunpack.c.h.b16 %v4363
    %v5507 = vunpack.c.l.b16 %v4364
    %v5508 = vunpack.c.h.b16 %v4364
    %v5509 = vunpack.c.l.b16 %v4365
    %v5510 = vunpack.c.h.b16 %v4365
    %v5511 = vunpack.c.l.b16 %v4366
    %v5512 = vunpack.c.h.b16 %v4366
    %v5513 = vunpack.c.l.b16 %v4367
    %v5514 = vunpack.c.h.b16 %v4367
    %v5515 = vunpack.c.l.b16 %v4368
    %v5516 = vunpack.c.h.b16 %v4368
    %v5517 = vunpack.c.l.b16 %v4369
    %v5518 = vunpack.c.h.b16 %v4369
    %v5519 = vunpack.c.l.b16 %v4370
    %v5520 = vunpack.c.h.b16 %v4370
    %v5521 = vunpack.c.l.b16 %v4371
    %v5522 = vunpack.c.h.b16 %v4371
    %v5523 = vunpack.c.l.b16 %v4372
    %v5524 = vunpack.c.h.b16 %v4372
    %v5525 = vunpack.c.l.b16 %v4373
    %v5526 = vunpack.c.h.b16 %v4373
    %v5527 = vunpack.c.l.b16 %v4374
    %v5528 = vunpack.c.h.b16 %v4374
    %v5529 = vunpack.c.l.b16 %v4375
    %v5530 = vunpack.c.h.b16 %v4375
    %v5531 = vunpack.c.l.b16 %v4376
    %v5532 = vunpack.c.h.b16 %v4376
    %v5533 = vunpack.c.l.b16 %v4377
    %v5534 = vunpack.c.h.b16 %v4377
    %v5535 = vunpack.c.l.b16 %v4378
    %v5536 = vunpack.c.h.b16 %v4378
    %v5537 = vunpack.c.l.b16 %v4379
    %v5538 = vunpack.c.h.b16 %v4379
    %v5539 = vunpack.c.l.b16 %v4380
    %v5540 = vunpack.c.h.b16 %v4380
    %v5541 = vunpack.c.l.b16 %v4381
    %v5542 = vunpack.c.h.b16 %v4381
    %v5543 = vunpack.c.l.b16 %v4382
    %v5544 = vunpack.c.h.b16 %v4382
    %v5545 = vunpack.c.l.b16 %v4383
    %v5546 = vunpack.c.h.b16 %v4383
    %v5547 = vunpack.c.l.b16 %v4384
    %v5548 = vunpack.c.h.b16 %v4384
    %v5549 = vunpack.c.l.b16 %v4385
    %v5550 = vunpack.c.h.b16 %v4385
    %v5551 = vunpack.c.l.b16 %v4386
    %v5552 = vunpack.c.h.b16 %v4386
    %v5553 = vunpack.c.l.b16 %v4387
    %v5554 = vunpack.c.h.b16 %v4387
    %v5555 = vunpack.c.l.b16 %v4388
    %v5556 = vunpack.c.h.b16 %v4388
    %v5557 = vunpack.c.l.b16 %v4389
    %v5558 = vunpack.c.h.b16 %v4389
    %v5559 = vunpack.c.l.b16 %v4390
    %v5560 = vunpack.c.h.b16 %v4390
    %v5561 = vunpack.c.l.b16 %v4391
    %v5562 = vunpack.c.h.b16 %v4391
    %v5563 = vunpack.c.l.b16 %v4392
    %v5564 = vunpack.c.h.b16 %v4392
    %v5565 = vunpack.c.l.b16 %v4393
    %v5566 = vunpack.c.h.b16 %v4393
    %v5567 = vunpack.c.l.b16 %v4394
    %v5568 = vunpack.c.h.b16 %v4394
    %v5569 = vunpack.c.l.b16 %v4395
    %v5570 = vunpack.c.h.b16 %v4395
    %v5571 = vunpack.c.l.b16 %v4396
    %v5572 = vunpack.c.h.b16 %v4396
    %v5573 = vunpack.c.l.b16 %v4397
    %v5574 = vunpack.c.h.b16 %v4397
    %v5575 = vunpack.c.l.b16 %v4398
    %v5576 = vunpack.c.h.b16 %v4398
    %v5577 = vunpack.c.l.b16 %v4399
    %v5578 = vunpack.c.h.b16 %v4399
    %v5579 = vunpack.c.l.b16 %v4400
    %v5580 = vunpack.c.h.b16 %v4400
    %v5581 = vunpack.c.l.b16 %v4401
    %v5582 = vunpack.c.h.b16 %v4401
    %v5583 = vunpack.c.l.b16 %v4402
    %v5584 = vunpack.c.h.b16 %v4402
    %v5585 = vunpack.c.l.b16 %v4403
    %v5586 = vunpack.c.h.b16 %v4403
    %v5587 = vunpack.c.l.b16 %v4404
    %v5588 = vunpack.c.h.b16 %v4404
    %v5589 = vunpack.c.l.b16 %v4405
    %v5590 = vunpack.c.h.b16 %v4405
    %v5591 = vunpack.c.l.b16 %v4406
    %v5592 = vunpack.c.h.b16 %v4406
    %v5593 = vunpack.c.l.b16 %v4407
    %v5594 = vunpack.c.h.b16 %v4407
    %v5595 = vunpack.c.l.b16 %v4408
    %v5596 = vunpack.c.h.b16 %v4408
    %v5597 = vunpack.c.l.b16 %v4409
    %v5598 = vunpack.c.h.b16 %v4409
    %v5599 = vunpack.c.l.b16 %v4410
    %v5600 = vunpack.c.h.b16 %v4410
    %v5601 = vunpack.c.l.b16 %v4411
    %v5602 = vunpack.c.h.b16 %v4411
    %v5603 = vunpack.c.l.b16 %v4412
    %v5604 = vunpack.c.h.b16 %v4412
    %v5605 = vunpack.c.l.b16 %v4413
    %v5606 = vunpack.c.h.b16 %v4413
    %v5607 = vunpack.c.l.b16 %v4414
    %v5608 = vunpack.c.h.b16 %v4414
    %v5609 = vunpack.c.l.b16 %v4415
    %v5610 = vunpack.c.h.b16 %v4415
    %v5611 = vunpack.c.l.b16 %v4416
    %v5612 = vunpack.c.h.b16 %v4416
    %v5613 = vunpack.c.l.b16 %v4417
    %v5614 = vunpack.c.h.b16 %v4417
    %v5615 = vunpack.c.l.b16 %v4418
    %v5616 = vunpack.c.h.b16 %v4418
    %v5617 = vunpack.c.l.b16 %v4419
    %v5618 = vunpack.c.h.b16 %v4419
    %v5619 = vunpack.c.l.b16 %v4420
    %v5620 = vunpack.c.h.b16 %v4420
    %v5621 = vunpack.c.l.b16 %v4421
    %v5622 = vunpack.c.h.b16 %v4421
    %v5623 = vunpack.c.l.b16 %v4422
    %v5624 = vunpack.c.h.b16 %v4422
    %v5625 = vunpack.c.l.b16 %v4423
    %v5626 = vunpack.c.h.b16 %v4423
    %v5627 = vunpack.c.l.b16 %v4424
    %v5628 = vunpack.c.h.b16 %v4424
    %v5629 = vunpack.c.l.b16 %v4425
    %v5630 = vunpack.c.h.b16 %v4425
    %v5631 = vunpack.c.l.b16 %v4426
    %v5632 = vunpack.c.h.b16 %v4426
    %v5633 = vunpack.c.l.b16 %v4427
    %v5634 = vunpack.c.h.b16 %v4427
    %v5635 = vunpack.c.l.b16 %v4428
    %v5636 = vunpack.c.h.b16 %v4428
    %v5637 = vunpack.c.l.b16 %v4429
    %v5638 = vunpack.c.h.b16 %v4429
    %v5639 = vunpack.c.l.b16 %v4430
    %v5640 = vunpack.c.h.b16 %v4430
    %v5641 = vunpack.c.l.b16 %v4431
    %v5642 = vunpack.c.h.b16 %v4431
    %v5643 = vunpack.c.l.b16 %v4432
    %v5644 = vunpack.c.h.b16 %v4432
    %v5645 = vunpack.c.l.b16 %v4433
    %v5646 = vunpack.c.h.b16 %v4433
    %v5647 = vunpack.c.l.b16 %v4434
    %v5648 = vunpack.c.h.b16 %v4434
    %v5649 = vunpack.c.l.b16 %v4435
    %v5650 = vunpack.c.h.b16 %v4435
    %v5651 = vunpack.c.l.b16 %v4436
    %v5652 = vunpack.c.h.b16 %v4436
    %v5653 = vunpack.c.l.b16 %v4437
    %v5654 = vunpack.c.h.b16 %v4437
    %v5655 = vunpack.c.l.b16 %v4438
    %v5656 = vunpack.c.h.b16 %v4438
    %v5657 = vunpack.c.l.b16 %v4439
    %v5658 = vunpack.c.h.b16 %v4439
    %v5659 = vunpack.c.l.b16 %v4440
    %v5660 = vunpack.c.h.b16 %v4440
    %v5661 = vunpack.c.l.b16 %v4441
    %v5662 = vunpack.c.h.b16 %v4441
    %v5663 = vunpack.c.l.b16 %v4442
    %v5664 = vunpack.c.h.b16 %v4442
    %v5665 = vunpack.c.l.b16 %v4443
    %v5666 = vunpack.c.h.b16 %v4443
    %v5667 = vunpack.c.l.b16 %v4444
    %v5668 = vunpack.c.h.b16 %v4444
    %v5669 = vunpack.c.l.b16 %v4445
    %v5670 = vunpack.c.h.b16 %v4445
    %v5671 = vunpack.c.l.b16 %v4446
    %v5672 = vunpack.c.h.b16 %v4446
    %v5673 = vunpack.c.l.b16 %v4447
    %v5674 = vunpack.c.h.b16 %v4447
    %v5675 = vunpack.c.l.b16 %v4448
    %v5676 = vunpack.c.h.b16 %v4448
    %v5677 = vunpack.c.l.b16 %v4449
    %v5678 = vunpack.c.h.b16 %v4449
    %v5679 = vunpack.c.l.b16 %v4450
    %v5680 = vunpack.c.h.b16 %v4450
    %v5681 = vunpack.c.l.b16 %v4451
    %v5682 = vunpack.c.h.b16 %v4451
    %v5683 = vunpack.c.l.b16 %v4452
    %v5684 = vunpack.c.h.b16 %v4452
    %v5685 = vunpack.c.l.b16 %v4453
    %v5686 = vunpack.c.h.b16 %v4453
    %v5687 = vunpack.c.l.b16 %v4454
    %v5688 = vunpack.c.h.b16 %v4454
    %v5689 = vunpack.c.l.b16 %v4455
    %v5690 = vunpack.c.h.b16 %v4455
    %v5691 = vunpack.c.l.b16 %v4456
    %v5692 = vunpack.c.h.b16 %v4456
    %v5693 = vunpack.c.l.b16 %v4457
    %v5694 = vunpack.c.h.b16 %v4457
    %v5695 = vunpack.c.l.b16 %v4458
    %v5696 = vunpack.c.h.b16 %v4458
    %v5697 = vunpack.c.l.b16 %v4459
    %v5698 = vunpack.c.h.b16 %v4459
    %v5699 = vunpack.c.l.b16 %v4460
    %v5700 = vunpack.c.h.b16 %v4460
    %v5701 = vunpack.c.l.b16 %v4461
    %v5702 = vunpack.c.h.b16 %v4461
    %v5703 = vunpack.c.l.b16 %v4462
    %v5704 = vunpack.c.h.b16 %v4462
    %v5705 = vunpack.c.l.b16 %v4463
    %v5706 = vunpack.c.h.b16 %v4463
    %v5707 = vunpack.c.l.b16 %v4464
    %v5708 = vunpack.c.h.b16 %v4464
    %v5709 = vunpack.c.l.b16 %v4465
    %v5710 = vunpack.c.h.b16 %v4465
    %v5711 = vunpack.c.l.b16 %v4466
    %v5712 = vunpack.c.h.b16 %v4466
    %v5713 = vunpack.c.l.b16 %v4467
    %v5714 = vunpack.c.h.b16 %v4467
    %v5715 = vunpack.c.l.b16 %v4468
    %v5716 = vunpack.c.h.b16 %v4468
    %v5717 = vunpack.c.l.b16 %v4469
    %v5718 = vunpack.c.h.b16 %v4469
    %v5719 = vunpack.c.l.b16 %v4470
    %v5720 = vunpack.c.h.b16 %v4470
    %v5721 = vunpack.c.l.b16 %v4471
    %v5722 = vunpack.c.h.b16 %v4471
    %v5723 = vunpack.c.l.b16 %v4472
    %v5724 = vunpack.c.h.b16 %v4472
    %v5725 = vunpack.c.l.b16 %v4473
    %v5726 = vunpack.c.h.b16 %v4473
    %v5727 = vunpack.c.l.b16 %v4474
    %v5728 = vunpack.c.h.b16 %v4474
    %v5729 = vunpack.c.l.b16 %v4475
    %v5730 = vunpack.c.h.b16 %v4475
    %v5731 = vunpack.c.l.b16 %v4476
    %v5732 = vunpack.c.h.b16 %v4476
    %v5733 = vunpack.c.l.b16 %v4477
    %v5734 = vunpack.c.h.b16 %v4477
    %v5735 = vunpack.c.l.b16 %v4478
    %v5736 = vunpack.c.h.b16 %v4478
    %v5737 = vunpack.c.l.b16 %v4479
    %v5738 = vunpack.c.h.b16 %v4479
    %v5739 = vunpack.c.l.b16 %v4480
    %v5740 = vunpack.c.h.b16 %v4480
    %v5741 = vunpack.c.l.b16 %v4481
    %v5742 = vunpack.c.h.b16 %v4481
    %v5743 = vunpack.c.l.b16 %v4482
    %v5744 = vunpack.c.h.b16 %v4482
    %v5745 = vunpack.c.l.b16 %v4483
    %v5746 = vunpack.c.h.b16 %v4483
    %v5747 = vunpack.c.l.b16 %v4484
    %v5748 = vunpack.c.h.b16 %v4484
    %v5749 = vunpack.c.l.b16 %v4485
    %v5750 = vunpack.c.h.b16 %v4485
    %v5751 = vunpack.c.l.b16 %v4486
    %v5752 = vunpack.c.h.b16 %v4486
    %v5753 = vunpack.c.l.b16 %v4487
    %v5754 = vunpack.c.h.b16 %v4487
    %v5755 = vunpack.c.l.b16 %v4488
    %v5756 = vunpack.c.h.b16 %v4488
    %v5757 = vunpack.c.l.b16 %v4489
    %v5758 = vunpack.c.h.b16 %v4489
    %v5759 = vunpack.c.l.b16 %v4490
    %v5760 = vunpack.c.h.b16 %v4490
    %v5761 = vunpack.c.l.b16 %v4491
    %v5762 = vunpack.c.h.b16 %v4491
    %v5763 = vunpack.c.l.b16 %v4492
    %v5764 = vunpack.c.h.b16 %v4492
    %v5765 = vunpack.c.l.b16 %v4493
    %v5766 = vunpack.c.h.b16 %v4493
    %v5767 = vunpack.c.l.b16 %v4494
    %v5768 = vunpack.c.h.b16 %v4494
    %v5769 = vunpack.c.l.b16 %v4495
    %v5770 = vunpack.c.h.b16 %v4495
    %v5771 = vunpack.c.l.b16 %v4496
    %v5772 = vunpack.c.h.b16 %v4496
    %v5773 = vunpack.c.l.b16 %v4497
    %v5774 = vunpack.c.h.b16 %v4497
    %v5775 = vunpack.c.l.b16 %v4498
    %v5776 = vunpack.c.h.b16 %v4498
    %v5777 = vunpack.c.l.b16 %v4499
    %v5778 = vunpack.c.h.b16 %v4499
    %v5779 = vunpack.c.l.b16 %v4500
    %v5780 = vunpack.c.h.b16 %v4500
    %v5781 = vunpack.c.l.b16 %v4501
    %v5782 = vunpack.c.h.b16 %v4501
    %v5783 = vunpack.c.l.b16 %v4502
    %v5784 = vunpack.c.h.b16 %v4502
    %v5785 = vunpack.c.l.b16 %v4503
    %v5786 = vunpack.c.h.b16 %v4503
    %v5787 = vunpack.c.l.b16 %v4504
    %v5788 = vunpack.c.h.b16 %v4504
    %v5789 = vunpack.c.l.b16 %v4505
    %v5790 = vunpack.c.h.b16 %v4505
    %v5791 = vunpack.c.l.b16 %v4506
    %v5792 = vunpack.c.h.b16 %v4506
    %v5793 = vunpack.c.l.b16 %v4507
    %v5794 = vunpack.c.h.b16 %v4507
    %v5795 = vunpack.c.l.b16 %v4508
    %v5796 = vunpack.c.h.b16 %v4508
    %v5797 = vunpack.c.l.b16 %v4509
    %v5798 = vunpack.c.h.b16 %v4509
    %v5799 = vunpack.c.l.b16 %v4510
    %v5800 = vunpack.c.h.b16 %v4510
    %v5801 = vunpack.c.l.b16 %v4511
    %v5802 = vunpack.c.h.b16 %v4511
    %v5803 = vunpack.c.l.b16 %v4512
    %v5804 = vunpack.c.h.b16 %v4512
    %v5805 = vunpack.c.l.b16 %v4513
    %v5806 = vunpack.c.h.b16 %v4513
    %v5807 = vunpack.c.l.b16 %v4514
    %v5808 = vunpack.c.h.b16 %v4514
    %v5809 = vunpack.c.l.b16 %v4515
    %v5810 = vunpack.c.h.b16 %v4515
    %v5811 = vunpack.c.l.b16 %v4516
    %v5812 = vunpack.c.h.b16 %v4516
    %v5813 = vunpack.c.l.b16 %v4517
    %v5814 = vunpack.c.h.b16 %v4517
    %v5815 = vunpack.c.l.b16 %v4518
    %v5816 = vunpack.c.h.b16 %v4518
    %v5817 = vunpack.c.l.b16 %v4519
    %v5818 = vunpack.c.h.b16 %v4519
    %v5819 = vunpack.c.l.b16 %v4520
    %v5820 = vunpack.c.h.b16 %v4520
    %v5821 = vunpack.c.l.b16 %v4521
    %v5822 = vunpack.c.h.b16 %v4521
    %v5823 = vunpack.c.l.b16 %v4522
    %v5824 = vunpack.c.h.b16 %v4522
    %v5825 = vunpack.c.l.b16 %v4523
    %v5826 = vunpack.c.h.b16 %v4523
    %v5827 = vunpack.c.l.b16 %v4524
    %v5828 = vunpack.c.h.b16 %v4524
    %v5829 = vunpack.c.l.b16 %v4525
    %v5830 = vunpack.c.h.b16 %v4525
    %v5831 = vunpack.c.l.b16 %v4526
    %v5832 = vunpack.c.h.b16 %v4526
    %v5833 = vunpack.c.l.b16 %v4527
    %v5834 = vunpack.c.h.b16 %v4527
    %v5835 = vunpack.c.l.b16 %v4528
    %v5836 = vunpack.c.h.b16 %v4528
    %v5837 = vunpack.c.l.b16 %v4529
    %v5838 = vunpack.c.h.b16 %v4529
    %v5839 = vunpack.c.l.b16 %v4530
    %v5840 = vunpack.c.h.b16 %v4530
    %v5841 = vunpack.c.l.b16 %v4531
    %v5842 = vunpack.c.h.b16 %v4531
    %v5843 = vunpack.c.l.b16 %v4532
    %v5844 = vunpack.c.h.b16 %v4532
    %v5845 = vunpack.c.l.b16 %v4533
    %v5846 = vunpack.c.h.b16 %v4533
    %v5847 = vunpack.c.l.b16 %v4534
    %v5848 = vunpack.c.h.b16 %v4534
    %v5849 = vunpack.c.l.b16 %v4535
    %v5850 = vunpack.c.h.b16 %v4535
    %v5851 = vunpack.c.l.b16 %v4536
    %v5852 = vunpack.c.h.b16 %v4536
    %v5853 = vunpack.c.l.b16 %v4537
    %v5854 = vunpack.c.h.b16 %v4537
    %v5855 = vunpack.c.l.b16 %v4538
    %v5856 = vunpack.c.h.b16 %v4538
    %v5857 = vunpack.c.l.b16 %v4539
    %v5858 = vunpack.c.h.b16 %v4539
    %v5859 = vunpack.c.l.b16 %v4540
    %v5860 = vunpack.c.h.b16 %v4540
    %v5861 = vunpack.c.l.b16 %v4541
    %v5862 = vunpack.c.h.b16 %v4541
    %v5863 = vunpack.c.l.b16 %v4542
    %v5864 = vunpack.c.h.b16 %v4542
    %v5865 = vunpack.c.l.b16 %v4543
    %v5866 = vunpack.c.h.b16 %v4543
    %v5867 = vunpack.c.l.b16 %v4544
    %v5868 = vunpack.c.h.b16 %v4544
    %v5869 = vunpack.c.l.b16 %v4545
    %v5870 = vunpack.c.h.b16 %v4545
    %v5871 = vunpack.c.l.b16 %v4546
    %v5872 = vunpack.c.h.b16 %v4546
    %v5873 = vunpack.c.l.b16 %v4547
    %v5874 = vunpack.c.h.b16 %v4547
    %v5875 = vunpack.c.l.b16 %v4548
    %v5876 = vunpack.c.h.b16 %v4548
    %v5877 = vunpack.c.l.b16 %v4549
    %v5878 = vunpack.c.h.b16 %v4549
    %v5879 = vunpack.c.l.b16 %v4550
    %v5880 = vunpack.c.h.b16 %v4550
    %v5881 = vunpack.c.l.b16 %v4551
    %v5882 = vunpack.c.h.b16 %v4551
    %v5883 = vunpack.c.l.b16 %v4552
    %v5884 = vunpack.c.h.b16 %v4552
    %v5885 = vunpack.c.l.b16 %v4553
    %v5886 = vunpack.c.h.b16 %v4553
    %v5887 = vunpack.c.l.b16 %v4554
    %v5888 = vunpack.c.h.b16 %v4554
    %v5889 = vunpack.c.l.b16 %v4555
    %v5890 = vunpack.c.h.b16 %v4555
    %v5891 = vunpack.c.l.b16 %v4556
    %v5892 = vunpack.c.h.b16 %v4556
    %v5893 = vunpack.c.l.b16 %v4557
    %v5894 = vunpack.c.h.b16 %v4557
    %v5895 = vunpack.c.l.b16 %v4558
    %v5896 = vunpack.c.h.b16 %v4558
    %v5897 = vunpack.c.l.b16 %v4559
    %v5898 = vunpack.c.h.b16 %v4559
    %v5899 = vunpack.c.l.b16 %v4560
    %v5900 = vunpack.c.h.b16 %v4560
    %v5901 = vunpack.c.l.b16 %v4561
    %v5902 = vunpack.c.h.b16 %v4561
    %v5903 = vunpack.c.l.b16 %v4562
    %v5904 = vunpack.c.h.b16 %v4562
    %v5905 = vunpack.c.l.b16 %v4563
    %v5906 = vunpack.c.h.b16 %v4563
    %v5907 = vunpack.c.l.b16 %v4564
    %v5908 = vunpack.c.h.b16 %v4564
    %v5909 = vunpack.c.l.b16 %v4565
    %v5910 = vunpack.c.h.b16 %v4565
    %v5911 = vunpack.c.l.b16 %v4566
    %v5912 = vunpack.c.h.b16 %v4566
    %v5913 = vunpack.c.l.b16 %v4567
    %v5914 = vunpack.c.h.b16 %v4567
    %v5915 = vunpack.c.l.b16 %v4568
    %v5916 = vunpack.c.h.b16 %v4568
    %v5917 = vunpack.c.l.b16 %v4569
    %v5918 = vunpack.c.h.b16 %v4569
    %v5919 = vunpack.c.l.b16 %v4570
    %v5920 = vunpack.c.h.b16 %v4570
    %v5921 = vunpack.c.l.b16 %v4571
    %v5922 = vunpack.c.h.b16 %v4571
    %v5923 = vunpack.c.l.b16 %v4572
    %v5924 = vunpack.c.h.b16 %v4572
    %v5925 = vunpack.c.l.b16 %v4573
    %v5926 = vunpack.c.h.b16 %v4573
    %v5927 = vunpack.c.l.b16 %v4574
    %v5928 = vunpack.c.h.b16 %v4574
    %v5929 = vunpack.c.l.b16 %v4575
    %v5930 = vunpack.c.h.b16 %v4575
    %v5931 = vunpack.c.l.b16 %v4576
    %v5932 = vunpack.c.h.b16 %v4576
    %v5933 = vunpack.c.l.b16 %v4577
    %v5934 = vunpack.c.h.b16 %v4577
    %v5935 = vunpack.c.l.b16 %v4578
    %v5936 = vunpack.c.h.b16 %v4578
    %v5937 = vunpack.c.l.b16 %v4579
    %v5938 = vunpack.c.h.b16 %v4579
    %v5939 = vunpack.c.l.b16 %v4580
    %v5940 = vunpack.c.h.b16 %v4580
    %v5941 = vunpack.c.l.b16 %v4581
    %v5942 = vunpack.c.h.b16 %v4581
    %v5943 = vunpack.c.l.b16 %v4582
    %v5944 = vunpack.c.h.b16 %v4582
    %v5945 = vunpack.c.l.b16 %v4583
    %v5946 = vunpack.c.h.b16 %v4583
    %v5947 = vunpack.c.l.b16 %v4584
    %v5948 = vunpack.c.h.b16 %v4584
    %v5949 = vunpack.c.l.b16 %v4585
    %v5950 = vunpack.c.h.b16 %v4585
    %v5951 = vunpack.c.l.b16 %v4586
    %v5952 = vunpack.c.h.b16 %v4586
    %v5953 = vunpack.c.l.b16 %v4587
    %v5954 = vunpack.c.h.b16 %v4587
    %v5955 = vunpack.c.l.b16 %v4588
    %v5956 = vunpack.c.h.b16 %v4588
    %v5957 = vunpack.c.l.b16 %v4589
    %v5958 = vunpack.c.h.b16 %v4589
    %v5959 = vunpack.c.l.b16 %v4590
    %v5960 = vunpack.c.h.b16 %v4590
    %v5961 = vunpack.c.l.b16 %v4591
    %v5962 = vunpack.c.h.b16 %v4591
    %v5963 = vunpack.c.l.b16 %v4592
    %v5964 = vunpack.c.h.b16 %v4592
    %v5965 = vunpack.c.l.b16 %v4593
    %v5966 = vunpack.c.h.b16 %v4593
    %v5967 = vunpack.c.l.b16 %v4594
    %v5968 = vunpack.c.h.b16 %v4594
    %v5969 = vunpack.c.l.b16 %v4595
    %v5970 = vunpack.c.h.b16 %v4595
    %v5971 = vunpack.c.l.b16 %v4596
    %v5972 = vunpack.c.h.b16 %v4596
    %v5973 = vunpack.c.l.b16 %v4597
    %v5974 = vunpack.c.h.b16 %v4597
    %v5975 = vunpack.c.l.b16 %v4598
    %v5976 = vunpack.c.h.b16 %v4598
    %v5977 = vunpack.c.l.b16 %v4599
    %v5978 = vunpack.c.h.b16 %v4599
    %v5979 = vunpack.c.l.b16 %v4600
    %v5980 = vunpack.c.h.b16 %v4600
    %v5981 = vunpack.c.l.b16 %v4601
    %v5982 = vunpack.c.h.b16 %v4601
    %v5983 = vunpack.c.l.b16 %v4602
    %v5984 = vunpack.c.h.b16 %v4602
    %v5985 = vunpack.c.l.b16 %v4603
    %v5986 = vunpack.c.h.b16 %v4603
    %v5987 = vunpack.c.l.b16 %v4604
    %v5988 = vunpack.c.h.b16 %v4604
    %v5989 = vunpack.c.l.b16 %v4605
    %v5990 = vunpack.c.h.b16 %v4605
    %v5991 = vunpack.c.l.b16 %v4606
    %v5992 = vunpack.c.h.b16 %v4606
    %v5993 = vunpack.c.l.b16 %v4607
    %v5994 = vunpack.c.h.b16 %v4607
    %v5995 = vunpack.c.l.b16 %v4608
    %v5996 = vunpack.c.h.b16 %v4608
    %v5997 = vunpack.c.l.b16 %v4609
    %v5998 = vunpack.c.h.b16 %v4609
    %v5999 = vunpack.c.l.b16 %v4610
    %v6000 = vunpack.c.h.b16 %v4610
    %v6001 = vunpack.c.l.b16 %v4611
    %v6002 = vunpack.c.h.b16 %v4611
    %v6003 = vunpack.c.l.b16 %v4612
    %v6004 = vunpack.c.h.b16 %v4612
    %v6005 = vunpack.c.l.b16 %v4613
    %v6006 = vunpack.c.h.b16 %v4613
    %v6007 = vunpack.c.l.b16 %v4614
    %v6008 = vunpack.c.h.b16 %v4614
    %v6009 = vunpack.c.l.b16 %v4615
    %v6010 = vunpack.c.h.b16 %v4615
    %v6011 = vunpack.c.l.b16 %v4616
    %v6012 = vunpack.c.h.b16 %v4616
    %v6013 = vunpack.c.l.b16 %v4617
    %v6014 = vunpack.c.h.b16 %v4617
    %v6015 = vunpack.c.l.b16 %v4618
    %v6016 = vunpack.c.h.b16 %v4618
    %v6017 = vunpack.c.l.b16 %v4619
    %v6018 = vunpack.c.h.b16 %v4619
    %v6019 = vunpack.c.l.b16 %v4620
    %v6020 = vunpack.c.h.b16 %v4620
    %v6021 = vunpack.c.l.b16 %v4621
    %v6022 = vunpack.c.h.b16 %v4621
    %v6023 = vunpack.c.l.b16 %v4622
    %v6024 = vunpack.c.h.b16 %v4622
    %v6025 = vunpack.c.l.b16 %v4623
    %v6026 = vunpack.c.h.b16 %v4623
    %v6027 = vunpack.c.l.b16 %v4624
    %v6028 = vunpack.c.h.b16 %v4624
    %v6029 = vunpack.c.l.b16 %v4625
    %v6030 = vunpack.c.h.b16 %v4625
    %v6031 = vunpack.c.l.b16 %v4626
    %v6032 = vunpack.c.h.b16 %v4626
    %v6033 = vunpack.c.l.b16 %v4627
    %v6034 = vunpack.c.h.b16 %v4627
    %v6035 = vunpack.c.l.b16 %v4628
    %v6036 = vunpack.c.h.b16 %v4628
    %v6037 = vunpack.c.l.b16 %v4629
    %v6038 = vunpack.c.h.b16 %v4629
    %v6039 = vunpack.c.l.b16 %v4630
    %v6040 = vunpack.c.h.b16 %v4630
    %v6041 = vunpack.c.l.b16 %v4631
    %v6042 = vunpack.c.h.b16 %v4631
    %v6043 = vunpack.c.l.b16 %v4632
    %v6044 = vunpack.c.h.b16 %v4632
    %v6045 = vunpack.c.l.b16 %v4633
    %v6046 = vunpack.c.h.b16 %v4633
    %v6047 = vunpack.c.l.b16 %v4634
    %v6048 = vunpack.c.h.b16 %v4634
    %v6049 = vunpack.c.l.b16 %v4635
    %v6050 = vunpack.c.h.b16 %v4635
    %v6051 = vunpack.c.l.b16 %v4636
    %v6052 = vunpack.c.h.b16 %v4636
    %v6053 = vunpack.c.l.b16 %v4637
    %v6054 = vunpack.c.h.b16 %v4637
    %v6055 = vunpack.c.l.b16 %v4638
    %v6056 = vunpack.c.h.b16 %v4638
    %v6057 = vunpack.c.l.b16 %v4639
    %v6058 = vunpack.c.h.b16 %v4639
    %v6059 = vunpack.c.l.b16 %v4640
    %v6060 = vunpack.c.h.b16 %v4640
    %v6061 = vunpack.c.l.b16 %v4641
    %v6062 = vunpack.c.h.b16 %v4641
    %v6063 = vunpack.c.l.b16 %v4642
    %v6064 = vunpack.c.h.b16 %v4642
    %v6065 = vunpack.c.l.b16 %v4643
    %v6066 = vunpack.c.h.b16 %v4643
    %v6067 = vunpack.c.l.b16 %v4644
    %v6068 = vunpack.c.h.b16 %v4644
    %v6069 = vunpack.c.l.b16 %v4645
    %v6070 = vunpack.c.h.b16 %v4645
    %v6071 = vunpack.c.l.b16 %v4646
    %v6072 = vunpack.c.h.b16 %v4646
    %v6073 = vunpack.c.l.b16 %v4647
    %v6074 = vunpack.c.h.b16 %v4647
    %v6075 = vunpack.c.l.b16 %v4648
    %v6076 = vunpack.c.h.b16 %v4648
    %v6077 = vunpack.c.l.b16 %v4649
    %v6078 = vunpack.c.h.b16 %v4649
    %v6079 = vunpack.c.l.b16 %v4650
    %v6080 = vunpack.c.h.b16 %v4650
    %v6081 = vunpack.c.l.b16 %v4651
    %v6082 = vunpack.c.h.b16 %v4651
    %v6083 = vunpack.c.l.b16 %v4652
    %v6084 = vunpack.c.h.b16 %v4652
    %v6085 = vunpack.c.l.b16 %v4653
    %v6086 = vunpack.c.h.b16 %v4653
    %v6087 = vunpack.c.l.b16 %v4654
    %v6088 = vunpack.c.h.b16 %v4654
    %v6089 = vunpack.c.l.b16 %v4655
    %v6090 = vunpack.c.h.b16 %v4655
    %v6091 = vunpack.c.l.b16 %v4656
    %v6092 = vunpack.c.h.b16 %v4656
    %v6093 = vunpack.c.l.b16 %v4657
    %v6094 = vunpack.c.h.b16 %v4657
    %v6095 = vunpack.c.l.b16 %v4658
    %v6096 = vunpack.c.h.b16 %v4658
    %v6097 = vunpack.c.l.b16 %v4659
    %v6098 = vunpack.c.h.b16 %v4659
    %v6099 = vunpack.c.l.b16 %v4660
    %v6100 = vunpack.c.h.b16 %v4660
    %v6101 = vunpack.c.l.b16 %v4661
    %v6102 = vunpack.c.h.b16 %v4661
    %v6103 = vunpack.c.l.b16 %v4662
    %v6104 = vunpack.c.h.b16 %v4662
    %v6105 = vunpack.c.l.b16 %v4663
    %v6106 = vunpack.c.h.b16 %v4663
    %v6107 = vunpack.c.l.b16 %v4664
    %v6108 = vunpack.c.h.b16 %v4664
    %v6109 = vunpack.c.l.b16 %v4665
    %v6110 = vunpack.c.h.b16 %v4665
    %v6111 = vunpack.c.l.b16 %v4666
    %v6112 = vunpack.c.h.b16 %v4666
    %v6113 = vunpack.c.l.b16 %v4667
    %v6114 = vunpack.c.h.b16 %v4667
    %v6115 = vunpack.c.l.b16 %v4668
    %v6116 = vunpack.c.h.b16 %v4668
    %v6117 = vunpack.c.l.b16 %v4669
    %v6118 = vunpack.c.h.b16 %v4669
    %v6119 = vunpack.c.l.b16 %v4670
    %v6120 = vunpack.c.h.b16 %v4670
    %v6121 = vunpack.c.l.b16 %v4671
    %v6122 = vunpack.c.h.b16 %v4671
    %v6123 = vunpack.c.l.b16 %v4672
    %v6124 = vunpack.c.h.b16 %v4672
    %v6125 = vunpack.c.l.b16 %v4673
    %v6126 = vunpack.c.h.b16 %v4673
    %v6127 = vunpack.c.l.b16 %v4674
    %v6128 = vunpack.c.h.b16 %v4674
    %v6129 = vunpack.c.l.b16 %v4675
    %v6130 = vunpack.c.h.b16 %v4675
    %v6131 = vunpack.c.l.b16 %v4676
    %v6132 = vunpack.c.h.b16 %v4676
    %v6133 = vunpack.c.l.b16 %v4677
    %v6134 = vunpack.c.h.b16 %v4677
    %v6135 = vunpack.c.l.b16 %v4678
    %v6136 = vunpack.c.h.b16 %v4678
    %v6137 = vunpack.c.l.b16 %v4679
    %v6138 = vunpack.c.h.b16 %v4679
    %v6139 = vunpack.c.l.b16 %v4680
    %v6140 = vunpack.c.h.b16 %v4680
    %v6141 = vunpack.c.l.b16 %v4681
    %v6142 = vunpack.c.h.b16 %v4681
    %v6143 = vunpack.c.l.b16 %v4682
    %v6144 = vunpack.c.h.b16 %v4682
    %v6145 = vunpack.c.l.b16 %v4683
    %v6146 = vunpack.c.h.b16 %v4683
    %v6147 = vunpack.c.l.b16 %v4684
    %v6148 = vunpack.c.h.b16 %v4684
    %v6149 = vunpack.c.l.b16 %v4685
    %v6150 = vunpack.c.h.b16 %v4685
    %v6151 = vunpack.c.l.b16 %v4686
    %v6152 = vunpack.c.h.b16 %v4686
    %v6153 = vunpack.c.l.b16 %v4687
    %v6154 = vunpack.c.h.b16 %v4687
    %v6155 = vunpack.c.l.b16 %v4688
    %v6156 = vunpack.c.h.b16 %v4688
    %v6157 = vunpack.c.l.b16 %v4689
    %v6158 = vunpack.c.h.b16 %v4689
    %v6159 = vunpack.c.l.b16 %v4690
    %v6160 = vunpack.c.h.b16 %v4690
    %v6161 = vunpack.c.l.b16 %v4691
    %v6162 = vunpack.c.h.b16 %v4691
    %v6163 = vunpack.c.l.b16 %v4692
    %v6164 = vunpack.c.h.b16 %v4692
    %v6165 = vunpack.c.l.b16 %v4693
    %v6166 = vunpack.c.h.b16 %v4693
    %v6167 = vunpack.c.l.b16 %v4694
    %v6168 = vunpack.c.h.b16 %v4694
    %v6169 = vunpack.c.l.b16 %v4695
    %v6170 = vunpack.c.h.b16 %v4695
    %v6171 = vunpack.c.l.b16 %v4696
    %v6172 = vunpack.c.h.b16 %v4696
    %v6173 = vunpack.c.l.b16 %v4697
    %v6174 = vunpack.c.h.b16 %v4697
    %v6175 = vunpack.c.l.b16 %v4698
    %v6176 = vunpack.c.h.b16 %v4698
    %v6177 = vunpack.c.l.b16 %v4699
    %v6178 = vunpack.c.h.b16 %v4699
    %v6179 = vunpack.c.l.b16 %v4700
    %v6180 = vunpack.c.h.b16 %v4700
    %v6181 = vunpack.c.l.b16 %v4701
    %v6182 = vunpack.c.h.b16 %v4701
    %v6183 = vunpack.c.l.b16 %v4702
    %v6184 = vunpack.c.h.b16 %v4702
    %v6185 = vunpack.c.l.b16 %v4703
    %v6186 = vunpack.c.h.b16 %v4703
    %v6187 = vunpack.c.l.b16 %v4704
    %v6188 = vunpack.c.h.b16 %v4704
    %v6189 = vunpack.c.l.b16 %v4705
    %v6190 = vunpack.c.h.b16 %v4705
    %v6191 = vunpack.c.l.b16 %v4706
    %v6192 = vunpack.c.h.b16 %v4706
    %v6193 = vunpack.c.l.b16 %v4707
    %v6194 = vunpack.c.h.b16 %v4707
    %v6195 = vunpack.c.l.b16 %v4708
    %v6196 = vunpack.c.h.b16 %v4708
    %v6197 = vunpack.c.l.b16 %v4709
    %v6198 = vunpack.c.h.b16 %v4709
    %v6199 = vunpack.c.l.b16 %v4710
    %v6200 = vunpack.c.h.b16 %v4710
    %v6201 = vunpack.c.l.b16 %v4711
    %v6202 = vunpack.c.h.b16 %v4711
    %v6203 = vunpack.c.l.b16 %v4712
    %v6204 = vunpack.c.h.b16 %v4712
    %v6205 = vunpack.c.l.b16 %v4713
    %v6206 = vunpack.c.h.b16 %v4713
    %v6207 = vunpack.c.l.b16 %v4714
    %v6208 = vunpack.c.h.b16 %v4714
    %v6209 = vunpack.c.l.b16 %v4715
    %v6210 = vunpack.c.h.b16 %v4715
    %v6211 = vunpack.c.l.b16 %v4716
    %v6212 = vunpack.c.h.b16 %v4716
    %v6213 = vunpack.c.l.b16 %v4717
    %v6214 = vunpack.c.h.b16 %v4717
    %v6215 = vunpack.c.l.b16 %v4718
    %v6216 = vunpack.c.h.b16 %v4718
    %v6217 = vunpack.c.l.b16 %v4719
    %v6218 = vunpack.c.h.b16 %v4719
    %v6219 = vunpack.c.l.b16 %v4720
    %v6220 = vunpack.c.h.b16 %v4720
    %v6221 = vunpack.c.l.b16 %v4721
    %v6222 = vunpack.c.h.b16 %v4721
    %v6223 = vunpack.c.l.b16 %v4722
    %v6224 = vunpack.c.h.b16 %v4722
    %v6225 = vunpack.c.l.b16 %v4723
    %v6226 = vunpack.c.h.b16 %v4723
    %v6227 = vunpack.c.l.b16 %v4724
    %v6228 = vunpack.c.h.b16 %v4724
    %v6229 = vunpack.c.l.b16 %v4725
    %v6230 = vunpack.c.h.b16 %v4725
    %v6231 = vunpack.c.l.b16 %v4726
    %v6232 = vunpack.c.h.b16 %v4726
    %v6233 = vunpack.c.l.b16 %v4727
    %v6234 = vunpack.c.h.b16 %v4727
    %v6235 = vunpack.c.l.b16 %v4728
    %v6236 = vunpack.c.h.b16 %v4728
    %v6237 = vunpack.c.l.b16 %v4729
    %v6238 = vunpack.c.h.b16 %v4729
    %v6239 = vunpack.c.l.b16 %v4730
    %v6240 = vunpack.c.h.b16 %v4730
    %v6241 = vunpack.c.l.b16 %v4731
    %v6242 = vunpack.c.h.b16 %v4731
    %v6243 = vunpack.c.l.b16 %v4732
    %v6244 = vunpack.c.h.b16 %v4732
    %v6245 = vunpack.c.l.b16 %v4733
    %v6246 = vunpack.c.h.b16 %v4733
    %v6247 = vunpack.c.l.b16 %v4734
    %v6248 = vunpack.c.h.b16 %v4734
    %v6249 = vunpack.c.l.b16 %v4735
    %v6250 = vunpack.c.h.b16 %v4735
    %v6251 = vunpack.c.l.b16 %v4736
    %v6252 = vunpack.c.h.b16 %v4736
    %v6253 = vunpack.c.l.b16 %v4737
    %v6254 = vunpack.c.h.b16 %v4737
    %v6255 = vunpack.c.l.b16 %v4738
    %v6256 = vunpack.c.h.b16 %v4738
    %v6257 = vunpack.c.l.b16 %v4739
    %v6258 = vunpack.c.h.b16 %v4739
    %v6259 = vunpack.c.l.b16 %v4740
    %v6260 = vunpack.c.h.b16 %v4740
    %v6261 = vunpack.c.l.b16 %v4741
    %v6262 = vunpack.c.h.b16 %v4741
    %v6263 = vunpack.c.l.b16 %v4742
    %v6264 = vunpack.c.h.b16 %v4742
    %v6265 = vunpack.c.l.b16 %v4743
    %v6266 = vunpack.c.h.b16 %v4743
    %v6267 = vunpack.c.l.b16 %v4744
    %v6268 = vunpack.c.h.b16 %v4744
    %v6269 = vunpack.c.l.b16 %v4745
    %v6270 = vunpack.c.h.b16 %v4745
    %v6271 = vunpack.c.l.b16 %v4746
    %v6272 = vunpack.c.h.b16 %v4746
    %v6273 = vunpack.c.l.b16 %v4747
    %v6274 = vunpack.c.h.b16 %v4747
    %v6275 = vunpack.c.l.b16 %v4748
    %v6276 = vunpack.c.h.b16 %v4748
    %v6277 = vunpack.c.l.b16 %v4749
    %v6278 = vunpack.c.h.b16 %v4749
    %v6279 = vunpack.c.l.b16 %v4750
    %v6280 = vunpack.c.h.b16 %v4750
    %v6281 = vunpack.c.l.b16 %v4751
    %v6282 = vunpack.c.h.b16 %v4751
    %v6283 = vunpack.c.l.b16 %v4752
    %v6284 = vunpack.c.h.b16 %v4752
    %v6285 = vunpack.c.l.b16 %v4753
    %v6286 = vunpack.c.h.b16 %v4753
    %v6287 = vunpack.c.l.b16 %v4754
    %v6288 = vunpack.c.h.b16 %v4754
    %v6289 = vunpack.c.l.b16 %v4755
    %v6290 = vunpack.c.h.b16 %v4755
    %v6291 = vunpack.c.l.b16 %v4756
    %v6292 = vunpack.c.h.b16 %v4756
    %v6293 = vunpack.c.l.b16 %v4757
    %v6294 = vunpack.c.h.b16 %v4757
    %v6295 = vunpack.c.l.b16 %v4758
    %v6296 = vunpack.c.h.b16 %v4758
    %v6297 = vunpack.c.l.b16 %v4759
    %v6298 = vunpack.c.h.b16 %v4759
    %v6299 = vunpack.c.l.b16 %v4760
    %v6300 = vunpack.c.h.b16 %v4760
    %v6301 = vunpack.c.l.b16 %v4761
    %v6302 = vunpack.c.h.b16 %v4761
    %v6303 = vunpack.c.l.b16 %v4762
    %v6304 = vunpack.c.h.b16 %v4762
    %v6305 = vunpack.c.l.b16 %v4763
    %v6306 = vunpack.c.h.b16 %v4763
    %v6307 = vunpack.c.l.b16 %v4764
    %v6308 = vunpack.c.h.b16 %v4764
    %v6309 = vunpack.c.l.b16 %v4765
    %v6310 = vunpack.c.h.b16 %v4765
    %v6311 = vunpack.c.l.b16 %v4766
    %v6312 = vunpack.c.h.b16 %v4766
    %v6313 = vunpack.c.l.b16 %v4767
    %v6314 = vunpack.c.h.b16 %v4767
    %v6315 = vunpack.c.l.b16 %v4768
    %v6316 = vunpack.c.h.b16 %v4768
    %v6317 = vunpack.c.l.b16 %v4769
    %v6318 = vunpack.c.h.b16 %v4769
    %v6319 = vunpack.c.l.b16 %v4770
    %v6320 = vunpack.c.h.b16 %v4770
    %v6321 = vunpack.c.l.b16 %v4771
    %v6322 = vunpack.c.h.b16 %v4771
    %v6323 = vunpack.c.l.b16 %v4772
    %v6324 = vunpack.c.h.b16 %v4772
    %v6325 = vunpack.c.l.b16 %v4773
    %v6326 = vunpack.c.h.b16 %v4773
    %v6327 = vunpack.c.l.b16 %v4774
    %v6328 = vunpack.c.h.b16 %v4774
    %v6329 = vunpack.c.l.b16 %v4775
    %v6330 = vunpack.c.h.b16 %v4775
    %v6331 = vunpack.c.l.b16 %v4776
    %v6332 = vunpack.c.h.b16 %v4776
    %v6333 = vunpack.c.l.b16 %v4777
    %v6334 = vunpack.c.h.b16 %v4777
    %v6335 = vunpack.c.l.b16 %v4778
    %v6336 = vunpack.c.h.b16 %v4778
    %v6337 = vunpack.c.l.b16 %v4779
    %v6338 = vunpack.c.h.b16 %v4779
    %v6339 = vunpack.c.l.b16 %v4780
    %v6340 = vunpack.c.h.b16 %v4780
    %v6341 = vunpack.c.l.b16 %v4781
    %v6342 = vunpack.c.h.b16 %v4781
    %v6343 = vunpack.c.l.b16 %v4782
    %v6344 = vunpack.c.h.b16 %v4782
    %v6345 = vunpack.c.l.b16 %v4783
    %v6346 = vunpack.c.h.b16 %v4783
    %v6347 = vunpack.c.l.b16 %v4784
    %v6348 = vunpack.c.h.b16 %v4784
    %v6349 = vunpack.c.l.b16 %v4785
    %v6350 = vunpack.c.h.b16 %v4785
    %v6351 = vunpack.c.l.b16 %v4786
    %v6352 = vunpack.c.h.b16 %v4786
    %v6353 = vunpack.c.l.b16 %v4787
    %v6354 = vunpack.c.h.b16 %v4787
    %v6355 = vunpack.c.l.b16 %v4788
    %v6356 = vunpack.c.h.b16 %v4788
    %v6357 = vunpack.c.l.b16 %v4789
    %v6358 = vunpack.c.h.b16 %v4789
    %v6359 = vunpack.c.l.b16 %v4790
    %v6360 = vunpack.c.h.b16 %v4790
    %v6361 = vunpack.c.l.b16 %v4791
    %v6362 = vunpack.c.h.b16 %v4791
    %v6363 = vunpack.c.l.b16 %v4792
    %v6364 = vunpack.c.h.b16 %v4792
    %v6365 = vunpack.c.l.b16 %v4793
    %v6366 = vunpack.c.h.b16 %v4793
    %v6367 = vunpack.c.l.b16 %v4794
    %v6368 = vunpack.c.h.b16 %v4794
    %v6369 = vunpack.c.l.b16 %v4795
    %v6370 = vunpack.c.h.b16 %v4795
    %v6371 = vunpack.c.l.b16 %v4796
    %v6372 = vunpack.c.h.b16 %v4796
    %v6373 = vunpack.c.l.b16 %v4797
    %v6374 = vunpack.c.h.b16 %v4797
    %v6375 = vunpack.c.l.b16 %v4798
    %v6376 = vunpack.c.h.b16 %v4798
    %v6377 = vpack.c.b16 %v5361, %v5353
    %v6378 = vpack.c.b16 %v5362, %v5354
    %v6379 = vpack.c.b16 %v5363, %v5355
    %v6380 = vpack.c.b16 %v5364, %v5356
    %v6381 = vpack.c.b16 %v5365, %v5357
    %v6382 = vpack.c.b16 %v5366, %v5358
    %v6383 = vpack.c.b16 %v5367, %v5359
    %v6384 = vpack.c.b16 %v5368, %v5360
    %v6385 = vpack.c.b16 %v5377, %v5369
    %v6386 = vpack.c.b16 %v5378, %v5370
    %v6387 = vpack.c.b16 %v5379, %v5371
    %v6388 = vpack.c.b16 %v5380, %v5372
    %v6389 = vpack.c.b16 %v5381, %v5373
    %v6390 = vpack.c.b16 %v5382, %v5374
    %v6391 = vpack.c.b16 %v5383, %v5375
    %v6392 = vpack.c.b16 %v5384, %v5376
    %v6393 = vpack.c.b16 %v5393, %v5385
    %v6394 = vpack.c.b16 %v5394, %v5386
    %v6395 = vpack.c.b16 %v5395, %v5387
    %v6396 = vpack.c.b16 %v5396, %v5388
    %v6397 = vpack.c.b16 %v5397, %v5389
    %v6398 = vpack.c.b16 %v5398, %v5390
    %v6399 = vpack.c.b16 %v5399, %v5391
    %v6400 = vpack.c.b16 %v5400, %v5392
    %v6401 = vpack.c.b16 %v5409, %v5401
    %v6402 = vpack.c.b16 %v5410, %v5402
    %v6403 = vpack.c.b16 %v5411, %v5403
    %v6404 = vpack.c.b16 %v5412, %v5404
    %v6405 = vpack.c.b16 %v5413, %v5405
    %v6406 = vpack.c.b16 %v5414, %v5406
    %v6407 = vpack.c.b16 %v5415, %v5407
    %v6408 = vpack.c.b16 %v5416, %v5408
    %v6409 = vpack.c.b16 %v5425, %v5417
    %v6410 = vpack.c.b16 %v5426, %v5418
    %v6411 = vpack.c.b16 %v5427, %v5419
    %v6412 = vpack.c.b16 %v5428, %v5420
    %v6413 = vpack.c.b16 %v5429, %v5421
    %v6414 = vpack.c.b16 %v5430, %v5422
    %v6415 = vpack.c.b16 %v5431, %v5423
    %v6416 = vpack.c.b16 %v5432, %v5424
    %v6417 = vpack.c.b16 %v5441, %v5433
    %v6418 = vpack.c.b16 %v5442, %v5434
    %v6419 = vpack.c.b16 %v5443, %v5435
    %v6420 = vpack.c.b16 %v5444, %v5436
    %v6421 = vpack.c.b16 %v5445, %v5437
    %v6422 = vpack.c.b16 %v5446, %v5438
    %v6423 = vpack.c.b16 %v5447, %v5439
    %v6424 = vpack.c.b16 %v5448, %v5440
    %v6425 = vpack.c.b16 %v5457, %v5449
    %v6426 = vpack.c.b16 %v5458, %v5450
    %v6427 = vpack.c.b16 %v5459, %v5451
    %v6428 = vpack.c.b16 %v5460, %v5452
    %v6429 = vpack.c.b16 %v5461, %v5453
    %v6430 = vpack.c.b16 %v5462, %v5454
    %v6431 = vpack.c.b16 %v5463, %v5455
    %v6432 = vpack.c.b16 %v5464, %v5456
    %v6433 = vpack.c.b16 %v5473, %v5465
    %v6434 = vpack.c.b16 %v5474, %v5466
    %v6435 = vpack.c.b16 %v5475, %v5467
    %v6436 = vpack.c.b16 %v5476, %v5468
    %v6437 = vpack.c.b16 %v5477, %v5469
    %v6438 = vpack.c.b16 %v5478, %v5470
    %v6439 = vpack.c.b16 %v5479, %v5471
    %v6440 = vpack.c.b16 %v5480, %v5472
    %v6441 = vpack.c.b16 %v5489, %v5481
    %v6442 = vpack.c.b16 %v5490, %v5482
    %v6443 = vpack.c.b16 %v5491, %v5483
    %v6444 = vpack.c.b16 %v5492, %v5484
    %v6445 = vpack.c.b16 %v5493, %v5485
    %v6446 = vpack.c.b16 %v5494, %v5486
    %v6447 = vpack.c.b16 %v5495, %v5487
    %v6448 = vpack.c.b16 %v5496, %v5488
    %v6449 = vpack.c.b16 %v5505, %v5497
    %v6450 = vpack.c.b16 %v5506, %v5498
    %v6451 = vpack.c.b16 %v5507, %v5499
    %v6452 = vpack.c.b16 %v5508, %v5500
    %v6453 = vpack.c.b16 %v5509, %v5501
    %v6454 = vpack.c.b16 %v5510, %v5502
    %v6455 = vpack.c.b16 %v5511, %v5503
    %v6456 = vpack.c.b16 %v5512, %v5504
    %v6457 = vpack.c.b16 %v5521, %v5513
    %v6458 = vpack.c.b16 %v5522, %v5514
    %v6459 = vpack.c.b16 %v5523, %v5515
    %v6460 = vpack.c.b16 %v5524, %v5516
    %v6461 = vpack.c.b16 %v5525, %v5517
    %v6462 = vpack.c.b16 %v5526, %v5518
    %v6463 = vpack.c.b16 %v5527, %v5519
    %v6464 = vpack.c.b16 %v5528, %v5520
    %v6465 = vpack.c.b16 %v5537, %v5529
    %v6466 = vpack.c.b16 %v5538, %v5530
    %v6467 = vpack.c.b16 %v5539, %v5531
    %v6468 = vpack.c.b16 %v5540, %v5532
    %v6469 = vpack.c.b16 %v5541, %v5533
    %v6470 = vpack.c.b16 %v5542, %v5534
    %v6471 = vpack.c.b16 %v5543, %v5535
    %v6472 = vpack.c.b16 %v5544, %v5536
    %v6473 = vpack.c.b16 %v5553, %v5545
    %v6474 = vpack.c.b16 %v5554, %v5546
    %v6475 = vpack.c.b16 %v5555, %v5547
    %v6476 = vpack.c.b16 %v5556, %v5548
    %v6477 = vpack.c.b16 %v5557, %v5549
    %v6478 = vpack.c.b16 %v5558, %v5550
    %v6479 = vpack.c.b16 %v5559, %v5551
    %v6480 = vpack.c.b16 %v5560, %v5552
    %v6481 = vpack.c.b16 %v5569, %v5561
    %v6482 = vpack.c.b16 %v5570, %v5562
    %v6483 = vpack.c.b16 %v5571, %v5563
    %v6484 = vpack.c.b16 %v5572, %v5564
    %v6485 = vpack.c.b16 %v5573, %v5565
    %v6486 = vpack.c.b16 %v5574, %v5566
    %v6487 = vpack.c.b16 %v5575, %v5567
    %v6488 = vpack.c.b16 %v5576, %v5568
    %v6489 = vpack.c.b16 %v5585, %v5577
    %v6490 = vpack.c.b16 %v5586, %v5578
    %v6491 = vpack.c.b16 %v5587, %v5579
    %v6492 = vpack.c.b16 %v5588, %v5580
    %v6493 = vpack.c.b16 %v5589, %v5581
    %v6494 = vpack.c.b16 %v5590, %v5582
    %v6495 = vpack.c.b16 %v5591, %v5583
    %v6496 = vpack.c.b16 %v5592, %v5584
    %v6497 = vpack.c.b16 %v5601, %v5593
    %v6498 = vpack.c.b16 %v5602, %v5594
    %v6499 = vpack.c.b16 %v5603, %v5595
    %v6500 = vpack.c.b16 %v5604, %v5596
    %v6501 = vpack.c.b16 %v5605, %v5597
    %v6502 = vpack.c.b16 %v5606, %v5598
    %v6503 = vpack.c.b16 %v5607, %v5599
    %v6504 = vpack.c.b16 %v5608, %v5600
    %v6505 = vpack.c.b16 %v5617, %v5609
    %v6506 = vpack.c.b16 %v5618, %v5610
    %v6507 = vpack.c.b16 %v5619, %v5611
    %v6508 = vpack.c.b16 %v5620, %v5612
    %v6509 = vpack.c.b16 %v5621, %v5613
    %v6510 = vpack.c.b16 %v5622, %v5614
    %v6511 = vpack.c.b16 %v5623, %v5615
    %v6512 = vpack.c.b16 %v5624, %v5616
    %v6513 = vpack.c.b16 %v5633, %v5625
    %v6514 = vpack.c.b16 %v5634, %v5626
    %v6515 = vpack.c.b16 %v5635, %v5627
    %v6516 = vpack.c.b16 %v5636, %v5628
    %v6517 = vpack.c.b16 %v5637, %v5629
    %v6518 = vpack.c.b16 %v5638, %v5630
    %v6519 = vpack.c.b16 %v5639, %v5631
    %v6520 = vpack.c.b16 %v5640, %v5632
    %v6521 = vpack.c.b16 %v5649, %v5641
    %v6522 = vpack.c.b16 %v5650, %v5642
    %v6523 = vpack.c.b16 %v5651, %v5643
    %v6524 = vpack.c.b16 %v5652, %v5644
    %v6525 = vpack.c.b16 %v5653, %v5645
    %v6526 = vpack.c.b16 %v5654, %v5646
    %v6527 = vpack.c.b16 %v5655, %v5647
    %v6528 = vpack.c.b16 %v5656, %v5648
    %v6529 = vpack.c.b16 %v5665, %v5657
    %v6530 = vpack.c.b16 %v5666, %v5658
    %v6531 = vpack.c.b16 %v5667, %v5659
    %v6532 = vpack.c.b16 %v5668, %v5660
    %v6533 = vpack.c.b16 %v5669, %v5661
    %v6534 = vpack.c.b16 %v5670, %v5662
    %v6535 = vpack.c.b16 %v5671, %v5663
    %v6536 = vpack.c.b16 %v5672, %v5664
    %v6537 = vpack.c.b16 %v5681, %v5673
    %v6538 = vpack.c.b16 %v5682, %v5674
    %v6539 = vpack.c.b16 %v5683, %v5675
    %v6540 = vpack.c.b16 %v5684, %v5676
    %v6541 = vpack.c.b16 %v5685, %v5677
    %v6542 = vpack.c.b16 %v5686, %v5678
    %v6543 = vpack.c.b16 %v5687, %v5679
    %v6544 = vpack.c.b16 %v5688, %v5680
    %v6545 = vpack.c.b16 %v5697, %v5689
    %v6546 = vpack.c.b16 %v5698, %v5690
    %v6547 = vpack.c.b16 %v5699, %v5691
    %v6548 = vpack.c.b16 %v5700, %v5692
    %v6549 = vpack.c.b16 %v5701, %v5693
    %v6550 = vpack.c.b16 %v5702, %v5694
    %v6551 = vpack.c.b16 %v5703, %v5695
    %v6552 = vpack.c.b16 %v5704, %v5696
    %v6553 = vpack.c.b16 %v5713, %v5705
    %v6554 = vpack.c.b16 %v5714, %v5706
    %v6555 = vpack.c.b16 %v5715, %v5707
    %v6556 = vpack.c.b16 %v5716, %v5708
    %v6557 = vpack.c.b16 %v5717, %v5709
    %v6558 = vpack.c.b16 %v5718, %v5710
    %v6559 = vpack.c.b16 %v5719, %v5711
    %v6560 = vpack.c.b16 %v5720, %v5712
    %v6561 = vpack.c.b16 %v5729, %v5721
    %v6562 = vpack.c.b16 %v5730, %v5722
    %v6563 = vpack.c.b16 %v5731, %v5723
    %v6564 = vpack.c.b16 %v5732, %v5724
    %v6565 = vpack.c.b16 %v5733, %v5725
    %v6566 = vpack.c.b16 %v5734, %v5726
    %v6567 = vpack.c.b16 %v5735, %v5727
    %v6568 = vpack.c.b16 %v5736, %v5728
    %v6569 = vpack.c.b16 %v5745, %v5737
    %v6570 = vpack.c.b16 %v5746, %v5738
    %v6571 = vpack.c.b16 %v5747, %v5739
    %v6572 = vpack.c.b16 %v5748, %v5740
    %v6573 = vpack.c.b16 %v5749, %v5741
    %v6574 = vpack.c.b16 %v5750, %v5742
    %v6575 = vpack.c.b16 %v5751, %v5743
    %v6576 = vpack.c.b16 %v5752, %v5744
    %v6577 = vpack.c.b16 %v5761, %v5753
    %v6578 = vpack.c.b16 %v5762, %v5754
    %v6579 = vpack.c.b16 %v5763, %v5755
    %v6580 = vpack.c.b16 %v5764, %v5756
    %v6581 = vpack.c.b16 %v5765, %v5757
    %v6582 = vpack.c.b16 %v5766, %v5758
    %v6583 = vpack.c.b16 %v5767, %v5759
    %v6584 = vpack.c.b16 %v5768, %v5760
    %v6585 = vpack.c.b16 %v5777, %v5769
    %v6586 = vpack.c.b16 %v5778, %v5770
    %v6587 = vpack.c.b16 %v5779, %v5771
    %v6588 = vpack.c.b16 %v5780, %v5772
    %v6589 = vpack.c.b16 %v5781, %v5773
    %v6590 = vpack.c.b16 %v5782, %v5774
    %v6591 = vpack.c.b16 %v5783, %v5775
    %v6592 = vpack.c.b16 %v5784, %v5776
    %v6593 = vpack.c.b16 %v5793, %v5785
    %v6594 = vpack.c.b16 %v5794, %v5786
    %v6595 = vpack.c.b16 %v5795, %v5787
    %v6596 = vpack.c.b16 %v5796, %v5788
    %v6597 = vpack.c.b16 %v5797, %v5789
    %v6598 = vpack.c.b16 %v5798, %v5790
    %v6599 = vpack.c.b16 %v5799, %v5791
    %v6600 = vpack.c.b16 %v5800, %v5792
    %v6601 = vpack.c.b16 %v5809, %v5801
    %v6602 = vpack.c.b16 %v5810, %v5802
    %v6603 = vpack.c.b16 %v5811, %v5803
    %v6604 = vpack.c.b16 %v5812, %v5804
    %v6605 = vpack.c.b16 %v5813, %v5805
    %v6606 = vpack.c.b16 %v5814, %v5806
    %v6607 = vpack.c.b16 %v5815, %v5807
    %v6608 = vpack.c.b16 %v5816, %v5808
    %v6609 = vpack.c.b16 %v5825, %v5817
    %v6610 = vpack.c.b16 %v5826, %v5818
    %v6611 = vpack.c.b16 %v5827, %v5819
    %v6612 = vpack.c.b16 %v5828, %v5820
    %v6613 = vpack.c.b16 %v5829, %v5821
    %v6614 = vpack.c.b16 %v5830, %v5822
    %v6615 = vpack.c.b16 %v5831, %v5823
    %v6616 = vpack.c.b16 %v5832, %v5824
    %v6617 = vpack.c.b16 %v5841, %v5833
    %v6618 = vpack.c.b16 %v5842, %v5834
    %v6619 = vpack.c.b16 %v5843, %v5835
    %v6620 = vpack.c.b16 %v5844, %v5836
    %v6621 = vpack.c.b16 %v5845, %v5837
    %v6622 = vpack.c.b16 %v5846, %v5838
    %v6623 = vpack.c.b16 %v5847, %v5839
    %v6624 = vpack.c.b16 %v5848, %v5840
    %v6625 = vpack.c.b16 %v5857, %v5849
    %v6626 = vpack.c.b16 %v5858, %v5850
    %v6627 = vpack.c.b16 %v5859, %v5851
    %v6628 = vpack.c.b16 %v5860, %v5852
    %v6629 = vpack.c.b16 %v5861, %v5853
    %v6630 = vpack.c.b16 %v5862, %v5854
    %v6631 = vpack.c.b16 %v5863, %v5855
    %v6632 = vpack.c.b16 %v5864, %v5856
    %v6633 = vpack.c.b16 %v5873, %v5865
    %v6634 = vpack.c.b16 %v5874, %v5866
    %v6635 = vpack.c.b16 %v5875, %v5867
    %v6636 = vpack.c.b16 %v5876, %v5868
    %v6637 = vpack.c.b16 %v5877, %v5869
    %v6638 = vpack.c.b16 %v5878, %v5870
    %v6639 = vpack.c.b16 %v5879, %v5871
    %v6640 = vpack.c.b16 %v5880, %v5872
    %v6641 = vpack.c.b16 %v5889, %v5881
    %v6642 = vpack.c.b16 %v5890, %v5882
    %v6643 = vpack.c.b16 %v5891, %v5883
    %v6644 = vpack.c.b16 %v5892, %v5884
    %v6645 = vpack.c.b16 %v5893, %v5885
    %v6646 = vpack.c.b16 %v5894, %v5886
    %v6647 = vpack.c.b16 %v5895, %v5887
    %v6648 = vpack.c.b16 %v5896, %v5888
    %v6649 = vpack.c.b16 %v5905, %v5897
    %v6650 = vpack.c.b16 %v5906, %v5898
    %v6651 = vpack.c.b16 %v5907, %v5899
    %v6652 = vpack.c.b16 %v5908, %v5900
    %v6653 = vpack.c.b16 %v5909, %v5901
    %v6654 = vpack.c.b16 %v5910, %v5902
    %v6655 = vpack.c.b16 %v5911, %v5903
    %v6656 = vpack.c.b16 %v5912, %v5904
    %v6657 = vpack.c.b16 %v5921, %v5913
    %v6658 = vpack.c.b16 %v5922, %v5914
    %v6659 = vpack.c.b16 %v5923, %v5915
    %v6660 = vpack.c.b16 %v5924, %v5916
    %v6661 = vpack.c.b16 %v5925, %v5917
    %v6662 = vpack.c.b16 %v5926, %v5918
    %v6663 = vpack.c.b16 %v5927, %v5919
    %v6664 = vpack.c.b16 %v5928, %v5920
    %v6665 = vpack.c.b16 %v5937, %v5929
    %v6666 = vpack.c.b16 %v5938, %v5930
    %v6667 = vpack.c.b16 %v5939, %v5931
    %v6668 = vpack.c.b16 %v5940, %v5932
    %v6669 = vpack.c.b16 %v5941, %v5933
    %v6670 = vpack.c.b16 %v5942, %v5934
    %v6671 = vpack.c.b16 %v5943, %v5935
    %v6672 = vpack.c.b16 %v5944, %v5936
    %v6673 = vpack.c.b16 %v5953, %v5945
    %v6674 = vpack.c.b16 %v5954, %v5946
    %v6675 = vpack.c.b16 %v5955, %v5947
    %v6676 = vpack.c.b16 %v5956, %v5948
    %v6677 = vpack.c.b16 %v5957, %v5949
    %v6678 = vpack.c.b16 %v5958, %v5950
    %v6679 = vpack.c.b16 %v5959, %v5951
    %v6680 = vpack.c.b16 %v5960, %v5952
    %v6681 = vpack.c.b16 %v5969, %v5961
    %v6682 = vpack.c.b16 %v5970, %v5962
    %v6683 = vpack.c.b16 %v5971, %v5963
    %v6684 = vpack.c.b16 %v5972, %v5964
    %v6685 = vpack.c.b16 %v5973, %v5965
    %v6686 = vpack.c.b16 %v5974, %v5966
    %v6687 = vpack.c.b16 %v5975, %v5967
    %v6688 = vpack.c.b16 %v5976, %v5968
    %v6689 = vpack.c.b16 %v5985, %v5977
    %v6690 = vpack.c.b16 %v5986, %v5978
    %v6691 = vpack.c.b16 %v5987, %v5979
    %v6692 = vpack.c.b16 %v5988, %v5980
    %v6693 = vpack.c.b16 %v5989, %v5981
    %v6694 = vpack.c.b16 %v5990, %v5982
    %v6695 = vpack.c.b16 %v5991, %v5983
    %v6696 = vpack.c.b16 %v5992, %v5984
    %v6697 = vpack.c.b16 %v6001, %v5993
    %v6698 = vpack.c.b16 %v6002, %v5994
    %v6699 = vpack.c.b16 %v6003, %v5995
    %v6700 = vpack.c.b16 %v6004, %v5996
    %v6701 = vpack.c.b16 %v6005, %v5997
    %v6702 = vpack.c.b16 %v6006, %v5998
    %v6703 = vpack.c.b16 %v6007, %v5999
    %v6704 = vpack.c.b16 %v6008, %v6000
    %v6705 = vpack.c.b16 %v6017, %v6009
    %v6706 = vpack.c.b16 %v6018, %v6010
    %v6707 = vpack.c.b16 %v6019, %v6011
    %v6708 = vpack.c.b16 %v6020, %v6012
    %v6709 = vpack.c.b16 %v6021, %v6013
    %v6710 = vpack.c.b16 %v6022, %v6014
    %v6711 = vpack.c.b16 %v6023, %v6015
    %v6712 = vpack.c.b16 %v6024, %v6016
    %v6713 = vpack.c.b16 %v6033, %v6025
    %v6714 = vpack.c.b16 %v6034, %v6026
    %v6715 = vpack.c.b16 %v6035, %v6027
    %v6716 = vpack.c.b16 %v6036, %v6028
    %v6717 = vpack.c.b16 %v6037, %v6029
    %v6718 = vpack.c.b16 %v6038, %v6030
    %v6719 = vpack.c.b16 %v6039, %v6031
    %v6720 = vpack.c.b16 %v6040, %v6032
    %v6721 = vpack.c.b16 %v6049, %v6041
    %v6722 = vpack.c.b16 %v6050, %v6042
    %v6723 = vpack.c.b16 %v6051, %v6043
    %v6724 = vpack.c.b16 %v6052, %v6044
    %v6725 = vpack.c.b16 %v6053, %v6045
    %v6726 = vpack.c.b16 %v6054, %v6046
    %v6727 = vpack.c.b16 %v6055, %v6047
    %v6728 = vpack.c.b16 %v6056, %v6048
    %v6729 = vpack.c.b16 %v6065, %v6057
    %v6730 = vpack.c.b16 %v6066, %v6058
    %v6731 = vpack.c.b16 %v6067, %v6059
    %v6732 = vpack.c.b16 %v6068, %v6060
    %v6733 = vpack.c.b16 %v6069, %v6061
    %v6734 = vpack.c.b16 %v6070, %v6062
    %v6735 = vpack.c.b16 %v6071, %v6063
    %v6736 = vpack.c.b16 %v6072, %v6064
    %v6737 = vpack.c.b16 %v6081, %v6073
    %v6738 = vpack.c.b16 %v6082, %v6074
    %v6739 = vpack.c.b16 %v6083, %v6075
    %v6740 = vpack.c.b16 %v6084, %v6076
    %v6741 = vpack.c.b16 %v6085, %v6077
    %v6742 = vpack.c.b16 %v6086, %v6078
    %v6743 = vpack.c.b16 %v6087, %v6079
    %v6744 = vpack.c.b16 %v6088, %v6080
    %v6745 = vpack.c.b16 %v6097, %v6089
    %v6746 = vpack.c.b16 %v6098, %v6090
    %v6747 = vpack.c.b16 %v6099, %v6091
    %v6748 = vpack.c.b16 %v6100, %v6092
    %v6749 = vpack.c.b16 %v6101, %v6093
    %v6750 = vpack.c.b16 %v6102, %v6094
    %v6751 = vpack.c.b16 %v6103, %v6095
    %v6752 = vpack.c.b16 %v6104, %v6096
    %v6753 = vpack.c.b16 %v6113, %v6105
    %v6754 = vpack.c.b16 %v6114, %v6106
    %v6755 = vpack.c.b16 %v6115, %v6107
    %v6756 = vpack.c.b16 %v6116, %v6108
    %v6757 = vpack.c.b16 %v6117, %v6109
    %v6758 = vpack.c.b16 %v6118, %v6110
    %v6759 = vpack.c.b16 %v6119, %v6111
    %v6760 = vpack.c.b16 %v6120, %v6112
    %v6761 = vpack.c.b16 %v6129, %v6121
    %v6762 = vpack.c.b16 %v6130, %v6122
    %v6763 = vpack.c.b16 %v6131, %v6123
    %v6764 = vpack.c.b16 %v6132, %v6124
    %v6765 = vpack.c.b16 %v6133, %v6125
    %v6766 = vpack.c.b16 %v6134, %v6126
    %v6767 = vpack.c.b16 %v6135, %v6127
    %v6768 = vpack.c.b16 %v6136, %v6128
    %v6769 = vpack.c.b16 %v6145, %v6137
    %v6770 = vpack.c.b16 %v6146, %v6138
    %v6771 = vpack.c.b16 %v6147, %v6139
    %v6772 = vpack.c.b16 %v6148, %v6140
    %v6773 = vpack.c.b16 %v6149, %v6141
    %v6774 = vpack.c.b16 %v6150, %v6142
    %v6775 = vpack.c.b16 %v6151, %v6143
    %v6776 = vpack.c.b16 %v6152, %v6144
    %v6777 = vpack.c.b16 %v6161, %v6153
    %v6778 = vpack.c.b16 %v6162, %v6154
    %v6779 = vpack.c.b16 %v6163, %v6155
    %v6780 = vpack.c.b16 %v6164, %v6156
    %v6781 = vpack.c.b16 %v6165, %v6157
    %v6782 = vpack.c.b16 %v6166, %v6158
    %v6783 = vpack.c.b16 %v6167, %v6159
    %v6784 = vpack.c.b16 %v6168, %v6160
    %v6785 = vpack.c.b16 %v6177, %v6169
    %v6786 = vpack.c.b16 %v6178, %v6170
    %v6787 = vpack.c.b16 %v6179, %v6171
    %v6788 = vpack.c.b16 %v6180, %v6172
    %v6789 = vpack.c.b16 %v6181, %v6173
    %v6790 = vpack.c.b16 %v6182, %v6174
    %v6791 = vpack.c.b16 %v6183, %v6175
    %v6792 = vpack.c.b16 %v6184, %v6176
    %v6793 = vpack.c.b16 %v6193, %v6185
    %v6794 = vpack.c.b16 %v6194, %v6186
    %v6795 = vpack.c.b16 %v6195, %v6187
    %v6796 = vpack.c.b16 %v6196, %v6188
    %v6797 = vpack.c.b16 %v6197, %v6189
    %v6798 = vpack.c.b16 %v6198, %v6190
    %v6799 = vpack.c.b16 %v6199, %v6191
    %v6800 = vpack.c.b16 %v6200, %v6192
    %v6801 = vpack.c.b16 %v6209, %v6201
    %v6802 = vpack.c.b16 %v6210, %v6202
    %v6803 = vpack.c.b16 %v6211, %v6203
    %v6804 = vpack.c.b16 %v6212, %v6204
    %v6805 = vpack.c.b16 %v6213, %v6205
    %v6806 = vpack.c.b16 %v6214, %v6206
    %v6807 = vpack.c.b16 %v6215, %v6207
    %v6808 = vpack.c.b16 %v6216, %v6208
    %v6809 = vpack.c.b16 %v6225, %v6217
    %v6810 = vpack.c.b16 %v6226, %v6218
    %v6811 = vpack.c.b16 %v6227, %v6219
    %v6812 = vpack.c.b16 %v6228, %v6220
    %v6813 = vpack.c.b16 %v6229, %v6221
    %v6814 = vpack.c.b16 %v6230, %v6222
    %v6815 = vpack.c.b16 %v6231, %v6223
    %v6816 = vpack.c.b16 %v6232, %v6224
    %v6817 = vpack.c.b16 %v6241, %v6233
    %v6818 = vpack.c.b16 %v6242, %v6234
    %v6819 = vpack.c.b16 %v6243, %v6235
    %v6820 = vpack.c.b16 %v6244, %v6236
    %v6821 = vpack.c.b16 %v6245, %v6237
    %v6822 = vpack.c.b16 %v6246, %v6238
    %v6823 = vpack.c.b16 %v6247, %v6239
    %v6824 = vpack.c.b16 %v6248, %v6240
    %v6825 = vpack.c.b16 %v6257, %v6249
    %v6826 = vpack.c.b16 %v6258, %v6250
    %v6827 = vpack.c.b16 %v6259, %v6251
    %v6828 = vpack.c.b16 %v6260, %v6252
    %v6829 = vpack.c.b16 %v6261, %v6253
    %v6830 = vpack.c.b16 %v6262, %v6254
    %v6831 = vpack.c.b16 %v6263, %v6255
    %v6832 = vpack.c.b16 %v6264, %v6256
    %v6833 = vpack.c.b16 %v6273, %v6265
    %v6834 = vpack.c.b16 %v6274, %v6266
    %v6835 = vpack.c.b16 %v6275, %v6267
    %v6836 = vpack.c.b16 %v6276, %v6268
    %v6837 = vpack.c.b16 %v6277, %v6269
    %v6838 = vpack.c.b16 %v6278, %v6270
    %v6839 = vpack.c.b16 %v6279, %v6271
    %v6840 = vpack.c.b16 %v6280, %v6272
    %v6841 = vpack.c.b16 %v6289, %v6281
    %v6842 = vpack.c.b16 %v6290, %v6282
    %v6843 = vpack.c.b16 %v6291, %v6283
    %v6844 = vpack.c.b16 %v6292, %v6284
    %v6845 = vpack.c.b16 %v6293, %v6285
    %v6846 = vpack.c.b16 %v6294, %v6286
    %v6847 = vpack.c.b16 %v6295, %v6287
    %v6848 = vpack.c.b16 %v6296, %v6288
    %v6849 = vpack.c.b16 %v6305, %v6297
    %v6850 = vpack.c.b16 %v6306, %v6298
    %v6851 = vpack.c.b16 %v6307, %v6299
    %v6852 = vpack.c.b16 %v6308, %v6300
    %v6853 = vpack.c.b16 %v6309, %v6301
    %v6854 = vpack.c.b16 %v6310, %v6302
    %v6855 = vpack.c.b16 %v6311, %v6303
    %v6856 = vpack.c.b16 %v6312, %v6304
    %v6857 = vpack.c.b16 %v6321, %v6313
    %v6858 = vpack.c.b16 %v6322, %v6314
    %v6859 = vpack.c.b16 %v6323, %v6315
    %v6860 = vpack.c.b16 %v6324, %v6316
    %v6861 = vpack.c.b16 %v6325, %v6317
    %v6862 = vpack.c.b16 %v6326, %v6318
    %v6863 = vpack.c.b16 %v6327, %v6319
    %v6864 = vpack.c.b16 %v6328, %v6320
    %v6865 = vpack.c.b16 %v6337, %v6329
    %v6866 = vpack.c.b16 %v6338, %v6330
    %v6867 = vpack.c.b16 %v6339, %v6331
    %v6868 = vpack.c.b16 %v6340, %v6332
    %v6869 = vpack.c.b16 %v6341, %v6333
    %v6870 = vpack.c.b16 %v6342, %v6334
    %v6871 = vpack.c.b16 %v6343, %v6335
    %v6872 = vpack.c.b16 %v6344, %v6336
    %v6873 = vpack.c.b16 %v6353, %v6345
    %v6874 = vpack.c.b16 %v6354, %v6346
    %v6875 = vpack.c.b16 %v6355, %v6347
    %v6876 = vpack.c.b16 %v6356, %v6348
    %v6877 = vpack.c.b16 %v6357, %v6349
    %v6878 = vpack.c.b16 %v6358, %v6350
    %v6879 = vpack.c.b16 %v6359, %v6351
    %v6880 = vpack.c.b16 %v6360, %v6352
    %v6881 = vpack.c.b16 %v6369, %v6361
    %v6882 = vpack.c.b16 %v6370, %v6362
    %v6883 = vpack.c.b16 %v6371, %v6363
    %v6884 = vpack.c.b16 %v6372, %v6364
    %v6885 = vpack.c.b16 %v6373, %v6365
    %v6886 = vpack.c.b16 %v6374, %v6366
    %v6887 = vpack.c.b16 %v6375, %v6367
    %v6888 = vpack.c.b16 %v6376, %v6368
    %7401 = vmatprep.subr.bf16.mxu0 %v6378
    %7402 = vmatpush1.bf16.msra.mxu0 %v6377
    %7403 = vmatprep.subr.bf16.mxu0 %v6386
    %7404 = vmatpush1.bf16.msra.mxu0 %v6385
    %7405 = vmatprep.subr.bf16.mxu0 %v6394
    %7406 = vmatpush1.bf16.msra.mxu0 %v6393
    %7407 = vmatprep.subr.bf16.mxu0 %v6402
    %7408 = vmatpush1.bf16.msra.mxu0 %v6401
    %7409 = vmatprep.subr.bf16.mxu0 %v6410
    %7410 = vmatpush1.bf16.msra.mxu0 %v6409
    %7411 = vmatprep.subr.bf16.mxu0 %v6418
    %7412 = vmatpush1.bf16.msra.mxu0 %v6417
    %7413 = vmatprep.subr.bf16.mxu0 %v6426
    %7414 = vmatpush1.bf16.msra.mxu0 %v6425
    %7415 = vmatprep.subr.bf16.mxu0 %v6434
    %7416 = vmatpush1.bf16.msra.mxu0 %v6433
    %7417 = vmatprep.subr.bf16.mxu0 %v6442
    %7418 = vmatpush1.bf16.msra.mxu0 %v6441
    %7419 = vmatprep.subr.bf16.mxu0 %v6450
    %7420 = vmatpush1.bf16.msra.mxu0 %v6449
    %7421 = vmatprep.subr.bf16.mxu0 %v6458
    %7422 = vmatpush1.bf16.msra.mxu0 %v6457
    %7423 = vmatprep.subr.bf16.mxu0 %v6466
    %7424 = vmatpush1.bf16.msra.mxu0 %v6465
    %7425 = vmatprep.subr.bf16.mxu0 %v6474
    %7426 = vmatpush1.bf16.msra.mxu0 %v6473
    %7427 = vmatprep.subr.bf16.mxu0 %v6482
    %7428 = vmatpush1.bf16.msra.mxu0 %v6481
    %7429 = vmatprep.subr.bf16.mxu0 %v6490
    %7430 = vmatpush1.bf16.msra.mxu0 %v6489
    %7431 = vmatprep.subr.bf16.mxu0 %v6498
    %7432 = vmatpush1.bf16.msra.mxu0 %v6497
    %7433 = vmatprep.mubr.bf16.mxu0 %v4280
    %7434 = vmatmul.mubr.bf16.gmra.mrb[0].mxu0 %v4279
    %v7435 = vpop.f32.mrb[0].mxu0
    %v7436 = vadd.f32 %v4804, %v7435
    %v7437 = vpop.f32.mrb[0].mxu0
    %v7438 = vadd.f32 %v4808, %v7437
    %v7439 = vpop.f32.mrb[0].mxu0
    %v7440 = vpop.f32.mrb[0].mxu0
    %7441 = vdwg.mxu0
    %7442 = vmatprep.subr.bf16.mxu0 %v6506
    %7443 = vmatpush1.bf16.msra.mxu0 %v6505
    %7444 = vmatprep.subr.bf16.mxu0 %v6514
    %7445 = vmatpush1.bf16.msra.mxu0 %v6513
    %7446 = vmatprep.subr.bf16.mxu0 %v6522
    %7447 = vmatpush1.bf16.msra.mxu0 %v6521
    %7448 = vmatprep.subr.bf16.mxu0 %v6530
    %7449 = vmatpush1.bf16.msra.mxu0 %v6529
    %7450 = vmatprep.subr.bf16.mxu0 %v6538
    %7451 = vmatpush1.bf16.msra.mxu0 %v6537
    %7452 = vmatprep.subr.bf16.mxu0 %v6546
    %7453 = vmatpush1.bf16.msra.mxu0 %v6545
    %7454 = vmatprep.subr.bf16.mxu0 %v6554
    %7455 = vmatpush1.bf16.msra.mxu0 %v6553
    %7456 = vmatprep.subr.bf16.mxu0 %v6562
    %7457 = vmatpush1.bf16.msra.mxu0 %v6561
    %7458 = vmatprep.subr.bf16.mxu0 %v6570
    %7459 = vmatpush1.bf16.msra.mxu0 %v6569
    %7460 = vmatprep.subr.bf16.mxu0 %v6578
    %7461 = vmatpush1.bf16.msra.mxu0 %v6577
    %7462 = vmatprep.subr.bf16.mxu0 %v6586
    %7463 = vmatpush1.bf16.msra.mxu0 %v6585
    %7464 = vmatprep.subr.bf16.mxu0 %v6594
    %7465 = vmatpush1.bf16.msra.mxu0 %v6593
    %7466 = vmatprep.subr.bf16.mxu0 %v6602
    %7467 = vmatpush1.bf16.msra.mxu0 %v6601
    %7468 = vmatprep.subr.bf16.mxu0 %v6610
    %7469 = vmatpush1.bf16.msra.mxu0 %v6609
    %7470 = vmatprep.subr.bf16.mxu0 %v6618
    %7471 = vmatpush1.bf16.msra.mxu0 %v6617
    %7472 = vmatprep.subr.bf16.mxu0 %v6626
    %7473 = vmatpush1.bf16.msra.mxu0 %v6625
    %7474 = vmatprep.mubr.bf16.mxu0 %v4282
    %7475 = vmatmul.mubr.bf16.gmra.mrb[0].mxu0 %v4281
    %v7476 = vpop.f32.mrb[0].mxu0
    %v7477 = vadd.f32 %v7436, %v7476
    %v7478 = vpop.f32.mrb[0].mxu0
    %v7479 = vadd.f32 %v7438, %v7478
    %v7480 = vpop.f32.mrb[0].mxu0
    %v7481 = vpop.f32.mrb[0].mxu0
    %7482 = vdwg.mxu0
    %7483 = vmatprep.subr.bf16.mxu0 %v6634
    %7484 = vmatpush1.bf16.msra.mxu0 %v6633
    %7485 = vmatprep.subr.bf16.mxu0 %v6642
    %7486 = vmatpush1.bf16.msra.mxu0 %v6641
    %7487 = vmatprep.subr.bf16.mxu0 %v6650
    %7488 = vmatpush1.bf16.msra.mxu0 %v6649
    %7489 = vmatprep.subr.bf16.mxu0 %v6658
    %7490 = vmatpush1.bf16.msra.mxu0 %v6657
    %7491 = vmatprep.subr.bf16.mxu0 %v6666
    %7492 = vmatpush1.bf16.msra.mxu0 %v6665
    %7493 = vmatprep.subr.bf16.mxu0 %v6674
    %7494 = vmatpush1.bf16.msra.mxu0 %v6673
    %7495 = vmatprep.subr.bf16.mxu0 %v6682
    %7496 = vmatpush1.bf16.msra.mxu0 %v6681
    %7497 = vmatprep.subr.bf16.mxu0 %v6690
    %7498 = vmatpush1.bf16.msra.mxu0 %v6689
    %7499 = vmatprep.subr.bf16.mxu0 %v6698
    %7500 = vmatpush1.bf16.msra.mxu0 %v6697
    %7501 = vmatprep.subr.bf16.mxu0 %v6706
    %7502 = vmatpush1.bf16.msra.mxu0 %v6705
    %7503 = vmatprep.subr.bf16.mxu0 %v6714
    %7504 = vmatpush1.bf16.msra.mxu0 %v6713
    %7505 = vmatprep.subr.bf16.mxu0 %v6722
    %7506 = vmatpush1.bf16.msra.mxu0 %v6721
    %7507 = vmatprep.subr.bf16.mxu0 %v6730
    %7508 = vmatpush1.bf16.msra.mxu0 %v6729
    %7509 = vmatprep.subr.bf16.mxu0 %v6738
    %7510 = vmatpush1.bf16.msra.mxu0 %v6737
    %7511 = vmatprep.subr.bf16.mxu0 %v6746
    %7512 = vmatpush1.bf16.msra.mxu0 %v6745
    %7513 = vmatprep.subr.bf16.mxu0 %v6754
    %7514 = vmatpush1.bf16.msra.mxu0 %v6753
    %7515 = vmatprep.mubr.bf16.mxu0 %v4284
    %7516 = vmatmul.mubr.bf16.gmra.mrb[0].mxu0 %v4283
    %v7517 = vpop.f32.mrb[0].mxu0
    %v7518 = vadd.f32 %v7477, %v7517
    %v7519 = vpop.f32.mrb[0].mxu0
    %v7520 = vadd.f32 %v7479, %v7519
    %v7521 = vpop.f32.mrb[0].mxu0
    %v7522 = vpop.f32.mrb[0].mxu0
    %7523 = vdwg.mxu0
    %7524 = vmatprep.subr.bf16.mxu0 %v6762
    %7525 = vmatpush1.bf16.msra.mxu0 %v6761
    %7526 = vmatprep.subr.bf16.mxu0 %v6770
    %7527 = vmatpush1.bf16.msra.mxu0 %v6769
    %7528 = vmatprep.subr.bf16.mxu0 %v6778
    %7529 = vmatpush1.bf16.msra.mxu0 %v6777
    %7530 = vmatprep.subr.bf16.mxu0 %v6786
    %7531 = vmatpush1.bf16.msra.mxu0 %v6785
    %7532 = vmatprep.subr.bf16.mxu0 %v6794
    %7533 = vmatpush1.bf16.msra.mxu0 %v6793
    %7534 = vmatprep.subr.bf16.mxu0 %v6802
    %7535 = vmatpush1.bf16.msra.mxu0 %v6801
    %7536 = vmatprep.subr.bf16.mxu0 %v6810
    %7537 = vmatpush1.bf16.msra.mxu0 %v6809
    %7538 = vmatprep.subr.bf16.mxu0 %v6818
    %7539 = vmatpush1.bf16.msra.mxu0 %v6817
    %7540 = vmatprep.subr.bf16.mxu0 %v6826
    %7541 = vmatpush1.bf16.msra.mxu0 %v6825
    %7542 = vmatprep.subr.bf16.mxu0 %v6834
    %7543 = vmatpush1.bf16.msra.mxu0 %v6833
    %7544 = vmatprep.subr.bf16.mxu0 %v6842
    %7545 = vmatpush1.bf16.msra.mxu0 %v6841
    %7546 = vmatprep.subr.bf16.mxu0 %v6850
    %7547 = vmatpush1.bf16.msra.mxu0 %v6849
    %7548 = vmatprep.subr.bf16.mxu0 %v6858
    %7549 = vmatpush1.bf16.msra.mxu0 %v6857
    %7550 = vmatprep.subr.bf16.mxu0 %v6866
    %7551 = vmatpush1.bf16.msra.mxu0 %v6865
    %7552 = vmatprep.subr.bf16.mxu0 %v6874
    %7553 = vmatpush1.bf16.msra.mxu0 %v6873
    %7554 = vmatprep.subr.bf16.mxu0 %v6882
    %7555 = vmatpush1.bf16.msra.mxu0 %v6881
    %7556 = vmatprep.mubr.bf16.mxu0 %v4286
    %7557 = vmatmul.mubr.bf16.gmra.mrb[0].mxu0 %v4285
    %v7558 = vpop.f32.mrb[0].mxu0
    %v7559 = vadd.f32 %v7518, %v7558
    %v7560 = vpop.f32.mrb[0].mxu0
    %v7561 = vadd.f32 %v7520, %v7560
    %v7562 = vpop.f32.mrb[0].mxu0
    %v7563 = vpop.f32.mrb[0].mxu0
    %7564 = vdwg.mxu0
    %7565 = vmatprep.subr.bf16.mxu0 %v6380
    %7566 = vmatpush1.bf16.msra.mxu0 %v6379
    %7567 = vmatprep.subr.bf16.mxu0 %v6388
    %7568 = vmatpush1.bf16.msra.mxu0 %v6387
    %7569 = vmatprep.subr.bf16.mxu0 %v6396
    %7570 = vmatpush1.bf16.msra.mxu0 %v6395
    %7571 = vmatprep.subr.bf16.mxu0 %v6404
    %7572 = vmatpush1.bf16.msra.mxu0 %v6403
    %7573 = vmatprep.subr.bf16.mxu0 %v6412
    %7574 = vmatpush1.bf16.msra.mxu0 %v6411
    %7575 = vmatprep.subr.bf16.mxu0 %v6420
    %7576 = vmatpush1.bf16.msra.mxu0 %v6419
    %7577 = vmatprep.subr.bf16.mxu0 %v6428
    %7578 = vmatpush1.bf16.msra.mxu0 %v6427
    %7579 = vmatprep.subr.bf16.mxu0 %v6436
    %7580 = vmatpush1.bf16.msra.mxu0 %v6435
    %7581 = vmatprep.subr.bf16.mxu0 %v6444
    %7582 = vmatpush1.bf16.msra.mxu0 %v6443
    %7583 = vmatprep.subr.bf16.mxu0 %v6452
    %7584 = vmatpush1.bf16.msra.mxu0 %v6451
    %7585 = vmatprep.subr.bf16.mxu0 %v6460
    %7586 = vmatpush1.bf16.msra.mxu0 %v6459
    %7587 = vmatprep.subr.bf16.mxu0 %v6468
    %7588 = vmatpush1.bf16.msra.mxu0 %v6467
    %7589 = vmatprep.subr.bf16.mxu0 %v6476
    %7590 = vmatpush1.bf16.msra.mxu0 %v6475
    %7591 = vmatprep.subr.bf16.mxu0 %v6484
    %7592 = vmatpush1.bf16.msra.mxu0 %v6483
    %7593 = vmatprep.subr.bf16.mxu0 %v6492
    %7594 = vmatpush1.bf16.msra.mxu0 %v6491
    %7595 = vmatprep.subr.bf16.mxu0 %v6500
    %7596 = vmatpush1.bf16.msra.mxu0 %v6499
    %7597 = vmatprep.mubr.bf16.mxu0 %v4280
    %7598 = vmatmul.mubr.bf16.gmra.mrb[0].mxu0 %v4279
    %v7599 = vpop.f32.mrb[0].mxu0
    %v7600 = vadd.f32 %v4812, %v7599
    %v7601 = vpop.f32.mrb[0].mxu0
    %v7602 = vadd.f32 %v4816, %v7601
    %v7603 = vpop.f32.mrb[0].mxu0
    %v7604 = vpop.f32.mrb[0].mxu0
    %7605 = vdwg.mxu0
    %7606 = vmatprep.subr.bf16.mxu0 %v6508
    %7607 = vmatpush1.bf16.msra.mxu0 %v6507
    %7608 = vmatprep.subr.bf16.mxu0 %v6516
    %7609 = vmatpush1.bf16.msra.mxu0 %v6515
    %7610 = vmatprep.subr.bf16.mxu0 %v6524
    %7611 = vmatpush1.bf16.msra.mxu0 %v6523
    %7612 = vmatprep.subr.bf16.mxu0 %v6532
    %7613 = vmatpush1.bf16.msra.mxu0 %v6531
    %7614 = vmatprep.subr.bf16.mxu0 %v6540
    %7615 = vmatpush1.bf16.msra.mxu0 %v6539
    %7616 = vmatprep.subr.bf16.mxu0 %v6548
    %7617 = vmatpush1.bf16.msra.mxu0 %v6547
    %7618 = vmatprep.subr.bf16.mxu0 %v6556
    %7619 = vmatpush1.bf16.msra.mxu0 %v6555
    %7620 = vmatprep.subr.bf16.mxu0 %v6564
    %7621 = vmatpush1.bf16.msra.mxu0 %v6563
    %7622 = vmatprep.subr.bf16.mxu0 %v6572
    %7623 = vmatpush1.bf16.msra.mxu0 %v6571
    %7624 = vmatprep.subr.bf16.mxu0 %v6580
    %7625 = vmatpush1.bf16.msra.mxu0 %v6579
    %7626 = vmatprep.subr.bf16.mxu0 %v6588
    %7627 = vmatpush1.bf16.msra.mxu0 %v6587
    %7628 = vmatprep.subr.bf16.mxu0 %v6596
    %7629 = vmatpush1.bf16.msra.mxu0 %v6595
    %7630 = vmatprep.subr.bf16.mxu0 %v6604
    %7631 = vmatpush1.bf16.msra.mxu0 %v6603
    %7632 = vmatprep.subr.bf16.mxu0 %v6612
    %7633 = vmatpush1.bf16.msra.mxu0 %v6611
    %7634 = vmatprep.subr.bf16.mxu0 %v6620
    %7635 = vmatpush1.bf16.msra.mxu0 %v6619
    %7636 = vmatprep.subr.bf16.mxu0 %v6628
    %7637 = vmatpush1.bf16.msra.mxu0 %v6627
    %7638 = vmatprep.mubr.bf16.mxu0 %v4282
    %7639 = vmatmul.mubr.bf16.gmra.mrb[0].mxu0 %v4281
    %v7640 = vpop.f32.mrb[0].mxu0
    %v7641 = vadd.f32 %v7600, %v7640
    %v7642 = vpop.f32.mrb[0].mxu0
    %v7643 = vadd.f32 %v7602, %v7642
    %v7644 = vpop.f32.mrb[0].mxu0
    %v7645 = vpop.f32.mrb[0].mxu0
    %7646 = vdwg.mxu0
    %7647 = vmatprep.subr.bf16.mxu0 %v6636
    %7648 = vmatpush1.bf16.msra.mxu0 %v6635
    %7649 = vmatprep.subr.bf16.mxu0 %v6644
    %7650 = vmatpush1.bf16.msra.mxu0 %v6643
    %7651 = vmatprep.subr.bf16.mxu0 %v6652
    %7652 = vmatpush1.bf16.msra.mxu0 %v6651
    %7653 = vmatprep.subr.bf16.mxu0 %v6660
    %7654 = vmatpush1.bf16.msra.mxu0 %v6659
    %7655 = vmatprep.subr.bf16.mxu0 %v6668
    %7656 = vmatpush1.bf16.msra.mxu0 %v6667
    %7657 = vmatprep.subr.bf16.mxu0 %v6676
    %7658 = vmatpush1.bf16.msra.mxu0 %v6675
    %7659 = vmatprep.subr.bf16.mxu0 %v6684
    %7660 = vmatpush1.bf16.msra.mxu0 %v6683
    %7661 = vmatprep.subr.bf16.mxu0 %v6692
    %7662 = vmatpush1.bf16.msra.mxu0 %v6691
    %7663 = vmatprep.subr.bf16.mxu0 %v6700
    %7664 = vmatpush1.bf16.msra.mxu0 %v6699
    %7665 = vmatprep.subr.bf16.mxu0 %v6708
    %7666 = vmatpush1.bf16.msra.mxu0 %v6707
    %7667 = vmatprep.subr.bf16.mxu0 %v6716
    %7668 = vmatpush1.bf16.msra.mxu0 %v6715
    %7669 = vmatprep.subr.bf16.mxu0 %v6724
    %7670 = vmatpush1.bf16.msra.mxu0 %v6723
    %7671 = vmatprep.subr.bf16.mxu0 %v6732
    %7672 = vmatpush1.bf16.msra.mxu0 %v6731
    %7673 = vmatprep.subr.bf16.mxu0 %v6740
    %7674 = vmatpush1.bf16.msra.mxu0 %v6739
    %7675 = vmatprep.subr.bf16.mxu0 %v6748
    %7676 = vmatpush1.bf16.msra.mxu0 %v6747
    %7677 = vmatprep.subr.bf16.mxu0 %v6756
    %7678 = vmatpush1.bf16.msra.mxu0 %v6755
    %7679 = vmatprep.mubr.bf16.mxu0 %v4284
    %7680 = vmatmul.mubr.bf16.gmra.mrb[0].mxu0 %v4283
    %v7681 = vpop.f32.mrb[0].mxu0
    %v7682 = vadd.f32 %v7641, %v7681
    %v7683 = vpop.f32.mrb[0].mxu0
    %v7684 = vadd.f32 %v7643, %v7683
    %v7685 = vpop.f32.mrb[0].mxu0
    %v7686 = vpop.f32.mrb[0].mxu0
    %7687 = vdwg.mxu0
    %7688 = vmatprep.subr.bf16.mxu0 %v6764
    %7689 = vmatpush1.bf16.msra.mxu0 %v6763
    %7690 = vmatprep.subr.bf16.mxu0 %v6772
    %7691 = vmatpush1.bf16.msra.mxu0 %v6771
    %7692 = vmatprep.subr.bf16.mxu0 %v6780
    %7693 = vmatpush1.bf16.msra.mxu0 %v6779
    %7694 = vmatprep.subr.bf16.mxu0 %v6788
    %7695 = vmatpush1.bf16.msra.mxu0 %v6787
    %7696 = vmatprep.subr.bf16.mxu0 %v6796
    %7697 = vmatpush1.bf16.msra.mxu0 %v6795
    %7698 = vmatprep.subr.bf16.mxu0 %v6804
    %7699 = vmatpush1.bf16.msra.mxu0 %v6803
    %7700 = vmatprep.subr.bf16.mxu0 %v6812
    %7701 = vmatpush1.bf16.msra.mxu0 %v6811
    %7702 = vmatprep.subr.bf16.mxu0 %v6820
    %7703 = vmatpush1.bf16.msra.mxu0 %v6819
    %7704 = vmatprep.subr.bf16.mxu0 %v6828
    %7705 = vmatpush1.bf16.msra.mxu0 %v6827
    %7706 = vmatprep.subr.bf16.mxu0 %v6836
    %7707 = vmatpush1.bf16.msra.mxu0 %v6835
    %7708 = vmatprep.subr.bf16.mxu0 %v6844
    %7709 = vmatpush1.bf16.msra.mxu0 %v6843
    %7710 = vmatprep.subr.bf16.mxu0 %v6852
    %7711 = vmatpush1.bf16.msra.mxu0 %v6851
    %7712 = vmatprep.subr.bf16.mxu0 %v6860
    %7713 = vmatpush1.bf16.msra.mxu0 %v6859
    %7714 = vmatprep.subr.bf16.mxu0 %v6868
    %7715 = vmatpush1.bf16.msra.mxu0 %v6867
    %7716 = vmatprep.subr.bf16.mxu0 %v6876
    %7717 = vmatpush1.bf16.msra.mxu0 %v6875
    %7718 = vmatprep.subr.bf16.mxu0 %v6884
    %7719 = vmatpush1.bf16.msra.mxu0 %v6883
    %7720 = vmatprep.mubr.bf16.mxu0 %v4286
    %7721 = vmatmul.mubr.bf16.gmra.mrb[0].mxu0 %v4285
    %v7722 = vpop.f32.mrb[0].mxu0
    %v7723 = vadd.f32 %v7682, %v7722
    %v7724 = vpop.f32.mrb[0].mxu0
    %v7725 = vadd.f32 %v7684, %v7724
    %v7726 = vpop.f32.mrb[0].mxu0
    %v7727 = vpop.f32.mrb[0].mxu0
    %7728 = vdwg.mxu0
    %7729 = vmatprep.subr.bf16.mxu0 %v6382
    %7730 = vmatpush1.bf16.msra.mxu0 %v6381
    %7731 = vmatprep.subr.bf16.mxu0 %v6390
    %7732 = vmatpush1.bf16.msra.mxu0 %v6389
    %7733 = vmatprep.subr.bf16.mxu0 %v6398
    %7734 = vmatpush1.bf16.msra.mxu0 %v6397
    %7735 = vmatprep.subr.bf16.mxu0 %v6406
    %7736 = vmatpush1.bf16.msra.mxu0 %v6405
    %7737 = vmatprep.subr.bf16.mxu0 %v6414
    %7738 = vmatpush1.bf16.msra.mxu0 %v6413
    %7739 = vmatprep.subr.bf16.mxu0 %v6422
    %7740 = vmatpush1.bf16.msra.mxu0 %v6421
    %7741 = vmatprep.subr.bf16.mxu0 %v6430
    %7742 = vmatpush1.bf16.msra.mxu0 %v6429
    %7743 = vmatprep.subr.bf16.mxu0 %v6438
    %7744 = vmatpush1.bf16.msra.mxu0 %v6437
    %7745 = vmatprep.subr.bf16.mxu0 %v6446
    %7746 = vmatpush1.bf16.msra.mxu0 %v6445
    %7747 = vmatprep.subr.bf16.mxu0 %v6454
    %7748 = vmatpush1.bf16.msra.mxu0 %v6453
    %7749 = vmatprep.subr.bf16.mxu0 %v6462
    %7750 = vmatpush1.bf16.msra.mxu0 %v6461
    %7751 = vmatprep.subr.bf16.mxu0 %v6470
    %7752 = vmatpush1.bf16.msra.mxu0 %v6469
    %7753 = vmatprep.subr.bf16.mxu0 %v6478
    %7754 = vmatpush1.bf16.msra.mxu0 %v6477
    %7755 = vmatprep.subr.bf16.mxu0 %v6486
    %7756 = vmatpush1.bf16.msra.mxu0 %v6485
    %7757 = vmatprep.subr.bf16.mxu0 %v6494
    %7758 = vmatpush1.bf16.msra.mxu0 %v6493
    %7759 = vmatprep.subr.bf16.mxu0 %v6502
    %7760 = vmatpush1.bf16.msra.mxu0 %v6501
    %7761 = vmatprep.mubr.bf16.mxu0 %v4280
    %7762 = vmatmul.mubr.bf16.gmra.mrb[0].mxu0 %v4279
    %v7763 = vpop.f32.mrb[0].mxu0
    %v7764 = vadd.f32 %v4820, %v7763
    %v7765 = vpop.f32.mrb[0].mxu0
    %v7766 = vadd.f32 %v4824, %v7765
    %v7767 = vpop.f32.mrb[0].mxu0
    %v7768 = vpop.f32.mrb[0].mxu0
    %7769 = vdwg.mxu0
    %7770 = vmatprep.subr.bf16.mxu0 %v6510
    %7771 = vmatpush1.bf16.msra.mxu0 %v6509
    %7772 = vmatprep.subr.bf16.mxu0 %v6518
    %7773 = vmatpush1.bf16.msra.mxu0 %v6517
    %7774 = vmatprep.subr.bf16.mxu0 %v6526
    %7775 = vmatpush1.bf16.msra.mxu0 %v6525
    %7776 = vmatprep.subr.bf16.mxu0 %v6534
    %7777 = vmatpush1.bf16.msra.mxu0 %v6533
    %7778 = vmatprep.subr.bf16.mxu0 %v6542
    %7779 = vmatpush1.bf16.msra.mxu0 %v6541
    %7780 = vmatprep.subr.bf16.mxu0 %v6550
    %7781 = vmatpush1.bf16.msra.mxu0 %v6549
    %7782 = vmatprep.subr.bf16.mxu0 %v6558
    %7783 = vmatpush1.bf16.msra.mxu0 %v6557
    %7784 = vmatprep.subr.bf16.mxu0 %v6566
    %7785 = vmatpush1.bf16.msra.mxu0 %v6565
    %7786 = vmatprep.subr.bf16.mxu0 %v6574
    %7787 = vmatpush1.bf16.msra.mxu0 %v6573
    %7788 = vmatprep.subr.bf16.mxu0 %v6582
    %7789 = vmatpush1.bf16.msra.mxu0 %v6581
    %7790 = vmatprep.subr.bf16.mxu0 %v6590
    %7791 = vmatpush1.bf16.msra.mxu0 %v6589
    %7792 = vmatprep.subr.bf16.mxu0 %v6598
    %7793 = vmatpush1.bf16.msra.mxu0 %v6597
    %7794 = vmatprep.subr.bf16.mxu0 %v6606
    %7795 = vmatpush1.bf16.msra.mxu0 %v6605
    %7796 = vmatprep.subr.bf16.mxu0 %v6614
    %7797 = vmatpush1.bf16.msra.mxu0 %v6613
    %7798 = vmatprep.subr.bf16.mxu0 %v6622
    %7799 = vmatpush1.bf16.msra.mxu0 %v6621
    %7800 = vmatprep.subr.bf16.mxu0 %v6630
    %7801 = vmatpush1.bf16.msra.mxu0 %v6629
    %7802 = vmatprep.mubr.bf16.mxu0 %v4282
    %7803 = vmatmul.mubr.bf16.gmra.mrb[0].mxu0 %v4281
    %v7804 = vpop.f32.mrb[0].mxu0
    %v7805 = vadd.f32 %v7764, %v7804
    %v7806 = vpop.f32.mrb[0].mxu0
    %v7807 = vadd.f32 %v7766, %v7806
    %v7808 = vpop.f32.mrb[0].mxu0
    %v7809 = vpop.f32.mrb[0].mxu0
    %7810 = vdwg.mxu0
    %7811 = vmatprep.subr.bf16.mxu0 %v6638
    %7812 = vmatpush1.bf16.msra.mxu0 %v6637
    %7813 = vmatprep.subr.bf16.mxu0 %v6646
    %7814 = vmatpush1.bf16.msra.mxu0 %v6645
    %7815 = vmatprep.subr.bf16.mxu0 %v6654
    %7816 = vmatpush1.bf16.msra.mxu0 %v6653
    %7817 = vmatprep.subr.bf16.mxu0 %v6662
    %7818 = vmatpush1.bf16.msra.mxu0 %v6661
    %7819 = vmatprep.subr.bf16.mxu0 %v6670
    %7820 = vmatpush1.bf16.msra.mxu0 %v6669
    %7821 = vmatprep.subr.bf16.mxu0 %v6678
    %7822 = vmatpush1.bf16.msra.mxu0 %v6677
    %7823 = vmatprep.subr.bf16.mxu0 %v6686
    %7824 = vmatpush1.bf16.msra.mxu0 %v6685
    %7825 = vmatprep.subr.bf16.mxu0 %v6694
    %7826 = vmatpush1.bf16.msra.mxu0 %v6693
    %7827 = vmatprep.subr.bf16.mxu0 %v6702
    %7828 = vmatpush1.bf16.msra.mxu0 %v6701
    %7829 = vmatprep.subr.bf16.mxu0 %v6710
    %7830 = vmatpush1.bf16.msra.mxu0 %v6709
    %7831 = vmatprep.subr.bf16.mxu0 %v6718
    %7832 = vmatpush1.bf16.msra.mxu0 %v6717
    %7833 = vmatprep.subr.bf16.mxu0 %v6726
    %7834 = vmatpush1.bf16.msra.mxu0 %v6725
    %7835 = vmatprep.subr.bf16.mxu0 %v6734
    %7836 = vmatpush1.bf16.msra.mxu0 %v6733
    %7837 = vmatprep.subr.bf16.mxu0 %v6742
    %7838 = vmatpush1.bf16.msra.mxu0 %v6741
    %7839 = vmatprep.subr.bf16.mxu0 %v6750
    %7840 = vmatpush1.bf16.msra.mxu0 %v6749
    %7841 = vmatprep.subr.bf16.mxu0 %v6758
    %7842 = vmatpush1.bf16.msra.mxu0 %v6757
    %7843 = vmatprep.mubr.bf16.mxu0 %v4284
    %7844 = vmatmul.mubr.bf16.gmra.mrb[0].mxu0 %v4283
    %v7845 = vpop.f32.mrb[0].mxu0
    %v7846 = vadd.f32 %v7805, %v7845
    %v7847 = vpop.f32.mrb[0].mxu0
    %v7848 = vadd.f32 %v7807, %v7847
    %v7849 = vpop.f32.mrb[0].mxu0
    %v7850 = vpop.f32.mrb[0].mxu0
    %7851 = vdwg.mxu0
    %7852 = vmatprep.subr.bf16.mxu0 %v6766
    %7853 = vmatpush1.bf16.msra.mxu0 %v6765
    %7854 = vmatprep.subr.bf16.mxu0 %v6774
    %7855 = vmatpush1.bf16.msra.mxu0 %v6773
    %7856 = vmatprep.subr.bf16.mxu0 %v6782
    %7857 = vmatpush1.bf16.msra.mxu0 %v6781
    %7858 = vmatprep.subr.bf16.mxu0 %v6790
    %7859 = vmatpush1.bf16.msra.mxu0 %v6789
    %7860 = vmatprep.subr.bf16.mxu0 %v6798
    %7861 = vmatpush1.bf16.msra.mxu0 %v6797
    %7862 = vmatprep.subr.bf16.mxu0 %v6806
    %7863 = vmatpush1.bf16.msra.mxu0 %v6805
    %7864 = vmatprep.subr.bf16.mxu0 %v6814
    %7865 = vmatpush1.bf16.msra.mxu0 %v6813
    %7866 = vmatprep.subr.bf16.mxu0 %v6822
    %7867 = vmatpush1.bf16.msra.mxu0 %v6821
    %7868 = vmatprep.subr.bf16.mxu0 %v6830
    %7869 = vmatpush1.bf16.msra.mxu0 %v6829
    %7870 = vmatprep.subr.bf16.mxu0 %v6838
    %7871 = vmatpush1.bf16.msra.mxu0 %v6837
    %7872 = vmatprep.subr.bf16.mxu0 %v6846
    %7873 = vmatpush1.bf16.msra.mxu0 %v6845
    %7874 = vmatprep.subr.bf16.mxu0 %v6854
    %7875 = vmatpush1.bf16.msra.mxu0 %v6853
    %7876 = vmatprep.subr.bf16.mxu0 %v6862
    %7877 = vmatpush1.bf16.msra.mxu0 %v6861
    %7878 = vmatprep.subr.bf16.mxu0 %v6870
    %7879 = vmatpush1.bf16.msra.mxu0 %v6869
    %7880 = vmatprep.subr.bf16.mxu0 %v6878
    %7881 = vmatpush1.bf16.msra.mxu0 %v6877
    %7882 = vmatprep.subr.bf16.mxu0 %v6886
    %7883 = vmatpush1.bf16.msra.mxu0 %v6885
    %7884 = vmatprep.mubr.bf16.mxu0 %v4286
    %7885 = vmatmul.mubr.bf16.gmra.mrb[0].mxu0 %v4285
    %v7886 = vpop.f32.mrb[0].mxu0
    %v7887 = vadd.f32 %v7846, %v7886
    %v7888 = vpop.f32.mrb[0].mxu0
    %v7889 = vadd.f32 %v7848, %v7888
    %v7890 = vpop.f32.mrb[0].mxu0
    %v7891 = vpop.f32.mrb[0].mxu0
    %7892 = vdwg.mxu0
    %7893 = vmatprep.subr.bf16.mxu0 %v6384
    %7894 = vmatpush1.bf16.msra.mxu0 %v6383
    %7895 = vmatprep.subr.bf16.mxu0 %v6392
    %7896 = vmatpush1.bf16.msra.mxu0 %v6391
    %7897 = vmatprep.subr.bf16.mxu0 %v6400
    %7898 = vmatpush1.bf16.msra.mxu0 %v6399
    %7899 = vmatprep.subr.bf16.mxu0 %v6408
    %7900 = vmatpush1.bf16.msra.mxu0 %v6407
    %7901 = vmatprep.subr.bf16.mxu0 %v6416
    %7902 = vmatpush1.bf16.msra.mxu0 %v6415
    %7903 = vmatprep.subr.bf16.mxu0 %v6424
    %7904 = vmatpush1.bf16.msra.mxu0 %v6423
    %7905 = vmatprep.subr.bf16.mxu0 %v6432
    %7906 = vmatpush1.bf16.msra.mxu0 %v6431
    %7907 = vmatprep.subr.bf16.mxu0 %v6440
    %7908 = vmatpush1.bf16.msra.mxu0 %v6439
    %7909 = vmatprep.subr.bf16.mxu0 %v6448
    %7910 = vmatpush1.bf16.msra.mxu0 %v6447
    %7911 = vmatprep.subr.bf16.mxu0 %v6456
    %7912 = vmatpush1.bf16.msra.mxu0 %v6455
    %7913 = vmatprep.subr.bf16.mxu0 %v6464
    %7914 = vmatpush1.bf16.msra.mxu0 %v6463
    %7915 = vmatprep.subr.bf16.mxu0 %v6472
    %7916 = vmatpush1.bf16.msra.mxu0 %v6471
    %7917 = vmatprep.subr.bf16.mxu0 %v6480
    %7918 = vmatpush1.bf16.msra.mxu0 %v6479
    %7919 = vmatprep.subr.bf16.mxu0 %v6488
    %7920 = vmatpush1.bf16.msra.mxu0 %v6487
    %7921 = vmatprep.subr.bf16.mxu0 %v6496
    %7922 = vmatpush1.bf16.msra.mxu0 %v6495
    %7923 = vmatprep.subr.bf16.mxu0 %v6504
    %7924 = vmatpush1.bf16.msra.mxu0 %v6503
    %7925 = vmatprep.mubr.bf16.mxu0 %v4280
    %7926 = vmatmul.mubr.bf16.gmra.mrb[0].mxu0 %v4279
    %v7927 = vpop.f32.mrb[0].mxu0
    %v7928 = vadd.f32 %v4828, %v7927
    %v7929 = vpop.f32.mrb[0].mxu0
    %v7930 = vadd.f32 %v4832, %v7929
    %v7931 = vpop.f32.mrb[0].mxu0
    %v7932 = vpop.f32.mrb[0].mxu0
    %7933 = vdwg.mxu0
    %7934 = vmatprep.subr.bf16.mxu0 %v6512
    %7935 = vmatpush1.bf16.msra.mxu0 %v6511
    %7936 = vmatprep.subr.bf16.mxu0 %v6520
    %7937 = vmatpush1.bf16.msra.mxu0 %v6519
    %7938 = vmatprep.subr.bf16.mxu0 %v6528
    %7939 = vmatpush1.bf16.msra.mxu0 %v6527
    %7940 = vmatprep.subr.bf16.mxu0 %v6536
    %7941 = vmatpush1.bf16.msra.mxu0 %v6535
    %7942 = vmatprep.subr.bf16.mxu0 %v6544
    %7943 = vmatpush1.bf16.msra.mxu0 %v6543
    %7944 = vmatprep.subr.bf16.mxu0 %v6552
    %7945 = vmatpush1.bf16.msra.mxu0 %v6551
    %7946 = vmatprep.subr.bf16.mxu0 %v6560
    %7947 = vmatpush1.bf16.msra.mxu0 %v6559
    %7948 = vmatprep.subr.bf16.mxu0 %v6568
    %7949 = vmatpush1.bf16.msra.mxu0 %v6567
    %7950 = vmatprep.subr.bf16.mxu0 %v6576
    %7951 = vmatpush1.bf16.msra.mxu0 %v6575
    %7952 = vmatprep.subr.bf16.mxu0 %v6584
    %7953 = vmatpush1.bf16.msra.mxu0 %v6583
    %7954 = vmatprep.subr.bf16.mxu0 %v6592
    %7955 = vmatpush1.bf16.msra.mxu0 %v6591
    %7956 = vmatprep.subr.bf16.mxu0 %v6600
    %7957 = vmatpush1.bf16.msra.mxu0 %v6599
    %7958 = vmatprep.subr.bf16.mxu0 %v6608
    %7959 = vmatpush1.bf16.msra.mxu0 %v6607
    %7960 = vmatprep.subr.bf16.mxu0 %v6616
    %7961 = vmatpush1.bf16.msra.mxu0 %v6615
    %7962 = vmatprep.subr.bf16.mxu0 %v6624
    %7963 = vmatpush1.bf16.msra.mxu0 %v6623
    %7964 = vmatprep.subr.bf16.mxu0 %v6632
    %7965 = vmatpush1.bf16.msra.mxu0 %v6631
    %7966 = vmatprep.mubr.bf16.mxu0 %v4282
    %7967 = vmatmul.mubr.bf16.gmra.mrb[0].mxu0 %v4281
    %v7968 = vpop.f32.mrb[0].mxu0
    %v7969 = vadd.f32 %v7928, %v7968
    %v7970 = vpop.f32.mrb[0].mxu0
    %v7971 = vadd.f32 %v7930, %v7970
    %v7972 = vpop.f32.mrb[0].mxu0
    %v7973 = vpop.f32.mrb[0].mxu0
    %7974 = vdwg.mxu0
    %7975 = vmatprep.subr.bf16.mxu0 %v6640
    %7976 = vmatpush1.bf16.msra.mxu0 %v6639
    %7977 = vmatprep.subr.bf16.mxu0 %v6648
    %7978 = vmatpush1.bf16.msra.mxu0 %v6647
    %7979 = vmatprep.subr.bf16.mxu0 %v6656
    %7980 = vmatpush1.bf16.msra.mxu0 %v6655
    %7981 = vmatprep.subr.bf16.mxu0 %v6664
    %7982 = vmatpush1.bf16.msra.mxu0 %v6663
    %7983 = vmatprep.subr.bf16.mxu0 %v6672
    %7984 = vmatpush1.bf16.msra.mxu0 %v6671
    %7985 = vmatprep.subr.bf16.mxu0 %v6680
    %7986 = vmatpush1.bf16.msra.mxu0 %v6679
    %7987 = vmatprep.subr.bf16.mxu0 %v6688
    %7988 = vmatpush1.bf16.msra.mxu0 %v6687
    %7989 = vmatprep.subr.bf16.mxu0 %v6696
    %7990 = vmatpush1.bf16.msra.mxu0 %v6695
    %7991 = vmatprep.subr.bf16.mxu0 %v6704
    %7992 = vmatpush1.bf16.msra.mxu0 %v6703
    %7993 = vmatprep.subr.bf16.mxu0 %v6712
    %7994 = vmatpush1.bf16.msra.mxu0 %v6711
    %7995 = vmatprep.subr.bf16.mxu0 %v6720
    %7996 = vmatpush1.bf16.msra.mxu0 %v6719
    %7997 = vmatprep.subr.bf16.mxu0 %v6728
    %7998 = vmatpush1.bf16.msra.mxu0 %v6727
    %7999 = vmatprep.subr.bf16.mxu0 %v6736
    %8000 = vmatpush1.bf16.msra.mxu0 %v6735
    %8001 = vmatprep.subr.bf16.mxu0 %v6744
    %8002 = vmatpush1.bf16.msra.mxu0 %v6743
    %8003 = vmatprep.subr.bf16.mxu0 %v6752
    %8004 = vmatpush1.bf16.msra.mxu0 %v6751
    %8005 = vmatprep.subr.bf16.mxu0 %v6760
    %8006 = vmatpush1.bf16.msra.mxu0 %v6759
    %8007 = vmatprep.mubr.bf16.mxu0 %v4284
    %8008 = vmatmul.mubr.bf16.gmra.mrb[0].mxu0 %v4283
    %v8009 = vpop.f32.mrb[0].mxu0
    %v8010 = vadd.f32 %v7969, %v8009
    %v8011 = vpop.f32.mrb[0].mxu0
    %v8012 = vadd.f32 %v7971, %v8011
    %v8013 = vpop.f32.mrb[0].mxu0
    %v8014 = vpop.f32.mrb[0].mxu0
    %8015 = vdwg.mxu0
    %8016 = vmatprep.subr.bf16.mxu0 %v6768
    %8017 = vmatpush1.bf16.msra.mxu0 %v6767
    %8018 = vmatprep.subr.bf16.mxu0 %v6776
    %8019 = vmatpush1.bf16.msra.mxu0 %v6775
    %8020 = vmatprep.subr.bf16.mxu0 %v6784
    %8021 = vmatpush1.bf16.msra.mxu0 %v6783
    %8022 = vmatprep.subr.bf16.mxu0 %v6792
    %8023 = vmatpush1.bf16.msra.mxu0 %v6791
    %8024 = vmatprep.subr.bf16.mxu0 %v6800
    %8025 = vmatpush1.bf16.msra.mxu0 %v6799
    %8026 = vmatprep.subr.bf16.mxu0 %v6808
    %8027 = vmatpush1.bf16.msra.mxu0 %v6807
    %8028 = vmatprep.subr.bf16.mxu0 %v6816
    %8029 = vmatpush1.bf16.msra.mxu0 %v6815
    %8030 = vmatprep.subr.bf16.mxu0 %v6824
    %8031 = vmatpush1.bf16.msra.mxu0 %v6823
    %8032 = vmatprep.subr.bf16.mxu0 %v6832
    %8033 = vmatpush1.bf16.msra.mxu0 %v6831
    %8034 = vmatprep.subr.bf16.mxu0 %v6840
    %8035 = vmatpush1.bf16.msra.mxu0 %v6839
    %8036 = vmatprep.subr.bf16.mxu0 %v6848
    %8037 = vmatpush1.bf16.msra.mxu0 %v6847
    %8038 = vmatprep.subr.bf16.mxu0 %v6856
    %8039 = vmatpush1.bf16.msra.mxu0 %v6855
    %8040 = vmatprep.subr.bf16.mxu0 %v6864
    %8041 = vmatpush1.bf16.msra.mxu0 %v6863
    %8042 = vmatprep.subr.bf16.mxu0 %v6872
    %8043 = vmatpush1.bf16.msra.mxu0 %v6871
    %8044 = vmatprep.subr.bf16.mxu0 %v6880
    %8045 = vmatpush1.bf16.msra.mxu0 %v6879
    %8046 = vmatprep.subr.bf16.mxu0 %v6888
    %8047 = vmatpush1.bf16.msra.mxu0 %v6887
    %8048 = vmatprep.mubr.bf16.mxu0 %v4286
    %8049 = vmatmul.mubr.bf16.gmra.mrb[0].mxu0 %v4285
    %v8050 = vpop.f32.mrb[0].mxu0
    %v8051 = vadd.f32 %v8010, %v8050
    %v8052 = vpop.f32.mrb[0].mxu0
    %v8053 = vadd.f32 %v8012, %v8052
    %v8054 = vpop.f32.mrb[0].mxu0
    %v8055 = vpop.f32.mrb[0].mxu0
    %8056 = vdwg.mxu0
    %v8057 = vmax.f32 %v7559, 0.0
    %v8058 = vmax.f32 %v7561, 0.0
    %v8059 = vmax.f32 %v7723, 0.0
    %v8060 = vmax.f32 %v7725, 0.0
    %v8061 = vmax.f32 %v7887, 0.0
    %v8062 = vmax.f32 %v7889, 0.0
    %v8063 = vmax.f32 %v8051, 0.0
    %v8064 = vmax.f32 %v8053, 0.0
    %v8065 = vpack.c.bf16 %v8057, %v8057
    %v8066 = vpack.c.bf16 %v8058, %v8058
    %v8067 = vpack.c.bf16 %v8059, %v8059
    %v8068 = vpack.c.bf16 %v8060, %v8060
    %v8069 = vpack.c.bf16 %v8061, %v8061
    %v8070 = vpack.c.bf16 %v8062, %v8062
    %v8071 = vpack.c.bf16 %v8063, %v8063
    %v8072 = vpack.c.bf16 %v8064, %v8064
    %v8073 = vld [vmem:[#allocation14] sm:$0xff]
    %v8074 = vld [vmem:[#allocation14 + $0x8] sm:$0xff]
    %v8075 = vld [vmem:[#allocation14 + $0x10] sm:$0xff]
    %v8076 = vld [vmem:[#allocation14 + $0x18] sm:$0xff]
    %v8077 = vld [vmem:[#allocation14 + $0x20] sm:$0xff]
    %v8078 = vld [vmem:[#allocation14 + $0x28] sm:$0xff]
    %v8079 = vld [vmem:[#allocation14 + $0x30] sm:$0xff]
    %v8080 = vld [vmem:[#allocation14 + $0x38] sm:$0xff]
    %v8081 = vld [vmem:[#allocation14 + $0x40] sm:$0xff]
    %v8082 = vld [vmem:[#allocation14 + $0x48] sm:$0xff]
    %v8083 = vld [vmem:[#allocation14 + $0x50] sm:$0xff]
    %v8084 = vld [vmem:[#allocation14 + $0x58] sm:$0xff]
    %v8085 = vld [vmem:[#allocation14 + $0x60] sm:$0xff]
    %v8086 = vld [vmem:[#allocation14 + $0x68] sm:$0xff]
    %v8087 = vld [vmem:[#allocation14 + $0x70] sm:$0xff]
    %v8088 = vld [vmem:[#allocation14 + $0x78] sm:$0xff]
    %v8089 = vld [vmem:[#allocation14 + $0x80] sm:$0xff]
    %v8090 = vld [vmem:[#allocation14 + $0x88] sm:$0xff]
    %v8091 = vld [vmem:[#allocation14 + $0x90] sm:$0xff]
    %v8092 = vld [vmem:[#allocation14 + $0x98] sm:$0xff]
    %v8093 = vld [vmem:[#allocation14 + $0xa0] sm:$0xff]
    %v8094 = vld [vmem:[#allocation14 + $0xa8] sm:$0xff]
    %v8095 = vld [vmem:[#allocation14 + $0xb0] sm:$0xff]
    %v8096 = vld [vmem:[#allocation14 + $0xb8] sm:$0xff]
    %v8097 = vld [vmem:[#allocation14 + $0xc0] sm:$0xff]
    %v8098 = vld [vmem:[#allocation14 + $0xc8] sm:$0xff]
    %v8099 = vld [vmem:[#allocation14 + $0xd0] sm:$0xff]
    %v8100 = vld [vmem:[#allocation14 + $0xd8] sm:$0xff]
    %v8101 = vld [vmem:[#allocation14 + $0xe0] sm:$0xff]
    %v8102 = vld [vmem:[#allocation14 + $0xe8] sm:$0xff]
    %v8103 = vld [vmem:[#allocation14 + $0xf0] sm:$0xff]
    %v8104 = vld [vmem:[#allocation14 + $0xf8] sm:$0xff]
    %v8105 = vld [vmem:[#allocation14 + $0x100] sm:$0xff]
    %v8106 = vld [vmem:[#allocation14 + $0x108] sm:$0xff]
    %v8107 = vld [vmem:[#allocation14 + $0x110] sm:$0xff]
    %v8108 = vld [vmem:[#allocation14 + $0x118] sm:$0xff]
    %v8109 = vld [vmem:[#allocation14 + $0x120] sm:$0xff]
    %v8110 = vld [vmem:[#allocation14 + $0x128] sm:$0xff]
    %v8111 = vld [vmem:[#allocation14 + $0x130] sm:$0xff]
    %v8112 = vld [vmem:[#allocation14 + $0x138] sm:$0xff]
    %v8113 = vld [vmem:[#allocation14 + $0x140] sm:$0xff]
    %v8114 = vld [vmem:[#allocation14 + $0x148] sm:$0xff]
    %v8115 = vld [vmem:[#allocation14 + $0x150] sm:$0xff]
    %v8116 = vld [vmem:[#allocation14 + $0x158] sm:$0xff]
    %v8117 = vld [vmem:[#allocation14 + $0x160] sm:$0xff]
    %v8118 = vld [vmem:[#allocation14 + $0x168] sm:$0xff]
    %v8119 = vld [vmem:[#allocation14 + $0x170] sm:$0xff]
    %v8120 = vld [vmem:[#allocation14 + $0x178] sm:$0xff]
    %v8121 = vld [vmem:[#allocation14 + $0x180] sm:$0xff]
    %v8122 = vld [vmem:[#allocation14 + $0x188] sm:$0xff]
    %v8123 = vld [vmem:[#allocation14 + $0x190] sm:$0xff]
    %v8124 = vld [vmem:[#allocation14 + $0x198] sm:$0xff]
    %v8125 = vld [vmem:[#allocation14 + $0x1a0] sm:$0xff]
    %v8126 = vld [vmem:[#allocation14 + $0x1a8] sm:$0xff]
    %v8127 = vld [vmem:[#allocation14 + $0x1b0] sm:$0xff]
    %v8128 = vld [vmem:[#allocation14 + $0x1b8] sm:$0xff]
    %v8129 = vld [vmem:[#allocation14 + $0x1c0] sm:$0xff]
    %v8130 = vld [vmem:[#allocation14 + $0x1c8] sm:$0xff]
    %v8131 = vld [vmem:[#allocation14 + $0x1d0] sm:$0xff]
    %v8132 = vld [vmem:[#allocation14 + $0x1d8] sm:$0xff]
    %v8133 = vld [vmem:[#allocation14 + $0x1e0] sm:$0xff]
    %v8134 = vld [vmem:[#allocation14 + $0x1e8] sm:$0xff]
    %v8135 = vld [vmem:[#allocation14 + $0x1f0] sm:$0xff]
    %v8136 = vld [vmem:[#allocation14 + $0x1f8] sm:$0xff]
    %v8137 = vld [vmem:[#allocation14 + $0x200] sm:$0xff]
    %v8138 = vld [vmem:[#allocation14 + $0x208] sm:$0xff]
    %v8139 = vld [vmem:[#allocation14 + $0x210] sm:$0xff]
    %v8140 = vld [vmem:[#allocation14 + $0x218] sm:$0xff]
    %v8141 = vld [vmem:[#allocation14 + $0x220] sm:$0xff]
    %v8142 = vld [vmem:[#allocation14 + $0x228] sm:$0xff]
    %v8143 = vld [vmem:[#allocation14 + $0x230] sm:$0xff]
    %v8144 = vld [vmem:[#allocation14 + $0x238] sm:$0xff]
    %v8145 = vld [vmem:[#allocation14 + $0x240] sm:$0xff]
    %v8146 = vld [vmem:[#allocation14 + $0x248] sm:$0xff]
    %v8147 = vld [vmem:[#allocation14 + $0x250] sm:$0xff]
    %v8148 = vld [vmem:[#allocation14 + $0x258] sm:$0xff]
    %v8149 = vld [vmem:[#allocation14 + $0x260] sm:$0xff]
    %v8150 = vld [vmem:[#allocation14 + $0x268] sm:$0xff]
    %v8151 = vld [vmem:[#allocation14 + $0x270] sm:$0xff]
    %v8152 = vld [vmem:[#allocation14 + $0x278] sm:$0xff]
    %v8153 = vld [vmem:[#allocation14 + $0x280] sm:$0xff]
    %v8154 = vld [vmem:[#allocation14 + $0x288] sm:$0xff]
    %v8155 = vld [vmem:[#allocation14 + $0x290] sm:$0xff]
    %v8156 = vld [vmem:[#allocation14 + $0x298] sm:$0xff]
    %v8157 = vld [vmem:[#allocation14 + $0x2a0] sm:$0xff]
    %v8158 = vld [vmem:[#allocation14 + $0x2a8] sm:$0xff]
    %v8159 = vld [vmem:[#allocation14 + $0x2b0] sm:$0xff]
    %v8160 = vld [vmem:[#allocation14 + $0x2b8] sm:$0xff]
    %v8161 = vld [vmem:[#allocation14 + $0x2c0] sm:$0xff]
    %v8162 = vld [vmem:[#allocation14 + $0x2c8] sm:$0xff]
    %v8163 = vld [vmem:[#allocation14 + $0x2d0] sm:$0xff]
    %v8164 = vld [vmem:[#allocation14 + $0x2d8] sm:$0xff]
    %v8165 = vld [vmem:[#allocation14 + $0x2e0] sm:$0xff]
    %v8166 = vld [vmem:[#allocation14 + $0x2e8] sm:$0xff]
    %v8167 = vld [vmem:[#allocation14 + $0x2f0] sm:$0xff]
    %v8168 = vld [vmem:[#allocation14 + $0x2f8] sm:$0xff]
    %v8169 = vld [vmem:[#allocation14 + $0x300] sm:$0xff]
    %v8170 = vld [vmem:[#allocation14 + $0x308] sm:$0xff]
    %v8171 = vld [vmem:[#allocation14 + $0x310] sm:$0xff]
    %v8172 = vld [vmem:[#allocation14 + $0x318] sm:$0xff]
    %v8173 = vld [vmem:[#allocation14 + $0x320] sm:$0xff]
    %v8174 = vld [vmem:[#allocation14 + $0x328] sm:$0xff]
    %v8175 = vld [vmem:[#allocation14 + $0x330] sm:$0xff]
    %v8176 = vld [vmem:[#allocation14 + $0x338] sm:$0xff]
    %v8177 = vld [vmem:[#allocation14 + $0x340] sm:$0xff]
    %v8178 = vld [vmem:[#allocation14 + $0x348] sm:$0xff]
    %v8179 = vld [vmem:[#allocation14 + $0x350] sm:$0xff]
    %v8180 = vld [vmem:[#allocation14 + $0x358] sm:$0xff]
    %v8181 = vld [vmem:[#allocation14 + $0x360] sm:$0xff]
    %v8182 = vld [vmem:[#allocation14 + $0x368] sm:$0xff]
    %v8183 = vld [vmem:[#allocation14 + $0x370] sm:$0xff]
    %v8184 = vld [vmem:[#allocation14 + $0x378] sm:$0xff]
    %v8185 = vld [vmem:[#allocation14 + $0x380] sm:$0xff]
    %v8186 = vld [vmem:[#allocation14 + $0x388] sm:$0xff]
    %v8187 = vld [vmem:[#allocation14 + $0x390] sm:$0xff]
    %v8188 = vld [vmem:[#allocation14 + $0x398] sm:$0xff]
    %v8189 = vld [vmem:[#allocation14 + $0x3a0] sm:$0xff]
    %v8190 = vld [vmem:[#allocation14 + $0x3a8] sm:$0xff]
    %v8191 = vld [vmem:[#allocation14 + $0x3b0] sm:$0xff]
    %v8192 = vld [vmem:[#allocation14 + $0x3b8] sm:$0xff]
    %v8193 = vld [vmem:[#allocation14 + $0x3c0] sm:$0xff]
    %v8194 = vld [vmem:[#allocation14 + $0x3c8] sm:$0xff]
    %v8195 = vld [vmem:[#allocation14 + $0x3d0] sm:$0xff]
    %v8196 = vld [vmem:[#allocation14 + $0x3d8] sm:$0xff]
    %v8197 = vld [vmem:[#allocation14 + $0x3e0] sm:$0xff]
    %v8198 = vld [vmem:[#allocation14 + $0x3e8] sm:$0xff]
    %v8199 = vld [vmem:[#allocation14 + $0x3f0] sm:$0xff]
    %v8200 = vld [vmem:[#allocation14 + $0x3f8] sm:$0xff]
    %v8201 = vld [vmem:[#allocation14 + $0x400] sm:$0xff]
    %v8202 = vld [vmem:[#allocation14 + $0x408] sm:$0xff]
    %v8203 = vld [vmem:[#allocation14 + $0x410] sm:$0xff]
    %v8204 = vld [vmem:[#allocation14 + $0x418] sm:$0xff]
    %v8205 = vld [vmem:[#allocation14 + $0x420] sm:$0xff]
    %v8206 = vld [vmem:[#allocation14 + $0x428] sm:$0xff]
    %v8207 = vld [vmem:[#allocation14 + $0x430] sm:$0xff]
    %v8208 = vld [vmem:[#allocation14 + $0x438] sm:$0xff]
    %v8209 = vld [vmem:[#allocation14 + $0x440] sm:$0xff]
    %v8210 = vld [vmem:[#allocation14 + $0x448] sm:$0xff]
    %v8211 = vld [vmem:[#allocation14 + $0x450] sm:$0xff]
    %v8212 = vld [vmem:[#allocation14 + $0x458] sm:$0xff]
    %v8213 = vld [vmem:[#allocation14 + $0x460] sm:$0xff]
    %v8214 = vld [vmem:[#allocation14 + $0x468] sm:$0xff]
    %v8215 = vld [vmem:[#allocation14 + $0x470] sm:$0xff]
    %v8216 = vld [vmem:[#allocation14 + $0x478] sm:$0xff]
    %v8217 = vld [vmem:[#allocation14 + $0x480] sm:$0xff]
    %v8218 = vld [vmem:[#allocation14 + $0x488] sm:$0xff]
    %v8219 = vld [vmem:[#allocation14 + $0x490] sm:$0xff]
    %v8220 = vld [vmem:[#allocation14 + $0x498] sm:$0xff]
    %v8221 = vld [vmem:[#allocation14 + $0x4a0] sm:$0xff]
    %v8222 = vld [vmem:[#allocation14 + $0x4a8] sm:$0xff]
    %v8223 = vld [vmem:[#allocation14 + $0x4b0] sm:$0xff]
    %v8224 = vld [vmem:[#allocation14 + $0x4b8] sm:$0xff]
    %v8225 = vld [vmem:[#allocation14 + $0x4c0] sm:$0xff]
    %v8226 = vld [vmem:[#allocation14 + $0x4c8] sm:$0xff]
    %v8227 = vld [vmem:[#allocation14 + $0x4d0] sm:$0xff]
    %v8228 = vld [vmem:[#allocation14 + $0x4d8] sm:$0xff]
    %v8229 = vld [vmem:[#allocation14 + $0x4e0] sm:$0xff]
    %v8230 = vld [vmem:[#allocation14 + $0x4e8] sm:$0xff]
    %v8231 = vld [vmem:[#allocation14 + $0x4f0] sm:$0xff]
    %v8232 = vld [vmem:[#allocation14 + $0x4f8] sm:$0xff]
    %v8233 = vld [vmem:[#allocation14 + $0x500] sm:$0xff]
    %v8234 = vld [vmem:[#allocation14 + $0x508] sm:$0xff]
    %v8235 = vld [vmem:[#allocation14 + $0x510] sm:$0xff]
    %v8236 = vld [vmem:[#allocation14 + $0x518] sm:$0xff]
    %v8237 = vld [vmem:[#allocation14 + $0x520] sm:$0xff]
    %v8238 = vld [vmem:[#allocation14 + $0x528] sm:$0xff]
    %v8239 = vld [vmem:[#allocation14 + $0x530] sm:$0xff]
    %v8240 = vld [vmem:[#allocation14 + $0x538] sm:$0xff]
    %v8241 = vld [vmem:[#allocation14 + $0x540] sm:$0xff]
    %v8242 = vld [vmem:[#allocation14 + $0x548] sm:$0xff]
    %v8243 = vld [vmem:[#allocation14 + $0x550] sm:$0xff]
    %v8244 = vld [vmem:[#allocation14 + $0x558] sm:$0xff]
    %v8245 = vld [vmem:[#allocation14 + $0x560] sm:$0xff]
    %v8246 = vld [vmem:[#allocation14 + $0x568] sm:$0xff]
    %v8247 = vld [vmem:[#allocation14 + $0x570] sm:$0xff]
    %v8248 = vld [vmem:[#allocation14 + $0x578] sm:$0xff]
    %v8249 = vld [vmem:[#allocation14 + $0x580] sm:$0xff]
    %v8250 = vld [vmem:[#allocation14 + $0x588] sm:$0xff]
    %v8251 = vld [vmem:[#allocation14 + $0x590] sm:$0xff]
    %v8252 = vld [vmem:[#allocation14 + $0x598] sm:$0xff]
    %v8253 = vld [vmem:[#allocation14 + $0x5a0] sm:$0xff]
    %v8254 = vld [vmem:[#allocation14 + $0x5a8] sm:$0xff]
    %v8255 = vld [vmem:[#allocation14 + $0x5b0] sm:$0xff]
    %v8256 = vld [vmem:[#allocation14 + $0x5b8] sm:$0xff]
    %v8257 = vld [vmem:[#allocation14 + $0x5c0] sm:$0xff]
    %v8258 = vld [vmem:[#allocation14 + $0x5c8] sm:$0xff]
    %v8259 = vld [vmem:[#allocation14 + $0x5d0] sm:$0xff]
    %v8260 = vld [vmem:[#allocation14 + $0x5d8] sm:$0xff]
    %v8261 = vld [vmem:[#allocation14 + $0x5e0] sm:$0xff]
    %v8262 = vld [vmem:[#allocation14 + $0x5e8] sm:$0xff]
    %v8263 = vld [vmem:[#allocation14 + $0x5f0] sm:$0xff]
    %v8264 = vld [vmem:[#allocation14 + $0x5f8] sm:$0xff]
    %v8265 = vld [vmem:[#allocation14 + $0x600] sm:$0xff]
    %v8266 = vld [vmem:[#allocation14 + $0x608] sm:$0xff]
    %v8267 = vld [vmem:[#allocation14 + $0x610] sm:$0xff]
    %v8268 = vld [vmem:[#allocation14 + $0x618] sm:$0xff]
    %v8269 = vld [vmem:[#allocation14 + $0x620] sm:$0xff]
    %v8270 = vld [vmem:[#allocation14 + $0x628] sm:$0xff]
    %v8271 = vld [vmem:[#allocation14 + $0x630] sm:$0xff]
    %v8272 = vld [vmem:[#allocation14 + $0x638] sm:$0xff]
    %v8273 = vld [vmem:[#allocation14 + $0x640] sm:$0xff]
    %v8274 = vld [vmem:[#allocation14 + $0x648] sm:$0xff]
    %v8275 = vld [vmem:[#allocation14 + $0x650] sm:$0xff]
    %v8276 = vld [vmem:[#allocation14 + $0x658] sm:$0xff]
    %v8277 = vld [vmem:[#allocation14 + $0x660] sm:$0xff]
    %v8278 = vld [vmem:[#allocation14 + $0x668] sm:$0xff]
    %v8279 = vld [vmem:[#allocation14 + $0x670] sm:$0xff]
    %v8280 = vld [vmem:[#allocation14 + $0x678] sm:$0xff]
    %v8281 = vld [vmem:[#allocation14 + $0x680] sm:$0xff]
    %v8282 = vld [vmem:[#allocation14 + $0x688] sm:$0xff]
    %v8283 = vld [vmem:[#allocation14 + $0x690] sm:$0xff]
    %v8284 = vld [vmem:[#allocation14 + $0x698] sm:$0xff]
    %v8285 = vld [vmem:[#allocation14 + $0x6a0] sm:$0xff]
    %v8286 = vld [vmem:[#allocation14 + $0x6a8] sm:$0xff]
    %v8287 = vld [vmem:[#allocation14 + $0x6b0] sm:$0xff]
    %v8288 = vld [vmem:[#allocation14 + $0x6b8] sm:$0xff]
    %v8289 = vld [vmem:[#allocation14 + $0x6c0] sm:$0xff]
    %v8290 = vld [vmem:[#allocation14 + $0x6c8] sm:$0xff]
    %v8291 = vld [vmem:[#allocation14 + $0x6d0] sm:$0xff]
    %v8292 = vld [vmem:[#allocation14 + $0x6d8] sm:$0xff]
    %v8293 = vld [vmem:[#allocation14 + $0x6e0] sm:$0xff]
    %v8294 = vld [vmem:[#allocation14 + $0x6e8] sm:$0xff]
    %v8295 = vld [vmem:[#allocation14 + $0x6f0] sm:$0xff]
    %v8296 = vld [vmem:[#allocation14 + $0x6f8] sm:$0xff]
    %v8297 = vld [vmem:[#allocation14 + $0x700] sm:$0xff]
    %v8298 = vld [vmem:[#allocation14 + $0x708] sm:$0xff]
    %v8299 = vld [vmem:[#allocation14 + $0x710] sm:$0xff]
    %v8300 = vld [vmem:[#allocation14 + $0x718] sm:$0xff]
    %v8301 = vld [vmem:[#allocation14 + $0x720] sm:$0xff]
    %v8302 = vld [vmem:[#allocation14 + $0x728] sm:$0xff]
    %v8303 = vld [vmem:[#allocation14 + $0x730] sm:$0xff]
    %v8304 = vld [vmem:[#allocation14 + $0x738] sm:$0xff]
    %v8305 = vld [vmem:[#allocation14 + $0x740] sm:$0xff]
    %v8306 = vld [vmem:[#allocation14 + $0x748] sm:$0xff]
    %v8307 = vld [vmem:[#allocation14 + $0x750] sm:$0xff]
    %v8308 = vld [vmem:[#allocation14 + $0x758] sm:$0xff]
    %v8309 = vld [vmem:[#allocation14 + $0x760] sm:$0xff]
    %v8310 = vld [vmem:[#allocation14 + $0x768] sm:$0xff]
    %v8311 = vld [vmem:[#allocation14 + $0x770] sm:$0xff]
    %v8312 = vld [vmem:[#allocation14 + $0x778] sm:$0xff]
    %v8313 = vld [vmem:[#allocation14 + $0x780] sm:$0xff]
    %v8314 = vld [vmem:[#allocation14 + $0x788] sm:$0xff]
    %v8315 = vld [vmem:[#allocation14 + $0x790] sm:$0xff]
    %v8316 = vld [vmem:[#allocation14 + $0x798] sm:$0xff]
    %v8317 = vld [vmem:[#allocation14 + $0x7a0] sm:$0xff]
    %v8318 = vld [vmem:[#allocation14 + $0x7a8] sm:$0xff]
    %v8319 = vld [vmem:[#allocation14 + $0x7b0] sm:$0xff]
    %v8320 = vld [vmem:[#allocation14 + $0x7b8] sm:$0xff]
    %v8321 = vld [vmem:[#allocation14 + $0x7c0] sm:$0xff]
    %v8322 = vld [vmem:[#allocation14 + $0x7c8] sm:$0xff]
    %v8323 = vld [vmem:[#allocation14 + $0x7d0] sm:$0xff]
    %v8324 = vld [vmem:[#allocation14 + $0x7d8] sm:$0xff]
    %v8325 = vld [vmem:[#allocation14 + $0x7e0] sm:$0xff]
    %v8326 = vld [vmem:[#allocation14 + $0x7e8] sm:$0xff]
    %v8327 = vld [vmem:[#allocation14 + $0x7f0] sm:$0xff]
    %v8328 = vld [vmem:[#allocation14 + $0x7f8] sm:$0xff]
    %v8329 = vld [vmem:[#allocation14 + $0x800] sm:$0xff]
    %v8330 = vld [vmem:[#allocation14 + $0x808] sm:$0xff]
    %v8331 = vld [vmem:[#allocation14 + $0x810] sm:$0xff]
    %v8332 = vld [vmem:[#allocation14 + $0x818] sm:$0xff]
    %v8333 = vld [vmem:[#allocation14 + $0x820] sm:$0xff]
    %v8334 = vld [vmem:[#allocation14 + $0x828] sm:$0xff]
    %v8335 = vld [vmem:[#allocation14 + $0x830] sm:$0xff]
    %v8336 = vld [vmem:[#allocation14 + $0x838] sm:$0xff]
    %v8337 = vld [vmem:[#allocation14 + $0x840] sm:$0xff]
    %v8338 = vld [vmem:[#allocation14 + $0x848] sm:$0xff]
    %v8339 = vld [vmem:[#allocation14 + $0x850] sm:$0xff]
    %v8340 = vld [vmem:[#allocation14 + $0x858] sm:$0xff]
    %v8341 = vld [vmem:[#allocation14 + $0x860] sm:$0xff]
    %v8342 = vld [vmem:[#allocation14 + $0x868] sm:$0xff]
    %v8343 = vld [vmem:[#allocation14 + $0x870] sm:$0xff]
    %v8344 = vld [vmem:[#allocation14 + $0x878] sm:$0xff]
    %v8345 = vld [vmem:[#allocation14 + $0x880] sm:$0xff]
    %v8346 = vld [vmem:[#allocation14 + $0x888] sm:$0xff]
    %v8347 = vld [vmem:[#allocation14 + $0x890] sm:$0xff]
    %v8348 = vld [vmem:[#allocation14 + $0x898] sm:$0xff]
    %v8349 = vld [vmem:[#allocation14 + $0x8a0] sm:$0xff]
    %v8350 = vld [vmem:[#allocation14 + $0x8a8] sm:$0xff]
    %v8351 = vld [vmem:[#allocation14 + $0x8b0] sm:$0xff]
    %v8352 = vld [vmem:[#allocation14 + $0x8b8] sm:$0xff]
    %v8353 = vld [vmem:[#allocation14 + $0x8c0] sm:$0xff]
    %v8354 = vld [vmem:[#allocation14 + $0x8c8] sm:$0xff]
    %v8355 = vld [vmem:[#allocation14 + $0x8d0] sm:$0xff]
    %v8356 = vld [vmem:[#allocation14 + $0x8d8] sm:$0xff]
    %v8357 = vld [vmem:[#allocation14 + $0x8e0] sm:$0xff]
    %v8358 = vld [vmem:[#allocation14 + $0x8e8] sm:$0xff]
    %v8359 = vld [vmem:[#allocation14 + $0x8f0] sm:$0xff]
    %v8360 = vld [vmem:[#allocation14 + $0x8f8] sm:$0xff]
    %v8361 = vld [vmem:[#allocation14 + $0x900] sm:$0xff]
    %v8362 = vld [vmem:[#allocation14 + $0x908] sm:$0xff]
    %v8363 = vld [vmem:[#allocation14 + $0x910] sm:$0xff]
    %v8364 = vld [vmem:[#allocation14 + $0x918] sm:$0xff]
    %v8365 = vld [vmem:[#allocation14 + $0x920] sm:$0xff]
    %v8366 = vld [vmem:[#allocation14 + $0x928] sm:$0xff]
    %v8367 = vld [vmem:[#allocation14 + $0x930] sm:$0xff]
    %v8368 = vld [vmem:[#allocation14 + $0x938] sm:$0xff]
    %v8369 = vld [vmem:[#allocation14 + $0x940] sm:$0xff]
    %v8370 = vld [vmem:[#allocation14 + $0x948] sm:$0xff]
    %v8371 = vld [vmem:[#allocation14 + $0x950] sm:$0xff]
    %v8372 = vld [vmem:[#allocation14 + $0x958] sm:$0xff]
    %v8373 = vld [vmem:[#allocation14 + $0x960] sm:$0xff]
    %v8374 = vld [vmem:[#allocation14 + $0x968] sm:$0xff]
    %v8375 = vld [vmem:[#allocation14 + $0x970] sm:$0xff]
    %v8376 = vld [vmem:[#allocation14 + $0x978] sm:$0xff]
    %v8377 = vld [vmem:[#allocation14 + $0x980] sm:$0xff]
    %v8378 = vld [vmem:[#allocation14 + $0x988] sm:$0xff]
    %v8379 = vld [vmem:[#allocation14 + $0x990] sm:$0xff]
    %v8380 = vld [vmem:[#allocation14 + $0x998] sm:$0xff]
    %v8381 = vld [vmem:[#allocation14 + $0x9a0] sm:$0xff]
    %v8382 = vld [vmem:[#allocation14 + $0x9a8] sm:$0xff]
    %v8383 = vld [vmem:[#allocation14 + $0x9b0] sm:$0xff]
    %v8384 = vld [vmem:[#allocation14 + $0x9b8] sm:$0xff]
    %v8385 = vld [vmem:[#allocation14 + $0x9c0] sm:$0xff]
    %v8386 = vld [vmem:[#allocation14 + $0x9c8] sm:$0xff]
    %v8387 = vld [vmem:[#allocation14 + $0x9d0] sm:$0xff]
    %v8388 = vld [vmem:[#allocation14 + $0x9d8] sm:$0xff]
    %v8389 = vld [vmem:[#allocation14 + $0x9e0] sm:$0xff]
    %v8390 = vld [vmem:[#allocation14 + $0x9e8] sm:$0xff]
    %v8391 = vld [vmem:[#allocation14 + $0x9f0] sm:$0xff]
    %v8392 = vld [vmem:[#allocation14 + $0x9f8] sm:$0xff]
    %v8393 = vld [vmem:[#allocation14 + $0xa00] sm:$0xff]
    %v8394 = vld [vmem:[#allocation14 + $0xa08] sm:$0xff]
    %v8395 = vld [vmem:[#allocation14 + $0xa10] sm:$0xff]
    %v8396 = vld [vmem:[#allocation14 + $0xa18] sm:$0xff]
    %v8397 = vld [vmem:[#allocation14 + $0xa20] sm:$0xff]
    %v8398 = vld [vmem:[#allocation14 + $0xa28] sm:$0xff]
    %v8399 = vld [vmem:[#allocation14 + $0xa30] sm:$0xff]
    %v8400 = vld [vmem:[#allocation14 + $0xa38] sm:$0xff]
    %v8401 = vld [vmem:[#allocation14 + $0xa40] sm:$0xff]
    %v8402 = vld [vmem:[#allocation14 + $0xa48] sm:$0xff]
    %v8403 = vld [vmem:[#allocation14 + $0xa50] sm:$0xff]
    %v8404 = vld [vmem:[#allocation14 + $0xa58] sm:$0xff]
    %v8405 = vld [vmem:[#allocation14 + $0xa60] sm:$0xff]
    %v8406 = vld [vmem:[#allocation14 + $0xa68] sm:$0xff]
    %v8407 = vld [vmem:[#allocation14 + $0xa70] sm:$0xff]
    %v8408 = vld [vmem:[#allocation14 + $0xa78] sm:$0xff]
    %v8409 = vld [vmem:[#allocation14 + $0xa80] sm:$0xff]
    %v8410 = vld [vmem:[#allocation14 + $0xa88] sm:$0xff]
    %v8411 = vld [vmem:[#allocation14 + $0xa90] sm:$0xff]
    %v8412 = vld [vmem:[#allocation14 + $0xa98] sm:$0xff]
    %v8413 = vld [vmem:[#allocation14 + $0xaa0] sm:$0xff]
    %v8414 = vld [vmem:[#allocation14 + $0xaa8] sm:$0xff]
    %v8415 = vld [vmem:[#allocation14 + $0xab0] sm:$0xff]
    %v8416 = vld [vmem:[#allocation14 + $0xab8] sm:$0xff]
    %v8417 = vld [vmem:[#allocation14 + $0xac0] sm:$0xff]
    %v8418 = vld [vmem:[#allocation14 + $0xac8] sm:$0xff]
    %v8419 = vld [vmem:[#allocation14 + $0xad0] sm:$0xff]
    %v8420 = vld [vmem:[#allocation14 + $0xad8] sm:$0xff]
    %v8421 = vld [vmem:[#allocation14 + $0xae0] sm:$0xff]
    %v8422 = vld [vmem:[#allocation14 + $0xae8] sm:$0xff]
    %v8423 = vld [vmem:[#allocation14 + $0xaf0] sm:$0xff]
    %v8424 = vld [vmem:[#allocation14 + $0xaf8] sm:$0xff]
    %v8425 = vld [vmem:[#allocation14 + $0xb00] sm:$0xff]
    %v8426 = vld [vmem:[#allocation14 + $0xb08] sm:$0xff]
    %v8427 = vld [vmem:[#allocation14 + $0xb10] sm:$0xff]
    %v8428 = vld [vmem:[#allocation14 + $0xb18] sm:$0xff]
    %v8429 = vld [vmem:[#allocation14 + $0xb20] sm:$0xff]
    %v8430 = vld [vmem:[#allocation14 + $0xb28] sm:$0xff]
    %v8431 = vld [vmem:[#allocation14 + $0xb30] sm:$0xff]
    %v8432 = vld [vmem:[#allocation14 + $0xb38] sm:$0xff]
    %v8433 = vld [vmem:[#allocation14 + $0xb40] sm:$0xff]
    %v8434 = vld [vmem:[#allocation14 + $0xb48] sm:$0xff]
    %v8435 = vld [vmem:[#allocation14 + $0xb50] sm:$0xff]
    %v8436 = vld [vmem:[#allocation14 + $0xb58] sm:$0xff]
    %v8437 = vld [vmem:[#allocation14 + $0xb60] sm:$0xff]
    %v8438 = vld [vmem:[#allocation14 + $0xb68] sm:$0xff]
    %v8439 = vld [vmem:[#allocation14 + $0xb70] sm:$0xff]
    %v8440 = vld [vmem:[#allocation14 + $0xb78] sm:$0xff]
    %v8441 = vld [vmem:[#allocation14 + $0xb80] sm:$0xff]
    %v8442 = vld [vmem:[#allocation14 + $0xb88] sm:$0xff]
    %v8443 = vld [vmem:[#allocation14 + $0xb90] sm:$0xff]
    %v8444 = vld [vmem:[#allocation14 + $0xb98] sm:$0xff]
    %v8445 = vld [vmem:[#allocation14 + $0xba0] sm:$0xff]
    %v8446 = vld [vmem:[#allocation14 + $0xba8] sm:$0xff]
    %v8447 = vld [vmem:[#allocation14 + $0xbb0] sm:$0xff]
    %v8448 = vld [vmem:[#allocation14 + $0xbb8] sm:$0xff]
    %v8449 = vld [vmem:[#allocation14 + $0xbc0] sm:$0xff]
    %v8450 = vld [vmem:[#allocation14 + $0xbc8] sm:$0xff]
    %v8451 = vld [vmem:[#allocation14 + $0xbd0] sm:$0xff]
    %v8452 = vld [vmem:[#allocation14 + $0xbd8] sm:$0xff]
    %v8453 = vld [vmem:[#allocation14 + $0xbe0] sm:$0xff]
    %v8454 = vld [vmem:[#allocation14 + $0xbe8] sm:$0xff]
    %v8455 = vld [vmem:[#allocation14 + $0xbf0] sm:$0xff]
    %v8456 = vld [vmem:[#allocation14 + $0xbf8] sm:$0xff]
    %v8457 = vld [vmem:[#allocation14 + $0xc00] sm:$0xff]
    %v8458 = vld [vmem:[#allocation14 + $0xc08] sm:$0xff]
    %v8459 = vld [vmem:[#allocation14 + $0xc10] sm:$0xff]
    %v8460 = vld [vmem:[#allocation14 + $0xc18] sm:$0xff]
    %v8461 = vld [vmem:[#allocation14 + $0xc20] sm:$0xff]
    %v8462 = vld [vmem:[#allocation14 + $0xc28] sm:$0xff]
    %v8463 = vld [vmem:[#allocation14 + $0xc30] sm:$0xff]
    %v8464 = vld [vmem:[#allocation14 + $0xc38] sm:$0xff]
    %v8465 = vld [vmem:[#allocation14 + $0xc40] sm:$0xff]
    %v8466 = vld [vmem:[#allocation14 + $0xc48] sm:$0xff]
    %v8467 = vld [vmem:[#allocation14 + $0xc50] sm:$0xff]
    %v8468 = vld [vmem:[#allocation14 + $0xc58] sm:$0xff]
    %v8469 = vld [vmem:[#allocation14 + $0xc60] sm:$0xff]
    %v8470 = vld [vmem:[#allocation14 + $0xc68] sm:$0xff]
    %v8471 = vld [vmem:[#allocation14 + $0xc70] sm:$0xff]
    %v8472 = vld [vmem:[#allocation14 + $0xc78] sm:$0xff]
    %v8473 = vld [vmem:[#allocation14 + $0xc80] sm:$0xff]
    %v8474 = vld [vmem:[#allocation14 + $0xc88] sm:$0xff]
    %v8475 = vld [vmem:[#allocation14 + $0xc90] sm:$0xff]
    %v8476 = vld [vmem:[#allocation14 + $0xc98] sm:$0xff]
    %v8477 = vld [vmem:[#allocation14 + $0xca0] sm:$0xff]
    %v8478 = vld [vmem:[#allocation14 + $0xca8] sm:$0xff]
    %v8479 = vld [vmem:[#allocation14 + $0xcb0] sm:$0xff]
    %v8480 = vld [vmem:[#allocation14 + $0xcb8] sm:$0xff]
    %v8481 = vld [vmem:[#allocation14 + $0xcc0] sm:$0xff]
    %v8482 = vld [vmem:[#allocation14 + $0xcc8] sm:$0xff]
    %v8483 = vld [vmem:[#allocation14 + $0xcd0] sm:$0xff]
    %v8484 = vld [vmem:[#allocation14 + $0xcd8] sm:$0xff]
    %v8485 = vld [vmem:[#allocation14 + $0xce0] sm:$0xff]
    %v8486 = vld [vmem:[#allocation14 + $0xce8] sm:$0xff]
    %v8487 = vld [vmem:[#allocation14 + $0xcf0] sm:$0xff]
    %v8488 = vld [vmem:[#allocation14 + $0xcf8] sm:$0xff]
    %v8489 = vld [vmem:[#allocation14 + $0xd00] sm:$0xff]
    %v8490 = vld [vmem:[#allocation14 + $0xd08] sm:$0xff]
    %v8491 = vld [vmem:[#allocation14 + $0xd10] sm:$0xff]
    %v8492 = vld [vmem:[#allocation14 + $0xd18] sm:$0xff]
    %v8493 = vld [vmem:[#allocation14 + $0xd20] sm:$0xff]
    %v8494 = vld [vmem:[#allocation14 + $0xd28] sm:$0xff]
    %v8495 = vld [vmem:[#allocation14 + $0xd30] sm:$0xff]
    %v8496 = vld [vmem:[#allocation14 + $0xd38] sm:$0xff]
    %v8497 = vld [vmem:[#allocation14 + $0xd40] sm:$0xff]
    %v8498 = vld [vmem:[#allocation14 + $0xd48] sm:$0xff]
    %v8499 = vld [vmem:[#allocation14 + $0xd50] sm:$0xff]
    %v8500 = vld [vmem:[#allocation14 + $0xd58] sm:$0xff]
    %v8501 = vld [vmem:[#allocation14 + $0xd60] sm:$0xff]
    %v8502 = vld [vmem:[#allocation14 + $0xd68] sm:$0xff]
    %v8503 = vld [vmem:[#allocation14 + $0xd70] sm:$0xff]
    %v8504 = vld [vmem:[#allocation14 + $0xd78] sm:$0xff]
    %v8505 = vld [vmem:[#allocation14 + $0xd80] sm:$0xff]
    %v8506 = vld [vmem:[#allocation14 + $0xd88] sm:$0xff]
    %v8507 = vld [vmem:[#allocation14 + $0xd90] sm:$0xff]
    %v8508 = vld [vmem:[#allocation14 + $0xd98] sm:$0xff]
    %v8509 = vld [vmem:[#allocation14 + $0xda0] sm:$0xff]
    %v8510 = vld [vmem:[#allocation14 + $0xda8] sm:$0xff]
    %v8511 = vld [vmem:[#allocation14 + $0xdb0] sm:$0xff]
    %v8512 = vld [vmem:[#allocation14 + $0xdb8] sm:$0xff]
    %v8513 = vld [vmem:[#allocation14 + $0xdc0] sm:$0xff]
    %v8514 = vld [vmem:[#allocation14 + $0xdc8] sm:$0xff]
    %v8515 = vld [vmem:[#allocation14 + $0xdd0] sm:$0xff]
    %v8516 = vld [vmem:[#allocation14 + $0xdd8] sm:$0xff]
    %v8517 = vld [vmem:[#allocation14 + $0xde0] sm:$0xff]
    %v8518 = vld [vmem:[#allocation14 + $0xde8] sm:$0xff]
    %v8519 = vld [vmem:[#allocation14 + $0xdf0] sm:$0xff]
    %v8520 = vld [vmem:[#allocation14 + $0xdf8] sm:$0xff]
    %v8521 = vld [vmem:[#allocation14 + $0xe00] sm:$0xff]
    %v8522 = vld [vmem:[#allocation14 + $0xe08] sm:$0xff]
    %v8523 = vld [vmem:[#allocation14 + $0xe10] sm:$0xff]
    %v8524 = vld [vmem:[#allocation14 + $0xe18] sm:$0xff]
    %v8525 = vld [vmem:[#allocation14 + $0xe20] sm:$0xff]
    %v8526 = vld [vmem:[#allocation14 + $0xe28] sm:$0xff]
    %v8527 = vld [vmem:[#allocation14 + $0xe30] sm:$0xff]
    %v8528 = vld [vmem:[#allocation14 + $0xe38] sm:$0xff]
    %v8529 = vld [vmem:[#allocation14 + $0xe40] sm:$0xff]
    %v8530 = vld [vmem:[#allocation14 + $0xe48] sm:$0xff]
    %v8531 = vld [vmem:[#allocation14 + $0xe50] sm:$0xff]
    %v8532 = vld [vmem:[#allocation14 + $0xe58] sm:$0xff]
    %v8533 = vld [vmem:[#allocation14 + $0xe60] sm:$0xff]
    %v8534 = vld [vmem:[#allocation14 + $0xe68] sm:$0xff]
    %v8535 = vld [vmem:[#allocation14 + $0xe70] sm:$0xff]
    %v8536 = vld [vmem:[#allocation14 + $0xe78] sm:$0xff]
    %v8537 = vld [vmem:[#allocation14 + $0xe80] sm:$0xff]
    %v8538 = vld [vmem:[#allocation14 + $0xe88] sm:$0xff]
    %v8539 = vld [vmem:[#allocation14 + $0xe90] sm:$0xff]
    %v8540 = vld [vmem:[#allocation14 + $0xe98] sm:$0xff]
    %v8541 = vld [vmem:[#allocation14 + $0xea0] sm:$0xff]
    %v8542 = vld [vmem:[#allocation14 + $0xea8] sm:$0xff]
    %v8543 = vld [vmem:[#allocation14 + $0xeb0] sm:$0xff]
    %v8544 = vld [vmem:[#allocation14 + $0xeb8] sm:$0xff]
    %v8545 = vld [vmem:[#allocation14 + $0xec0] sm:$0xff]
    %v8546 = vld [vmem:[#allocation14 + $0xec8] sm:$0xff]
    %v8547 = vld [vmem:[#allocation14 + $0xed0] sm:$0xff]
    %v8548 = vld [vmem:[#allocation14 + $0xed8] sm:$0xff]
    %v8549 = vld [vmem:[#allocation14 + $0xee0] sm:$0xff]
    %v8550 = vld [vmem:[#allocation14 + $0xee8] sm:$0xff]
    %v8551 = vld [vmem:[#allocation14 + $0xef0] sm:$0xff]
    %v8552 = vld [vmem:[#allocation14 + $0xef8] sm:$0xff]
    %v8553 = vld [vmem:[#allocation14 + $0xf00] sm:$0xff]
    %v8554 = vld [vmem:[#allocation14 + $0xf08] sm:$0xff]
    %v8555 = vld [vmem:[#allocation14 + $0xf10] sm:$0xff]
    %v8556 = vld [vmem:[#allocation14 + $0xf18] sm:$0xff]
    %v8557 = vld [vmem:[#allocation14 + $0xf20] sm:$0xff]
    %v8558 = vld [vmem:[#allocation14 + $0xf28] sm:$0xff]
    %v8559 = vld [vmem:[#allocation14 + $0xf30] sm:$0xff]
    %v8560 = vld [vmem:[#allocation14 + $0xf38] sm:$0xff]
    %v8561 = vld [vmem:[#allocation14 + $0xf40] sm:$0xff]
    %v8562 = vld [vmem:[#allocation14 + $0xf48] sm:$0xff]
    %v8563 = vld [vmem:[#allocation14 + $0xf50] sm:$0xff]
    %v8564 = vld [vmem:[#allocation14 + $0xf58] sm:$0xff]
    %v8565 = vld [vmem:[#allocation14 + $0xf60] sm:$0xff]
    %v8566 = vld [vmem:[#allocation14 + $0xf68] sm:$0xff]
    %v8567 = vld [vmem:[#allocation14 + $0xf70] sm:$0xff]
    %v8568 = vld [vmem:[#allocation14 + $0xf78] sm:$0xff]
    %v8569 = vld [vmem:[#allocation14 + $0xf80] sm:$0xff]
    %v8570 = vld [vmem:[#allocation14 + $0xf88] sm:$0xff]
    %v8571 = vld [vmem:[#allocation14 + $0xf90] sm:$0xff]
    %v8572 = vld [vmem:[#allocation14 + $0xf98] sm:$0xff]
    %v8573 = vld [vmem:[#allocation14 + $0xfa0] sm:$0xff]
    %v8574 = vld [vmem:[#allocation14 + $0xfa8] sm:$0xff]
    %v8575 = vld [vmem:[#allocation14 + $0xfb0] sm:$0xff]
    %v8576 = vld [vmem:[#allocation14 + $0xfb8] sm:$0xff]
    %v8577 = vld [vmem:[#allocation14 + $0xfc0] sm:$0xff]
    %v8578 = vld [vmem:[#allocation14 + $0xfc8] sm:$0xff]
    %v8579 = vld [vmem:[#allocation14 + $0xfd0] sm:$0xff]
    %v8580 = vld [vmem:[#allocation14 + $0xfd8] sm:$0xff]
    %v8581 = vld [vmem:[#allocation14 + $0xfe0] sm:$0xff]
    %v8582 = vld [vmem:[#allocation14 + $0xfe8] sm:$0xff]
    %v8583 = vld [vmem:[#allocation14 + $0xff0] sm:$0xff]
    %v8584 = vld [vmem:[#allocation14 + $0xff8] sm:$0xff]
    %v8585 = vld [vmem:[#allocation16] sm:$0xff]
    %v8587 = vlaneseq
    %v8588 = vshrl.u32 %v8587, 7
    %v8589 = vsub.s32 0, %v8588
    %v8590 = vrot.slane %v8585, %v8589
    %v8591 = vlaneseq
    %v8592 = vshrl.u32 %v8591, 7
    %v8593 = vsub.s32 1, %v8592
    %v8594 = vrot.slane %v8585, %v8593
    %v8595 = vlaneseq
    %v8596 = vshrl.u32 %v8595, 7
    %v8597 = vsub.s32 2, %v8596
    %v8598 = vrot.slane %v8585, %v8597
    %v8599 = vlaneseq
    %v8600 = vshrl.u32 %v8599, 7
    %v8601 = vsub.s32 3, %v8600
    %v8602 = vrot.slane %v8585, %v8601
    %v8603 = vlaneseq
    %v8604 = vshrl.u32 %v8603, 7
    %v8605 = vsub.s32 4, %v8604
    %v8606 = vrot.slane %v8585, %v8605
    %v8607 = vlaneseq
    %v8608 = vshrl.u32 %v8607, 7
    %v8609 = vsub.s32 5, %v8608
    %v8610 = vrot.slane %v8585, %v8609
    %v8611 = vlaneseq
    %v8612 = vshrl.u32 %v8611, 7
    %v8613 = vsub.s32 6, %v8612
    %v8614 = vrot.slane %v8585, %v8613
    %v8615 = vlaneseq
    %v8616 = vshrl.u32 %v8615, 7
    %v8617 = vsub.s32 7, %v8616
    %v8618 = vrot.slane %v8585, %v8617
    %v9139 = vunpack.c.l.b16 %v8073
    %v9140 = vunpack.c.h.b16 %v8073
    %v9141 = vunpack.c.l.b16 %v8074
    %v9142 = vunpack.c.h.b16 %v8074
    %v9143 = vunpack.c.l.b16 %v8075
    %v9144 = vunpack.c.h.b16 %v8075
    %v9145 = vunpack.c.l.b16 %v8076
    %v9146 = vunpack.c.h.b16 %v8076
    %v9147 = vunpack.c.l.b16 %v8077
    %v9148 = vunpack.c.h.b16 %v8077
    %v9149 = vunpack.c.l.b16 %v8078
    %v9150 = vunpack.c.h.b16 %v8078
    %v9151 = vunpack.c.l.b16 %v8079
    %v9152 = vunpack.c.h.b16 %v8079
    %v9153 = vunpack.c.l.b16 %v8080
    %v9154 = vunpack.c.h.b16 %v8080
    %v9155 = vunpack.c.l.b16 %v8081
    %v9156 = vunpack.c.h.b16 %v8081
    %v9157 = vunpack.c.l.b16 %v8082
    %v9158 = vunpack.c.h.b16 %v8082
    %v9159 = vunpack.c.l.b16 %v8083
    %v9160 = vunpack.c.h.b16 %v8083
    %v9161 = vunpack.c.l.b16 %v8084
    %v9162 = vunpack.c.h.b16 %v8084
    %v9163 = vunpack.c.l.b16 %v8085
    %v9164 = vunpack.c.h.b16 %v8085
    %v9165 = vunpack.c.l.b16 %v8086
    %v9166 = vunpack.c.h.b16 %v8086
    %v9167 = vunpack.c.l.b16 %v8087
    %v9168 = vunpack.c.h.b16 %v8087
    %v9169 = vunpack.c.l.b16 %v8088
    %v9170 = vunpack.c.h.b16 %v8088
    %v9171 = vunpack.c.l.b16 %v8089
    %v9172 = vunpack.c.h.b16 %v8089
    %v9173 = vunpack.c.l.b16 %v8090
    %v9174 = vunpack.c.h.b16 %v8090
    %v9175 = vunpack.c.l.b16 %v8091
    %v9176 = vunpack.c.h.b16 %v8091
    %v9177 = vunpack.c.l.b16 %v8092
    %v9178 = vunpack.c.h.b16 %v8092
    %v9179 = vunpack.c.l.b16 %v8093
    %v9180 = vunpack.c.h.b16 %v8093
    %v9181 = vunpack.c.l.b16 %v8094
    %v9182 = vunpack.c.h.b16 %v8094
    %v9183 = vunpack.c.l.b16 %v8095
    %v9184 = vunpack.c.h.b16 %v8095
    %v9185 = vunpack.c.l.b16 %v8096
    %v9186 = vunpack.c.h.b16 %v8096
    %v9187 = vunpack.c.l.b16 %v8097
    %v9188 = vunpack.c.h.b16 %v8097
    %v9189 = vunpack.c.l.b16 %v8098
    %v9190 = vunpack.c.h.b16 %v8098
    %v9191 = vunpack.c.l.b16 %v8099
    %v9192 = vunpack.c.h.b16 %v8099
    %v9193 = vunpack.c.l.b16 %v8100
    %v9194 = vunpack.c.h.b16 %v8100
    %v9195 = vunpack.c.l.b16 %v8101
    %v9196 = vunpack.c.h.b16 %v8101
    %v9197 = vunpack.c.l.b16 %v8102
    %v9198 = vunpack.c.h.b16 %v8102
    %v9199 = vunpack.c.l.b16 %v8103
    %v9200 = vunpack.c.h.b16 %v8103
    %v9201 = vunpack.c.l.b16 %v8104
    %v9202 = vunpack.c.h.b16 %v8104
    %v9203 = vunpack.c.l.b16 %v8105
    %v9204 = vunpack.c.h.b16 %v8105
    %v9205 = vunpack.c.l.b16 %v8106
    %v9206 = vunpack.c.h.b16 %v8106
    %v9207 = vunpack.c.l.b16 %v8107
    %v9208 = vunpack.c.h.b16 %v8107
    %v9209 = vunpack.c.l.b16 %v8108
    %v9210 = vunpack.c.h.b16 %v8108
    %v9211 = vunpack.c.l.b16 %v8109
    %v9212 = vunpack.c.h.b16 %v8109
    %v9213 = vunpack.c.l.b16 %v8110
    %v9214 = vunpack.c.h.b16 %v8110
    %v9215 = vunpack.c.l.b16 %v8111
    %v9216 = vunpack.c.h.b16 %v8111
    %v9217 = vunpack.c.l.b16 %v8112
    %v9218 = vunpack.c.h.b16 %v8112
    %v9219 = vunpack.c.l.b16 %v8113
    %v9220 = vunpack.c.h.b16 %v8113
    %v9221 = vunpack.c.l.b16 %v8114
    %v9222 = vunpack.c.h.b16 %v8114
    %v9223 = vunpack.c.l.b16 %v8115
    %v9224 = vunpack.c.h.b16 %v8115
    %v9225 = vunpack.c.l.b16 %v8116
    %v9226 = vunpack.c.h.b16 %v8116
    %v9227 = vunpack.c.l.b16 %v8117
    %v9228 = vunpack.c.h.b16 %v8117
    %v9229 = vunpack.c.l.b16 %v8118
    %v9230 = vunpack.c.h.b16 %v8118
    %v9231 = vunpack.c.l.b16 %v8119
    %v9232 = vunpack.c.h.b16 %v8119
    %v9233 = vunpack.c.l.b16 %v8120
    %v9234 = vunpack.c.h.b16 %v8120
    %v9235 = vunpack.c.l.b16 %v8121
    %v9236 = vunpack.c.h.b16 %v8121
    %v9237 = vunpack.c.l.b16 %v8122
    %v9238 = vunpack.c.h.b16 %v8122
    %v9239 = vunpack.c.l.b16 %v8123
    %v9240 = vunpack.c.h.b16 %v8123
    %v9241 = vunpack.c.l.b16 %v8124
    %v9242 = vunpack.c.h.b16 %v8124
    %v9243 = vunpack.c.l.b16 %v8125
    %v9244 = vunpack.c.h.b16 %v8125
    %v9245 = vunpack.c.l.b16 %v8126
    %v9246 = vunpack.c.h.b16 %v8126
    %v9247 = vunpack.c.l.b16 %v8127
    %v9248 = vunpack.c.h.b16 %v8127
    %v9249 = vunpack.c.l.b16 %v8128
    %v9250 = vunpack.c.h.b16 %v8128
    %v9251 = vunpack.c.l.b16 %v8129
    %v9252 = vunpack.c.h.b16 %v8129
    %v9253 = vunpack.c.l.b16 %v8130
    %v9254 = vunpack.c.h.b16 %v8130
    %v9255 = vunpack.c.l.b16 %v8131
    %v9256 = vunpack.c.h.b16 %v8131
    %v9257 = vunpack.c.l.b16 %v8132
    %v9258 = vunpack.c.h.b16 %v8132
    %v9259 = vunpack.c.l.b16 %v8133
    %v9260 = vunpack.c.h.b16 %v8133
    %v9261 = vunpack.c.l.b16 %v8134
    %v9262 = vunpack.c.h.b16 %v8134
    %v9263 = vunpack.c.l.b16 %v8135
    %v9264 = vunpack.c.h.b16 %v8135
    %v9265 = vunpack.c.l.b16 %v8136
    %v9266 = vunpack.c.h.b16 %v8136
    %v9267 = vunpack.c.l.b16 %v8137
    %v9268 = vunpack.c.h.b16 %v8137
    %v9269 = vunpack.c.l.b16 %v8138
    %v9270 = vunpack.c.h.b16 %v8138
    %v9271 = vunpack.c.l.b16 %v8139
    %v9272 = vunpack.c.h.b16 %v8139
    %v9273 = vunpack.c.l.b16 %v8140
    %v9274 = vunpack.c.h.b16 %v8140
    %v9275 = vunpack.c.l.b16 %v8141
    %v9276 = vunpack.c.h.b16 %v8141
    %v9277 = vunpack.c.l.b16 %v8142
    %v9278 = vunpack.c.h.b16 %v8142
    %v9279 = vunpack.c.l.b16 %v8143
    %v9280 = vunpack.c.h.b16 %v8143
    %v9281 = vunpack.c.l.b16 %v8144
    %v9282 = vunpack.c.h.b16 %v8144
    %v9283 = vunpack.c.l.b16 %v8145
    %v9284 = vunpack.c.h.b16 %v8145
    %v9285 = vunpack.c.l.b16 %v8146
    %v9286 = vunpack.c.h.b16 %v8146
    %v9287 = vunpack.c.l.b16 %v8147
    %v9288 = vunpack.c.h.b16 %v8147
    %v9289 = vunpack.c.l.b16 %v8148
    %v9290 = vunpack.c.h.b16 %v8148
    %v9291 = vunpack.c.l.b16 %v8149
    %v9292 = vunpack.c.h.b16 %v8149
    %v9293 = vunpack.c.l.b16 %v8150
    %v9294 = vunpack.c.h.b16 %v8150
    %v9295 = vunpack.c.l.b16 %v8151
    %v9296 = vunpack.c.h.b16 %v8151
    %v9297 = vunpack.c.l.b16 %v8152
    %v9298 = vunpack.c.h.b16 %v8152
    %v9299 = vunpack.c.l.b16 %v8153
    %v9300 = vunpack.c.h.b16 %v8153
    %v9301 = vunpack.c.l.b16 %v8154
    %v9302 = vunpack.c.h.b16 %v8154
    %v9303 = vunpack.c.l.b16 %v8155
    %v9304 = vunpack.c.h.b16 %v8155
    %v9305 = vunpack.c.l.b16 %v8156
    %v9306 = vunpack.c.h.b16 %v8156
    %v9307 = vunpack.c.l.b16 %v8157
    %v9308 = vunpack.c.h.b16 %v8157
    %v9309 = vunpack.c.l.b16 %v8158
    %v9310 = vunpack.c.h.b16 %v8158
    %v9311 = vunpack.c.l.b16 %v8159
    %v9312 = vunpack.c.h.b16 %v8159
    %v9313 = vunpack.c.l.b16 %v8160
    %v9314 = vunpack.c.h.b16 %v8160
    %v9315 = vunpack.c.l.b16 %v8161
    %v9316 = vunpack.c.h.b16 %v8161
    %v9317 = vunpack.c.l.b16 %v8162
    %v9318 = vunpack.c.h.b16 %v8162
    %v9319 = vunpack.c.l.b16 %v8163
    %v9320 = vunpack.c.h.b16 %v8163
    %v9321 = vunpack.c.l.b16 %v8164
    %v9322 = vunpack.c.h.b16 %v8164
    %v9323 = vunpack.c.l.b16 %v8165
    %v9324 = vunpack.c.h.b16 %v8165
    %v9325 = vunpack.c.l.b16 %v8166
    %v9326 = vunpack.c.h.b16 %v8166
    %v9327 = vunpack.c.l.b16 %v8167
    %v9328 = vunpack.c.h.b16 %v8167
    %v9329 = vunpack.c.l.b16 %v8168
    %v9330 = vunpack.c.h.b16 %v8168
    %v9331 = vunpack.c.l.b16 %v8169
    %v9332 = vunpack.c.h.b16 %v8169
    %v9333 = vunpack.c.l.b16 %v8170
    %v9334 = vunpack.c.h.b16 %v8170
    %v9335 = vunpack.c.l.b16 %v8171
    %v9336 = vunpack.c.h.b16 %v8171
    %v9337 = vunpack.c.l.b16 %v8172
    %v9338 = vunpack.c.h.b16 %v8172
    %v9339 = vunpack.c.l.b16 %v8173
    %v9340 = vunpack.c.h.b16 %v8173
    %v9341 = vunpack.c.l.b16 %v8174
    %v9342 = vunpack.c.h.b16 %v8174
    %v9343 = vunpack.c.l.b16 %v8175
    %v9344 = vunpack.c.h.b16 %v8175
    %v9345 = vunpack.c.l.b16 %v8176
    %v9346 = vunpack.c.h.b16 %v8176
    %v9347 = vunpack.c.l.b16 %v8177
    %v9348 = vunpack.c.h.b16 %v8177
    %v9349 = vunpack.c.l.b16 %v8178
    %v9350 = vunpack.c.h.b16 %v8178
    %v9351 = vunpack.c.l.b16 %v8179
    %v9352 = vunpack.c.h.b16 %v8179
    %v9353 = vunpack.c.l.b16 %v8180
    %v9354 = vunpack.c.h.b16 %v8180
    %v9355 = vunpack.c.l.b16 %v8181
    %v9356 = vunpack.c.h.b16 %v8181
    %v9357 = vunpack.c.l.b16 %v8182
    %v9358 = vunpack.c.h.b16 %v8182
    %v9359 = vunpack.c.l.b16 %v8183
    %v9360 = vunpack.c.h.b16 %v8183
    %v9361 = vunpack.c.l.b16 %v8184
    %v9362 = vunpack.c.h.b16 %v8184
    %v9363 = vunpack.c.l.b16 %v8185
    %v9364 = vunpack.c.h.b16 %v8185
    %v9365 = vunpack.c.l.b16 %v8186
    %v9366 = vunpack.c.h.b16 %v8186
    %v9367 = vunpack.c.l.b16 %v8187
    %v9368 = vunpack.c.h.b16 %v8187
    %v9369 = vunpack.c.l.b16 %v8188
    %v9370 = vunpack.c.h.b16 %v8188
    %v9371 = vunpack.c.l.b16 %v8189
    %v9372 = vunpack.c.h.b16 %v8189
    %v9373 = vunpack.c.l.b16 %v8190
    %v9374 = vunpack.c.h.b16 %v8190
    %v9375 = vunpack.c.l.b16 %v8191
    %v9376 = vunpack.c.h.b16 %v8191
    %v9377 = vunpack.c.l.b16 %v8192
    %v9378 = vunpack.c.h.b16 %v8192
    %v9379 = vunpack.c.l.b16 %v8193
    %v9380 = vunpack.c.h.b16 %v8193
    %v9381 = vunpack.c.l.b16 %v8194
    %v9382 = vunpack.c.h.b16 %v8194
    %v9383 = vunpack.c.l.b16 %v8195
    %v9384 = vunpack.c.h.b16 %v8195
    %v9385 = vunpack.c.l.b16 %v8196
    %v9386 = vunpack.c.h.b16 %v8196
    %v9387 = vunpack.c.l.b16 %v8197
    %v9388 = vunpack.c.h.b16 %v8197
    %v9389 = vunpack.c.l.b16 %v8198
    %v9390 = vunpack.c.h.b16 %v8198
    %v9391 = vunpack.c.l.b16 %v8199
    %v9392 = vunpack.c.h.b16 %v8199
    %v9393 = vunpack.c.l.b16 %v8200
    %v9394 = vunpack.c.h.b16 %v8200
    %v9395 = vunpack.c.l.b16 %v8201
    %v9396 = vunpack.c.h.b16 %v8201
    %v9397 = vunpack.c.l.b16 %v8202
    %v9398 = vunpack.c.h.b16 %v8202
    %v9399 = vunpack.c.l.b16 %v8203
    %v9400 = vunpack.c.h.b16 %v8203
    %v9401 = vunpack.c.l.b16 %v8204
    %v9402 = vunpack.c.h.b16 %v8204
    %v9403 = vunpack.c.l.b16 %v8205
    %v9404 = vunpack.c.h.b16 %v8205
    %v9405 = vunpack.c.l.b16 %v8206
    %v9406 = vunpack.c.h.b16 %v8206
    %v9407 = vunpack.c.l.b16 %v8207
    %v9408 = vunpack.c.h.b16 %v8207
    %v9409 = vunpack.c.l.b16 %v8208
    %v9410 = vunpack.c.h.b16 %v8208
    %v9411 = vunpack.c.l.b16 %v8209
    %v9412 = vunpack.c.h.b16 %v8209
    %v9413 = vunpack.c.l.b16 %v8210
    %v9414 = vunpack.c.h.b16 %v8210
    %v9415 = vunpack.c.l.b16 %v8211
    %v9416 = vunpack.c.h.b16 %v8211
    %v9417 = vunpack.c.l.b16 %v8212
    %v9418 = vunpack.c.h.b16 %v8212
    %v9419 = vunpack.c.l.b16 %v8213
    %v9420 = vunpack.c.h.b16 %v8213
    %v9421 = vunpack.c.l.b16 %v8214
    %v9422 = vunpack.c.h.b16 %v8214
    %v9423 = vunpack.c.l.b16 %v8215
    %v9424 = vunpack.c.h.b16 %v8215
    %v9425 = vunpack.c.l.b16 %v8216
    %v9426 = vunpack.c.h.b16 %v8216
    %v9427 = vunpack.c.l.b16 %v8217
    %v9428 = vunpack.c.h.b16 %v8217
    %v9429 = vunpack.c.l.b16 %v8218
    %v9430 = vunpack.c.h.b16 %v8218
    %v9431 = vunpack.c.l.b16 %v8219
    %v9432 = vunpack.c.h.b16 %v8219
    %v9433 = vunpack.c.l.b16 %v8220
    %v9434 = vunpack.c.h.b16 %v8220
    %v9435 = vunpack.c.l.b16 %v8221
    %v9436 = vunpack.c.h.b16 %v8221
    %v9437 = vunpack.c.l.b16 %v8222
    %v9438 = vunpack.c.h.b16 %v8222
    %v9439 = vunpack.c.l.b16 %v8223
    %v9440 = vunpack.c.h.b16 %v8223
    %v9441 = vunpack.c.l.b16 %v8224
    %v9442 = vunpack.c.h.b16 %v8224
    %v9443 = vunpack.c.l.b16 %v8225
    %v9444 = vunpack.c.h.b16 %v8225
    %v9445 = vunpack.c.l.b16 %v8226
    %v9446 = vunpack.c.h.b16 %v8226
    %v9447 = vunpack.c.l.b16 %v8227
    %v9448 = vunpack.c.h.b16 %v8227
    %v9449 = vunpack.c.l.b16 %v8228
    %v9450 = vunpack.c.h.b16 %v8228
    %v9451 = vunpack.c.l.b16 %v8229
    %v9452 = vunpack.c.h.b16 %v8229
    %v9453 = vunpack.c.l.b16 %v8230
    %v9454 = vunpack.c.h.b16 %v8230
    %v9455 = vunpack.c.l.b16 %v8231
    %v9456 = vunpack.c.h.b16 %v8231
    %v9457 = vunpack.c.l.b16 %v8232
    %v9458 = vunpack.c.h.b16 %v8232
    %v9459 = vunpack.c.l.b16 %v8233
    %v9460 = vunpack.c.h.b16 %v8233
    %v9461 = vunpack.c.l.b16 %v8234
    %v9462 = vunpack.c.h.b16 %v8234
    %v9463 = vunpack.c.l.b16 %v8235
    %v9464 = vunpack.c.h.b16 %v8235
    %v9465 = vunpack.c.l.b16 %v8236
    %v9466 = vunpack.c.h.b16 %v8236
    %v9467 = vunpack.c.l.b16 %v8237
    %v9468 = vunpack.c.h.b16 %v8237
    %v9469 = vunpack.c.l.b16 %v8238
    %v9470 = vunpack.c.h.b16 %v8238
    %v9471 = vunpack.c.l.b16 %v8239
    %v9472 = vunpack.c.h.b16 %v8239
    %v9473 = vunpack.c.l.b16 %v8240
    %v9474 = vunpack.c.h.b16 %v8240
    %v9475 = vunpack.c.l.b16 %v8241
    %v9476 = vunpack.c.h.b16 %v8241
    %v9477 = vunpack.c.l.b16 %v8242
    %v9478 = vunpack.c.h.b16 %v8242
    %v9479 = vunpack.c.l.b16 %v8243
    %v9480 = vunpack.c.h.b16 %v8243
    %v9481 = vunpack.c.l.b16 %v8244
    %v9482 = vunpack.c.h.b16 %v8244
    %v9483 = vunpack.c.l.b16 %v8245
    %v9484 = vunpack.c.h.b16 %v8245
    %v9485 = vunpack.c.l.b16 %v8246
    %v9486 = vunpack.c.h.b16 %v8246
    %v9487 = vunpack.c.l.b16 %v8247
    %v9488 = vunpack.c.h.b16 %v8247
    %v9489 = vunpack.c.l.b16 %v8248
    %v9490 = vunpack.c.h.b16 %v8248
    %v9491 = vunpack.c.l.b16 %v8249
    %v9492 = vunpack.c.h.b16 %v8249
    %v9493 = vunpack.c.l.b16 %v8250
    %v9494 = vunpack.c.h.b16 %v8250
    %v9495 = vunpack.c.l.b16 %v8251
    %v9496 = vunpack.c.h.b16 %v8251
    %v9497 = vunpack.c.l.b16 %v8252
    %v9498 = vunpack.c.h.b16 %v8252
    %v9499 = vunpack.c.l.b16 %v8253
    %v9500 = vunpack.c.h.b16 %v8253
    %v9501 = vunpack.c.l.b16 %v8254
    %v9502 = vunpack.c.h.b16 %v8254
    %v9503 = vunpack.c.l.b16 %v8255
    %v9504 = vunpack.c.h.b16 %v8255
    %v9505 = vunpack.c.l.b16 %v8256
    %v9506 = vunpack.c.h.b16 %v8256
    %v9507 = vunpack.c.l.b16 %v8257
    %v9508 = vunpack.c.h.b16 %v8257
    %v9509 = vunpack.c.l.b16 %v8258
    %v9510 = vunpack.c.h.b16 %v8258
    %v9511 = vunpack.c.l.b16 %v8259
    %v9512 = vunpack.c.h.b16 %v8259
    %v9513 = vunpack.c.l.b16 %v8260
    %v9514 = vunpack.c.h.b16 %v8260
    %v9515 = vunpack.c.l.b16 %v8261
    %v9516 = vunpack.c.h.b16 %v8261
    %v9517 = vunpack.c.l.b16 %v8262
    %v9518 = vunpack.c.h.b16 %v8262
    %v9519 = vunpack.c.l.b16 %v8263
    %v9520 = vunpack.c.h.b16 %v8263
    %v9521 = vunpack.c.l.b16 %v8264
    %v9522 = vunpack.c.h.b16 %v8264
    %v9523 = vunpack.c.l.b16 %v8265
    %v9524 = vunpack.c.h.b16 %v8265
    %v9525 = vunpack.c.l.b16 %v8266
    %v9526 = vunpack.c.h.b16 %v8266
    %v9527 = vunpack.c.l.b16 %v8267
    %v9528 = vunpack.c.h.b16 %v8267
    %v9529 = vunpack.c.l.b16 %v8268
    %v9530 = vunpack.c.h.b16 %v8268
    %v9531 = vunpack.c.l.b16 %v8269
    %v9532 = vunpack.c.h.b16 %v8269
    %v9533 = vunpack.c.l.b16 %v8270
    %v9534 = vunpack.c.h.b16 %v8270
    %v9535 = vunpack.c.l.b16 %v8271
    %v9536 = vunpack.c.h.b16 %v8271
    %v9537 = vunpack.c.l.b16 %v8272
    %v9538 = vunpack.c.h.b16 %v8272
    %v9539 = vunpack.c.l.b16 %v8273
    %v9540 = vunpack.c.h.b16 %v8273
    %v9541 = vunpack.c.l.b16 %v8274
    %v9542 = vunpack.c.h.b16 %v8274
    %v9543 = vunpack.c.l.b16 %v8275
    %v9544 = vunpack.c.h.b16 %v8275
    %v9545 = vunpack.c.l.b16 %v8276
    %v9546 = vunpack.c.h.b16 %v8276
    %v9547 = vunpack.c.l.b16 %v8277
    %v9548 = vunpack.c.h.b16 %v8277
    %v9549 = vunpack.c.l.b16 %v8278
    %v9550 = vunpack.c.h.b16 %v8278
    %v9551 = vunpack.c.l.b16 %v8279
    %v9552 = vunpack.c.h.b16 %v8279
    %v9553 = vunpack.c.l.b16 %v8280
    %v9554 = vunpack.c.h.b16 %v8280
    %v9555 = vunpack.c.l.b16 %v8281
    %v9556 = vunpack.c.h.b16 %v8281
    %v9557 = vunpack.c.l.b16 %v8282
    %v9558 = vunpack.c.h.b16 %v8282
    %v9559 = vunpack.c.l.b16 %v8283
    %v9560 = vunpack.c.h.b16 %v8283
    %v9561 = vunpack.c.l.b16 %v8284
    %v9562 = vunpack.c.h.b16 %v8284
    %v9563 = vunpack.c.l.b16 %v8285
    %v9564 = vunpack.c.h.b16 %v8285
    %v9565 = vunpack.c.l.b16 %v8286
    %v9566 = vunpack.c.h.b16 %v8286
    %v9567 = vunpack.c.l.b16 %v8287
    %v9568 = vunpack.c.h.b16 %v8287
    %v9569 = vunpack.c.l.b16 %v8288
    %v9570 = vunpack.c.h.b16 %v8288
    %v9571 = vunpack.c.l.b16 %v8289
    %v9572 = vunpack.c.h.b16 %v8289
    %v9573 = vunpack.c.l.b16 %v8290
    %v9574 = vunpack.c.h.b16 %v8290
    %v9575 = vunpack.c.l.b16 %v8291
    %v9576 = vunpack.c.h.b16 %v8291
    %v9577 = vunpack.c.l.b16 %v8292
    %v9578 = vunpack.c.h.b16 %v8292
    %v9579 = vunpack.c.l.b16 %v8293
    %v9580 = vunpack.c.h.b16 %v8293
    %v9581 = vunpack.c.l.b16 %v8294
    %v9582 = vunpack.c.h.b16 %v8294
    %v9583 = vunpack.c.l.b16 %v8295
    %v9584 = vunpack.c.h.b16 %v8295
    %v9585 = vunpack.c.l.b16 %v8296
    %v9586 = vunpack.c.h.b16 %v8296
    %v9587 = vunpack.c.l.b16 %v8297
    %v9588 = vunpack.c.h.b16 %v8297
    %v9589 = vunpack.c.l.b16 %v8298
    %v9590 = vunpack.c.h.b16 %v8298
    %v9591 = vunpack.c.l.b16 %v8299
    %v9592 = vunpack.c.h.b16 %v8299
    %v9593 = vunpack.c.l.b16 %v8300
    %v9594 = vunpack.c.h.b16 %v8300
    %v9595 = vunpack.c.l.b16 %v8301
    %v9596 = vunpack.c.h.b16 %v8301
    %v9597 = vunpack.c.l.b16 %v8302
    %v9598 = vunpack.c.h.b16 %v8302
    %v9599 = vunpack.c.l.b16 %v8303
    %v9600 = vunpack.c.h.b16 %v8303
    %v9601 = vunpack.c.l.b16 %v8304
    %v9602 = vunpack.c.h.b16 %v8304
    %v9603 = vunpack.c.l.b16 %v8305
    %v9604 = vunpack.c.h.b16 %v8305
    %v9605 = vunpack.c.l.b16 %v8306
    %v9606 = vunpack.c.h.b16 %v8306
    %v9607 = vunpack.c.l.b16 %v8307
    %v9608 = vunpack.c.h.b16 %v8307
    %v9609 = vunpack.c.l.b16 %v8308
    %v9610 = vunpack.c.h.b16 %v8308
    %v9611 = vunpack.c.l.b16 %v8309
    %v9612 = vunpack.c.h.b16 %v8309
    %v9613 = vunpack.c.l.b16 %v8310
    %v9614 = vunpack.c.h.b16 %v8310
    %v9615 = vunpack.c.l.b16 %v8311
    %v9616 = vunpack.c.h.b16 %v8311
    %v9617 = vunpack.c.l.b16 %v8312
    %v9618 = vunpack.c.h.b16 %v8312
    %v9619 = vunpack.c.l.b16 %v8313
    %v9620 = vunpack.c.h.b16 %v8313
    %v9621 = vunpack.c.l.b16 %v8314
    %v9622 = vunpack.c.h.b16 %v8314
    %v9623 = vunpack.c.l.b16 %v8315
    %v9624 = vunpack.c.h.b16 %v8315
    %v9625 = vunpack.c.l.b16 %v8316
    %v9626 = vunpack.c.h.b16 %v8316
    %v9627 = vunpack.c.l.b16 %v8317
    %v9628 = vunpack.c.h.b16 %v8317
    %v9629 = vunpack.c.l.b16 %v8318
    %v9630 = vunpack.c.h.b16 %v8318
    %v9631 = vunpack.c.l.b16 %v8319
    %v9632 = vunpack.c.h.b16 %v8319
    %v9633 = vunpack.c.l.b16 %v8320
    %v9634 = vunpack.c.h.b16 %v8320
    %v9635 = vunpack.c.l.b16 %v8321
    %v9636 = vunpack.c.h.b16 %v8321
    %v9637 = vunpack.c.l.b16 %v8322
    %v9638 = vunpack.c.h.b16 %v8322
    %v9639 = vunpack.c.l.b16 %v8323
    %v9640 = vunpack.c.h.b16 %v8323
    %v9641 = vunpack.c.l.b16 %v8324
    %v9642 = vunpack.c.h.b16 %v8324
    %v9643 = vunpack.c.l.b16 %v8325
    %v9644 = vunpack.c.h.b16 %v8325
    %v9645 = vunpack.c.l.b16 %v8326
    %v9646 = vunpack.c.h.b16 %v8326
    %v9647 = vunpack.c.l.b16 %v8327
    %v9648 = vunpack.c.h.b16 %v8327
    %v9649 = vunpack.c.l.b16 %v8328
    %v9650 = vunpack.c.h.b16 %v8328
    %v9651 = vunpack.c.l.b16 %v8329
    %v9652 = vunpack.c.h.b16 %v8329
    %v9653 = vunpack.c.l.b16 %v8330
    %v9654 = vunpack.c.h.b16 %v8330
    %v9655 = vunpack.c.l.b16 %v8331
    %v9656 = vunpack.c.h.b16 %v8331
    %v9657 = vunpack.c.l.b16 %v8332
    %v9658 = vunpack.c.h.b16 %v8332
    %v9659 = vunpack.c.l.b16 %v8333
    %v9660 = vunpack.c.h.b16 %v8333
    %v9661 = vunpack.c.l.b16 %v8334
    %v9662 = vunpack.c.h.b16 %v8334
    %v9663 = vunpack.c.l.b16 %v8335
    %v9664 = vunpack.c.h.b16 %v8335
    %v9665 = vunpack.c.l.b16 %v8336
    %v9666 = vunpack.c.h.b16 %v8336
    %v9667 = vunpack.c.l.b16 %v8337
    %v9668 = vunpack.c.h.b16 %v8337
    %v9669 = vunpack.c.l.b16 %v8338
    %v9670 = vunpack.c.h.b16 %v8338
    %v9671 = vunpack.c.l.b16 %v8339
    %v9672 = vunpack.c.h.b16 %v8339
    %v9673 = vunpack.c.l.b16 %v8340
    %v9674 = vunpack.c.h.b16 %v8340
    %v9675 = vunpack.c.l.b16 %v8341
    %v9676 = vunpack.c.h.b16 %v8341
    %v9677 = vunpack.c.l.b16 %v8342
    %v9678 = vunpack.c.h.b16 %v8342
    %v9679 = vunpack.c.l.b16 %v8343
    %v9680 = vunpack.c.h.b16 %v8343
    %v9681 = vunpack.c.l.b16 %v8344
    %v9682 = vunpack.c.h.b16 %v8344
    %v9683 = vunpack.c.l.b16 %v8345
    %v9684 = vunpack.c.h.b16 %v8345
    %v9685 = vunpack.c.l.b16 %v8346
    %v9686 = vunpack.c.h.b16 %v8346
    %v9687 = vunpack.c.l.b16 %v8347
    %v9688 = vunpack.c.h.b16 %v8347
    %v9689 = vunpack.c.l.b16 %v8348
    %v9690 = vunpack.c.h.b16 %v8348
    %v9691 = vunpack.c.l.b16 %v8349
    %v9692 = vunpack.c.h.b16 %v8349
    %v9693 = vunpack.c.l.b16 %v8350
    %v9694 = vunpack.c.h.b16 %v8350
    %v9695 = vunpack.c.l.b16 %v8351
    %v9696 = vunpack.c.h.b16 %v8351
    %v9697 = vunpack.c.l.b16 %v8352
    %v9698 = vunpack.c.h.b16 %v8352
    %v9699 = vunpack.c.l.b16 %v8353
    %v9700 = vunpack.c.h.b16 %v8353
    %v9701 = vunpack.c.l.b16 %v8354
    %v9702 = vunpack.c.h.b16 %v8354
    %v9703 = vunpack.c.l.b16 %v8355
    %v9704 = vunpack.c.h.b16 %v8355
    %v9705 = vunpack.c.l.b16 %v8356
    %v9706 = vunpack.c.h.b16 %v8356
    %v9707 = vunpack.c.l.b16 %v8357
    %v9708 = vunpack.c.h.b16 %v8357
    %v9709 = vunpack.c.l.b16 %v8358
    %v9710 = vunpack.c.h.b16 %v8358
    %v9711 = vunpack.c.l.b16 %v8359
    %v9712 = vunpack.c.h.b16 %v8359
    %v9713 = vunpack.c.l.b16 %v8360
    %v9714 = vunpack.c.h.b16 %v8360
    %v9715 = vunpack.c.l.b16 %v8361
    %v9716 = vunpack.c.h.b16 %v8361
    %v9717 = vunpack.c.l.b16 %v8362
    %v9718 = vunpack.c.h.b16 %v8362
    %v9719 = vunpack.c.l.b16 %v8363
    %v9720 = vunpack.c.h.b16 %v8363
    %v9721 = vunpack.c.l.b16 %v8364
    %v9722 = vunpack.c.h.b16 %v8364
    %v9723 = vunpack.c.l.b16 %v8365
    %v9724 = vunpack.c.h.b16 %v8365
    %v9725 = vunpack.c.l.b16 %v8366
    %v9726 = vunpack.c.h.b16 %v8366
    %v9727 = vunpack.c.l.b16 %v8367
    %v9728 = vunpack.c.h.b16 %v8367
    %v9729 = vunpack.c.l.b16 %v8368
    %v9730 = vunpack.c.h.b16 %v8368
    %v9731 = vunpack.c.l.b16 %v8369
    %v9732 = vunpack.c.h.b16 %v8369
    %v9733 = vunpack.c.l.b16 %v8370
    %v9734 = vunpack.c.h.b16 %v8370
    %v9735 = vunpack.c.l.b16 %v8371
    %v9736 = vunpack.c.h.b16 %v8371
    %v9737 = vunpack.c.l.b16 %v8372
    %v9738 = vunpack.c.h.b16 %v8372
    %v9739 = vunpack.c.l.b16 %v8373
    %v9740 = vunpack.c.h.b16 %v8373
    %v9741 = vunpack.c.l.b16 %v8374
    %v9742 = vunpack.c.h.b16 %v8374
    %v9743 = vunpack.c.l.b16 %v8375
    %v9744 = vunpack.c.h.b16 %v8375
    %v9745 = vunpack.c.l.b16 %v8376
    %v9746 = vunpack.c.h.b16 %v8376
    %v9747 = vunpack.c.l.b16 %v8377
    %v9748 = vunpack.c.h.b16 %v8377
    %v9749 = vunpack.c.l.b16 %v8378
    %v9750 = vunpack.c.h.b16 %v8378
    %v9751 = vunpack.c.l.b16 %v8379
    %v9752 = vunpack.c.h.b16 %v8379
    %v9753 = vunpack.c.l.b16 %v8380
    %v9754 = vunpack.c.h.b16 %v8380
    %v9755 = vunpack.c.l.b16 %v8381
    %v9756 = vunpack.c.h.b16 %v8381
    %v9757 = vunpack.c.l.b16 %v8382
    %v9758 = vunpack.c.h.b16 %v8382
    %v9759 = vunpack.c.l.b16 %v8383
    %v9760 = vunpack.c.h.b16 %v8383
    %v9761 = vunpack.c.l.b16 %v8384
    %v9762 = vunpack.c.h.b16 %v8384
    %v9763 = vunpack.c.l.b16 %v8385
    %v9764 = vunpack.c.h.b16 %v8385
    %v9765 = vunpack.c.l.b16 %v8386
    %v9766 = vunpack.c.h.b16 %v8386
    %v9767 = vunpack.c.l.b16 %v8387
    %v9768 = vunpack.c.h.b16 %v8387
    %v9769 = vunpack.c.l.b16 %v8388
    %v9770 = vunpack.c.h.b16 %v8388
    %v9771 = vunpack.c.l.b16 %v8389
    %v9772 = vunpack.c.h.b16 %v8389
    %v9773 = vunpack.c.l.b16 %v8390
    %v9774 = vunpack.c.h.b16 %v8390
    %v9775 = vunpack.c.l.b16 %v8391
    %v9776 = vunpack.c.h.b16 %v8391
    %v9777 = vunpack.c.l.b16 %v8392
    %v9778 = vunpack.c.h.b16 %v8392
    %v9779 = vunpack.c.l.b16 %v8393
    %v9780 = vunpack.c.h.b16 %v8393
    %v9781 = vunpack.c.l.b16 %v8394
    %v9782 = vunpack.c.h.b16 %v8394
    %v9783 = vunpack.c.l.b16 %v8395
    %v9784 = vunpack.c.h.b16 %v8395
    %v9785 = vunpack.c.l.b16 %v8396
    %v9786 = vunpack.c.h.b16 %v8396
    %v9787 = vunpack.c.l.b16 %v8397
    %v9788 = vunpack.c.h.b16 %v8397
    %v9789 = vunpack.c.l.b16 %v8398
    %v9790 = vunpack.c.h.b16 %v8398
    %v9791 = vunpack.c.l.b16 %v8399
    %v9792 = vunpack.c.h.b16 %v8399
    %v9793 = vunpack.c.l.b16 %v8400
    %v9794 = vunpack.c.h.b16 %v8400
    %v9795 = vunpack.c.l.b16 %v8401
    %v9796 = vunpack.c.h.b16 %v8401
    %v9797 = vunpack.c.l.b16 %v8402
    %v9798 = vunpack.c.h.b16 %v8402
    %v9799 = vunpack.c.l.b16 %v8403
    %v9800 = vunpack.c.h.b16 %v8403
    %v9801 = vunpack.c.l.b16 %v8404
    %v9802 = vunpack.c.h.b16 %v8404
    %v9803 = vunpack.c.l.b16 %v8405
    %v9804 = vunpack.c.h.b16 %v8405
    %v9805 = vunpack.c.l.b16 %v8406
    %v9806 = vunpack.c.h.b16 %v8406
    %v9807 = vunpack.c.l.b16 %v8407
    %v9808 = vunpack.c.h.b16 %v8407
    %v9809 = vunpack.c.l.b16 %v8408
    %v9810 = vunpack.c.h.b16 %v8408
    %v9811 = vunpack.c.l.b16 %v8409
    %v9812 = vunpack.c.h.b16 %v8409
    %v9813 = vunpack.c.l.b16 %v8410
    %v9814 = vunpack.c.h.b16 %v8410
    %v9815 = vunpack.c.l.b16 %v8411
    %v9816 = vunpack.c.h.b16 %v8411
    %v9817 = vunpack.c.l.b16 %v8412
    %v9818 = vunpack.c.h.b16 %v8412
    %v9819 = vunpack.c.l.b16 %v8413
    %v9820 = vunpack.c.h.b16 %v8413
    %v9821 = vunpack.c.l.b16 %v8414
    %v9822 = vunpack.c.h.b16 %v8414
    %v9823 = vunpack.c.l.b16 %v8415
    %v9824 = vunpack.c.h.b16 %v8415
    %v9825 = vunpack.c.l.b16 %v8416
    %v9826 = vunpack.c.h.b16 %v8416
    %v9827 = vunpack.c.l.b16 %v8417
    %v9828 = vunpack.c.h.b16 %v8417
    %v9829 = vunpack.c.l.b16 %v8418
    %v9830 = vunpack.c.h.b16 %v8418
    %v9831 = vunpack.c.l.b16 %v8419
    %v9832 = vunpack.c.h.b16 %v8419
    %v9833 = vunpack.c.l.b16 %v8420
    %v9834 = vunpack.c.h.b16 %v8420
    %v9835 = vunpack.c.l.b16 %v8421
    %v9836 = vunpack.c.h.b16 %v8421
    %v9837 = vunpack.c.l.b16 %v8422
    %v9838 = vunpack.c.h.b16 %v8422
    %v9839 = vunpack.c.l.b16 %v8423
    %v9840 = vunpack.c.h.b16 %v8423
    %v9841 = vunpack.c.l.b16 %v8424
    %v9842 = vunpack.c.h.b16 %v8424
    %v9843 = vunpack.c.l.b16 %v8425
    %v9844 = vunpack.c.h.b16 %v8425
    %v9845 = vunpack.c.l.b16 %v8426
    %v9846 = vunpack.c.h.b16 %v8426
    %v9847 = vunpack.c.l.b16 %v8427
    %v9848 = vunpack.c.h.b16 %v8427
    %v9849 = vunpack.c.l.b16 %v8428
    %v9850 = vunpack.c.h.b16 %v8428
    %v9851 = vunpack.c.l.b16 %v8429
    %v9852 = vunpack.c.h.b16 %v8429
    %v9853 = vunpack.c.l.b16 %v8430
    %v9854 = vunpack.c.h.b16 %v8430
    %v9855 = vunpack.c.l.b16 %v8431
    %v9856 = vunpack.c.h.b16 %v8431
    %v9857 = vunpack.c.l.b16 %v8432
    %v9858 = vunpack.c.h.b16 %v8432
    %v9859 = vunpack.c.l.b16 %v8433
    %v9860 = vunpack.c.h.b16 %v8433
    %v9861 = vunpack.c.l.b16 %v8434
    %v9862 = vunpack.c.h.b16 %v8434
    %v9863 = vunpack.c.l.b16 %v8435
    %v9864 = vunpack.c.h.b16 %v8435
    %v9865 = vunpack.c.l.b16 %v8436
    %v9866 = vunpack.c.h.b16 %v8436
    %v9867 = vunpack.c.l.b16 %v8437
    %v9868 = vunpack.c.h.b16 %v8437
    %v9869 = vunpack.c.l.b16 %v8438
    %v9870 = vunpack.c.h.b16 %v8438
    %v9871 = vunpack.c.l.b16 %v8439
    %v9872 = vunpack.c.h.b16 %v8439
    %v9873 = vunpack.c.l.b16 %v8440
    %v9874 = vunpack.c.h.b16 %v8440
    %v9875 = vunpack.c.l.b16 %v8441
    %v9876 = vunpack.c.h.b16 %v8441
    %v9877 = vunpack.c.l.b16 %v8442
    %v9878 = vunpack.c.h.b16 %v8442
    %v9879 = vunpack.c.l.b16 %v8443
    %v9880 = vunpack.c.h.b16 %v8443
    %v9881 = vunpack.c.l.b16 %v8444
    %v9882 = vunpack.c.h.b16 %v8444
    %v9883 = vunpack.c.l.b16 %v8445
    %v9884 = vunpack.c.h.b16 %v8445
    %v9885 = vunpack.c.l.b16 %v8446
    %v9886 = vunpack.c.h.b16 %v8446
    %v9887 = vunpack.c.l.b16 %v8447
    %v9888 = vunpack.c.h.b16 %v8447
    %v9889 = vunpack.c.l.b16 %v8448
    %v9890 = vunpack.c.h.b16 %v8448
    %v9891 = vunpack.c.l.b16 %v8449
    %v9892 = vunpack.c.h.b16 %v8449
    %v9893 = vunpack.c.l.b16 %v8450
    %v9894 = vunpack.c.h.b16 %v8450
    %v9895 = vunpack.c.l.b16 %v8451
    %v9896 = vunpack.c.h.b16 %v8451
    %v9897 = vunpack.c.l.b16 %v8452
    %v9898 = vunpack.c.h.b16 %v8452
    %v9899 = vunpack.c.l.b16 %v8453
    %v9900 = vunpack.c.h.b16 %v8453
    %v9901 = vunpack.c.l.b16 %v8454
    %v9902 = vunpack.c.h.b16 %v8454
    %v9903 = vunpack.c.l.b16 %v8455
    %v9904 = vunpack.c.h.b16 %v8455
    %v9905 = vunpack.c.l.b16 %v8456
    %v9906 = vunpack.c.h.b16 %v8456
    %v9907 = vunpack.c.l.b16 %v8457
    %v9908 = vunpack.c.h.b16 %v8457
    %v9909 = vunpack.c.l.b16 %v8458
    %v9910 = vunpack.c.h.b16 %v8458
    %v9911 = vunpack.c.l.b16 %v8459
    %v9912 = vunpack.c.h.b16 %v8459
    %v9913 = vunpack.c.l.b16 %v8460
    %v9914 = vunpack.c.h.b16 %v8460
    %v9915 = vunpack.c.l.b16 %v8461
    %v9916 = vunpack.c.h.b16 %v8461
    %v9917 = vunpack.c.l.b16 %v8462
    %v9918 = vunpack.c.h.b16 %v8462
    %v9919 = vunpack.c.l.b16 %v8463
    %v9920 = vunpack.c.h.b16 %v8463
    %v9921 = vunpack.c.l.b16 %v8464
    %v9922 = vunpack.c.h.b16 %v8464
    %v9923 = vunpack.c.l.b16 %v8465
    %v9924 = vunpack.c.h.b16 %v8465
    %v9925 = vunpack.c.l.b16 %v8466
    %v9926 = vunpack.c.h.b16 %v8466
    %v9927 = vunpack.c.l.b16 %v8467
    %v9928 = vunpack.c.h.b16 %v8467
    %v9929 = vunpack.c.l.b16 %v8468
    %v9930 = vunpack.c.h.b16 %v8468
    %v9931 = vunpack.c.l.b16 %v8469
    %v9932 = vunpack.c.h.b16 %v8469
    %v9933 = vunpack.c.l.b16 %v8470
    %v9934 = vunpack.c.h.b16 %v8470
    %v9935 = vunpack.c.l.b16 %v8471
    %v9936 = vunpack.c.h.b16 %v8471
    %v9937 = vunpack.c.l.b16 %v8472
    %v9938 = vunpack.c.h.b16 %v8472
    %v9939 = vunpack.c.l.b16 %v8473
    %v9940 = vunpack.c.h.b16 %v8473
    %v9941 = vunpack.c.l.b16 %v8474
    %v9942 = vunpack.c.h.b16 %v8474
    %v9943 = vunpack.c.l.b16 %v8475
    %v9944 = vunpack.c.h.b16 %v8475
    %v9945 = vunpack.c.l.b16 %v8476
    %v9946 = vunpack.c.h.b16 %v8476
    %v9947 = vunpack.c.l.b16 %v8477
    %v9948 = vunpack.c.h.b16 %v8477
    %v9949 = vunpack.c.l.b16 %v8478
    %v9950 = vunpack.c.h.b16 %v8478
    %v9951 = vunpack.c.l.b16 %v8479
    %v9952 = vunpack.c.h.b16 %v8479
    %v9953 = vunpack.c.l.b16 %v8480
    %v9954 = vunpack.c.h.b16 %v8480
    %v9955 = vunpack.c.l.b16 %v8481
    %v9956 = vunpack.c.h.b16 %v8481
    %v9957 = vunpack.c.l.b16 %v8482
    %v9958 = vunpack.c.h.b16 %v8482
    %v9959 = vunpack.c.l.b16 %v8483
    %v9960 = vunpack.c.h.b16 %v8483
    %v9961 = vunpack.c.l.b16 %v8484
    %v9962 = vunpack.c.h.b16 %v8484
    %v9963 = vunpack.c.l.b16 %v8485
    %v9964 = vunpack.c.h.b16 %v8485
    %v9965 = vunpack.c.l.b16 %v8486
    %v9966 = vunpack.c.h.b16 %v8486
    %v9967 = vunpack.c.l.b16 %v8487
    %v9968 = vunpack.c.h.b16 %v8487
    %v9969 = vunpack.c.l.b16 %v8488
    %v9970 = vunpack.c.h.b16 %v8488
    %v9971 = vunpack.c.l.b16 %v8489
    %v9972 = vunpack.c.h.b16 %v8489
    %v9973 = vunpack.c.l.b16 %v8490
    %v9974 = vunpack.c.h.b16 %v8490
    %v9975 = vunpack.c.l.b16 %v8491
    %v9976 = vunpack.c.h.b16 %v8491
    %v9977 = vunpack.c.l.b16 %v8492
    %v9978 = vunpack.c.h.b16 %v8492
    %v9979 = vunpack.c.l.b16 %v8493
    %v9980 = vunpack.c.h.b16 %v8493
    %v9981 = vunpack.c.l.b16 %v8494
    %v9982 = vunpack.c.h.b16 %v8494
    %v9983 = vunpack.c.l.b16 %v8495
    %v9984 = vunpack.c.h.b16 %v8495
    %v9985 = vunpack.c.l.b16 %v8496
    %v9986 = vunpack.c.h.b16 %v8496
    %v9987 = vunpack.c.l.b16 %v8497
    %v9988 = vunpack.c.h.b16 %v8497
    %v9989 = vunpack.c.l.b16 %v8498
    %v9990 = vunpack.c.h.b16 %v8498
    %v9991 = vunpack.c.l.b16 %v8499
    %v9992 = vunpack.c.h.b16 %v8499
    %v9993 = vunpack.c.l.b16 %v8500
    %v9994 = vunpack.c.h.b16 %v8500
    %v9995 = vunpack.c.l.b16 %v8501
    %v9996 = vunpack.c.h.b16 %v8501
    %v9997 = vunpack.c.l.b16 %v8502
    %v9998 = vunpack.c.h.b16 %v8502
    %v9999 = vunpack.c.l.b16 %v8503
    %v10000 = vunpack.c.h.b16 %v8503
    %v10001 = vunpack.c.l.b16 %v8504
    %v10002 = vunpack.c.h.b16 %v8504
    %v10003 = vunpack.c.l.b16 %v8505
    %v10004 = vunpack.c.h.b16 %v8505
    %v10005 = vunpack.c.l.b16 %v8506
    %v10006 = vunpack.c.h.b16 %v8506
    %v10007 = vunpack.c.l.b16 %v8507
    %v10008 = vunpack.c.h.b16 %v8507
    %v10009 = vunpack.c.l.b16 %v8508
    %v10010 = vunpack.c.h.b16 %v8508
    %v10011 = vunpack.c.l.b16 %v8509
    %v10012 = vunpack.c.h.b16 %v8509
    %v10013 = vunpack.c.l.b16 %v8510
    %v10014 = vunpack.c.h.b16 %v8510
    %v10015 = vunpack.c.l.b16 %v8511
    %v10016 = vunpack.c.h.b16 %v8511
    %v10017 = vunpack.c.l.b16 %v8512
    %v10018 = vunpack.c.h.b16 %v8512
    %v10019 = vunpack.c.l.b16 %v8513
    %v10020 = vunpack.c.h.b16 %v8513
    %v10021 = vunpack.c.l.b16 %v8514
    %v10022 = vunpack.c.h.b16 %v8514
    %v10023 = vunpack.c.l.b16 %v8515
    %v10024 = vunpack.c.h.b16 %v8515
    %v10025 = vunpack.c.l.b16 %v8516
    %v10026 = vunpack.c.h.b16 %v8516
    %v10027 = vunpack.c.l.b16 %v8517
    %v10028 = vunpack.c.h.b16 %v8517
    %v10029 = vunpack.c.l.b16 %v8518
    %v10030 = vunpack.c.h.b16 %v8518
    %v10031 = vunpack.c.l.b16 %v8519
    %v10032 = vunpack.c.h.b16 %v8519
    %v10033 = vunpack.c.l.b16 %v8520
    %v10034 = vunpack.c.h.b16 %v8520
    %v10035 = vunpack.c.l.b16 %v8521
    %v10036 = vunpack.c.h.b16 %v8521
    %v10037 = vunpack.c.l.b16 %v8522
    %v10038 = vunpack.c.h.b16 %v8522
    %v10039 = vunpack.c.l.b16 %v8523
    %v10040 = vunpack.c.h.b16 %v8523
    %v10041 = vunpack.c.l.b16 %v8524
    %v10042 = vunpack.c.h.b16 %v8524
    %v10043 = vunpack.c.l.b16 %v8525
    %v10044 = vunpack.c.h.b16 %v8525
    %v10045 = vunpack.c.l.b16 %v8526
    %v10046 = vunpack.c.h.b16 %v8526
    %v10047 = vunpack.c.l.b16 %v8527
    %v10048 = vunpack.c.h.b16 %v8527
    %v10049 = vunpack.c.l.b16 %v8528
    %v10050 = vunpack.c.h.b16 %v8528
    %v10051 = vunpack.c.l.b16 %v8529
    %v10052 = vunpack.c.h.b16 %v8529
    %v10053 = vunpack.c.l.b16 %v8530
    %v10054 = vunpack.c.h.b16 %v8530
    %v10055 = vunpack.c.l.b16 %v8531
    %v10056 = vunpack.c.h.b16 %v8531
    %v10057 = vunpack.c.l.b16 %v8532
    %v10058 = vunpack.c.h.b16 %v8532
    %v10059 = vunpack.c.l.b16 %v8533
    %v10060 = vunpack.c.h.b16 %v8533
    %v10061 = vunpack.c.l.b16 %v8534
    %v10062 = vunpack.c.h.b16 %v8534
    %v10063 = vunpack.c.l.b16 %v8535
    %v10064 = vunpack.c.h.b16 %v8535
    %v10065 = vunpack.c.l.b16 %v8536
    %v10066 = vunpack.c.h.b16 %v8536
    %v10067 = vunpack.c.l.b16 %v8537
    %v10068 = vunpack.c.h.b16 %v8537
    %v10069 = vunpack.c.l.b16 %v8538
    %v10070 = vunpack.c.h.b16 %v8538
    %v10071 = vunpack.c.l.b16 %v8539
    %v10072 = vunpack.c.h.b16 %v8539
    %v10073 = vunpack.c.l.b16 %v8540
    %v10074 = vunpack.c.h.b16 %v8540
    %v10075 = vunpack.c.l.b16 %v8541
    %v10076 = vunpack.c.h.b16 %v8541
    %v10077 = vunpack.c.l.b16 %v8542
    %v10078 = vunpack.c.h.b16 %v8542
    %v10079 = vunpack.c.l.b16 %v8543
    %v10080 = vunpack.c.h.b16 %v8543
    %v10081 = vunpack.c.l.b16 %v8544
    %v10082 = vunpack.c.h.b16 %v8544
    %v10083 = vunpack.c.l.b16 %v8545
    %v10084 = vunpack.c.h.b16 %v8545
    %v10085 = vunpack.c.l.b16 %v8546
    %v10086 = vunpack.c.h.b16 %v8546
    %v10087 = vunpack.c.l.b16 %v8547
    %v10088 = vunpack.c.h.b16 %v8547
    %v10089 = vunpack.c.l.b16 %v8548
    %v10090 = vunpack.c.h.b16 %v8548
    %v10091 = vunpack.c.l.b16 %v8549
    %v10092 = vunpack.c.h.b16 %v8549
    %v10093 = vunpack.c.l.b16 %v8550
    %v10094 = vunpack.c.h.b16 %v8550
    %v10095 = vunpack.c.l.b16 %v8551
    %v10096 = vunpack.c.h.b16 %v8551
    %v10097 = vunpack.c.l.b16 %v8552
    %v10098 = vunpack.c.h.b16 %v8552
    %v10099 = vunpack.c.l.b16 %v8553
    %v10100 = vunpack.c.h.b16 %v8553
    %v10101 = vunpack.c.l.b16 %v8554
    %v10102 = vunpack.c.h.b16 %v8554
    %v10103 = vunpack.c.l.b16 %v8555
    %v10104 = vunpack.c.h.b16 %v8555
    %v10105 = vunpack.c.l.b16 %v8556
    %v10106 = vunpack.c.h.b16 %v8556
    %v10107 = vunpack.c.l.b16 %v8557
    %v10108 = vunpack.c.h.b16 %v8557
    %v10109 = vunpack.c.l.b16 %v8558
    %v10110 = vunpack.c.h.b16 %v8558
    %v10111 = vunpack.c.l.b16 %v8559
    %v10112 = vunpack.c.h.b16 %v8559
    %v10113 = vunpack.c.l.b16 %v8560
    %v10114 = vunpack.c.h.b16 %v8560
    %v10115 = vunpack.c.l.b16 %v8561
    %v10116 = vunpack.c.h.b16 %v8561
    %v10117 = vunpack.c.l.b16 %v8562
    %v10118 = vunpack.c.h.b16 %v8562
    %v10119 = vunpack.c.l.b16 %v8563
    %v10120 = vunpack.c.h.b16 %v8563
    %v10121 = vunpack.c.l.b16 %v8564
    %v10122 = vunpack.c.h.b16 %v8564
    %v10123 = vunpack.c.l.b16 %v8565
    %v10124 = vunpack.c.h.b16 %v8565
    %v10125 = vunpack.c.l.b16 %v8566
    %v10126 = vunpack.c.h.b16 %v8566
    %v10127 = vunpack.c.l.b16 %v8567
    %v10128 = vunpack.c.h.b16 %v8567
    %v10129 = vunpack.c.l.b16 %v8568
    %v10130 = vunpack.c.h.b16 %v8568
    %v10131 = vunpack.c.l.b16 %v8569
    %v10132 = vunpack.c.h.b16 %v8569
    %v10133 = vunpack.c.l.b16 %v8570
    %v10134 = vunpack.c.h.b16 %v8570
    %v10135 = vunpack.c.l.b16 %v8571
    %v10136 = vunpack.c.h.b16 %v8571
    %v10137 = vunpack.c.l.b16 %v8572
    %v10138 = vunpack.c.h.b16 %v8572
    %v10139 = vunpack.c.l.b16 %v8573
    %v10140 = vunpack.c.h.b16 %v8573
    %v10141 = vunpack.c.l.b16 %v8574
    %v10142 = vunpack.c.h.b16 %v8574
    %v10143 = vunpack.c.l.b16 %v8575
    %v10144 = vunpack.c.h.b16 %v8575
    %v10145 = vunpack.c.l.b16 %v8576
    %v10146 = vunpack.c.h.b16 %v8576
    %v10147 = vunpack.c.l.b16 %v8577
    %v10148 = vunpack.c.h.b16 %v8577
    %v10149 = vunpack.c.l.b16 %v8578
    %v10150 = vunpack.c.h.b16 %v8578
    %v10151 = vunpack.c.l.b16 %v8579
    %v10152 = vunpack.c.h.b16 %v8579
    %v10153 = vunpack.c.l.b16 %v8580
    %v10154 = vunpack.c.h.b16 %v8580
    %v10155 = vunpack.c.l.b16 %v8581
    %v10156 = vunpack.c.h.b16 %v8581
    %v10157 = vunpack.c.l.b16 %v8582
    %v10158 = vunpack.c.h.b16 %v8582
    %v10159 = vunpack.c.l.b16 %v8583
    %v10160 = vunpack.c.h.b16 %v8583
    %v10161 = vunpack.c.l.b16 %v8584
    %v10162 = vunpack.c.h.b16 %v8584
    %v10163 = vpack.c.b16 %v9147, %v9139
    %v10164 = vpack.c.b16 %v9148, %v9140
    %v10165 = vpack.c.b16 %v9149, %v9141
    %v10166 = vpack.c.b16 %v9150, %v9142
    %v10167 = vpack.c.b16 %v9151, %v9143
    %v10168 = vpack.c.b16 %v9152, %v9144
    %v10169 = vpack.c.b16 %v9153, %v9145
    %v10170 = vpack.c.b16 %v9154, %v9146
    %v10171 = vpack.c.b16 %v9163, %v9155
    %v10172 = vpack.c.b16 %v9164, %v9156
    %v10173 = vpack.c.b16 %v9165, %v9157
    %v10174 = vpack.c.b16 %v9166, %v9158
    %v10175 = vpack.c.b16 %v9167, %v9159
    %v10176 = vpack.c.b16 %v9168, %v9160
    %v10177 = vpack.c.b16 %v9169, %v9161
    %v10178 = vpack.c.b16 %v9170, %v9162
    %v10179 = vpack.c.b16 %v9179, %v9171
    %v10180 = vpack.c.b16 %v9180, %v9172
    %v10181 = vpack.c.b16 %v9181, %v9173
    %v10182 = vpack.c.b16 %v9182, %v9174
    %v10183 = vpack.c.b16 %v9183, %v9175
    %v10184 = vpack.c.b16 %v9184, %v9176
    %v10185 = vpack.c.b16 %v9185, %v9177
    %v10186 = vpack.c.b16 %v9186, %v9178
    %v10187 = vpack.c.b16 %v9195, %v9187
    %v10188 = vpack.c.b16 %v9196, %v9188
    %v10189 = vpack.c.b16 %v9197, %v9189
    %v10190 = vpack.c.b16 %v9198, %v9190
    %v10191 = vpack.c.b16 %v9199, %v9191
    %v10192 = vpack.c.b16 %v9200, %v9192
    %v10193 = vpack.c.b16 %v9201, %v9193
    %v10194 = vpack.c.b16 %v9202, %v9194
    %v10195 = vpack.c.b16 %v9211, %v9203
    %v10196 = vpack.c.b16 %v9212, %v9204
    %v10197 = vpack.c.b16 %v9213, %v9205
    %v10198 = vpack.c.b16 %v9214, %v9206
    %v10199 = vpack.c.b16 %v9215, %v9207
    %v10200 = vpack.c.b16 %v9216, %v9208
    %v10201 = vpack.c.b16 %v9217, %v9209
    %v10202 = vpack.c.b16 %v9218, %v9210
    %v10203 = vpack.c.b16 %v9227, %v9219
    %v10204 = vpack.c.b16 %v9228, %v9220
    %v10205 = vpack.c.b16 %v9229, %v9221
    %v10206 = vpack.c.b16 %v9230, %v9222
    %v10207 = vpack.c.b16 %v9231, %v9223
    %v10208 = vpack.c.b16 %v9232, %v9224
    %v10209 = vpack.c.b16 %v9233, %v9225
    %v10210 = vpack.c.b16 %v9234, %v9226
    %v10211 = vpack.c.b16 %v9243, %v9235
    %v10212 = vpack.c.b16 %v9244, %v9236
    %v10213 = vpack.c.b16 %v9245, %v9237
    %v10214 = vpack.c.b16 %v9246, %v9238
    %v10215 = vpack.c.b16 %v9247, %v9239
    %v10216 = vpack.c.b16 %v9248, %v9240
    %v10217 = vpack.c.b16 %v9249, %v9241
    %v10218 = vpack.c.b16 %v9250, %v9242
    %v10219 = vpack.c.b16 %v9259, %v9251
    %v10220 = vpack.c.b16 %v9260, %v9252
    %v10221 = vpack.c.b16 %v9261, %v9253
    %v10222 = vpack.c.b16 %v9262, %v9254
    %v10223 = vpack.c.b16 %v9263, %v9255
    %v10224 = vpack.c.b16 %v9264, %v9256
    %v10225 = vpack.c.b16 %v9265, %v9257
    %v10226 = vpack.c.b16 %v9266, %v9258
    %v10227 = vpack.c.b16 %v9275, %v9267
    %v10228 = vpack.c.b16 %v9276, %v9268
    %v10229 = vpack.c.b16 %v9277, %v9269
    %v10230 = vpack.c.b16 %v9278, %v9270
    %v10231 = vpack.c.b16 %v9279, %v9271
    %v10232 = vpack.c.b16 %v9280, %v9272
    %v10233 = vpack.c.b16 %v9281, %v9273
    %v10234 = vpack.c.b16 %v9282, %v9274
    %v10235 = vpack.c.b16 %v9291, %v9283
    %v10236 = vpack.c.b16 %v9292, %v9284
    %v10237 = vpack.c.b16 %v9293, %v9285
    %v10238 = vpack.c.b16 %v9294, %v9286
    %v10239 = vpack.c.b16 %v9295, %v9287
    %v10240 = vpack.c.b16 %v9296, %v9288
    %v10241 = vpack.c.b16 %v9297, %v9289
    %v10242 = vpack.c.b16 %v9298, %v9290
    %v10243 = vpack.c.b16 %v9307, %v9299
    %v10244 = vpack.c.b16 %v9308, %v9300
    %v10245 = vpack.c.b16 %v9309, %v9301
    %v10246 = vpack.c.b16 %v9310, %v9302
    %v10247 = vpack.c.b16 %v9311, %v9303
    %v10248 = vpack.c.b16 %v9312, %v9304
    %v10249 = vpack.c.b16 %v9313, %v9305
    %v10250 = vpack.c.b16 %v9314, %v9306
    %v10251 = vpack.c.b16 %v9323, %v9315
    %v10252 = vpack.c.b16 %v9324, %v9316
    %v10253 = vpack.c.b16 %v9325, %v9317
    %v10254 = vpack.c.b16 %v9326, %v9318
    %v10255 = vpack.c.b16 %v9327, %v9319
    %v10256 = vpack.c.b16 %v9328, %v9320
    %v10257 = vpack.c.b16 %v9329, %v9321
    %v10258 = vpack.c.b16 %v9330, %v9322
    %v10259 = vpack.c.b16 %v9339, %v9331
    %v10260 = vpack.c.b16 %v9340, %v9332
    %v10261 = vpack.c.b16 %v9341, %v9333
    %v10262 = vpack.c.b16 %v9342, %v9334
    %v10263 = vpack.c.b16 %v9343, %v9335
    %v10264 = vpack.c.b16 %v9344, %v9336
    %v10265 = vpack.c.b16 %v9345, %v9337
    %v10266 = vpack.c.b16 %v9346, %v9338
    %v10267 = vpack.c.b16 %v9355, %v9347
    %v10268 = vpack.c.b16 %v9356, %v9348
    %v10269 = vpack.c.b16 %v9357, %v9349
    %v10270 = vpack.c.b16 %v9358, %v9350
    %v10271 = vpack.c.b16 %v9359, %v9351
    %v10272 = vpack.c.b16 %v9360, %v9352
    %v10273 = vpack.c.b16 %v9361, %v9353
    %v10274 = vpack.c.b16 %v9362, %v9354
    %v10275 = vpack.c.b16 %v9371, %v9363
    %v10276 = vpack.c.b16 %v9372, %v9364
    %v10277 = vpack.c.b16 %v9373, %v9365
    %v10278 = vpack.c.b16 %v9374, %v9366
    %v10279 = vpack.c.b16 %v9375, %v9367
    %v10280 = vpack.c.b16 %v9376, %v9368
    %v10281 = vpack.c.b16 %v9377, %v9369
    %v10282 = vpack.c.b16 %v9378, %v9370
    %v10283 = vpack.c.b16 %v9387, %v9379
    %v10284 = vpack.c.b16 %v9388, %v9380
    %v10285 = vpack.c.b16 %v9389, %v9381
    %v10286 = vpack.c.b16 %v9390, %v9382
    %v10287 = vpack.c.b16 %v9391, %v9383
    %v10288 = vpack.c.b16 %v9392, %v9384
    %v10289 = vpack.c.b16 %v9393, %v9385
    %v10290 = vpack.c.b16 %v9394, %v9386
    %v10291 = vpack.c.b16 %v9403, %v9395
    %v10292 = vpack.c.b16 %v9404, %v9396
    %v10293 = vpack.c.b16 %v9405, %v9397
    %v10294 = vpack.c.b16 %v9406, %v9398
    %v10295 = vpack.c.b16 %v9407, %v9399
    %v10296 = vpack.c.b16 %v9408, %v9400
    %v10297 = vpack.c.b16 %v9409, %v9401
    %v10298 = vpack.c.b16 %v9410, %v9402
    %v10299 = vpack.c.b16 %v9419, %v9411
    %v10300 = vpack.c.b16 %v9420, %v9412
    %v10301 = vpack.c.b16 %v9421, %v9413
    %v10302 = vpack.c.b16 %v9422, %v9414
    %v10303 = vpack.c.b16 %v9423, %v9415
    %v10304 = vpack.c.b16 %v9424, %v9416
    %v10305 = vpack.c.b16 %v9425, %v9417
    %v10306 = vpack.c.b16 %v9426, %v9418
    %v10307 = vpack.c.b16 %v9435, %v9427
    %v10308 = vpack.c.b16 %v9436, %v9428
    %v10309 = vpack.c.b16 %v9437, %v9429
    %v10310 = vpack.c.b16 %v9438, %v9430
    %v10311 = vpack.c.b16 %v9439, %v9431
    %v10312 = vpack.c.b16 %v9440, %v9432
    %v10313 = vpack.c.b16 %v9441, %v9433
    %v10314 = vpack.c.b16 %v9442, %v9434
    %v10315 = vpack.c.b16 %v9451, %v9443
    %v10316 = vpack.c.b16 %v9452, %v9444
    %v10317 = vpack.c.b16 %v9453, %v9445
    %v10318 = vpack.c.b16 %v9454, %v9446
    %v10319 = vpack.c.b16 %v9455, %v9447
    %v10320 = vpack.c.b16 %v9456, %v9448
    %v10321 = vpack.c.b16 %v9457, %v9449
    %v10322 = vpack.c.b16 %v9458, %v9450
    %v10323 = vpack.c.b16 %v9467, %v9459
    %v10324 = vpack.c.b16 %v9468, %v9460
    %v10325 = vpack.c.b16 %v9469, %v9461
    %v10326 = vpack.c.b16 %v9470, %v9462
    %v10327 = vpack.c.b16 %v9471, %v9463
    %v10328 = vpack.c.b16 %v9472, %v9464
    %v10329 = vpack.c.b16 %v9473, %v9465
    %v10330 = vpack.c.b16 %v9474, %v9466
    %v10331 = vpack.c.b16 %v9483, %v9475
    %v10332 = vpack.c.b16 %v9484, %v9476
    %v10333 = vpack.c.b16 %v9485, %v9477
    %v10334 = vpack.c.b16 %v9486, %v9478
    %v10335 = vpack.c.b16 %v9487, %v9479
    %v10336 = vpack.c.b16 %v9488, %v9480
    %v10337 = vpack.c.b16 %v9489, %v9481
    %v10338 = vpack.c.b16 %v9490, %v9482
    %v10339 = vpack.c.b16 %v9499, %v9491
    %v10340 = vpack.c.b16 %v9500, %v9492
    %v10341 = vpack.c.b16 %v9501, %v9493
    %v10342 = vpack.c.b16 %v9502, %v9494
    %v10343 = vpack.c.b16 %v9503, %v9495
    %v10344 = vpack.c.b16 %v9504, %v9496
    %v10345 = vpack.c.b16 %v9505, %v9497
    %v10346 = vpack.c.b16 %v9506, %v9498
    %v10347 = vpack.c.b16 %v9515, %v9507
    %v10348 = vpack.c.b16 %v9516, %v9508
    %v10349 = vpack.c.b16 %v9517, %v9509
    %v10350 = vpack.c.b16 %v9518, %v9510
    %v10351 = vpack.c.b16 %v9519, %v9511
    %v10352 = vpack.c.b16 %v9520, %v9512
    %v10353 = vpack.c.b16 %v9521, %v9513
    %v10354 = vpack.c.b16 %v9522, %v9514
    %v10355 = vpack.c.b16 %v9531, %v9523
    %v10356 = vpack.c.b16 %v9532, %v9524
    %v10357 = vpack.c.b16 %v9533, %v9525
    %v10358 = vpack.c.b16 %v9534, %v9526
    %v10359 = vpack.c.b16 %v9535, %v9527
    %v10360 = vpack.c.b16 %v9536, %v9528
    %v10361 = vpack.c.b16 %v9537, %v9529
    %v10362 = vpack.c.b16 %v9538, %v9530
    %v10363 = vpack.c.b16 %v9547, %v9539
    %v10364 = vpack.c.b16 %v9548, %v9540
    %v10365 = vpack.c.b16 %v9549, %v9541
    %v10366 = vpack.c.b16 %v9550, %v9542
    %v10367 = vpack.c.b16 %v9551, %v9543
    %v10368 = vpack.c.b16 %v9552, %v9544
    %v10369 = vpack.c.b16 %v9553, %v9545
    %v10370 = vpack.c.b16 %v9554, %v9546
    %v10371 = vpack.c.b16 %v9563, %v9555
    %v10372 = vpack.c.b16 %v9564, %v9556
    %v10373 = vpack.c.b16 %v9565, %v9557
    %v10374 = vpack.c.b16 %v9566, %v9558
    %v10375 = vpack.c.b16 %v9567, %v9559
    %v10376 = vpack.c.b16 %v9568, %v9560
    %v10377 = vpack.c.b16 %v9569, %v9561
    %v10378 = vpack.c.b16 %v9570, %v9562
    %v10379 = vpack.c.b16 %v9579, %v9571
    %v10380 = vpack.c.b16 %v9580, %v9572
    %v10381 = vpack.c.b16 %v9581, %v9573
    %v10382 = vpack.c.b16 %v9582, %v9574
    %v10383 = vpack.c.b16 %v9583, %v9575
    %v10384 = vpack.c.b16 %v9584, %v9576
    %v10385 = vpack.c.b16 %v9585, %v9577
    %v10386 = vpack.c.b16 %v9586, %v9578
    %v10387 = vpack.c.b16 %v9595, %v9587
    %v10388 = vpack.c.b16 %v9596, %v9588
    %v10389 = vpack.c.b16 %v9597, %v9589
    %v10390 = vpack.c.b16 %v9598, %v9590
    %v10391 = vpack.c.b16 %v9599, %v9591
    %v10392 = vpack.c.b16 %v9600, %v9592
    %v10393 = vpack.c.b16 %v9601, %v9593
    %v10394 = vpack.c.b16 %v9602, %v9594
    %v10395 = vpack.c.b16 %v9611, %v9603
    %v10396 = vpack.c.b16 %v9612, %v9604
    %v10397 = vpack.c.b16 %v9613, %v9605
    %v10398 = vpack.c.b16 %v9614, %v9606
    %v10399 = vpack.c.b16 %v9615, %v9607
    %v10400 = vpack.c.b16 %v9616, %v9608
    %v10401 = vpack.c.b16 %v9617, %v9609
    %v10402 = vpack.c.b16 %v9618, %v9610
    %v10403 = vpack.c.b16 %v9627, %v9619
    %v10404 = vpack.c.b16 %v9628, %v9620
    %v10405 = vpack.c.b16 %v9629, %v9621
    %v10406 = vpack.c.b16 %v9630, %v9622
    %v10407 = vpack.c.b16 %v9631, %v9623
    %v10408 = vpack.c.b16 %v9632, %v9624
    %v10409 = vpack.c.b16 %v9633, %v9625
    %v10410 = vpack.c.b16 %v9634, %v9626
    %v10411 = vpack.c.b16 %v9643, %v9635
    %v10412 = vpack.c.b16 %v9644, %v9636
    %v10413 = vpack.c.b16 %v9645, %v9637
    %v10414 = vpack.c.b16 %v9646, %v9638
    %v10415 = vpack.c.b16 %v9647, %v9639
    %v10416 = vpack.c.b16 %v9648, %v9640
    %v10417 = vpack.c.b16 %v9649, %v9641
    %v10418 = vpack.c.b16 %v9650, %v9642
    %v10419 = vpack.c.b16 %v9659, %v9651
    %v10420 = vpack.c.b16 %v9660, %v9652
    %v10421 = vpack.c.b16 %v9661, %v9653
    %v10422 = vpack.c.b16 %v9662, %v9654
    %v10423 = vpack.c.b16 %v9663, %v9655
    %v10424 = vpack.c.b16 %v9664, %v9656
    %v10425 = vpack.c.b16 %v9665, %v9657
    %v10426 = vpack.c.b16 %v9666, %v9658
    %v10427 = vpack.c.b16 %v9675, %v9667
    %v10428 = vpack.c.b16 %v9676, %v9668
    %v10429 = vpack.c.b16 %v9677, %v9669
    %v10430 = vpack.c.b16 %v9678, %v9670
    %v10431 = vpack.c.b16 %v9679, %v9671
    %v10432 = vpack.c.b16 %v9680, %v9672
    %v10433 = vpack.c.b16 %v9681, %v9673
    %v10434 = vpack.c.b16 %v9682, %v9674
    %v10435 = vpack.c.b16 %v9691, %v9683
    %v10436 = vpack.c.b16 %v9692, %v9684
    %v10437 = vpack.c.b16 %v9693, %v9685
    %v10438 = vpack.c.b16 %v9694, %v9686
    %v10439 = vpack.c.b16 %v9695, %v9687
    %v10440 = vpack.c.b16 %v9696, %v9688
    %v10441 = vpack.c.b16 %v9697, %v9689
    %v10442 = vpack.c.b16 %v9698, %v9690
    %v10443 = vpack.c.b16 %v9707, %v9699
    %v10444 = vpack.c.b16 %v9708, %v9700
    %v10445 = vpack.c.b16 %v9709, %v9701
    %v10446 = vpack.c.b16 %v9710, %v9702
    %v10447 = vpack.c.b16 %v9711, %v9703
    %v10448 = vpack.c.b16 %v9712, %v9704
    %v10449 = vpack.c.b16 %v9713, %v9705
    %v10450 = vpack.c.b16 %v9714, %v9706
    %v10451 = vpack.c.b16 %v9723, %v9715
    %v10452 = vpack.c.b16 %v9724, %v9716
    %v10453 = vpack.c.b16 %v9725, %v9717
    %v10454 = vpack.c.b16 %v9726, %v9718
    %v10455 = vpack.c.b16 %v9727, %v9719
    %v10456 = vpack.c.b16 %v9728, %v9720
    %v10457 = vpack.c.b16 %v9729, %v9721
    %v10458 = vpack.c.b16 %v9730, %v9722
    %v10459 = vpack.c.b16 %v9739, %v9731
    %v10460 = vpack.c.b16 %v9740, %v9732
    %v10461 = vpack.c.b16 %v9741, %v9733
    %v10462 = vpack.c.b16 %v9742, %v9734
    %v10463 = vpack.c.b16 %v9743, %v9735
    %v10464 = vpack.c.b16 %v9744, %v9736
    %v10465 = vpack.c.b16 %v9745, %v9737
    %v10466 = vpack.c.b16 %v9746, %v9738
    %v10467 = vpack.c.b16 %v9755, %v9747
    %v10468 = vpack.c.b16 %v9756, %v9748
    %v10469 = vpack.c.b16 %v9757, %v9749
    %v10470 = vpack.c.b16 %v9758, %v9750
    %v10471 = vpack.c.b16 %v9759, %v9751
    %v10472 = vpack.c.b16 %v9760, %v9752
    %v10473 = vpack.c.b16 %v9761, %v9753
    %v10474 = vpack.c.b16 %v9762, %v9754
    %v10475 = vpack.c.b16 %v9771, %v9763
    %v10476 = vpack.c.b16 %v9772, %v9764
    %v10477 = vpack.c.b16 %v9773, %v9765
    %v10478 = vpack.c.b16 %v9774, %v9766
    %v10479 = vpack.c.b16 %v9775, %v9767
    %v10480 = vpack.c.b16 %v9776, %v9768
    %v10481 = vpack.c.b16 %v9777, %v9769
    %v10482 = vpack.c.b16 %v9778, %v9770
    %v10483 = vpack.c.b16 %v9787, %v9779
    %v10484 = vpack.c.b16 %v9788, %v9780
    %v10485 = vpack.c.b16 %v9789, %v9781
    %v10486 = vpack.c.b16 %v9790, %v9782
    %v10487 = vpack.c.b16 %v9791, %v9783
    %v10488 = vpack.c.b16 %v9792, %v9784
    %v10489 = vpack.c.b16 %v9793, %v9785
    %v10490 = vpack.c.b16 %v9794, %v9786
    %v10491 = vpack.c.b16 %v9803, %v9795
    %v10492 = vpack.c.b16 %v9804, %v9796
    %v10493 = vpack.c.b16 %v9805, %v9797
    %v10494 = vpack.c.b16 %v9806, %v9798
    %v10495 = vpack.c.b16 %v9807, %v9799
    %v10496 = vpack.c.b16 %v9808, %v9800
    %v10497 = vpack.c.b16 %v9809, %v9801
    %v10498 = vpack.c.b16 %v9810, %v9802
    %v10499 = vpack.c.b16 %v9819, %v9811
    %v10500 = vpack.c.b16 %v9820, %v9812
    %v10501 = vpack.c.b16 %v9821, %v9813
    %v10502 = vpack.c.b16 %v9822, %v9814
    %v10503 = vpack.c.b16 %v9823, %v9815
    %v10504 = vpack.c.b16 %v9824, %v9816
    %v10505 = vpack.c.b16 %v9825, %v9817
    %v10506 = vpack.c.b16 %v9826, %v9818
    %v10507 = vpack.c.b16 %v9835, %v9827
    %v10508 = vpack.c.b16 %v9836, %v9828
    %v10509 = vpack.c.b16 %v9837, %v9829
    %v10510 = vpack.c.b16 %v9838, %v9830
    %v10511 = vpack.c.b16 %v9839, %v9831
    %v10512 = vpack.c.b16 %v9840, %v9832
    %v10513 = vpack.c.b16 %v9841, %v9833
    %v10514 = vpack.c.b16 %v9842, %v9834
    %v10515 = vpack.c.b16 %v9851, %v9843
    %v10516 = vpack.c.b16 %v9852, %v9844
    %v10517 = vpack.c.b16 %v9853, %v9845
    %v10518 = vpack.c.b16 %v9854, %v9846
    %v10519 = vpack.c.b16 %v9855, %v9847
    %v10520 = vpack.c.b16 %v9856, %v9848
    %v10521 = vpack.c.b16 %v9857, %v9849
    %v10522 = vpack.c.b16 %v9858, %v9850
    %v10523 = vpack.c.b16 %v9867, %v9859
    %v10524 = vpack.c.b16 %v9868, %v9860
    %v10525 = vpack.c.b16 %v9869, %v9861
    %v10526 = vpack.c.b16 %v9870, %v9862
    %v10527 = vpack.c.b16 %v9871, %v9863
    %v10528 = vpack.c.b16 %v9872, %v9864
    %v10529 = vpack.c.b16 %v9873, %v9865
    %v10530 = vpack.c.b16 %v9874, %v9866
    %v10531 = vpack.c.b16 %v9883, %v9875
    %v10532 = vpack.c.b16 %v9884, %v9876
    %v10533 = vpack.c.b16 %v9885, %v9877
    %v10534 = vpack.c.b16 %v9886, %v9878
    %v10535 = vpack.c.b16 %v9887, %v9879
    %v10536 = vpack.c.b16 %v9888, %v9880
    %v10537 = vpack.c.b16 %v9889, %v9881
    %v10538 = vpack.c.b16 %v9890, %v9882
    %v10539 = vpack.c.b16 %v9899, %v9891
    %v10540 = vpack.c.b16 %v9900, %v9892
    %v10541 = vpack.c.b16 %v9901, %v9893
    %v10542 = vpack.c.b16 %v9902, %v9894
    %v10543 = vpack.c.b16 %v9903, %v9895
    %v10544 = vpack.c.b16 %v9904, %v9896
    %v10545 = vpack.c.b16 %v9905, %v9897
    %v10546 = vpack.c.b16 %v9906, %v9898
    %v10547 = vpack.c.b16 %v9915, %v9907
    %v10548 = vpack.c.b16 %v9916, %v9908
    %v10549 = vpack.c.b16 %v9917, %v9909
    %v10550 = vpack.c.b16 %v9918, %v9910
    %v10551 = vpack.c.b16 %v9919, %v9911
    %v10552 = vpack.c.b16 %v9920, %v9912
    %v10553 = vpack.c.b16 %v9921, %v9913
    %v10554 = vpack.c.b16 %v9922, %v9914
    %v10555 = vpack.c.b16 %v9931, %v9923
    %v10556 = vpack.c.b16 %v9932, %v9924
    %v10557 = vpack.c.b16 %v9933, %v9925
    %v10558 = vpack.c.b16 %v9934, %v9926
    %v10559 = vpack.c.b16 %v9935, %v9927
    %v10560 = vpack.c.b16 %v9936, %v9928
    %v10561 = vpack.c.b16 %v9937, %v9929
    %v10562 = vpack.c.b16 %v9938, %v9930
    %v10563 = vpack.c.b16 %v9947, %v9939
    %v10564 = vpack.c.b16 %v9948, %v9940
    %v10565 = vpack.c.b16 %v9949, %v9941
    %v10566 = vpack.c.b16 %v9950, %v9942
    %v10567 = vpack.c.b16 %v9951, %v9943
    %v10568 = vpack.c.b16 %v9952, %v9944
    %v10569 = vpack.c.b16 %v9953, %v9945
    %v10570 = vpack.c.b16 %v9954, %v9946
    %v10571 = vpack.c.b16 %v9963, %v9955
    %v10572 = vpack.c.b16 %v9964, %v9956
    %v10573 = vpack.c.b16 %v9965, %v9957
    %v10574 = vpack.c.b16 %v9966, %v9958
    %v10575 = vpack.c.b16 %v9967, %v9959
    %v10576 = vpack.c.b16 %v9968, %v9960
    %v10577 = vpack.c.b16 %v9969, %v9961
    %v10578 = vpack.c.b16 %v9970, %v9962
    %v10579 = vpack.c.b16 %v9979, %v9971
    %v10580 = vpack.c.b16 %v9980, %v9972
    %v10581 = vpack.c.b16 %v9981, %v9973
    %v10582 = vpack.c.b16 %v9982, %v9974
    %v10583 = vpack.c.b16 %v9983, %v9975
    %v10584 = vpack.c.b16 %v9984, %v9976
    %v10585 = vpack.c.b16 %v9985, %v9977
    %v10586 = vpack.c.b16 %v9986, %v9978
    %v10587 = vpack.c.b16 %v9995, %v9987
    %v10588 = vpack.c.b16 %v9996, %v9988
    %v10589 = vpack.c.b16 %v9997, %v9989
    %v10590 = vpack.c.b16 %v9998, %v9990
    %v10591 = vpack.c.b16 %v9999, %v9991
    %v10592 = vpack.c.b16 %v10000, %v9992
    %v10593 = vpack.c.b16 %v10001, %v9993
    %v10594 = vpack.c.b16 %v10002, %v9994
    %v10595 = vpack.c.b16 %v10011, %v10003
    %v10596 = vpack.c.b16 %v10012, %v10004
    %v10597 = vpack.c.b16 %v10013, %v10005
    %v10598 = vpack.c.b16 %v10014, %v10006
    %v10599 = vpack.c.b16 %v10015, %v10007
    %v10600 = vpack.c.b16 %v10016, %v10008
    %v10601 = vpack.c.b16 %v10017, %v10009
    %v10602 = vpack.c.b16 %v10018, %v10010
    %v10603 = vpack.c.b16 %v10027, %v10019
    %v10604 = vpack.c.b16 %v10028, %v10020
    %v10605 = vpack.c.b16 %v10029, %v10021
    %v10606 = vpack.c.b16 %v10030, %v10022
    %v10607 = vpack.c.b16 %v10031, %v10023
    %v10608 = vpack.c.b16 %v10032, %v10024
    %v10609 = vpack.c.b16 %v10033, %v10025
    %v10610 = vpack.c.b16 %v10034, %v10026
    %v10611 = vpack.c.b16 %v10043, %v10035
    %v10612 = vpack.c.b16 %v10044, %v10036
    %v10613 = vpack.c.b16 %v10045, %v10037
    %v10614 = vpack.c.b16 %v10046, %v10038
    %v10615 = vpack.c.b16 %v10047, %v10039
    %v10616 = vpack.c.b16 %v10048, %v10040
    %v10617 = vpack.c.b16 %v10049, %v10041
    %v10618 = vpack.c.b16 %v10050, %v10042
    %v10619 = vpack.c.b16 %v10059, %v10051
    %v10620 = vpack.c.b16 %v10060, %v10052
    %v10621 = vpack.c.b16 %v10061, %v10053
    %v10622 = vpack.c.b16 %v10062, %v10054
    %v10623 = vpack.c.b16 %v10063, %v10055
    %v10624 = vpack.c.b16 %v10064, %v10056
    %v10625 = vpack.c.b16 %v10065, %v10057
    %v10626 = vpack.c.b16 %v10066, %v10058
    %v10627 = vpack.c.b16 %v10075, %v10067
    %v10628 = vpack.c.b16 %v10076, %v10068
    %v10629 = vpack.c.b16 %v10077, %v10069
    %v10630 = vpack.c.b16 %v10078, %v10070
    %v10631 = vpack.c.b16 %v10079, %v10071
    %v10632 = vpack.c.b16 %v10080, %v10072
    %v10633 = vpack.c.b16 %v10081, %v10073
    %v10634 = vpack.c.b16 %v10082, %v10074
    %v10635 = vpack.c.b16 %v10091, %v10083
    %v10636 = vpack.c.b16 %v10092, %v10084
    %v10637 = vpack.c.b16 %v10093, %v10085
    %v10638 = vpack.c.b16 %v10094, %v10086
    %v10639 = vpack.c.b16 %v10095, %v10087
    %v10640 = vpack.c.b16 %v10096, %v10088
    %v10641 = vpack.c.b16 %v10097, %v10089
    %v10642 = vpack.c.b16 %v10098, %v10090
    %v10643 = vpack.c.b16 %v10107, %v10099
    %v10644 = vpack.c.b16 %v10108, %v10100
    %v10645 = vpack.c.b16 %v10109, %v10101
    %v10646 = vpack.c.b16 %v10110, %v10102
    %v10647 = vpack.c.b16 %v10111, %v10103
    %v10648 = vpack.c.b16 %v10112, %v10104
    %v10649 = vpack.c.b16 %v10113, %v10105
    %v10650 = vpack.c.b16 %v10114, %v10106
    %v10651 = vpack.c.b16 %v10123, %v10115
    %v10652 = vpack.c.b16 %v10124, %v10116
    %v10653 = vpack.c.b16 %v10125, %v10117
    %v10654 = vpack.c.b16 %v10126, %v10118
    %v10655 = vpack.c.b16 %v10127, %v10119
    %v10656 = vpack.c.b16 %v10128, %v10120
    %v10657 = vpack.c.b16 %v10129, %v10121
    %v10658 = vpack.c.b16 %v10130, %v10122
    %v10659 = vpack.c.b16 %v10139, %v10131
    %v10660 = vpack.c.b16 %v10140, %v10132
    %v10661 = vpack.c.b16 %v10141, %v10133
    %v10662 = vpack.c.b16 %v10142, %v10134
    %v10663 = vpack.c.b16 %v10143, %v10135
    %v10664 = vpack.c.b16 %v10144, %v10136
    %v10665 = vpack.c.b16 %v10145, %v10137
    %v10666 = vpack.c.b16 %v10146, %v10138
    %v10667 = vpack.c.b16 %v10155, %v10147
    %v10668 = vpack.c.b16 %v10156, %v10148
    %v10669 = vpack.c.b16 %v10157, %v10149
    %v10670 = vpack.c.b16 %v10158, %v10150
    %v10671 = vpack.c.b16 %v10159, %v10151
    %v10672 = vpack.c.b16 %v10160, %v10152
    %v10673 = vpack.c.b16 %v10161, %v10153
    %v10674 = vpack.c.b16 %v10162, %v10154
    %11187 = vmatprep.subr.bf16.mxu0 %v10164
    %11188 = vmatpush1.bf16.msra.mxu0 %v10163
    %11189 = vmatprep.subr.bf16.mxu0 %v10172
    %11190 = vmatpush1.bf16.msra.mxu0 %v10171
    %11191 = vmatprep.subr.bf16.mxu0 %v10180
    %11192 = vmatpush1.bf16.msra.mxu0 %v10179
    %11193 = vmatprep.subr.bf16.mxu0 %v10188
    %11194 = vmatpush1.bf16.msra.mxu0 %v10187
    %11195 = vmatprep.subr.bf16.mxu0 %v10196
    %11196 = vmatpush1.bf16.msra.mxu0 %v10195
    %11197 = vmatprep.subr.bf16.mxu0 %v10204
    %11198 = vmatpush1.bf16.msra.mxu0 %v10203
    %11199 = vmatprep.subr.bf16.mxu0 %v10212
    %11200 = vmatpush1.bf16.msra.mxu0 %v10211
    %11201 = vmatprep.subr.bf16.mxu0 %v10220
    %11202 = vmatpush1.bf16.msra.mxu0 %v10219
    %11203 = vmatprep.subr.bf16.mxu0 %v10228
    %11204 = vmatpush1.bf16.msra.mxu0 %v10227
    %11205 = vmatprep.subr.bf16.mxu0 %v10236
    %11206 = vmatpush1.bf16.msra.mxu0 %v10235
    %11207 = vmatprep.subr.bf16.mxu0 %v10244
    %11208 = vmatpush1.bf16.msra.mxu0 %v10243
    %11209 = vmatprep.subr.bf16.mxu0 %v10252
    %11210 = vmatpush1.bf16.msra.mxu0 %v10251
    %11211 = vmatprep.subr.bf16.mxu0 %v10260
    %11212 = vmatpush1.bf16.msra.mxu0 %v10259
    %11213 = vmatprep.subr.bf16.mxu0 %v10268
    %11214 = vmatpush1.bf16.msra.mxu0 %v10267
    %11215 = vmatprep.subr.bf16.mxu0 %v10276
    %11216 = vmatpush1.bf16.msra.mxu0 %v10275
    %11217 = vmatprep.subr.bf16.mxu0 %v10284
    %11218 = vmatpush1.bf16.msra.mxu0 %v10283
    %11219 = vmatprep.mubr.bf16.mxu0 %v8066
    %11220 = vmatmul.mubr.bf16.gmra.mrb[0].mxu0 %v8065
    %v11221 = vpop.f32.mrb[0].mxu0
    %v11222 = vadd.f32 %v8590, %v11221
    %v11223 = vpop.f32.mrb[0].mxu0
    %v11224 = vadd.f32 %v8594, %v11223
    %v11225 = vpop.f32.mrb[0].mxu0
    %v11226 = vpop.f32.mrb[0].mxu0
    %11227 = vdwg.mxu0
    %11228 = vmatprep.subr.bf16.mxu0 %v10292
    %11229 = vmatpush1.bf16.msra.mxu0 %v10291
    %11230 = vmatprep.subr.bf16.mxu0 %v10300
    %11231 = vmatpush1.bf16.msra.mxu0 %v10299
    %11232 = vmatprep.subr.bf16.mxu0 %v10308
    %11233 = vmatpush1.bf16.msra.mxu0 %v10307
    %11234 = vmatprep.subr.bf16.mxu0 %v10316
    %11235 = vmatpush1.bf16.msra.mxu0 %v10315
    %11236 = vmatprep.subr.bf16.mxu0 %v10324
    %11237 = vmatpush1.bf16.msra.mxu0 %v10323
    %11238 = vmatprep.subr.bf16.mxu0 %v10332
    %11239 = vmatpush1.bf16.msra.mxu0 %v10331
    %11240 = vmatprep.subr.bf16.mxu0 %v10340
    %11241 = vmatpush1.bf16.msra.mxu0 %v10339
    %11242 = vmatprep.subr.bf16.mxu0 %v10348
    %11243 = vmatpush1.bf16.msra.mxu0 %v10347
    %11244 = vmatprep.subr.bf16.mxu0 %v10356
    %11245 = vmatpush1.bf16.msra.mxu0 %v10355
    %11246 = vmatprep.subr.bf16.mxu0 %v10364
    %11247 = vmatpush1.bf16.msra.mxu0 %v10363
    %11248 = vmatprep.subr.bf16.mxu0 %v10372
    %11249 = vmatpush1.bf16.msra.mxu0 %v10371
    %11250 = vmatprep.subr.bf16.mxu0 %v10380
    %11251 = vmatpush1.bf16.msra.mxu0 %v10379
    %11252 = vmatprep.subr.bf16.mxu0 %v10388
    %11253 = vmatpush1.bf16.msra.mxu0 %v10387
    %11254 = vmatprep.subr.bf16.mxu0 %v10396
    %11255 = vmatpush1.bf16.msra.mxu0 %v10395
    %11256 = vmatprep.subr.bf16.mxu0 %v10404
    %11257 = vmatpush1.bf16.msra.mxu0 %v10403
    %11258 = vmatprep.subr.bf16.mxu0 %v10412
    %11259 = vmatpush1.bf16.msra.mxu0 %v10411
    %11260 = vmatprep.mubr.bf16.mxu0 %v8068
    %11261 = vmatmul.mubr.bf16.gmra.mrb[0].mxu0 %v8067
    %v11262 = vpop.f32.mrb[0].mxu0
    %v11263 = vadd.f32 %v11222, %v11262
    %v11264 = vpop.f32.mrb[0].mxu0
    %v11265 = vadd.f32 %v11224, %v11264
    %v11266 = vpop.f32.mrb[0].mxu0
    %v11267 = vpop.f32.mrb[0].mxu0
    %11268 = vdwg.mxu0
    %11269 = vmatprep.subr.bf16.mxu0 %v10420
    %11270 = vmatpush1.bf16.msra.mxu0 %v10419
    %11271 = vmatprep.subr.bf16.mxu0 %v10428
    %11272 = vmatpush1.bf16.msra.mxu0 %v10427
    %11273 = vmatprep.subr.bf16.mxu0 %v10436
    %11274 = vmatpush1.bf16.msra.mxu0 %v10435
    %11275 = vmatprep.subr.bf16.mxu0 %v10444
    %11276 = vmatpush1.bf16.msra.mxu0 %v10443
    %11277 = vmatprep.subr.bf16.mxu0 %v10452
    %11278 = vmatpush1.bf16.msra.mxu0 %v10451
    %11279 = vmatprep.subr.bf16.mxu0 %v10460
    %11280 = vmatpush1.bf16.msra.mxu0 %v10459
    %11281 = vmatprep.subr.bf16.mxu0 %v10468
    %11282 = vmatpush1.bf16.msra.mxu0 %v10467
    %11283 = vmatprep.subr.bf16.mxu0 %v10476
    %11284 = vmatpush1.bf16.msra.mxu0 %v10475
    %11285 = vmatprep.subr.bf16.mxu0 %v10484
    %11286 = vmatpush1.bf16.msra.mxu0 %v10483
    %11287 = vmatprep.subr.bf16.mxu0 %v10492
    %11288 = vmatpush1.bf16.msra.mxu0 %v10491
    %11289 = vmatprep.subr.bf16.mxu0 %v10500
    %11290 = vmatpush1.bf16.msra.mxu0 %v10499
    %11291 = vmatprep.subr.bf16.mxu0 %v10508
    %11292 = vmatpush1.bf16.msra.mxu0 %v10507
    %11293 = vmatprep.subr.bf16.mxu0 %v10516
    %11294 = vmatpush1.bf16.msra.mxu0 %v10515
    %11295 = vmatprep.subr.bf16.mxu0 %v10524
    %11296 = vmatpush1.bf16.msra.mxu0 %v10523
    %11297 = vmatprep.subr.bf16.mxu0 %v10532
    %11298 = vmatpush1.bf16.msra.mxu0 %v10531
    %11299 = vmatprep.subr.bf16.mxu0 %v10540
    %11300 = vmatpush1.bf16.msra.mxu0 %v10539
    %11301 = vmatprep.mubr.bf16.mxu0 %v8070
    %11302 = vmatmul.mubr.bf16.gmra.mrb[0].mxu0 %v8069
    %v11303 = vpop.f32.mrb[0].mxu0
    %v11304 = vadd.f32 %v11263, %v11303
    %v11305 = vpop.f32.mrb[0].mxu0
    %v11306 = vadd.f32 %v11265, %v11305
    %v11307 = vpop.f32.mrb[0].mxu0
    %v11308 = vpop.f32.mrb[0].mxu0
    %11309 = vdwg.mxu0
    %11310 = vmatprep.subr.bf16.mxu0 %v10548
    %11311 = vmatpush1.bf16.msra.mxu0 %v10547
    %11312 = vmatprep.subr.bf16.mxu0 %v10556
    %11313 = vmatpush1.bf16.msra.mxu0 %v10555
    %11314 = vmatprep.subr.bf16.mxu0 %v10564
    %11315 = vmatpush1.bf16.msra.mxu0 %v10563
    %11316 = vmatprep.subr.bf16.mxu0 %v10572
    %11317 = vmatpush1.bf16.msra.mxu0 %v10571
    %11318 = vmatprep.subr.bf16.mxu0 %v10580
    %11319 = vmatpush1.bf16.msra.mxu0 %v10579
    %11320 = vmatprep.subr.bf16.mxu0 %v10588
    %11321 = vmatpush1.bf16.msra.mxu0 %v10587
    %11322 = vmatprep.subr.bf16.mxu0 %v10596
    %11323 = vmatpush1.bf16.msra.mxu0 %v10595
    %11324 = vmatprep.subr.bf16.mxu0 %v10604
    %11325 = vmatpush1.bf16.msra.mxu0 %v10603
    %11326 = vmatprep.subr.bf16.mxu0 %v10612
    %11327 = vmatpush1.bf16.msra.mxu0 %v10611
    %11328 = vmatprep.subr.bf16.mxu0 %v10620
    %11329 = vmatpush1.bf16.msra.mxu0 %v10619
    %11330 = vmatprep.subr.bf16.mxu0 %v10628
    %11331 = vmatpush1.bf16.msra.mxu0 %v10627
    %11332 = vmatprep.subr.bf16.mxu0 %v10636
    %11333 = vmatpush1.bf16.msra.mxu0 %v10635
    %11334 = vmatprep.subr.bf16.mxu0 %v10644
    %11335 = vmatpush1.bf16.msra.mxu0 %v10643
    %11336 = vmatprep.subr.bf16.mxu0 %v10652
    %11337 = vmatpush1.bf16.msra.mxu0 %v10651
    %11338 = vmatprep.subr.bf16.mxu0 %v10660
    %11339 = vmatpush1.bf16.msra.mxu0 %v10659
    %11340 = vmatprep.subr.bf16.mxu0 %v10668
    %11341 = vmatpush1.bf16.msra.mxu0 %v10667
    %11342 = vmatprep.mubr.bf16.mxu0 %v8072
    %11343 = vmatmul.mubr.bf16.gmra.mrb[0].mxu0 %v8071
    %v11344 = vpop.f32.mrb[0].mxu0
    %v11345 = vadd.f32 %v11304, %v11344
    %v11346 = vpop.f32.mrb[0].mxu0
    %v11347 = vadd.f32 %v11306, %v11346
    %v11348 = vpop.f32.mrb[0].mxu0
    %v11349 = vpop.f32.mrb[0].mxu0
    %11350 = vdwg.mxu0
    %11351 = vmatprep.subr.bf16.mxu0 %v10166
    %11352 = vmatpush1.bf16.msra.mxu0 %v10165
    %11353 = vmatprep.subr.bf16.mxu0 %v10174
    %11354 = vmatpush1.bf16.msra.mxu0 %v10173
    %11355 = vmatprep.subr.bf16.mxu0 %v10182
    %11356 = vmatpush1.bf16.msra.mxu0 %v10181
    %11357 = vmatprep.subr.bf16.mxu0 %v10190
    %11358 = vmatpush1.bf16.msra.mxu0 %v10189
    %11359 = vmatprep.subr.bf16.mxu0 %v10198
    %11360 = vmatpush1.bf16.msra.mxu0 %v10197
    %11361 = vmatprep.subr.bf16.mxu0 %v10206
    %11362 = vmatpush1.bf16.msra.mxu0 %v10205
    %11363 = vmatprep.subr.bf16.mxu0 %v10214
    %11364 = vmatpush1.bf16.msra.mxu0 %v10213
    %11365 = vmatprep.subr.bf16.mxu0 %v10222
    %11366 = vmatpush1.bf16.msra.mxu0 %v10221
    %11367 = vmatprep.subr.bf16.mxu0 %v10230
    %11368 = vmatpush1.bf16.msra.mxu0 %v10229
    %11369 = vmatprep.subr.bf16.mxu0 %v10238
    %11370 = vmatpush1.bf16.msra.mxu0 %v10237
    %11371 = vmatprep.subr.bf16.mxu0 %v10246
    %11372 = vmatpush1.bf16.msra.mxu0 %v10245
    %11373 = vmatprep.subr.bf16.mxu0 %v10254
    %11374 = vmatpush1.bf16.msra.mxu0 %v10253
    %11375 = vmatprep.subr.bf16.mxu0 %v10262
    %11376 = vmatpush1.bf16.msra.mxu0 %v10261
    %11377 = vmatprep.subr.bf16.mxu0 %v10270
    %11378 = vmatpush1.bf16.msra.mxu0 %v10269
    %11379 = vmatprep.subr.bf16.mxu0 %v10278
    %11380 = vmatpush1.bf16.msra.mxu0 %v10277
    %11381 = vmatprep.subr.bf16.mxu0 %v10286
    %11382 = vmatpush1.bf16.msra.mxu0 %v10285
    %11383 = vmatprep.mubr.bf16.mxu0 %v8066
    %11384 = vmatmul.mubr.bf16.gmra.mrb[0].mxu0 %v8065
    %v11385 = vpop.f32.mrb[0].mxu0
    %v11386 = vadd.f32 %v8598, %v11385
    %v11387 = vpop.f32.mrb[0].mxu0
    %v11388 = vadd.f32 %v8602, %v11387
    %v11389 = vpop.f32.mrb[0].mxu0
    %v11390 = vpop.f32.mrb[0].mxu0
    %11391 = vdwg.mxu0
    %11392 = vmatprep.subr.bf16.mxu0 %v10294
    %11393 = vmatpush1.bf16.msra.mxu0 %v10293
    %11394 = vmatprep.subr.bf16.mxu0 %v10302
    %11395 = vmatpush1.bf16.msra.mxu0 %v10301
    %11396 = vmatprep.subr.bf16.mxu0 %v10310
    %11397 = vmatpush1.bf16.msra.mxu0 %v10309
    %11398 = vmatprep.subr.bf16.mxu0 %v10318
    %11399 = vmatpush1.bf16.msra.mxu0 %v10317
    %11400 = vmatprep.subr.bf16.mxu0 %v10326
    %11401 = vmatpush1.bf16.msra.mxu0 %v10325
    %11402 = vmatprep.subr.bf16.mxu0 %v10334
    %11403 = vmatpush1.bf16.msra.mxu0 %v10333
    %11404 = vmatprep.subr.bf16.mxu0 %v10342
    %11405 = vmatpush1.bf16.msra.mxu0 %v10341
    %11406 = vmatprep.subr.bf16.mxu0 %v10350
    %11407 = vmatpush1.bf16.msra.mxu0 %v10349
    %11408 = vmatprep.subr.bf16.mxu0 %v10358
    %11409 = vmatpush1.bf16.msra.mxu0 %v10357
    %11410 = vmatprep.subr.bf16.mxu0 %v10366
    %11411 = vmatpush1.bf16.msra.mxu0 %v10365
    %11412 = vmatprep.subr.bf16.mxu0 %v10374
    %11413 = vmatpush1.bf16.msra.mxu0 %v10373
    %11414 = vmatprep.subr.bf16.mxu0 %v10382
    %11415 = vmatpush1.bf16.msra.mxu0 %v10381
    %11416 = vmatprep.subr.bf16.mxu0 %v10390
    %11417 = vmatpush1.bf16.msra.mxu0 %v10389
    %11418 = vmatprep.subr.bf16.mxu0 %v10398
    %11419 = vmatpush1.bf16.msra.mxu0 %v10397
    %11420 = vmatprep.subr.bf16.mxu0 %v10406
    %11421 = vmatpush1.bf16.msra.mxu0 %v10405
    %11422 = vmatprep.subr.bf16.mxu0 %v10414
    %11423 = vmatpush1.bf16.msra.mxu0 %v10413
    %11424 = vmatprep.mubr.bf16.mxu0 %v8068
    %11425 = vmatmul.mubr.bf16.gmra.mrb[0].mxu0 %v8067
    %v11426 = vpop.f32.mrb[0].mxu0
    %v11427 = vadd.f32 %v11386, %v11426
    %v11428 = vpop.f32.mrb[0].mxu0
    %v11429 = vadd.f32 %v11388, %v11428
    %v11430 = vpop.f32.mrb[0].mxu0
    %v11431 = vpop.f32.mrb[0].mxu0
    %11432 = vdwg.mxu0
    %11433 = vmatprep.subr.bf16.mxu0 %v10422
    %11434 = vmatpush1.bf16.msra.mxu0 %v10421
    %11435 = vmatprep.subr.bf16.mxu0 %v10430
    %11436 = vmatpush1.bf16.msra.mxu0 %v10429
    %11437 = vmatprep.subr.bf16.mxu0 %v10438
    %11438 = vmatpush1.bf16.msra.mxu0 %v10437
    %11439 = vmatprep.subr.bf16.mxu0 %v10446
    %11440 = vmatpush1.bf16.msra.mxu0 %v10445
    %11441 = vmatprep.subr.bf16.mxu0 %v10454
    %11442 = vmatpush1.bf16.msra.mxu0 %v10453
    %11443 = vmatprep.subr.bf16.mxu0 %v10462
    %11444 = vmatpush1.bf16.msra.mxu0 %v10461
    %11445 = vmatprep.subr.bf16.mxu0 %v10470
    %11446 = vmatpush1.bf16.msra.mxu0 %v10469
    %11447 = vmatprep.subr.bf16.mxu0 %v10478
    %11448 = vmatpush1.bf16.msra.mxu0 %v10477
    %11449 = vmatprep.subr.bf16.mxu0 %v10486
    %11450 = vmatpush1.bf16.msra.mxu0 %v10485
    %11451 = vmatprep.subr.bf16.mxu0 %v10494
    %11452 = vmatpush1.bf16.msra.mxu0 %v10493
    %11453 = vmatprep.subr.bf16.mxu0 %v10502
    %11454 = vmatpush1.bf16.msra.mxu0 %v10501
    %11455 = vmatprep.subr.bf16.mxu0 %v10510
    %11456 = vmatpush1.bf16.msra.mxu0 %v10509
    %11457 = vmatprep.subr.bf16.mxu0 %v10518
    %11458 = vmatpush1.bf16.msra.mxu0 %v10517
    %11459 = vmatprep.subr.bf16.mxu0 %v10526
    %11460 = vmatpush1.bf16.msra.mxu0 %v10525
    %11461 = vmatprep.subr.bf16.mxu0 %v10534
    %11462 = vmatpush1.bf16.msra.mxu0 %v10533
    %11463 = vmatprep.subr.bf16.mxu0 %v10542
    %11464 = vmatpush1.bf16.msra.mxu0 %v10541
    %11465 = vmatprep.mubr.bf16.mxu0 %v8070
    %11466 = vmatmul.mubr.bf16.gmra.mrb[0].mxu0 %v8069
    %v11467 = vpop.f32.mrb[0].mxu0
    %v11468 = vadd.f32 %v11427, %v11467
    %v11469 = vpop.f32.mrb[0].mxu0
    %v11470 = vadd.f32 %v11429, %v11469
    %v11471 = vpop.f32.mrb[0].mxu0
    %v11472 = vpop.f32.mrb[0].mxu0
    %11473 = vdwg.mxu0
    %11474 = vmatprep.subr.bf16.mxu0 %v10550
    %11475 = vmatpush1.bf16.msra.mxu0 %v10549
    %11476 = vmatprep.subr.bf16.mxu0 %v10558
    %11477 = vmatpush1.bf16.msra.mxu0 %v10557
    %11478 = vmatprep.subr.bf16.mxu0 %v10566
    %11479 = vmatpush1.bf16.msra.mxu0 %v10565
    %11480 = vmatprep.subr.bf16.mxu0 %v10574
    %11481 = vmatpush1.bf16.msra.mxu0 %v10573
    %11482 = vmatprep.subr.bf16.mxu0 %v10582
    %11483 = vmatpush1.bf16.msra.mxu0 %v10581
    %11484 = vmatprep.subr.bf16.mxu0 %v10590
    %11485 = vmatpush1.bf16.msra.mxu0 %v10589
    %11486 = vmatprep.subr.bf16.mxu0 %v10598
    %11487 = vmatpush1.bf16.msra.mxu0 %v10597
    %11488 = vmatprep.subr.bf16.mxu0 %v10606
    %11489 = vmatpush1.bf16.msra.mxu0 %v10605
    %11490 = vmatprep.subr.bf16.mxu0 %v10614
    %11491 = vmatpush1.bf16.msra.mxu0 %v10613
    %11492 = vmatprep.subr.bf16.mxu0 %v10622
    %11493 = vmatpush1.bf16.msra.mxu0 %v10621
    %11494 = vmatprep.subr.bf16.mxu0 %v10630
    %11495 = vmatpush1.bf16.msra.mxu0 %v10629
    %11496 = vmatprep.subr.bf16.mxu0 %v10638
    %11497 = vmatpush1.bf16.msra.mxu0 %v10637
    %11498 = vmatprep.subr.bf16.mxu0 %v10646
    %11499 = vmatpush1.bf16.msra.mxu0 %v10645
    %11500 = vmatprep.subr.bf16.mxu0 %v10654
    %11501 = vmatpush1.bf16.msra.mxu0 %v10653
    %11502 = vmatprep.subr.bf16.mxu0 %v10662
    %11503 = vmatpush1.bf16.msra.mxu0 %v10661
    %11504 = vmatprep.subr.bf16.mxu0 %v10670
    %11505 = vmatpush1.bf16.msra.mxu0 %v10669
    %11506 = vmatprep.mubr.bf16.mxu0 %v8072
    %11507 = vmatmul.mubr.bf16.gmra.mrb[0].mxu0 %v8071
    %v11508 = vpop.f32.mrb[0].mxu0
    %v11509 = vadd.f32 %v11468, %v11508
    %v11510 = vpop.f32.mrb[0].mxu0
    %v11511 = vadd.f32 %v11470, %v11510
    %v11512 = vpop.f32.mrb[0].mxu0
    %v11513 = vpop.f32.mrb[0].mxu0
    %11514 = vdwg.mxu0
    %11515 = vmatprep.subr.bf16.mxu0 %v10168
    %11516 = vmatpush1.bf16.msra.mxu0 %v10167
    %11517 = vmatprep.subr.bf16.mxu0 %v10176
    %11518 = vmatpush1.bf16.msra.mxu0 %v10175
    %11519 = vmatprep.subr.bf16.mxu0 %v10184
    %11520 = vmatpush1.bf16.msra.mxu0 %v10183
    %11521 = vmatprep.subr.bf16.mxu0 %v10192
    %11522 = vmatpush1.bf16.msra.mxu0 %v10191
    %11523 = vmatprep.subr.bf16.mxu0 %v10200
    %11524 = vmatpush1.bf16.msra.mxu0 %v10199
    %11525 = vmatprep.subr.bf16.mxu0 %v10208
    %11526 = vmatpush1.bf16.msra.mxu0 %v10207
    %11527 = vmatprep.subr.bf16.mxu0 %v10216
    %11528 = vmatpush1.bf16.msra.mxu0 %v10215
    %11529 = vmatprep.subr.bf16.mxu0 %v10224
    %11530 = vmatpush1.bf16.msra.mxu0 %v10223
    %11531 = vmatprep.subr.bf16.mxu0 %v10232
    %11532 = vmatpush1.bf16.msra.mxu0 %v10231
    %11533 = vmatprep.subr.bf16.mxu0 %v10240
    %11534 = vmatpush1.bf16.msra.mxu0 %v10239
    %11535 = vmatprep.subr.bf16.mxu0 %v10248
    %11536 = vmatpush1.bf16.msra.mxu0 %v10247
    %11537 = vmatprep.subr.bf16.mxu0 %v10256
    %11538 = vmatpush1.bf16.msra.mxu0 %v10255
    %11539 = vmatprep.subr.bf16.mxu0 %v10264
    %11540 = vmatpush1.bf16.msra.mxu0 %v10263
    %11541 = vmatprep.subr.bf16.mxu0 %v10272
    %11542 = vmatpush1.bf16.msra.mxu0 %v10271
    %11543 = vmatprep.subr.bf16.mxu0 %v10280
    %11544 = vmatpush1.bf16.msra.mxu0 %v10279
    %11545 = vmatprep.subr.bf16.mxu0 %v10288
    %11546 = vmatpush1.bf16.msra.mxu0 %v10287
    %11547 = vmatprep.mubr.bf16.mxu0 %v8066
    %11548 = vmatmul.mubr.bf16.gmra.mrb[0].mxu0 %v8065
    %v11549 = vpop.f32.mrb[0].mxu0
    %v11550 = vadd.f32 %v8606, %v11549
    %v11551 = vpop.f32.mrb[0].mxu0
    %v11552 = vadd.f32 %v8610, %v11551
    %v11553 = vpop.f32.mrb[0].mxu0
    %v11554 = vpop.f32.mrb[0].mxu0
    %11555 = vdwg.mxu0
    %11556 = vmatprep.subr.bf16.mxu0 %v10296
    %11557 = vmatpush1.bf16.msra.mxu0 %v10295
    %11558 = vmatprep.subr.bf16.mxu0 %v10304
    %11559 = vmatpush1.bf16.msra.mxu0 %v10303
    %11560 = vmatprep.subr.bf16.mxu0 %v10312
    %11561 = vmatpush1.bf16.msra.mxu0 %v10311
    %11562 = vmatprep.subr.bf16.mxu0 %v10320
    %11563 = vmatpush1.bf16.msra.mxu0 %v10319
    %11564 = vmatprep.subr.bf16.mxu0 %v10328
    %11565 = vmatpush1.bf16.msra.mxu0 %v10327
    %11566 = vmatprep.subr.bf16.mxu0 %v10336
    %11567 = vmatpush1.bf16.msra.mxu0 %v10335
    %11568 = vmatprep.subr.bf16.mxu0 %v10344
    %11569 = vmatpush1.bf16.msra.mxu0 %v10343
    %11570 = vmatprep.subr.bf16.mxu0 %v10352
    %11571 = vmatpush1.bf16.msra.mxu0 %v10351
    %11572 = vmatprep.subr.bf16.mxu0 %v10360
    %11573 = vmatpush1.bf16.msra.mxu0 %v10359
    %11574 = vmatprep.subr.bf16.mxu0 %v10368
    %11575 = vmatpush1.bf16.msra.mxu0 %v10367
    %11576 = vmatprep.subr.bf16.mxu0 %v10376
    %11577 = vmatpush1.bf16.msra.mxu0 %v10375
    %11578 = vmatprep.subr.bf16.mxu0 %v10384
    %11579 = vmatpush1.bf16.msra.mxu0 %v10383
    %11580 = vmatprep.subr.bf16.mxu0 %v10392
    %11581 = vmatpush1.bf16.msra.mxu0 %v10391
    %11582 = vmatprep.subr.bf16.mxu0 %v10400
    %11583 = vmatpush1.bf16.msra.mxu0 %v10399
    %11584 = vmatprep.subr.bf16.mxu0 %v10408
    %11585 = vmatpush1.bf16.msra.mxu0 %v10407
    %11586 = vmatprep.subr.bf16.mxu0 %v10416
    %11587 = vmatpush1.bf16.msra.mxu0 %v10415
    %11588 = vmatprep.mubr.bf16.mxu0 %v8068
    %11589 = vmatmul.mubr.bf16.gmra.mrb[0].mxu0 %v8067
    %v11590 = vpop.f32.mrb[0].mxu0
    %v11591 = vadd.f32 %v11550, %v11590
    %v11592 = vpop.f32.mrb[0].mxu0
    %v11593 = vadd.f32 %v11552, %v11592
    %v11594 = vpop.f32.mrb[0].mxu0
    %v11595 = vpop.f32.mrb[0].mxu0
    %11596 = vdwg.mxu0
    %11597 = vmatprep.subr.bf16.mxu0 %v10424
    %11598 = vmatpush1.bf16.msra.mxu0 %v10423
    %11599 = vmatprep.subr.bf16.mxu0 %v10432
    %11600 = vmatpush1.bf16.msra.mxu0 %v10431
    %11601 = vmatprep.subr.bf16.mxu0 %v10440
    %11602 = vmatpush1.bf16.msra.mxu0 %v10439
    %11603 = vmatprep.subr.bf16.mxu0 %v10448
    %11604 = vmatpush1.bf16.msra.mxu0 %v10447
    %11605 = vmatprep.subr.bf16.mxu0 %v10456
    %11606 = vmatpush1.bf16.msra.mxu0 %v10455
    %11607 = vmatprep.subr.bf16.mxu0 %v10464
    %11608 = vmatpush1.bf16.msra.mxu0 %v10463
    %11609 = vmatprep.subr.bf16.mxu0 %v10472
    %11610 = vmatpush1.bf16.msra.mxu0 %v10471
    %11611 = vmatprep.subr.bf16.mxu0 %v10480
    %11612 = vmatpush1.bf16.msra.mxu0 %v10479
    %11613 = vmatprep.subr.bf16.mxu0 %v10488
    %11614 = vmatpush1.bf16.msra.mxu0 %v10487
    %11615 = vmatprep.subr.bf16.mxu0 %v10496
    %11616 = vmatpush1.bf16.msra.mxu0 %v10495
    %11617 = vmatprep.subr.bf16.mxu0 %v10504
    %11618 = vmatpush1.bf16.msra.mxu0 %v10503
    %11619 = vmatprep.subr.bf16.mxu0 %v10512
    %11620 = vmatpush1.bf16.msra.mxu0 %v10511
    %11621 = vmatprep.subr.bf16.mxu0 %v10520
    %11622 = vmatpush1.bf16.msra.mxu0 %v10519
    %11623 = vmatprep.subr.bf16.mxu0 %v10528
    %11624 = vmatpush1.bf16.msra.mxu0 %v10527
    %11625 = vmatprep.subr.bf16.mxu0 %v10536
    %11626 = vmatpush1.bf16.msra.mxu0 %v10535
    %11627 = vmatprep.subr.bf16.mxu0 %v10544
    %11628 = vmatpush1.bf16.msra.mxu0 %v10543
    %11629 = vmatprep.mubr.bf16.mxu0 %v8070
    %11630 = vmatmul.mubr.bf16.gmra.mrb[0].mxu0 %v8069
    %v11631 = vpop.f32.mrb[0].mxu0
    %v11632 = vadd.f32 %v11591, %v11631
    %v11633 = vpop.f32.mrb[0].mxu0
    %v11634 = vadd.f32 %v11593, %v11633
    %v11635 = vpop.f32.mrb[0].mxu0
    %v11636 = vpop.f32.mrb[0].mxu0
    %11637 = vdwg.mxu0
    %11638 = vmatprep.subr.bf16.mxu0 %v10552
    %11639 = vmatpush1.bf16.msra.mxu0 %v10551
    %11640 = vmatprep.subr.bf16.mxu0 %v10560
    %11641 = vmatpush1.bf16.msra.mxu0 %v10559
    %11642 = vmatprep.subr.bf16.mxu0 %v10568
    %11643 = vmatpush1.bf16.msra.mxu0 %v10567
    %11644 = vmatprep.subr.bf16.mxu0 %v10576
    %11645 = vmatpush1.bf16.msra.mxu0 %v10575
    %11646 = vmatprep.subr.bf16.mxu0 %v10584
    %11647 = vmatpush1.bf16.msra.mxu0 %v10583
    %11648 = vmatprep.subr.bf16.mxu0 %v10592
    %11649 = vmatpush1.bf16.msra.mxu0 %v10591
    %11650 = vmatprep.subr.bf16.mxu0 %v10600
    %11651 = vmatpush1.bf16.msra.mxu0 %v10599
    %11652 = vmatprep.subr.bf16.mxu0 %v10608
    %11653 = vmatpush1.bf16.msra.mxu0 %v10607
    %11654 = vmatprep.subr.bf16.mxu0 %v10616
    %11655 = vmatpush1.bf16.msra.mxu0 %v10615
    %11656 = vmatprep.subr.bf16.mxu0 %v10624
    %11657 = vmatpush1.bf16.msra.mxu0 %v10623
    %11658 = vmatprep.subr.bf16.mxu0 %v10632
    %11659 = vmatpush1.bf16.msra.mxu0 %v10631
    %11660 = vmatprep.subr.bf16.mxu0 %v10640
    %11661 = vmatpush1.bf16.msra.mxu0 %v10639
    %11662 = vmatprep.subr.bf16.mxu0 %v10648
    %11663 = vmatpush1.bf16.msra.mxu0 %v10647
    %11664 = vmatprep.subr.bf16.mxu0 %v10656
    %11665 = vmatpush1.bf16.msra.mxu0 %v10655
    %11666 = vmatprep.subr.bf16.mxu0 %v10664
    %11667 = vmatpush1.bf16.msra.mxu0 %v10663
    %11668 = vmatprep.subr.bf16.mxu0 %v10672
    %11669 = vmatpush1.bf16.msra.mxu0 %v10671
    %11670 = vmatprep.mubr.bf16.mxu0 %v8072
    %11671 = vmatmul.mubr.bf16.gmra.mrb[0].mxu0 %v8071
    %v11672 = vpop.f32.mrb[0].mxu0
    %v11673 = vadd.f32 %v11632, %v11672
    %v11674 = vpop.f32.mrb[0].mxu0
    %v11675 = vadd.f32 %v11634, %v11674
    %v11676 = vpop.f32.mrb[0].mxu0
    %v11677 = vpop.f32.mrb[0].mxu0
    %11678 = vdwg.mxu0
    %11679 = vmatprep.subr.bf16.mxu0 %v10170
    %11680 = vmatpush1.bf16.msra.mxu0 %v10169
    %11681 = vmatprep.subr.bf16.mxu0 %v10178
    %11682 = vmatpush1.bf16.msra.mxu0 %v10177
    %11683 = vmatprep.subr.bf16.mxu0 %v10186
    %11684 = vmatpush1.bf16.msra.mxu0 %v10185
    %11685 = vmatprep.subr.bf16.mxu0 %v10194
    %11686 = vmatpush1.bf16.msra.mxu0 %v10193
    %11687 = vmatprep.subr.bf16.mxu0 %v10202
    %11688 = vmatpush1.bf16.msra.mxu0 %v10201
    %11689 = vmatprep.subr.bf16.mxu0 %v10210
    %11690 = vmatpush1.bf16.msra.mxu0 %v10209
    %11691 = vmatprep.subr.bf16.mxu0 %v10218
    %11692 = vmatpush1.bf16.msra.mxu0 %v10217
    %11693 = vmatprep.subr.bf16.mxu0 %v10226
    %11694 = vmatpush1.bf16.msra.mxu0 %v10225
    %11695 = vmatprep.subr.bf16.mxu0 %v10234
    %11696 = vmatpush1.bf16.msra.mxu0 %v10233
    %11697 = vmatprep.subr.bf16.mxu0 %v10242
    %11698 = vmatpush1.bf16.msra.mxu0 %v10241
    %11699 = vmatprep.subr.bf16.mxu0 %v10250
    %11700 = vmatpush1.bf16.msra.mxu0 %v10249
    %11701 = vmatprep.subr.bf16.mxu0 %v10258
    %11702 = vmatpush1.bf16.msra.mxu0 %v10257
    %11703 = vmatprep.subr.bf16.mxu0 %v10266
    %11704 = vmatpush1.bf16.msra.mxu0 %v10265
    %11705 = vmatprep.subr.bf16.mxu0 %v10274
    %11706 = vmatpush1.bf16.msra.mxu0 %v10273
    %11707 = vmatprep.subr.bf16.mxu0 %v10282
    %11708 = vmatpush1.bf16.msra.mxu0 %v10281
    %11709 = vmatprep.subr.bf16.mxu0 %v10290
    %11710 = vmatpush1.bf16.msra.mxu0 %v10289
    %11711 = vmatprep.mubr.bf16.mxu0 %v8066
    %11712 = vmatmul.mubr.bf16.gmra.mrb[0].mxu0 %v8065
    %v11713 = vpop.f32.mrb[0].mxu0
    %v11714 = vadd.f32 %v8614, %v11713
    %v11715 = vpop.f32.mrb[0].mxu0
    %v11716 = vadd.f32 %v8618, %v11715
    %v11717 = vpop.f32.mrb[0].mxu0
    %v11718 = vpop.f32.mrb[0].mxu0
    %11719 = vdwg.mxu0
    %11720 = vmatprep.subr.bf16.mxu0 %v10298
    %11721 = vmatpush1.bf16.msra.mxu0 %v10297
    %11722 = vmatprep.subr.bf16.mxu0 %v10306
    %11723 = vmatpush1.bf16.msra.mxu0 %v10305
    %11724 = vmatprep.subr.bf16.mxu0 %v10314
    %11725 = vmatpush1.bf16.msra.mxu0 %v10313
    %11726 = vmatprep.subr.bf16.mxu0 %v10322
    %11727 = vmatpush1.bf16.msra.mxu0 %v10321
    %11728 = vmatprep.subr.bf16.mxu0 %v10330
    %11729 = vmatpush1.bf16.msra.mxu0 %v10329
    %11730 = vmatprep.subr.bf16.mxu0 %v10338
    %11731 = vmatpush1.bf16.msra.mxu0 %v10337
    %11732 = vmatprep.subr.bf16.mxu0 %v10346
    %11733 = vmatpush1.bf16.msra.mxu0 %v10345
    %11734 = vmatprep.subr.bf16.mxu0 %v10354
    %11735 = vmatpush1.bf16.msra.mxu0 %v10353
    %11736 = vmatprep.subr.bf16.mxu0 %v10362
    %11737 = vmatpush1.bf16.msra.mxu0 %v10361
    %11738 = vmatprep.subr.bf16.mxu0 %v10370
    %11739 = vmatpush1.bf16.msra.mxu0 %v10369
    %11740 = vmatprep.subr.bf16.mxu0 %v10378
    %11741 = vmatpush1.bf16.msra.mxu0 %v10377
    %11742 = vmatprep.subr.bf16.mxu0 %v10386
    %11743 = vmatpush1.bf16.msra.mxu0 %v10385
    %11744 = vmatprep.subr.bf16.mxu0 %v10394
    %11745 = vmatpush1.bf16.msra.mxu0 %v10393
    %11746 = vmatprep.subr.bf16.mxu0 %v10402
    %11747 = vmatpush1.bf16.msra.mxu0 %v10401
    %11748 = vmatprep.subr.bf16.mxu0 %v10410
    %11749 = vmatpush1.bf16.msra.mxu0 %v10409
    %11750 = vmatprep.subr.bf16.mxu0 %v10418
    %11751 = vmatpush1.bf16.msra.mxu0 %v10417
    %11752 = vmatprep.mubr.bf16.mxu0 %v8068
    %11753 = vmatmul.mubr.bf16.gmra.mrb[0].mxu0 %v8067
    %v11754 = vpop.f32.mrb[0].mxu0
    %v11755 = vadd.f32 %v11714, %v11754
    %v11756 = vpop.f32.mrb[0].mxu0
    %v11757 = vadd.f32 %v11716, %v11756
    %v11758 = vpop.f32.mrb[0].mxu0
    %v11759 = vpop.f32.mrb[0].mxu0
    %11760 = vdwg.mxu0
    %11761 = vmatprep.subr.bf16.mxu0 %v10426
    %11762 = vmatpush1.bf16.msra.mxu0 %v10425
    %11763 = vmatprep.subr.bf16.mxu0 %v10434
    %11764 = vmatpush1.bf16.msra.mxu0 %v10433
    %11765 = vmatprep.subr.bf16.mxu0 %v10442
    %11766 = vmatpush1.bf16.msra.mxu0 %v10441
    %11767 = vmatprep.subr.bf16.mxu0 %v10450
    %11768 = vmatpush1.bf16.msra.mxu0 %v10449
    %11769 = vmatprep.subr.bf16.mxu0 %v10458
    %11770 = vmatpush1.bf16.msra.mxu0 %v10457
    %11771 = vmatprep.subr.bf16.mxu0 %v10466
    %11772 = vmatpush1.bf16.msra.mxu0 %v10465
    %11773 = vmatprep.subr.bf16.mxu0 %v10474
    %11774 = vmatpush1.bf16.msra.mxu0 %v10473
    %11775 = vmatprep.subr.bf16.mxu0 %v10482
    %11776 = vmatpush1.bf16.msra.mxu0 %v10481
    %11777 = vmatprep.subr.bf16.mxu0 %v10490
    %11778 = vmatpush1.bf16.msra.mxu0 %v10489
    %11779 = vmatprep.subr.bf16.mxu0 %v10498
    %11780 = vmatpush1.bf16.msra.mxu0 %v10497
    %11781 = vmatprep.subr.bf16.mxu0 %v10506
    %11782 = vmatpush1.bf16.msra.mxu0 %v10505
    %11783 = vmatprep.subr.bf16.mxu0 %v10514
    %11784 = vmatpush1.bf16.msra.mxu0 %v10513
    %11785 = vmatprep.subr.bf16.mxu0 %v10522
    %11786 = vmatpush1.bf16.msra.mxu0 %v10521
    %11787 = vmatprep.subr.bf16.mxu0 %v10530
    %11788 = vmatpush1.bf16.msra.mxu0 %v10529
    %11789 = vmatprep.subr.bf16.mxu0 %v10538
    %11790 = vmatpush1.bf16.msra.mxu0 %v10537
    %11791 = vmatprep.subr.bf16.mxu0 %v10546
    %11792 = vmatpush1.bf16.msra.mxu0 %v10545
    %11793 = vmatprep.mubr.bf16.mxu0 %v8070
    %11794 = vmatmul.mubr.bf16.gmra.mrb[0].mxu0 %v8069
    %v11795 = vpop.f32.mrb[0].mxu0
    %v11796 = vadd.f32 %v11755, %v11795
    %v11797 = vpop.f32.mrb[0].mxu0
    %v11798 = vadd.f32 %v11757, %v11797
    %v11799 = vpop.f32.mrb[0].mxu0
    %v11800 = vpop.f32.mrb[0].mxu0
    %11801 = vdwg.mxu0
    %11802 = vmatprep.subr.bf16.mxu0 %v10554
    %11803 = vmatpush1.bf16.msra.mxu0 %v10553
    %11804 = vmatprep.subr.bf16.mxu0 %v10562
    %11805 = vmatpush1.bf16.msra.mxu0 %v10561
    %11806 = vmatprep.subr.bf16.mxu0 %v10570
    %11807 = vmatpush1.bf16.msra.mxu0 %v10569
    %11808 = vmatprep.subr.bf16.mxu0 %v10578
    %11809 = vmatpush1.bf16.msra.mxu0 %v10577
    %11810 = vmatprep.subr.bf16.mxu0 %v10586
    %11811 = vmatpush1.bf16.msra.mxu0 %v10585
    %11812 = vmatprep.subr.bf16.mxu0 %v10594
    %11813 = vmatpush1.bf16.msra.mxu0 %v10593
    %11814 = vmatprep.subr.bf16.mxu0 %v10602
    %11815 = vmatpush1.bf16.msra.mxu0 %v10601
    %11816 = vmatprep.subr.bf16.mxu0 %v10610
    %11817 = vmatpush1.bf16.msra.mxu0 %v10609
    %11818 = vmatprep.subr.bf16.mxu0 %v10618
    %11819 = vmatpush1.bf16.msra.mxu0 %v10617
    %11820 = vmatprep.subr.bf16.mxu0 %v10626
    %11821 = vmatpush1.bf16.msra.mxu0 %v10625
    %11822 = vmatprep.subr.bf16.mxu0 %v10634
    %11823 = vmatpush1.bf16.msra.mxu0 %v10633
    %11824 = vmatprep.subr.bf16.mxu0 %v10642
    %11825 = vmatpush1.bf16.msra.mxu0 %v10641
    %11826 = vmatprep.subr.bf16.mxu0 %v10650
    %11827 = vmatpush1.bf16.msra.mxu0 %v10649
    %11828 = vmatprep.subr.bf16.mxu0 %v10658
    %11829 = vmatpush1.bf16.msra.mxu0 %v10657
    %11830 = vmatprep.subr.bf16.mxu0 %v10666
    %11831 = vmatpush1.bf16.msra.mxu0 %v10665
    %11832 = vmatprep.subr.bf16.mxu0 %v10674
    %11833 = vmatpush1.bf16.msra.mxu0 %v10673
    %11834 = vmatprep.mubr.bf16.mxu0 %v8072
    %11835 = vmatmul.mubr.bf16.gmra.mrb[0].mxu0 %v8071
    %v11836 = vpop.f32.mrb[0].mxu0
    %v11837 = vadd.f32 %v11796, %v11836
    %v11838 = vpop.f32.mrb[0].mxu0
    %v11839 = vadd.f32 %v11798, %v11838
    %v11840 = vpop.f32.mrb[0].mxu0
    %v11841 = vpop.f32.mrb[0].mxu0
    %11842 = vdwg.mxu0
    %v11843 = vmax.f32 %v11345, 0.0
    %v11844 = vmax.f32 %v11347, 0.0
    %v11845 = vmax.f32 %v11509, 0.0
    %v11846 = vmax.f32 %v11511, 0.0
    %v11847 = vmax.f32 %v11673, 0.0
    %v11848 = vmax.f32 %v11675, 0.0
    %v11849 = vmax.f32 %v11837, 0.0
    %v11850 = vmax.f32 %v11839, 0.0
    %v11851 = vpack.c.bf16 %v11843, %v11843
    %v11852 = vpack.c.bf16 %v11844, %v11844
    %v11853 = vpack.c.bf16 %v11845, %v11845
    %v11854 = vpack.c.bf16 %v11846, %v11846
    %v11855 = vpack.c.bf16 %v11847, %v11847
    %v11856 = vpack.c.bf16 %v11848, %v11848
    %v11857 = vpack.c.bf16 %v11849, %v11849
    %v11858 = vpack.c.bf16 %v11850, %v11850
    %v11859 = vld [vmem:[#allocation17] sm:$0xff]
    %v11860 = vld [vmem:[#allocation17 + $0x8] sm:$0xf]
    %v11861 = vld [vmem:[#allocation17 + $0xc] sm:$0xff]
    %v11862 = vld [vmem:[#allocation17 + $0x14] sm:$0xf]
    %v11863 = vld [vmem:[#allocation17 + $0x18] sm:$0xff]
    %v11864 = vld [vmem:[#allocation17 + $0x20] sm:$0xf]
    %v11865 = vld [vmem:[#allocation17 + $0x24] sm:$0xff]
    %v11866 = vld [vmem:[#allocation17 + $0x2c] sm:$0xf]
    %v11867 = vld [vmem:[#allocation17 + $0x30] sm:$0xff]
    %v11868 = vld [vmem:[#allocation17 + $0x38] sm:$0xf]
    %v11869 = vld [vmem:[#allocation17 + $0x3c] sm:$0xff]
    %v11870 = vld [vmem:[#allocation17 + $0x44] sm:$0xf]
    %v11871 = vld [vmem:[#allocation17 + $0x48] sm:$0xff]
    %v11872 = vld [vmem:[#allocation17 + $0x50] sm:$0xf]
    %v11873 = vld [vmem:[#allocation17 + $0x54] sm:$0xff]
    %v11874 = vld [vmem:[#allocation17 + $0x5c] sm:$0xf]
    %v11875 = vld [vmem:[#allocation17 + $0x60] sm:$0xff]
    %v11876 = vld [vmem:[#allocation17 + $0x68] sm:$0xf]
    %v11877 = vld [vmem:[#allocation17 + $0x6c] sm:$0xff]
    %v11878 = vld [vmem:[#allocation17 + $0x74] sm:$0xf]
    %v11879 = vld [vmem:[#allocation17 + $0x78] sm:$0xff]
    %v11880 = vld [vmem:[#allocation17 + $0x80] sm:$0xf]
    %v11881 = vld [vmem:[#allocation17 + $0x84] sm:$0xff]
    %v11882 = vld [vmem:[#allocation17 + $0x8c] sm:$0xf]
    %v11883 = vld [vmem:[#allocation17 + $0x90] sm:$0xff]
    %v11884 = vld [vmem:[#allocation17 + $0x98] sm:$0xf]
    %v11885 = vld [vmem:[#allocation17 + $0x9c] sm:$0xff]
    %v11886 = vld [vmem:[#allocation17 + $0xa4] sm:$0xf]
    %v11887 = vld [vmem:[#allocation17 + $0xa8] sm:$0xff]
    %v11888 = vld [vmem:[#allocation17 + $0xb0] sm:$0xf]
    %v11889 = vld [vmem:[#allocation17 + $0xb4] sm:$0xff]
    %v11890 = vld [vmem:[#allocation17 + $0xbc] sm:$0xf]
    %v11891 = vld [vmem:[#allocation17 + $0xc0] sm:$0xff]
    %v11892 = vld [vmem:[#allocation17 + $0xc8] sm:$0xf]
    %v11893 = vld [vmem:[#allocation17 + $0xcc] sm:$0xff]
    %v11894 = vld [vmem:[#allocation17 + $0xd4] sm:$0xf]
    %v11895 = vld [vmem:[#allocation17 + $0xd8] sm:$0xff]
    %v11896 = vld [vmem:[#allocation17 + $0xe0] sm:$0xf]
    %v11897 = vld [vmem:[#allocation17 + $0xe4] sm:$0xff]
    %v11898 = vld [vmem:[#allocation17 + $0xec] sm:$0xf]
    %v11899 = vld [vmem:[#allocation17 + $0xf0] sm:$0xff]
    %v11900 = vld [vmem:[#allocation17 + $0xf8] sm:$0xf]
    %v11901 = vld [vmem:[#allocation17 + $0xfc] sm:$0xff]
    %v11902 = vld [vmem:[#allocation17 + $0x104] sm:$0xf]
    %v11903 = vld [vmem:[#allocation17 + $0x108] sm:$0xff]
    %v11904 = vld [vmem:[#allocation17 + $0x110] sm:$0xf]
    %v11905 = vld [vmem:[#allocation17 + $0x114] sm:$0xff]
    %v11906 = vld [vmem:[#allocation17 + $0x11c] sm:$0xf]
    %v11907 = vld [vmem:[#allocation17 + $0x120] sm:$0xff]
    %v11908 = vld [vmem:[#allocation17 + $0x128] sm:$0xf]
    %v11909 = vld [vmem:[#allocation17 + $0x12c] sm:$0xff]
    %v11910 = vld [vmem:[#allocation17 + $0x134] sm:$0xf]
    %v11911 = vld [vmem:[#allocation17 + $0x138] sm:$0xff]
    %v11912 = vld [vmem:[#allocation17 + $0x140] sm:$0xf]
    %v11913 = vld [vmem:[#allocation17 + $0x144] sm:$0xff]
    %v11914 = vld [vmem:[#allocation17 + $0x14c] sm:$0xf]
    %v11915 = vld [vmem:[#allocation17 + $0x150] sm:$0xff]
    %v11916 = vld [vmem:[#allocation17 + $0x158] sm:$0xf]
    %v11917 = vld [vmem:[#allocation17 + $0x15c] sm:$0xff]
    %v11918 = vld [vmem:[#allocation17 + $0x164] sm:$0xf]
    %v11919 = vld [vmem:[#allocation17 + $0x168] sm:$0xff]
    %v11920 = vld [vmem:[#allocation17 + $0x170] sm:$0xf]
    %v11921 = vld [vmem:[#allocation17 + $0x174] sm:$0xff]
    %v11922 = vld [vmem:[#allocation17 + $0x17c] sm:$0xf]
    %v11923 = vld [vmem:[#allocation17 + $0x180] sm:$0xff]
    %v11924 = vld [vmem:[#allocation17 + $0x188] sm:$0xf]
    %v11925 = vld [vmem:[#allocation17 + $0x18c] sm:$0xff]
    %v11926 = vld [vmem:[#allocation17 + $0x194] sm:$0xf]
    %v11927 = vld [vmem:[#allocation17 + $0x198] sm:$0xff]
    %v11928 = vld [vmem:[#allocation17 + $0x1a0] sm:$0xf]
    %v11929 = vld [vmem:[#allocation17 + $0x1a4] sm:$0xff]
    %v11930 = vld [vmem:[#allocation17 + $0x1ac] sm:$0xf]
    %v11931 = vld [vmem:[#allocation17 + $0x1b0] sm:$0xff]
    %v11932 = vld [vmem:[#allocation17 + $0x1b8] sm:$0xf]
    %v11933 = vld [vmem:[#allocation17 + $0x1bc] sm:$0xff]
    %v11934 = vld [vmem:[#allocation17 + $0x1c4] sm:$0xf]
    %v11935 = vld [vmem:[#allocation17 + $0x1c8] sm:$0xff]
    %v11936 = vld [vmem:[#allocation17 + $0x1d0] sm:$0xf]
    %v11937 = vld [vmem:[#allocation17 + $0x1d4] sm:$0xff]
    %v11938 = vld [vmem:[#allocation17 + $0x1dc] sm:$0xf]
    %v11939 = vld [vmem:[#allocation17 + $0x1e0] sm:$0xff]
    %v11940 = vld [vmem:[#allocation17 + $0x1e8] sm:$0xf]
    %v11941 = vld [vmem:[#allocation17 + $0x1ec] sm:$0xff]
    %v11942 = vld [vmem:[#allocation17 + $0x1f4] sm:$0xf]
    %v11943 = vld [vmem:[#allocation17 + $0x1f8] sm:$0xff]
    %v11944 = vld [vmem:[#allocation17 + $0x200] sm:$0xf]
    %v11945 = vld [vmem:[#allocation17 + $0x204] sm:$0xff]
    %v11946 = vld [vmem:[#allocation17 + $0x20c] sm:$0xf]
    %v11947 = vld [vmem:[#allocation17 + $0x210] sm:$0xff]
    %v11948 = vld [vmem:[#allocation17 + $0x218] sm:$0xf]
    %v11949 = vld [vmem:[#allocation17 + $0x21c] sm:$0xff]
    %v11950 = vld [vmem:[#allocation17 + $0x224] sm:$0xf]
    %v11951 = vld [vmem:[#allocation17 + $0x228] sm:$0xff]
    %v11952 = vld [vmem:[#allocation17 + $0x230] sm:$0xf]
    %v11953 = vld [vmem:[#allocation17 + $0x234] sm:$0xff]
    %v11954 = vld [vmem:[#allocation17 + $0x23c] sm:$0xf]
    %v11955 = vld [vmem:[#allocation17 + $0x240] sm:$0xff]
    %v11956 = vld [vmem:[#allocation17 + $0x248] sm:$0xf]
    %v11957 = vld [vmem:[#allocation17 + $0x24c] sm:$0xff]
    %v11958 = vld [vmem:[#allocation17 + $0x254] sm:$0xf]
    %v11959 = vld [vmem:[#allocation17 + $0x258] sm:$0xff]
    %v11960 = vld [vmem:[#allocation17 + $0x260] sm:$0xf]
    %v11961 = vld [vmem:[#allocation17 + $0x264] sm:$0xff]
    %v11962 = vld [vmem:[#allocation17 + $0x26c] sm:$0xf]
    %v11963 = vld [vmem:[#allocation17 + $0x270] sm:$0xff]
    %v11964 = vld [vmem:[#allocation17 + $0x278] sm:$0xf]
    %v11965 = vld [vmem:[#allocation17 + $0x27c] sm:$0xff]
    %v11966 = vld [vmem:[#allocation17 + $0x284] sm:$0xf]
    %v11967 = vld [vmem:[#allocation17 + $0x288] sm:$0xff]
    %v11968 = vld [vmem:[#allocation17 + $0x290] sm:$0xf]
    %v11969 = vld [vmem:[#allocation17 + $0x294] sm:$0xff]
    %v11970 = vld [vmem:[#allocation17 + $0x29c] sm:$0xf]
    %v11971 = vld [vmem:[#allocation17 + $0x2a0] sm:$0xff]
    %v11972 = vld [vmem:[#allocation17 + $0x2a8] sm:$0xf]
    %v11973 = vld [vmem:[#allocation17 + $0x2ac] sm:$0xff]
    %v11974 = vld [vmem:[#allocation17 + $0x2b4] sm:$0xf]
    %v11975 = vld [vmem:[#allocation17 + $0x2b8] sm:$0xff]
    %v11976 = vld [vmem:[#allocation17 + $0x2c0] sm:$0xf]
    %v11977 = vld [vmem:[#allocation17 + $0x2c4] sm:$0xff]
    %v11978 = vld [vmem:[#allocation17 + $0x2cc] sm:$0xf]
    %v11979 = vld [vmem:[#allocation17 + $0x2d0] sm:$0xff]
    %v11980 = vld [vmem:[#allocation17 + $0x2d8] sm:$0xf]
    %v11981 = vld [vmem:[#allocation17 + $0x2dc] sm:$0xff]
    %v11982 = vld [vmem:[#allocation17 + $0x2e4] sm:$0xf]
    %v11983 = vld [vmem:[#allocation17 + $0x2e8] sm:$0xff]
    %v11984 = vld [vmem:[#allocation17 + $0x2f0] sm:$0xf]
    %v11985 = vld [vmem:[#allocation17 + $0x2f4] sm:$0xff]
    %v11986 = vld [vmem:[#allocation17 + $0x2fc] sm:$0xf]
    %v11987 = vld [vmem:[#allocation17 + $0x300] sm:$0xff]
    %v11988 = vld [vmem:[#allocation17 + $0x308] sm:$0xf]
    %v11989 = vld [vmem:[#allocation17 + $0x30c] sm:$0xff]
    %v11990 = vld [vmem:[#allocation17 + $0x314] sm:$0xf]
    %v11991 = vld [vmem:[#allocation17 + $0x318] sm:$0xff]
    %v11992 = vld [vmem:[#allocation17 + $0x320] sm:$0xf]
    %v11993 = vld [vmem:[#allocation17 + $0x324] sm:$0xff]
    %v11994 = vld [vmem:[#allocation17 + $0x32c] sm:$0xf]
    %v11995 = vld [vmem:[#allocation17 + $0x330] sm:$0xff]
    %v11996 = vld [vmem:[#allocation17 + $0x338] sm:$0xf]
    %v11997 = vld [vmem:[#allocation17 + $0x33c] sm:$0xff]
    %v11998 = vld [vmem:[#allocation17 + $0x344] sm:$0xf]
    %v11999 = vld [vmem:[#allocation17 + $0x348] sm:$0xff]
    %v12000 = vld [vmem:[#allocation17 + $0x350] sm:$0xf]
    %v12001 = vld [vmem:[#allocation17 + $0x354] sm:$0xff]
    %v12002 = vld [vmem:[#allocation17 + $0x35c] sm:$0xf]
    %v12003 = vld [vmem:[#allocation17 + $0x360] sm:$0xff]
    %v12004 = vld [vmem:[#allocation17 + $0x368] sm:$0xf]
    %v12005 = vld [vmem:[#allocation17 + $0x36c] sm:$0xff]
    %v12006 = vld [vmem:[#allocation17 + $0x374] sm:$0xf]
    %v12007 = vld [vmem:[#allocation17 + $0x378] sm:$0xff]
    %v12008 = vld [vmem:[#allocation17 + $0x380] sm:$0xf]
    %v12009 = vld [vmem:[#allocation17 + $0x384] sm:$0xff]
    %v12010 = vld [vmem:[#allocation17 + $0x38c] sm:$0xf]
    %v12011 = vld [vmem:[#allocation17 + $0x390] sm:$0xff]
    %v12012 = vld [vmem:[#allocation17 + $0x398] sm:$0xf]
    %v12013 = vld [vmem:[#allocation17 + $0x39c] sm:$0xff]
    %v12014 = vld [vmem:[#allocation17 + $0x3a4] sm:$0xf]
    %v12015 = vld [vmem:[#allocation17 + $0x3a8] sm:$0xff]
    %v12016 = vld [vmem:[#allocation17 + $0x3b0] sm:$0xf]
    %v12017 = vld [vmem:[#allocation17 + $0x3b4] sm:$0xff]
    %v12018 = vld [vmem:[#allocation17 + $0x3bc] sm:$0xf]
    %v12019 = vld [vmem:[#allocation17 + $0x3c0] sm:$0xff]
    %v12020 = vld [vmem:[#allocation17 + $0x3c8] sm:$0xf]
    %v12021 = vld [vmem:[#allocation17 + $0x3cc] sm:$0xff]
    %v12022 = vld [vmem:[#allocation17 + $0x3d4] sm:$0xf]
    %v12023 = vld [vmem:[#allocation17 + $0x3d8] sm:$0xff]
    %v12024 = vld [vmem:[#allocation17 + $0x3e0] sm:$0xf]
    %v12025 = vld [vmem:[#allocation17 + $0x3e4] sm:$0xff]
    %v12026 = vld [vmem:[#allocation17 + $0x3ec] sm:$0xf]
    %v12027 = vld [vmem:[#allocation17 + $0x3f0] sm:$0xff]
    %v12028 = vld [vmem:[#allocation17 + $0x3f8] sm:$0xf]
    %v12029 = vld [vmem:[#allocation17 + $0x3fc] sm:$0xff]
    %v12030 = vld [vmem:[#allocation17 + $0x404] sm:$0xf]
    %v12031 = vld [vmem:[#allocation17 + $0x408] sm:$0xff]
    %v12032 = vld [vmem:[#allocation17 + $0x410] sm:$0xf]
    %v12033 = vld [vmem:[#allocation17 + $0x414] sm:$0xff]
    %v12034 = vld [vmem:[#allocation17 + $0x41c] sm:$0xf]
    %v12035 = vld [vmem:[#allocation17 + $0x420] sm:$0xff]
    %v12036 = vld [vmem:[#allocation17 + $0x428] sm:$0xf]
    %v12037 = vld [vmem:[#allocation17 + $0x42c] sm:$0xff]
    %v12038 = vld [vmem:[#allocation17 + $0x434] sm:$0xf]
    %v12039 = vld [vmem:[#allocation17 + $0x438] sm:$0xff]
    %v12040 = vld [vmem:[#allocation17 + $0x440] sm:$0xf]
    %v12041 = vld [vmem:[#allocation17 + $0x444] sm:$0xff]
    %v12042 = vld [vmem:[#allocation17 + $0x44c] sm:$0xf]
    %v12043 = vld [vmem:[#allocation17 + $0x450] sm:$0xff]
    %v12044 = vld [vmem:[#allocation17 + $0x458] sm:$0xf]
    %v12045 = vld [vmem:[#allocation17 + $0x45c] sm:$0xff]
    %v12046 = vld [vmem:[#allocation17 + $0x464] sm:$0xf]
    %v12047 = vld [vmem:[#allocation17 + $0x468] sm:$0xff]
    %v12048 = vld [vmem:[#allocation17 + $0x470] sm:$0xf]
    %v12049 = vld [vmem:[#allocation17 + $0x474] sm:$0xff]
    %v12050 = vld [vmem:[#allocation17 + $0x47c] sm:$0xf]
    %v12051 = vld [vmem:[#allocation17 + $0x480] sm:$0xff]
    %v12052 = vld [vmem:[#allocation17 + $0x488] sm:$0xf]
    %v12053 = vld [vmem:[#allocation17 + $0x48c] sm:$0xff]
    %v12054 = vld [vmem:[#allocation17 + $0x494] sm:$0xf]
    %v12055 = vld [vmem:[#allocation17 + $0x498] sm:$0xff]
    %v12056 = vld [vmem:[#allocation17 + $0x4a0] sm:$0xf]
    %v12057 = vld [vmem:[#allocation17 + $0x4a4] sm:$0xff]
    %v12058 = vld [vmem:[#allocation17 + $0x4ac] sm:$0xf]
    %v12059 = vld [vmem:[#allocation17 + $0x4b0] sm:$0xff]
    %v12060 = vld [vmem:[#allocation17 + $0x4b8] sm:$0xf]
    %v12061 = vld [vmem:[#allocation17 + $0x4bc] sm:$0xff]
    %v12062 = vld [vmem:[#allocation17 + $0x4c4] sm:$0xf]
    %v12063 = vld [vmem:[#allocation17 + $0x4c8] sm:$0xff]
    %v12064 = vld [vmem:[#allocation17 + $0x4d0] sm:$0xf]
    %v12065 = vld [vmem:[#allocation17 + $0x4d4] sm:$0xff]
    %v12066 = vld [vmem:[#allocation17 + $0x4dc] sm:$0xf]
    %v12067 = vld [vmem:[#allocation17 + $0x4e0] sm:$0xff]
    %v12068 = vld [vmem:[#allocation17 + $0x4e8] sm:$0xf]
    %v12069 = vld [vmem:[#allocation17 + $0x4ec] sm:$0xff]
    %v12070 = vld [vmem:[#allocation17 + $0x4f4] sm:$0xf]
    %v12071 = vld [vmem:[#allocation17 + $0x4f8] sm:$0xff]
    %v12072 = vld [vmem:[#allocation17 + $0x500] sm:$0xf]
    %v12073 = vld [vmem:[#allocation17 + $0x504] sm:$0xff]
    %v12074 = vld [vmem:[#allocation17 + $0x50c] sm:$0xf]
    %v12075 = vld [vmem:[#allocation17 + $0x510] sm:$0xff]
    %v12076 = vld [vmem:[#allocation17 + $0x518] sm:$0xf]
    %v12077 = vld [vmem:[#allocation17 + $0x51c] sm:$0xff]
    %v12078 = vld [vmem:[#allocation17 + $0x524] sm:$0xf]
    %v12079 = vld [vmem:[#allocation17 + $0x528] sm:$0xff]
    %v12080 = vld [vmem:[#allocation17 + $0x530] sm:$0xf]
    %v12081 = vld [vmem:[#allocation17 + $0x534] sm:$0xff]
    %v12082 = vld [vmem:[#allocation17 + $0x53c] sm:$0xf]
    %v12083 = vld [vmem:[#allocation17 + $0x540] sm:$0xff]
    %v12084 = vld [vmem:[#allocation17 + $0x548] sm:$0xf]
    %v12085 = vld [vmem:[#allocation17 + $0x54c] sm:$0xff]
    %v12086 = vld [vmem:[#allocation17 + $0x554] sm:$0xf]
    %v12087 = vld [vmem:[#allocation17 + $0x558] sm:$0xff]
    %v12088 = vld [vmem:[#allocation17 + $0x560] sm:$0xf]
    %v12089 = vld [vmem:[#allocation17 + $0x564] sm:$0xff]
    %v12090 = vld [vmem:[#allocation17 + $0x56c] sm:$0xf]
    %v12091 = vld [vmem:[#allocation17 + $0x570] sm:$0xff]
    %v12092 = vld [vmem:[#allocation17 + $0x578] sm:$0xf]
    %v12093 = vld [vmem:[#allocation17 + $0x57c] sm:$0xff]
    %v12094 = vld [vmem:[#allocation17 + $0x584] sm:$0xf]
    %v12095 = vld [vmem:[#allocation17 + $0x588] sm:$0xff]
    %v12096 = vld [vmem:[#allocation17 + $0x590] sm:$0xf]
    %v12097 = vld [vmem:[#allocation17 + $0x594] sm:$0xff]
    %v12098 = vld [vmem:[#allocation17 + $0x59c] sm:$0xf]
    %v12099 = vld [vmem:[#allocation17 + $0x5a0] sm:$0xff]
    %v12100 = vld [vmem:[#allocation17 + $0x5a8] sm:$0xf]
    %v12101 = vld [vmem:[#allocation17 + $0x5ac] sm:$0xff]
    %v12102 = vld [vmem:[#allocation17 + $0x5b4] sm:$0xf]
    %v12103 = vld [vmem:[#allocation17 + $0x5b8] sm:$0xff]
    %v12104 = vld [vmem:[#allocation17 + $0x5c0] sm:$0xf]
    %v12105 = vld [vmem:[#allocation17 + $0x5c4] sm:$0xff]
    %v12106 = vld [vmem:[#allocation17 + $0x5cc] sm:$0xf]
    %v12107 = vld [vmem:[#allocation17 + $0x5d0] sm:$0xff]
    %v12108 = vld [vmem:[#allocation17 + $0x5d8] sm:$0xf]
    %v12109 = vld [vmem:[#allocation17 + $0x5dc] sm:$0xff]
    %v12110 = vld [vmem:[#allocation17 + $0x5e4] sm:$0xf]
    %v12111 = vld [vmem:[#allocation17 + $0x5e8] sm:$0xff]
    %v12112 = vld [vmem:[#allocation17 + $0x5f0] sm:$0xf]
    %v12113 = vld [vmem:[#allocation17 + $0x5f4] sm:$0xff]
    %v12114 = vld [vmem:[#allocation17 + $0x5fc] sm:$0xf]
    %v12115 = vld [vmem:[#allocation19] sm:$0x7]
    %v12117 = vlaneseq
    %v12118 = vshrl.u32 %v12117, 7
    %v12119 = vsub.s32 0, %v12118
    %v12120 = vrot.slane %v12115, %v12119
    %v12121 = vlaneseq
    %v12122 = vshrl.u32 %v12121, 7
    %v12123 = vsub.s32 1, %v12122
    %v12124 = vrot.slane %v12115, %v12123
    %v12125 = vlaneseq
    %v12126 = vshrl.u32 %v12125, 7
    %v12127 = vsub.s32 2, %v12126
    %v12128 = vrot.slane %v12115, %v12127
    %v12388 = vunpack.c.l.b16 %v11859
    %v12389 = vunpack.c.h.b16 %v11859
    %v12390 = vunpack.c.l.b16 %v11860
    %v12391 = vunpack.c.l.b16 %v11861
    %v12392 = vunpack.c.h.b16 %v11861
    %v12393 = vunpack.c.l.b16 %v11862
    %v12394 = vunpack.c.l.b16 %v11863
    %v12395 = vunpack.c.h.b16 %v11863
    %v12396 = vunpack.c.l.b16 %v11864
    %v12397 = vunpack.c.l.b16 %v11865
    %v12398 = vunpack.c.h.b16 %v11865
    %v12399 = vunpack.c.l.b16 %v11866
    %v12400 = vunpack.c.l.b16 %v11867
    %v12401 = vunpack.c.h.b16 %v11867
    %v12402 = vunpack.c.l.b16 %v11868
    %v12403 = vunpack.c.l.b16 %v11869
    %v12404 = vunpack.c.h.b16 %v11869
    %v12405 = vunpack.c.l.b16 %v11870
    %v12406 = vunpack.c.l.b16 %v11871
    %v12407 = vunpack.c.h.b16 %v11871
    %v12408 = vunpack.c.l.b16 %v11872
    %v12409 = vunpack.c.l.b16 %v11873
    %v12410 = vunpack.c.h.b16 %v11873
    %v12411 = vunpack.c.l.b16 %v11874
    %v12412 = vunpack.c.l.b16 %v11875
    %v12413 = vunpack.c.h.b16 %v11875
    %v12414 = vunpack.c.l.b16 %v11876
    %v12415 = vunpack.c.l.b16 %v11877
    %v12416 = vunpack.c.h.b16 %v11877
    %v12417 = vunpack.c.l.b16 %v11878
    %v12418 = vunpack.c.l.b16 %v11879
    %v12419 = vunpack.c.h.b16 %v11879
    %v12420 = vunpack.c.l.b16 %v11880
    %v12421 = vunpack.c.l.b16 %v11881
    %v12422 = vunpack.c.h.b16 %v11881
    %v12423 = vunpack.c.l.b16 %v11882
    %v12424 = vunpack.c.l.b16 %v11883
    %v12425 = vunpack.c.h.b16 %v11883
    %v12426 = vunpack.c.l.b16 %v11884
    %v12427 = vunpack.c.l.b16 %v11885
    %v12428 = vunpack.c.h.b16 %v11885
    %v12429 = vunpack.c.l.b16 %v11886
    %v12430 = vunpack.c.l.b16 %v11887
    %v12431 = vunpack.c.h.b16 %v11887
    %v12432 = vunpack.c.l.b16 %v11888
    %v12433 = vunpack.c.l.b16 %v11889
    %v12434 = vunpack.c.h.b16 %v11889
    %v12435 = vunpack.c.l.b16 %v11890
    %v12436 = vunpack.c.l.b16 %v11891
    %v12437 = vunpack.c.h.b16 %v11891
    %v12438 = vunpack.c.l.b16 %v11892
    %v12439 = vunpack.c.l.b16 %v11893
    %v12440 = vunpack.c.h.b16 %v11893
    %v12441 = vunpack.c.l.b16 %v11894
    %v12442 = vunpack.c.l.b16 %v11895
    %v12443 = vunpack.c.h.b16 %v11895
    %v12444 = vunpack.c.l.b16 %v11896
    %v12445 = vunpack.c.l.b16 %v11897
    %v12446 = vunpack.c.h.b16 %v11897
    %v12447 = vunpack.c.l.b16 %v11898
    %v12448 = vunpack.c.l.b16 %v11899
    %v12449 = vunpack.c.h.b16 %v11899
    %v12450 = vunpack.c.l.b16 %v11900
    %v12451 = vunpack.c.l.b16 %v11901
    %v12452 = vunpack.c.h.b16 %v11901
    %v12453 = vunpack.c.l.b16 %v11902
    %v12454 = vunpack.c.l.b16 %v11903
    %v12455 = vunpack.c.h.b16 %v11903
    %v12456 = vunpack.c.l.b16 %v11904
    %v12457 = vunpack.c.l.b16 %v11905
    %v12458 = vunpack.c.h.b16 %v11905
    %v12459 = vunpack.c.l.b16 %v11906
    %v12460 = vunpack.c.l.b16 %v11907
    %v12461 = vunpack.c.h.b16 %v11907
    %v12462 = vunpack.c.l.b16 %v11908
    %v12463 = vunpack.c.l.b16 %v11909
    %v12464 = vunpack.c.h.b16 %v11909
    %v12465 = vunpack.c.l.b16 %v11910
    %v12466 = vunpack.c.l.b16 %v11911
    %v12467 = vunpack.c.h.b16 %v11911
    %v12468 = vunpack.c.l.b16 %v11912
    %v12469 = vunpack.c.l.b16 %v11913
    %v12470 = vunpack.c.h.b16 %v11913
    %v12471 = vunpack.c.l.b16 %v11914
    %v12472 = vunpack.c.l.b16 %v11915
    %v12473 = vunpack.c.h.b16 %v11915
    %v12474 = vunpack.c.l.b16 %v11916
    %v12475 = vunpack.c.l.b16 %v11917
    %v12476 = vunpack.c.h.b16 %v11917
    %v12477 = vunpack.c.l.b16 %v11918
    %v12478 = vunpack.c.l.b16 %v11919
    %v12479 = vunpack.c.h.b16 %v11919
    %v12480 = vunpack.c.l.b16 %v11920
    %v12481 = vunpack.c.l.b16 %v11921
    %v12482 = vunpack.c.h.b16 %v11921
    %v12483 = vunpack.c.l.b16 %v11922
    %v12484 = vunpack.c.l.b16 %v11923
    %v12485 = vunpack.c.h.b16 %v11923
    %v12486 = vunpack.c.l.b16 %v11924
    %v12487 = vunpack.c.l.b16 %v11925
    %v12488 = vunpack.c.h.b16 %v11925
    %v12489 = vunpack.c.l.b16 %v11926
    %v12490 = vunpack.c.l.b16 %v11927
    %v12491 = vunpack.c.h.b16 %v11927
    %v12492 = vunpack.c.l.b16 %v11928
    %v12493 = vunpack.c.l.b16 %v11929
    %v12494 = vunpack.c.h.b16 %v11929
    %v12495 = vunpack.c.l.b16 %v11930
    %v12496 = vunpack.c.l.b16 %v11931
    %v12497 = vunpack.c.h.b16 %v11931
    %v12498 = vunpack.c.l.b16 %v11932
    %v12499 = vunpack.c.l.b16 %v11933
    %v12500 = vunpack.c.h.b16 %v11933
    %v12501 = vunpack.c.l.b16 %v11934
    %v12502 = vunpack.c.l.b16 %v11935
    %v12503 = vunpack.c.h.b16 %v11935
    %v12504 = vunpack.c.l.b16 %v11936
    %v12505 = vunpack.c.l.b16 %v11937
    %v12506 = vunpack.c.h.b16 %v11937
    %v12507 = vunpack.c.l.b16 %v11938
    %v12508 = vunpack.c.l.b16 %v11939
    %v12509 = vunpack.c.h.b16 %v11939
    %v12510 = vunpack.c.l.b16 %v11940
    %v12511 = vunpack.c.l.b16 %v11941
    %v12512 = vunpack.c.h.b16 %v11941
    %v12513 = vunpack.c.l.b16 %v11942
    %v12514 = vunpack.c.l.b16 %v11943
    %v12515 = vunpack.c.h.b16 %v11943
    %v12516 = vunpack.c.l.b16 %v11944
    %v12517 = vunpack.c.l.b16 %v11945
    %v12518 = vunpack.c.h.b16 %v11945
    %v12519 = vunpack.c.l.b16 %v11946
    %v12520 = vunpack.c.l.b16 %v11947
    %v12521 = vunpack.c.h.b16 %v11947
    %v12522 = vunpack.c.l.b16 %v11948
    %v12523 = vunpack.c.l.b16 %v11949
    %v12524 = vunpack.c.h.b16 %v11949
    %v12525 = vunpack.c.l.b16 %v11950
    %v12526 = vunpack.c.l.b16 %v11951
    %v12527 = vunpack.c.h.b16 %v11951
    %v12528 = vunpack.c.l.b16 %v11952
    %v12529 = vunpack.c.l.b16 %v11953
    %v12530 = vunpack.c.h.b16 %v11953
    %v12531 = vunpack.c.l.b16 %v11954
    %v12532 = vunpack.c.l.b16 %v11955
    %v12533 = vunpack.c.h.b16 %v11955
    %v12534 = vunpack.c.l.b16 %v11956
    %v12535 = vunpack.c.l.b16 %v11957
    %v12536 = vunpack.c.h.b16 %v11957
    %v12537 = vunpack.c.l.b16 %v11958
    %v12538 = vunpack.c.l.b16 %v11959
    %v12539 = vunpack.c.h.b16 %v11959
    %v12540 = vunpack.c.l.b16 %v11960
    %v12541 = vunpack.c.l.b16 %v11961
    %v12542 = vunpack.c.h.b16 %v11961
    %v12543 = vunpack.c.l.b16 %v11962
    %v12544 = vunpack.c.l.b16 %v11963
    %v12545 = vunpack.c.h.b16 %v11963
    %v12546 = vunpack.c.l.b16 %v11964
    %v12547 = vunpack.c.l.b16 %v11965
    %v12548 = vunpack.c.h.b16 %v11965
    %v12549 = vunpack.c.l.b16 %v11966
    %v12550 = vunpack.c.l.b16 %v11967
    %v12551 = vunpack.c.h.b16 %v11967
    %v12552 = vunpack.c.l.b16 %v11968
    %v12553 = vunpack.c.l.b16 %v11969
    %v12554 = vunpack.c.h.b16 %v11969
    %v12555 = vunpack.c.l.b16 %v11970
    %v12556 = vunpack.c.l.b16 %v11971
    %v12557 = vunpack.c.h.b16 %v11971
    %v12558 = vunpack.c.l.b16 %v11972
    %v12559 = vunpack.c.l.b16 %v11973
    %v12560 = vunpack.c.h.b16 %v11973
    %v12561 = vunpack.c.l.b16 %v11974
    %v12562 = vunpack.c.l.b16 %v11975
    %v12563 = vunpack.c.h.b16 %v11975
    %v12564 = vunpack.c.l.b16 %v11976
    %v12565 = vunpack.c.l.b16 %v11977
    %v12566 = vunpack.c.h.b16 %v11977
    %v12567 = vunpack.c.l.b16 %v11978
    %v12568 = vunpack.c.l.b16 %v11979
    %v12569 = vunpack.c.h.b16 %v11979
    %v12570 = vunpack.c.l.b16 %v11980
    %v12571 = vunpack.c.l.b16 %v11981
    %v12572 = vunpack.c.h.b16 %v11981
    %v12573 = vunpack.c.l.b16 %v11982
    %v12574 = vunpack.c.l.b16 %v11983
    %v12575 = vunpack.c.h.b16 %v11983
    %v12576 = vunpack.c.l.b16 %v11984
    %v12577 = vunpack.c.l.b16 %v11985
    %v12578 = vunpack.c.h.b16 %v11985
    %v12579 = vunpack.c.l.b16 %v11986
    %v12580 = vunpack.c.l.b16 %v11987
    %v12581 = vunpack.c.h.b16 %v11987
    %v12582 = vunpack.c.l.b16 %v11988
    %v12583 = vunpack.c.l.b16 %v11989
    %v12584 = vunpack.c.h.b16 %v11989
    %v12585 = vunpack.c.l.b16 %v11990
    %v12586 = vunpack.c.l.b16 %v11991
    %v12587 = vunpack.c.h.b16 %v11991
    %v12588 = vunpack.c.l.b16 %v11992
    %v12589 = vunpack.c.l.b16 %v11993
    %v12590 = vunpack.c.h.b16 %v11993
    %v12591 = vunpack.c.l.b16 %v11994
    %v12592 = vunpack.c.l.b16 %v11995
    %v12593 = vunpack.c.h.b16 %v11995
    %v12594 = vunpack.c.l.b16 %v11996
    %v12595 = vunpack.c.l.b16 %v11997
    %v12596 = vunpack.c.h.b16 %v11997
    %v12597 = vunpack.c.l.b16 %v11998
    %v12598 = vunpack.c.l.b16 %v11999
    %v12599 = vunpack.c.h.b16 %v11999
    %v12600 = vunpack.c.l.b16 %v12000
    %v12601 = vunpack.c.l.b16 %v12001
    %v12602 = vunpack.c.h.b16 %v12001
    %v12603 = vunpack.c.l.b16 %v12002
    %v12604 = vunpack.c.l.b16 %v12003
    %v12605 = vunpack.c.h.b16 %v12003
    %v12606 = vunpack.c.l.b16 %v12004
    %v12607 = vunpack.c.l.b16 %v12005
    %v12608 = vunpack.c.h.b16 %v12005
    %v12609 = vunpack.c.l.b16 %v12006
    %v12610 = vunpack.c.l.b16 %v12007
    %v12611 = vunpack.c.h.b16 %v12007
    %v12612 = vunpack.c.l.b16 %v12008
    %v12613 = vunpack.c.l.b16 %v12009
    %v12614 = vunpack.c.h.b16 %v12009
    %v12615 = vunpack.c.l.b16 %v12010
    %v12616 = vunpack.c.l.b16 %v12011
    %v12617 = vunpack.c.h.b16 %v12011
    %v12618 = vunpack.c.l.b16 %v12012
    %v12619 = vunpack.c.l.b16 %v12013
    %v12620 = vunpack.c.h.b16 %v12013
    %v12621 = vunpack.c.l.b16 %v12014
    %v12622 = vunpack.c.l.b16 %v12015
    %v12623 = vunpack.c.h.b16 %v12015
    %v12624 = vunpack.c.l.b16 %v12016
    %v12625 = vunpack.c.l.b16 %v12017
    %v12626 = vunpack.c.h.b16 %v12017
    %v12627 = vunpack.c.l.b16 %v12018
    %v12628 = vunpack.c.l.b16 %v12019
    %v12629 = vunpack.c.h.b16 %v12019
    %v12630 = vunpack.c.l.b16 %v12020
    %v12631 = vunpack.c.l.b16 %v12021
    %v12632 = vunpack.c.h.b16 %v12021
    %v12633 = vunpack.c.l.b16 %v12022
    %v12634 = vunpack.c.l.b16 %v12023
    %v12635 = vunpack.c.h.b16 %v12023
    %v12636 = vunpack.c.l.b16 %v12024
    %v12637 = vunpack.c.l.b16 %v12025
    %v12638 = vunpack.c.h.b16 %v12025
    %v12639 = vunpack.c.l.b16 %v12026
    %v12640 = vunpack.c.l.b16 %v12027
    %v12641 = vunpack.c.h.b16 %v12027
    %v12642 = vunpack.c.l.b16 %v12028
    %v12643 = vunpack.c.l.b16 %v12029
    %v12644 = vunpack.c.h.b16 %v12029
    %v12645 = vunpack.c.l.b16 %v12030
    %v12646 = vunpack.c.l.b16 %v12031
    %v12647 = vunpack.c.h.b16 %v12031
    %v12648 = vunpack.c.l.b16 %v12032
    %v12649 = vunpack.c.l.b16 %v12033
    %v12650 = vunpack.c.h.b16 %v12033
    %v12651 = vunpack.c.l.b16 %v12034
    %v12652 = vunpack.c.l.b16 %v12035
    %v12653 = vunpack.c.h.b16 %v12035
    %v12654 = vunpack.c.l.b16 %v12036
    %v12655 = vunpack.c.l.b16 %v12037
    %v12656 = vunpack.c.h.b16 %v12037
    %v12657 = vunpack.c.l.b16 %v12038
    %v12658 = vunpack.c.l.b16 %v12039
    %v12659 = vunpack.c.h.b16 %v12039
    %v12660 = vunpack.c.l.b16 %v12040
    %v12661 = vunpack.c.l.b16 %v12041
    %v12662 = vunpack.c.h.b16 %v12041
    %v12663 = vunpack.c.l.b16 %v12042
    %v12664 = vunpack.c.l.b16 %v12043
    %v12665 = vunpack.c.h.b16 %v12043
    %v12666 = vunpack.c.l.b16 %v12044
    %v12667 = vunpack.c.l.b16 %v12045
    %v12668 = vunpack.c.h.b16 %v12045
    %v12669 = vunpack.c.l.b16 %v12046
    %v12670 = vunpack.c.l.b16 %v12047
    %v12671 = vunpack.c.h.b16 %v12047
    %v12672 = vunpack.c.l.b16 %v12048
    %v12673 = vunpack.c.l.b16 %v12049
    %v12674 = vunpack.c.h.b16 %v12049
    %v12675 = vunpack.c.l.b16 %v12050
    %v12676 = vunpack.c.l.b16 %v12051
    %v12677 = vunpack.c.h.b16 %v12051
    %v12678 = vunpack.c.l.b16 %v12052
    %v12679 = vunpack.c.l.b16 %v12053
    %v12680 = vunpack.c.h.b16 %v12053
    %v12681 = vunpack.c.l.b16 %v12054
    %v12682 = vunpack.c.l.b16 %v12055
    %v12683 = vunpack.c.h.b16 %v12055
    %v12684 = vunpack.c.l.b16 %v12056
    %v12685 = vunpack.c.l.b16 %v12057
    %v12686 = vunpack.c.h.b16 %v12057
    %v12687 = vunpack.c.l.b16 %v12058
    %v12688 = vunpack.c.l.b16 %v12059
    %v12689 = vunpack.c.h.b16 %v12059
    %v12690 = vunpack.c.l.b16 %v12060
    %v12691 = vunpack.c.l.b16 %v12061
    %v12692 = vunpack.c.h.b16 %v12061
    %v12693 = vunpack.c.l.b16 %v12062
    %v12694 = vunpack.c.l.b16 %v12063
    %v12695 = vunpack.c.h.b16 %v12063
    %v12696 = vunpack.c.l.b16 %v12064
    %v12697 = vunpack.c.l.b16 %v12065
    %v12698 = vunpack.c.h.b16 %v12065
    %v12699 = vunpack.c.l.b16 %v12066
    %v12700 = vunpack.c.l.b16 %v12067
    %v12701 = vunpack.c.h.b16 %v12067
    %v12702 = vunpack.c.l.b16 %v12068
    %v12703 = vunpack.c.l.b16 %v12069
    %v12704 = vunpack.c.h.b16 %v12069
    %v12705 = vunpack.c.l.b16 %v12070
    %v12706 = vunpack.c.l.b16 %v12071
    %v12707 = vunpack.c.h.b16 %v12071
    %v12708 = vunpack.c.l.b16 %v12072
    %v12709 = vunpack.c.l.b16 %v12073
    %v12710 = vunpack.c.h.b16 %v12073
    %v12711 = vunpack.c.l.b16 %v12074
    %v12712 = vunpack.c.l.b16 %v12075
    %v12713 = vunpack.c.h.b16 %v12075
    %v12714 = vunpack.c.l.b16 %v12076
    %v12715 = vunpack.c.l.b16 %v12077
    %v12716 = vunpack.c.h.b16 %v12077
    %v12717 = vunpack.c.l.b16 %v12078
    %v12718 = vunpack.c.l.b16 %v12079
    %v12719 = vunpack.c.h.b16 %v12079
    %v12720 = vunpack.c.l.b16 %v12080
    %v12721 = vunpack.c.l.b16 %v12081
    %v12722 = vunpack.c.h.b16 %v12081
    %v12723 = vunpack.c.l.b16 %v12082
    %v12724 = vunpack.c.l.b16 %v12083
    %v12725 = vunpack.c.h.b16 %v12083
    %v12726 = vunpack.c.l.b16 %v12084
    %v12727 = vunpack.c.l.b16 %v12085
    %v12728 = vunpack.c.h.b16 %v12085
    %v12729 = vunpack.c.l.b16 %v12086
    %v12730 = vunpack.c.l.b16 %v12087
    %v12731 = vunpack.c.h.b16 %v12087
    %v12732 = vunpack.c.l.b16 %v12088
    %v12733 = vunpack.c.l.b16 %v12089
    %v12734 = vunpack.c.h.b16 %v12089
    %v12735 = vunpack.c.l.b16 %v12090
    %v12736 = vunpack.c.l.b16 %v12091
    %v12737 = vunpack.c.h.b16 %v12091
    %v12738 = vunpack.c.l.b16 %v12092
    %v12739 = vunpack.c.l.b16 %v12093
    %v12740 = vunpack.c.h.b16 %v12093
    %v12741 = vunpack.c.l.b16 %v12094
    %v12742 = vunpack.c.l.b16 %v12095
    %v12743 = vunpack.c.h.b16 %v12095
    %v12744 = vunpack.c.l.b16 %v12096
    %v12745 = vunpack.c.l.b16 %v12097
    %v12746 = vunpack.c.h.b16 %v12097
    %v12747 = vunpack.c.l.b16 %v12098
    %v12748 = vunpack.c.l.b16 %v12099
    %v12749 = vunpack.c.h.b16 %v12099
    %v12750 = vunpack.c.l.b16 %v12100
    %v12751 = vunpack.c.l.b16 %v12101
    %v12752 = vunpack.c.h.b16 %v12101
    %v12753 = vunpack.c.l.b16 %v12102
    %v12754 = vunpack.c.l.b16 %v12103
    %v12755 = vunpack.c.h.b16 %v12103
    %v12756 = vunpack.c.l.b16 %v12104
    %v12757 = vunpack.c.l.b16 %v12105
    %v12758 = vunpack.c.h.b16 %v12105
    %v12759 = vunpack.c.l.b16 %v12106
    %v12760 = vunpack.c.l.b16 %v12107
    %v12761 = vunpack.c.h.b16 %v12107
    %v12762 = vunpack.c.l.b16 %v12108
    %v12763 = vunpack.c.l.b16 %v12109
    %v12764 = vunpack.c.h.b16 %v12109
    %v12765 = vunpack.c.l.b16 %v12110
    %v12766 = vunpack.c.l.b16 %v12111
    %v12767 = vunpack.c.h.b16 %v12111
    %v12768 = vunpack.c.l.b16 %v12112
    %v12769 = vunpack.c.l.b16 %v12113
    %v12770 = vunpack.c.h.b16 %v12113
    %v12771 = vunpack.c.l.b16 %v12114
    %v12772 = vpack.c.b16 %v12391, %v12388
    %v12773 = vpack.c.b16 %v12392, %v12389
    %v12774 = vpack.c.b16 %v12393, %v12390
    %v12775 = vpack.c.b16 %v12397, %v12394
    %v12776 = vpack.c.b16 %v12398, %v12395
    %v12777 = vpack.c.b16 %v12399, %v12396
    %v12778 = vpack.c.b16 %v12403, %v12400
    %v12779 = vpack.c.b16 %v12404, %v12401
    %v12780 = vpack.c.b16 %v12405, %v12402
    %v12781 = vpack.c.b16 %v12409, %v12406
    %v12782 = vpack.c.b16 %v12410, %v12407
    %v12783 = vpack.c.b16 %v12411, %v12408
    %v12784 = vpack.c.b16 %v12415, %v12412
    %v12785 = vpack.c.b16 %v12416, %v12413
    %v12786 = vpack.c.b16 %v12417, %v12414
    %v12787 = vpack.c.b16 %v12421, %v12418
    %v12788 = vpack.c.b16 %v12422, %v12419
    %v12789 = vpack.c.b16 %v12423, %v12420
    %v12790 = vpack.c.b16 %v12427, %v12424
    %v12791 = vpack.c.b16 %v12428, %v12425
    %v12792 = vpack.c.b16 %v12429, %v12426
    %v12793 = vpack.c.b16 %v12433, %v12430
    %v12794 = vpack.c.b16 %v12434, %v12431
    %v12795 = vpack.c.b16 %v12435, %v12432
    %v12796 = vpack.c.b16 %v12439, %v12436
    %v12797 = vpack.c.b16 %v12440, %v12437
    %v12798 = vpack.c.b16 %v12441, %v12438
    %v12799 = vpack.c.b16 %v12445, %v12442
    %v12800 = vpack.c.b16 %v12446, %v12443
    %v12801 = vpack.c.b16 %v12447, %v12444
    %v12802 = vpack.c.b16 %v12451, %v12448
    %v12803 = vpack.c.b16 %v12452, %v12449
    %v12804 = vpack.c.b16 %v12453, %v12450
    %v12805 = vpack.c.b16 %v12457, %v12454
    %v12806 = vpack.c.b16 %v12458, %v12455
    %v12807 = vpack.c.b16 %v12459, %v12456
    %v12808 = vpack.c.b16 %v12463, %v12460
    %v12809 = vpack.c.b16 %v12464, %v12461
    %v12810 = vpack.c.b16 %v12465, %v12462
    %v12811 = vpack.c.b16 %v12469, %v12466
    %v12812 = vpack.c.b16 %v12470, %v12467
    %v12813 = vpack.c.b16 %v12471, %v12468
    %v12814 = vpack.c.b16 %v12475, %v12472
    %v12815 = vpack.c.b16 %v12476, %v12473
    %v12816 = vpack.c.b16 %v12477, %v12474
    %v12817 = vpack.c.b16 %v12481, %v12478
    %v12818 = vpack.c.b16 %v12482, %v12479
    %v12819 = vpack.c.b16 %v12483, %v12480
    %v12820 = vpack.c.b16 %v12487, %v12484
    %v12821 = vpack.c.b16 %v12488, %v12485
    %v12822 = vpack.c.b16 %v12489, %v12486
    %v12823 = vpack.c.b16 %v12493, %v12490
    %v12824 = vpack.c.b16 %v12494, %v12491
    %v12825 = vpack.c.b16 %v12495, %v12492
    %v12826 = vpack.c.b16 %v12499, %v12496
    %v12827 = vpack.c.b16 %v12500, %v12497
    %v12828 = vpack.c.b16 %v12501, %v12498
    %v12829 = vpack.c.b16 %v12505, %v12502
    %v12830 = vpack.c.b16 %v12506, %v12503
    %v12831 = vpack.c.b16 %v12507, %v12504
    %v12832 = vpack.c.b16 %v12511, %v12508
    %v12833 = vpack.c.b16 %v12512, %v12509
    %v12834 = vpack.c.b16 %v12513, %v12510
    %v12835 = vpack.c.b16 %v12517, %v12514
    %v12836 = vpack.c.b16 %v12518, %v12515
    %v12837 = vpack.c.b16 %v12519, %v12516
    %v12838 = vpack.c.b16 %v12523, %v12520
    %v12839 = vpack.c.b16 %v12524, %v12521
    %v12840 = vpack.c.b16 %v12525, %v12522
    %v12841 = vpack.c.b16 %v12529, %v12526
    %v12842 = vpack.c.b16 %v12530, %v12527
    %v12843 = vpack.c.b16 %v12531, %v12528
    %v12844 = vpack.c.b16 %v12535, %v12532
    %v12845 = vpack.c.b16 %v12536, %v12533
    %v12846 = vpack.c.b16 %v12537, %v12534
    %v12847 = vpack.c.b16 %v12541, %v12538
    %v12848 = vpack.c.b16 %v12542, %v12539
    %v12849 = vpack.c.b16 %v12543, %v12540
    %v12850 = vpack.c.b16 %v12547, %v12544
    %v12851 = vpack.c.b16 %v12548, %v12545
    %v12852 = vpack.c.b16 %v12549, %v12546
    %v12853 = vpack.c.b16 %v12553, %v12550
    %v12854 = vpack.c.b16 %v12554, %v12551
    %v12855 = vpack.c.b16 %v12555, %v12552
    %v12856 = vpack.c.b16 %v12559, %v12556
    %v12857 = vpack.c.b16 %v12560, %v12557
    %v12858 = vpack.c.b16 %v12561, %v12558
    %v12859 = vpack.c.b16 %v12565, %v12562
    %v12860 = vpack.c.b16 %v12566, %v12563
    %v12861 = vpack.c.b16 %v12567, %v12564
    %v12862 = vpack.c.b16 %v12571, %v12568
    %v12863 = vpack.c.b16 %v12572, %v12569
    %v12864 = vpack.c.b16 %v12573, %v12570
    %v12865 = vpack.c.b16 %v12577, %v12574
    %v12866 = vpack.c.b16 %v12578, %v12575
    %v12867 = vpack.c.b16 %v12579, %v12576
    %v12868 = vpack.c.b16 %v12583, %v12580
    %v12869 = vpack.c.b16 %v12584, %v12581
    %v12870 = vpack.c.b16 %v12585, %v12582
    %v12871 = vpack.c.b16 %v12589, %v12586
    %v12872 = vpack.c.b16 %v12590, %v12587
    %v12873 = vpack.c.b16 %v12591, %v12588
    %v12874 = vpack.c.b16 %v12595, %v12592
    %v12875 = vpack.c.b16 %v12596, %v12593
    %v12876 = vpack.c.b16 %v12597, %v12594
    %v12877 = vpack.c.b16 %v12601, %v12598
    %v12878 = vpack.c.b16 %v12602, %v12599
    %v12879 = vpack.c.b16 %v12603, %v12600
    %v12880 = vpack.c.b16 %v12607, %v12604
    %v12881 = vpack.c.b16 %v12608, %v12605
    %v12882 = vpack.c.b16 %v12609, %v12606
    %v12883 = vpack.c.b16 %v12613, %v12610
    %v12884 = vpack.c.b16 %v12614, %v12611
    %v12885 = vpack.c.b16 %v12615, %v12612
    %v12886 = vpack.c.b16 %v12619, %v12616
    %v12887 = vpack.c.b16 %v12620, %v12617
    %v12888 = vpack.c.b16 %v12621, %v12618
    %v12889 = vpack.c.b16 %v12625, %v12622
    %v12890 = vpack.c.b16 %v12626, %v12623
    %v12891 = vpack.c.b16 %v12627, %v12624
    %v12892 = vpack.c.b16 %v12631, %v12628
    %v12893 = vpack.c.b16 %v12632, %v12629
    %v12894 = vpack.c.b16 %v12633, %v12630
    %v12895 = vpack.c.b16 %v12637, %v12634
    %v12896 = vpack.c.b16 %v12638, %v12635
    %v12897 = vpack.c.b16 %v12639, %v12636
    %v12898 = vpack.c.b16 %v12643, %v12640
    %v12899 = vpack.c.b16 %v12644, %v12641
    %v12900 = vpack.c.b16 %v12645, %v12642
    %v12901 = vpack.c.b16 %v12649, %v12646
    %v12902 = vpack.c.b16 %v12650, %v12647
    %v12903 = vpack.c.b16 %v12651, %v12648
    %v12904 = vpack.c.b16 %v12655, %v12652
    %v12905 = vpack.c.b16 %v12656, %v12653
    %v12906 = vpack.c.b16 %v12657, %v12654
    %v12907 = vpack.c.b16 %v12661, %v12658
    %v12908 = vpack.c.b16 %v12662, %v12659
    %v12909 = vpack.c.b16 %v12663, %v12660
    %v12910 = vpack.c.b16 %v12667, %v12664
    %v12911 = vpack.c.b16 %v12668, %v12665
    %v12912 = vpack.c.b16 %v12669, %v12666
    %v12913 = vpack.c.b16 %v12673, %v12670
    %v12914 = vpack.c.b16 %v12674, %v12671
    %v12915 = vpack.c.b16 %v12675, %v12672
    %v12916 = vpack.c.b16 %v12679, %v12676
    %v12917 = vpack.c.b16 %v12680, %v12677
    %v12918 = vpack.c.b16 %v12681, %v12678
    %v12919 = vpack.c.b16 %v12685, %v12682
    %v12920 = vpack.c.b16 %v12686, %v12683
    %v12921 = vpack.c.b16 %v12687, %v12684
    %v12922 = vpack.c.b16 %v12691, %v12688
    %v12923 = vpack.c.b16 %v12692, %v12689
    %v12924 = vpack.c.b16 %v12693, %v12690
    %v12925 = vpack.c.b16 %v12697, %v12694
    %v12926 = vpack.c.b16 %v12698, %v12695
    %v12927 = vpack.c.b16 %v12699, %v12696
    %v12928 = vpack.c.b16 %v12703, %v12700
    %v12929 = vpack.c.b16 %v12704, %v12701
    %v12930 = vpack.c.b16 %v12705, %v12702
    %v12931 = vpack.c.b16 %v12709, %v12706
    %v12932 = vpack.c.b16 %v12710, %v12707
    %v12933 = vpack.c.b16 %v12711, %v12708
    %v12934 = vpack.c.b16 %v12715, %v12712
    %v12935 = vpack.c.b16 %v12716, %v12713
    %v12936 = vpack.c.b16 %v12717, %v12714
    %v12937 = vpack.c.b16 %v12721, %v12718
    %v12938 = vpack.c.b16 %v12722, %v12719
    %v12939 = vpack.c.b16 %v12723, %v12720
    %v12940 = vpack.c.b16 %v12727, %v12724
    %v12941 = vpack.c.b16 %v12728, %v12725
    %v12942 = vpack.c.b16 %v12729, %v12726
    %v12943 = vpack.c.b16 %v12733, %v12730
    %v12944 = vpack.c.b16 %v12734, %v12731
    %v12945 = vpack.c.b16 %v12735, %v12732
    %v12946 = vpack.c.b16 %v12739, %v12736
    %v12947 = vpack.c.b16 %v12740, %v12737
    %v12948 = vpack.c.b16 %v12741, %v12738
    %v12949 = vpack.c.b16 %v12745, %v12742
    %v12950 = vpack.c.b16 %v12746, %v12743
    %v12951 = vpack.c.b16 %v12747, %v12744
    %v12952 = vpack.c.b16 %v12751, %v12748
    %v12953 = vpack.c.b16 %v12752, %v12749
    %v12954 = vpack.c.b16 %v12753, %v12750
    %v12955 = vpack.c.b16 %v12757, %v12754
    %v12956 = vpack.c.b16 %v12758, %v12755
    %v12957 = vpack.c.b16 %v12759, %v12756
    %v12958 = vpack.c.b16 %v12763, %v12760
    %v12959 = vpack.c.b16 %v12764, %v12761
    %v12960 = vpack.c.b16 %v12765, %v12762
    %v12961 = vpack.c.b16 %v12769, %v12766
    %v12962 = vpack.c.b16 %v12770, %v12767
    %v12963 = vpack.c.b16 %v12771, %v12768
    %13156 = vmatprep.subr.bf16.mxu0 %v12773
    %13157 = vmatpush1.bf16.msra.mxu0 %v12772
    %13158 = vmatprep.subr.bf16.mxu0 %v12776
    %13159 = vmatpush1.bf16.msra.mxu0 %v12775
    %13160 = vmatprep.subr.bf16.mxu0 %v12779
    %13161 = vmatpush1.bf16.msra.mxu0 %v12778
    %13162 = vmatprep.subr.bf16.mxu0 %v12782
    %13163 = vmatpush1.bf16.msra.mxu0 %v12781
    %13164 = vmatprep.subr.bf16.mxu0 %v12785
    %13165 = vmatpush1.bf16.msra.mxu0 %v12784
    %13166 = vmatprep.subr.bf16.mxu0 %v12788
    %13167 = vmatpush1.bf16.msra.mxu0 %v12787
    %13168 = vmatprep.subr.bf16.mxu0 %v12791
    %13169 = vmatpush1.bf16.msra.mxu0 %v12790
    %13170 = vmatprep.subr.bf16.mxu0 %v12794
    %13171 = vmatpush1.bf16.msra.mxu0 %v12793
    %13172 = vmatprep.subr.bf16.mxu0 %v12797
    %13173 = vmatpush1.bf16.msra.mxu0 %v12796
    %13174 = vmatprep.subr.bf16.mxu0 %v12800
    %13175 = vmatpush1.bf16.msra.mxu0 %v12799
    %13176 = vmatprep.subr.bf16.mxu0 %v12803
    %13177 = vmatpush1.bf16.msra.mxu0 %v12802
    %13178 = vmatprep.subr.bf16.mxu0 %v12806
    %13179 = vmatpush1.bf16.msra.mxu0 %v12805
    %13180 = vmatprep.subr.bf16.mxu0 %v12809
    %13181 = vmatpush1.bf16.msra.mxu0 %v12808
    %13182 = vmatprep.subr.bf16.mxu0 %v12812
    %13183 = vmatpush1.bf16.msra.mxu0 %v12811
    %13184 = vmatprep.subr.bf16.mxu0 %v12815
    %13185 = vmatpush1.bf16.msra.mxu0 %v12814
    %13186 = vmatprep.subr.bf16.mxu0 %v12818
    %13187 = vmatpush1.bf16.msra.mxu0 %v12817
    %13188 = vmatprep.mubr.bf16.mxu0 %v11852
    %13189 = vmatmul.mubr.bf16.gmra.mrb[0].mxu0 %v11851
    %v13190 = vpop.f32.mrb[0].mxu0
    %v13191 = vadd.f32 %v12120, %v13190
    %v13192 = vpop.f32.mrb[0].mxu0
    %v13193 = vadd.f32 %v12124, %v13192
    %v13194 = vpop.f32.mrb[0].mxu0
    %v13195 = vpop.f32.mrb[0].mxu0
    %13196 = vdwg.mxu0
    %13197 = vmatprep.subr.bf16.mxu0 %v12821
    %13198 = vmatpush1.bf16.msra.mxu0 %v12820
    %13199 = vmatprep.subr.bf16.mxu0 %v12824
    %13200 = vmatpush1.bf16.msra.mxu0 %v12823
    %13201 = vmatprep.subr.bf16.mxu0 %v12827
    %13202 = vmatpush1.bf16.msra.mxu0 %v12826
    %13203 = vmatprep.subr.bf16.mxu0 %v12830
    %13204 = vmatpush1.bf16.msra.mxu0 %v12829
    %13205 = vmatprep.subr.bf16.mxu0 %v12833
    %13206 = vmatpush1.bf16.msra.mxu0 %v12832
    %13207 = vmatprep.subr.bf16.mxu0 %v12836
    %13208 = vmatpush1.bf16.msra.mxu0 %v12835
    %13209 = vmatprep.subr.bf16.mxu0 %v12839
    %13210 = vmatpush1.bf16.msra.mxu0 %v12838
    %13211 = vmatprep.subr.bf16.mxu0 %v12842
    %13212 = vmatpush1.bf16.msra.mxu0 %v12841
    %13213 = vmatprep.subr.bf16.mxu0 %v12845
    %13214 = vmatpush1.bf16.msra.mxu0 %v12844
    %13215 = vmatprep.subr.bf16.mxu0 %v12848
    %13216 = vmatpush1.bf16.msra.mxu0 %v12847
    %13217 = vmatprep.subr.bf16.mxu0 %v12851
    %13218 = vmatpush1.bf16.msra.mxu0 %v12850
    %13219 = vmatprep.subr.bf16.mxu0 %v12854
    %13220 = vmatpush1.bf16.msra.mxu0 %v12853
    %13221 = vmatprep.subr.bf16.mxu0 %v12857
    %13222 = vmatpush1.bf16.msra.mxu0 %v12856
    %13223 = vmatprep.subr.bf16.mxu0 %v12860
    %13224 = vmatpush1.bf16.msra.mxu0 %v12859
    %13225 = vmatprep.subr.bf16.mxu0 %v12863
    %13226 = vmatpush1.bf16.msra.mxu0 %v12862
    %13227 = vmatprep.subr.bf16.mxu0 %v12866
    %13228 = vmatpush1.bf16.msra.mxu0 %v12865
    %13229 = vmatprep.mubr.bf16.mxu0 %v11854
    %13230 = vmatmul.mubr.bf16.gmra.mrb[0].mxu0 %v11853
    %v13231 = vpop.f32.mrb[0].mxu0
    %v13232 = vadd.f32 %v13191, %v13231
    %v13233 = vpop.f32.mrb[0].mxu0
    %v13234 = vadd.f32 %v13193, %v13233
    %v13235 = vpop.f32.mrb[0].mxu0
    %v13236 = vpop.f32.mrb[0].mxu0
    %13237 = vdwg.mxu0
    %13238 = vmatprep.subr.bf16.mxu0 %v12869
    %13239 = vmatpush1.bf16.msra.mxu0 %v12868
    %13240 = vmatprep.subr.bf16.mxu0 %v12872
    %13241 = vmatpush1.bf16.msra.mxu0 %v12871
    %13242 = vmatprep.subr.bf16.mxu0 %v12875
    %13243 = vmatpush1.bf16.msra.mxu0 %v12874
    %13244 = vmatprep.subr.bf16.mxu0 %v12878
    %13245 = vmatpush1.bf16.msra.mxu0 %v12877
    %13246 = vmatprep.subr.bf16.mxu0 %v12881
    %13247 = vmatpush1.bf16.msra.mxu0 %v12880
    %13248 = vmatprep.subr.bf16.mxu0 %v12884
    %13249 = vmatpush1.bf16.msra.mxu0 %v12883
    %13250 = vmatprep.subr.bf16.mxu0 %v12887
    %13251 = vmatpush1.bf16.msra.mxu0 %v12886
    %13252 = vmatprep.subr.bf16.mxu0 %v12890
    %13253 = vmatpush1.bf16.msra.mxu0 %v12889
    %13254 = vmatprep.subr.bf16.mxu0 %v12893
    %13255 = vmatpush1.bf16.msra.mxu0 %v12892
    %13256 = vmatprep.subr.bf16.mxu0 %v12896
    %13257 = vmatpush1.bf16.msra.mxu0 %v12895
    %13258 = vmatprep.subr.bf16.mxu0 %v12899
    %13259 = vmatpush1.bf16.msra.mxu0 %v12898
    %13260 = vmatprep.subr.bf16.mxu0 %v12902
    %13261 = vmatpush1.bf16.msra.mxu0 %v12901
    %13262 = vmatprep.subr.bf16.mxu0 %v12905
    %13263 = vmatpush1.bf16.msra.mxu0 %v12904
    %13264 = vmatprep.subr.bf16.mxu0 %v12908
    %13265 = vmatpush1.bf16.msra.mxu0 %v12907
    %13266 = vmatprep.subr.bf16.mxu0 %v12911
    %13267 = vmatpush1.bf16.msra.mxu0 %v12910
    %13268 = vmatprep.subr.bf16.mxu0 %v12914
    %13269 = vmatpush1.bf16.msra.mxu0 %v12913
    %13270 = vmatprep.mubr.bf16.mxu0 %v11856
    %13271 = vmatmul.mubr.bf16.gmra.mrb[0].mxu0 %v11855
    %v13272 = vpop.f32.mrb[0].mxu0
    %v13273 = vadd.f32 %v13232, %v13272
    %v13274 = vpop.f32.mrb[0].mxu0
    %v13275 = vadd.f32 %v13234, %v13274
    %v13276 = vpop.f32.mrb[0].mxu0
    %v13277 = vpop.f32.mrb[0].mxu0
    %13278 = vdwg.mxu0
    %13279 = vmatprep.subr.bf16.mxu0 %v12917
    %13280 = vmatpush1.bf16.msra.mxu0 %v12916
    %13281 = vmatprep.subr.bf16.mxu0 %v12920
    %13282 = vmatpush1.bf16.msra.mxu0 %v12919
    %13283 = vmatprep.subr.bf16.mxu0 %v12923
    %13284 = vmatpush1.bf16.msra.mxu0 %v12922
    %13285 = vmatprep.subr.bf16.mxu0 %v12926
    %13286 = vmatpush1.bf16.msra.mxu0 %v12925
    %13287 = vmatprep.subr.bf16.mxu0 %v12929
    %13288 = vmatpush1.bf16.msra.mxu0 %v12928
    %13289 = vmatprep.subr.bf16.mxu0 %v12932
    %13290 = vmatpush1.bf16.msra.mxu0 %v12931
    %13291 = vmatprep.subr.bf16.mxu0 %v12935
    %13292 = vmatpush1.bf16.msra.mxu0 %v12934
    %13293 = vmatprep.subr.bf16.mxu0 %v12938
    %13294 = vmatpush1.bf16.msra.mxu0 %v12937
    %13295 = vmatprep.subr.bf16.mxu0 %v12941
    %13296 = vmatpush1.bf16.msra.mxu0 %v12940
    %13297 = vmatprep.subr.bf16.mxu0 %v12944
    %13298 = vmatpush1.bf16.msra.mxu0 %v12943
    %13299 = vmatprep.subr.bf16.mxu0 %v12947
    %13300 = vmatpush1.bf16.msra.mxu0 %v12946
    %13301 = vmatprep.subr.bf16.mxu0 %v12950
    %13302 = vmatpush1.bf16.msra.mxu0 %v12949
    %13303 = vmatprep.subr.bf16.mxu0 %v12953
    %13304 = vmatpush1.bf16.msra.mxu0 %v12952
    %13305 = vmatprep.subr.bf16.mxu0 %v12956
    %13306 = vmatpush1.bf16.msra.mxu0 %v12955
    %13307 = vmatprep.subr.bf16.mxu0 %v12959
    %13308 = vmatpush1.bf16.msra.mxu0 %v12958
    %13309 = vmatprep.subr.bf16.mxu0 %v12962
    %13310 = vmatpush1.bf16.msra.mxu0 %v12961
    %13311 = vmatprep.mubr.bf16.mxu0 %v11858
    %13312 = vmatmul.mubr.bf16.gmra.mrb[0].mxu0 %v11857
    %v13313 = vpop.f32.mrb[0].mxu0
    %v13314 = vadd.f32 %v13273, %v13313
    %v13315 = vpop.f32.mrb[0].mxu0
    %v13316 = vadd.f32 %v13275, %v13315
    %v13317 = vpop.f32.mrb[0].mxu0
    %v13318 = vpop.f32.mrb[0].mxu0
    %13319 = vdwg.mxu0
    %13320 = vmatprep.subr.bf16.mxu0 0
    %13321 = vmatpush1.bf16.msra.mxu0 %v12774
    %13322 = vmatprep.subr.bf16.mxu0 0
    %13323 = vmatpush1.bf16.msra.mxu0 %v12777
    %13324 = vmatprep.subr.bf16.mxu0 0
    %13325 = vmatpush1.bf16.msra.mxu0 %v12780
    %13326 = vmatprep.subr.bf16.mxu0 0
    %13327 = vmatpush1.bf16.msra.mxu0 %v12783
    %13328 = vmatprep.subr.bf16.mxu0 0
    %13329 = vmatpush1.bf16.msra.mxu0 %v12786
    %13330 = vmatprep.subr.bf16.mxu0 0
    %13331 = vmatpush1.bf16.msra.mxu0 %v12789
    %13332 = vmatprep.subr.bf16.mxu0 0
    %13333 = vmatpush1.bf16.msra.mxu0 %v12792
    %13334 = vmatprep.subr.bf16.mxu0 0
    %13335 = vmatpush1.bf16.msra.mxu0 %v12795
    %13336 = vmatprep.subr.bf16.mxu0 0
    %13337 = vmatpush1.bf16.msra.mxu0 %v12798
    %13338 = vmatprep.subr.bf16.mxu0 0
    %13339 = vmatpush1.bf16.msra.mxu0 %v12801
    %13340 = vmatprep.subr.bf16.mxu0 0
    %13341 = vmatpush1.bf16.msra.mxu0 %v12804
    %13342 = vmatprep.subr.bf16.mxu0 0
    %13343 = vmatpush1.bf16.msra.mxu0 %v12807
    %13344 = vmatprep.subr.bf16.mxu0 0
    %13345 = vmatpush1.bf16.msra.mxu0 %v12810
    %13346 = vmatprep.subr.bf16.mxu0 0
    %13347 = vmatpush1.bf16.msra.mxu0 %v12813
    %13348 = vmatprep.subr.bf16.mxu0 0
    %13349 = vmatpush1.bf16.msra.mxu0 %v12816
    %13350 = vmatprep.subr.bf16.mxu0 0
    %13351 = vmatpush1.bf16.msra.mxu0 %v12819
    %13352 = vmatprep.mubr.bf16.mxu0 %v11852
    %13353 = vmatmul.mubr.bf16.gmra.mrb[0].mxu0 %v11851
    %v13354 = vpop.f32.mrb[0].mxu0
    %v13355 = vadd.f32 %v12128, %v13354
    %v13356 = vpop.f32.mrb[0].mxu0
    %v13357 = vpop.f32.mrb[0].mxu0
    %v13358 = vpop.f32.mrb[0].mxu0
    %13359 = vdwg.mxu0
    %13360 = vmatprep.subr.bf16.mxu0 0
    %13361 = vmatpush1.bf16.msra.mxu0 %v12822
    %13362 = vmatprep.subr.bf16.mxu0 0
    %13363 = vmatpush1.bf16.msra.mxu0 %v12825
    %13364 = vmatprep.subr.bf16.mxu0 0
    %13365 = vmatpush1.bf16.msra.mxu0 %v12828
    %13366 = vmatprep.subr.bf16.mxu0 0
    %13367 = vmatpush1.bf16.msra.mxu0 %v12831
    %13368 = vmatprep.subr.bf16.mxu0 0
    %13369 = vmatpush1.bf16.msra.mxu0 %v12834
    %13370 = vmatprep.subr.bf16.mxu0 0
    %13371 = vmatpush1.bf16.msra.mxu0 %v12837
    %13372 = vmatprep.subr.bf16.mxu0 0
    %13373 = vmatpush1.bf16.msra.mxu0 %v12840
    %13374 = vmatprep.subr.bf16.mxu0 0
    %13375 = vmatpush1.bf16.msra.mxu0 %v12843
    %13376 = vmatprep.subr.bf16.mxu0 0
    %13377 = vmatpush1.bf16.msra.mxu0 %v12846
    %13378 = vmatprep.subr.bf16.mxu0 0
    %13379 = vmatpush1.bf16.msra.mxu0 %v12849
    %13380 = vmatprep.subr.bf16.mxu0 0
    %13381 = vmatpush1.bf16.msra.mxu0 %v12852
    %13382 = vmatprep.subr.bf16.mxu0 0
    %13383 = vmatpush1.bf16.msra.mxu0 %v12855
    %13384 = vmatprep.subr.bf16.mxu0 0
    %13385 = vmatpush1.bf16.msra.mxu0 %v12858
    %13386 = vmatprep.subr.bf16.mxu0 0
    %13387 = vmatpush1.bf16.msra.mxu0 %v12861
    %13388 = vmatprep.subr.bf16.mxu0 0
    %13389 = vmatpush1.bf16.msra.mxu0 %v12864
    %13390 = vmatprep.subr.bf16.mxu0 0
    %13391 = vmatpush1.bf16.msra.mxu0 %v12867
    %13392 = vmatprep.mubr.bf16.mxu0 %v11854
    %13393 = vmatmul.mubr.bf16.gmra.mrb[0].mxu0 %v11853
    %v13394 = vpop.f32.mrb[0].mxu0
    %v13395 = vadd.f32 %v13355, %v13394
    %v13396 = vpop.f32.mrb[0].mxu0
    %v13397 = vpop.f32.mrb[0].mxu0
    %v13398 = vpop.f32.mrb[0].mxu0
    %13399 = vdwg.mxu0
    %13400 = vmatprep.subr.bf16.mxu0 0
    %13401 = vmatpush1.bf16.msra.mxu0 %v12870
    %13402 = vmatprep.subr.bf16.mxu0 0
    %13403 = vmatpush1.bf16.msra.mxu0 %v12873
    %13404 = vmatprep.subr.bf16.mxu0 0
    %13405 = vmatpush1.bf16.msra.mxu0 %v12876
    %13406 = vmatprep.subr.bf16.mxu0 0
    %13407 = vmatpush1.bf16.msra.mxu0 %v12879
    %13408 = vmatprep.subr.bf16.mxu0 0
    %13409 = vmatpush1.bf16.msra.mxu0 %v12882
    %13410 = vmatprep.subr.bf16.mxu0 0
    %13411 = vmatpush1.bf16.msra.mxu0 %v12885
    %13412 = vmatprep.subr.bf16.mxu0 0
    %13413 = vmatpush1.bf16.msra.mxu0 %v12888
    %13414 = vmatprep.subr.bf16.mxu0 0
    %13415 = vmatpush1.bf16.msra.mxu0 %v12891
    %13416 = vmatprep.subr.bf16.mxu0 0
    %13417 = vmatpush1.bf16.msra.mxu0 %v12894
    %13418 = vmatprep.subr.bf16.mxu0 0
    %13419 = vmatpush1.bf16.msra.mxu0 %v12897
    %13420 = vmatprep.subr.bf16.mxu0 0
    %13421 = vmatpush1.bf16.msra.mxu0 %v12900
    %13422 = vmatprep.subr.bf16.mxu0 0
    %13423 = vmatpush1.bf16.msra.mxu0 %v12903
    %13424 = vmatprep.subr.bf16.mxu0 0
    %13425 = vmatpush1.bf16.msra.mxu0 %v12906
    %13426 = vmatprep.subr.bf16.mxu0 0
    %13427 = vmatpush1.bf16.msra.mxu0 %v12909
    %13428 = vmatprep.subr.bf16.mxu0 0
    %13429 = vmatpush1.bf16.msra.mxu0 %v12912
    %13430 = vmatprep.subr.bf16.mxu0 0
    %13431 = vmatpush1.bf16.msra.mxu0 %v12915
    %13432 = vmatprep.mubr.bf16.mxu0 %v11856
    %13433 = vmatmul.mubr.bf16.gmra.mrb[0].mxu0 %v11855
    %v13434 = vpop.f32.mrb[0].mxu0
    %v13435 = vadd.f32 %v13395, %v13434
    %v13436 = vpop.f32.mrb[0].mxu0
    %v13437 = vpop.f32.mrb[0].mxu0
    %v13438 = vpop.f32.mrb[0].mxu0
    %13439 = vdwg.mxu0
    %13440 = vmatprep.subr.bf16.mxu0 0
    %13441 = vmatpush1.bf16.msra.mxu0 %v12918
    %13442 = vmatprep.subr.bf16.mxu0 0
    %13443 = vmatpush1.bf16.msra.mxu0 %v12921
    %13444 = vmatprep.subr.bf16.mxu0 0
    %13445 = vmatpush1.bf16.msra.mxu0 %v12924
    %13446 = vmatprep.subr.bf16.mxu0 0
    %13447 = vmatpush1.bf16.msra.mxu0 %v12927
    %13448 = vmatprep.subr.bf16.mxu0 0
    %13449 = vmatpush1.bf16.msra.mxu0 %v12930
    %13450 = vmatprep.subr.bf16.mxu0 0
    %13451 = vmatpush1.bf16.msra.mxu0 %v12933
    %13452 = vmatprep.subr.bf16.mxu0 0
    %13453 = vmatpush1.bf16.msra.mxu0 %v12936
    %13454 = vmatprep.subr.bf16.mxu0 0
    %13455 = vmatpush1.bf16.msra.mxu0 %v12939
    %13456 = vmatprep.subr.bf16.mxu0 0
    %13457 = vmatpush1.bf16.msra.mxu0 %v12942
    %13458 = vmatprep.subr.bf16.mxu0 0
    %13459 = vmatpush1.bf16.msra.mxu0 %v12945
    %13460 = vmatprep.subr.bf16.mxu0 0
    %13461 = vmatpush1.bf16.msra.mxu0 %v12948
    %13462 = vmatprep.subr.bf16.mxu0 0
    %13463 = vmatpush1.bf16.msra.mxu0 %v12951
    %13464 = vmatprep.subr.bf16.mxu0 0
    %13465 = vmatpush1.bf16.msra.mxu0 %v12954
    %13466 = vmatprep.subr.bf16.mxu0 0
    %13467 = vmatpush1.bf16.msra.mxu0 %v12957
    %13468 = vmatprep.subr.bf16.mxu0 0
    %13469 = vmatpush1.bf16.msra.mxu0 %v12960
    %13470 = vmatprep.subr.bf16.mxu0 0
    %13471 = vmatpush1.bf16.msra.mxu0 %v12963
    %13472 = vmatprep.mubr.bf16.mxu0 %v11858
    %13473 = vmatmul.mubr.bf16.gmra.mrb[0].mxu0 %v11857
    %v13474 = vpop.f32.mrb[0].mxu0
    %v13475 = vadd.f32 %v13435, %v13474
    %v13476 = vpop.f32.mrb[0].mxu0
    %v13477 = vpop.f32.mrb[0].mxu0
    %v13478 = vpop.f32.mrb[0].mxu0
    %13479 = vdwg.mxu0
    %v13480 = vtanh.pop %v13314
    %v13481 = vtanh.pop %v13316
    %v13482 = vtanh.pop %v13475
    %13483 = vst [vmem:[#allocation20] sm:$0xff] %v13480
    %13484 = vst [vmem:[#allocation20 + $0x8] sm:$0xff] %v13481
    %13485 = vst [vmem:[#allocation20 + $0x10] sm:$0xff] %v13482
    // Predicated region
    $region90: #{tpu_custom_call.1} parent=1 // pred_check
      _
    $region91: #{tpu_custom_call.1} parent=1 // pred_check_branch
      %13487 = sbr.rel (0) target = $region93
    $region92: #{tpu_custom_call.1} parent=1 // pred_region
      %s13489 = ssub.s32 384, 384
      %13490 = vsyncadd [#allocation4], %s13489
      %s13492 = sshll.u32 [#allocation20], 4
      %s13493 = int_to_ptr.vmem [resolvable:$true] %s13492
      %13495 = dma.vmem_to_hbm [thread:$0]  %s13493, 384, %s11, [#allocation4]
    $region93: #{tpu_custom_call.1} parent=1 // pred_fallthru
      _
    // Predicated region
    $region94: #{tpu_custom_call.1} parent=1 // pred_check
      _
    $region95: #{tpu_custom_call.1} parent=1 // pred_check_branch
      %13497 = sbr.rel (0) target = $region97
    $region96: #{tpu_custom_call.1} parent=1 // pred_region
      %13498 = dma.done [#allocation4], 384
    $region97: #{tpu_custom_call.1} parent=1 // pred_fallthru
      _
    %13499 = vsyncpa [#allocation3], 1
    %13500 = vsyncpa [#allocation6], 1
    %13501 = vsyncpa [#allocation9], 1
    %13502 = vsyncpa [#allocation12], 1
    %13503 = vsyncpa [#allocation15], 1
    %13504 = vsyncpa [#allocation18], 1
    %13505 = vsyncpa [#allocation4], 1

</llo_original>
